<compile_context>
chip_gen: v7x
topology: tpu7x:2x2x1
jax: 0.10.0
libtpu: 0.0.40
codegen_flags: <defaults>
</compile_context>

<pallas_src>
import functools
import math

import jax
import jax.numpy as jnp
from jax.experimental import pallas as pl
from jax.experimental.pallas import tpu as pltpu


def _round_up(x, m):
    return (x + m - 1) // m * m


_VMEM_LIMIT = None


def _vmem_limit():
    """~3/4 of physical VMEM (96 MiB v5e/v6e, 48 MiB v7x); safe fallback."""
    global _VMEM_LIMIT
    if _VMEM_LIMIT is None:
        try:
            cap = int(pltpu.get_tpu_info().vmem_capacity_bytes)
        except Exception:
            cap = 128 * 1024 * 1024
        _VMEM_LIMIT = int(min(96 * 1024 * 1024, cap * 3 // 4))
    return _VMEM_LIMIT


# ----------------------------------------------------------------------------
# weight packing helpers (run in the jitted wrapper, on f32 params)
# ----------------------------------------------------------------------------
def _s2_ktap(a, p):
    """3x3 stride-2 conv: kernel index along one axis for block offset a, parity p."""
    if a == -1:
        return 0 if p == 1 else None
    return 1 if p == 0 else 2


def _pack_s2_weight(w_oihw):
    """(Cout, Cin, 3, 3) -> (4*4*Cin, Cout) for the space-to-depth 2x2 formulation.

    Row order: tap (a, b) in {-1, 0}^2 (a-major), then phase (py, px), then cin.
    """
    cout, cin = w_oihw.shape[0], w_oihw.shape[1]
    wt = jnp.transpose(w_oihw, (2, 3, 1, 0))          # (kh, kw, cin, cout)
    zero = jnp.zeros((cin, cout), w_oihw.dtype)
    blocks = []
    for a in (-1, 0):
        for b in (-1, 0):
            for py in (0, 1):
                for px in (0, 1):
                    kh, kw = _s2_ktap(a, py), _s2_ktap(b, px)
                    blocks.append(zero if kh is None or kw is None else wt[kh, kw])
    return jnp.concatenate(blocks, axis=0)            # (16*cin, cout)


def _deconv_ktap(a, p):
    """ConvTranspose2d(4,2,1): kernel index along one axis for input offset a, parity p."""
    return {0: {-1: 3, 0: 1}, 1: {0: 2, 1: 0}}[p].get(a)


def _pack_deconv_weight(w_iokk, cin, cout):
    """(Cin, Cout, 4, 4) -> (9*Cin, 4*Cout), shift-major rows, phase-major columns."""
    w = jnp.zeros((9 * cin, 4 * cout), w_iokk.dtype)
    for a in (-1, 0, 1):
        for b in (-1, 0, 1):
            t = (a + 1) * 3 + (b + 1)
            for py in (0, 1):
                for px in (0, 1):
                    kh, kw = _deconv_ktap(a, py), _deconv_ktap(b, px)
                    if kh is None or kw is None:
                        continue
                    p = 2 * py + px
                    w = w.at[t * cin:(t + 1) * cin,
                             p * cout:(p + 1) * cout].set(w_iokk[:, :, kh, kw])
    return w


# ----------------------------------------------------------------------------
# Kernel 1: Conv2d(3, stride 2, pad 1) + PReLU  (space-to-depth, 4 shifted matmuls)
# ----------------------------------------------------------------------------
def _conv_s2_kernel(x_ref, w_ref, b_ref, a_ref, o_ref, *, Ws, pad_top):
    # x_ref: (1, pad_top + R, 4*Cin) bf16   zero-halo flat space-to-depth input
    # w_ref: (4*4*Cin, Cout) bf16           tap-major rows
    # b_ref, a_ref: (1, Cout) f32
    # o_ref: (1, R, Cout) bf16
    R = o_ref.shape[1]
    C4 = x_ref.shape[2]
    acc = jnp.zeros((R, o_ref.shape[2]), jnp.float32)
    t = 0
    for a in (-1, 0):
        for b in (-1, 0):
            s = pad_top + a * Ws + b          # static -> zero-cost ref window
            acc = acc + jnp.dot(x_ref[0, s:s + R, :],
                                w_ref[t * C4:(t + 1) * C4, :],
                                preferred_element_type=jnp.float32)
            t += 1
    y = acc + b_ref[...]
    y = jnp.where(y >= 0.0, y, y * a_ref[...])           # PReLU
    o_ref[0] = y.astype(o_ref.dtype)


def conv2d_s2_prelu(x_nhwc, w_oihw, bias, alpha):
    """Conv2d(k=3, s=2, p=1) + PReLU as a stride-1 2x2 conv on a space-to-depth input."""
    N, H, W, Cin = x_nhwc.shape
    assert H % 2 == 0 and W % 2 == 0, "spatial dims must be even"
    Cout = w_oihw.shape[0]
    Ho, Wo = H // 2, W // 2
    C4 = 4 * Cin
    Ws = _round_up(Wo + 1, 8)                # sublane-aligned row stride
    pad_top = Ws + 8                         # covers the largest negative shift (-Ws-1)
    R = (Ho + 1) * Ws

    # space-to-depth (phase-major channels) + top/left zero halo, flattened
    xs = x_nhwc.reshape(N, Ho, 2, Wo, 2, Cin).transpose(0, 1, 3, 2, 4, 5)
    xs = xs.reshape(N, Ho, Wo, C4)
    xs = jnp.pad(xs, ((0, 0), (1, 0), (1, Ws - 1 - Wo), (0, 0)))
    xs = jnp.pad(xs.reshape(N, R, C4), ((0, 0), (pad_top, 0), (0, 0)))
    xs = xs.astype(jnp.bfloat16)

    w2 = _pack_s2_weight(w_oihw).astype(jnp.bfloat16)
    b2 = bias.reshape(1, Cout).astype(jnp.float32)
    a2 = alpha.reshape(1, Cout).astype(jnp.float32)

    flops = 2 * N * R * 4 * C4 * Cout
    bytes_acc = xs.size * 2 + w2.size * 2 + N * R * Cout * 2

    out = pl.pallas_call(
        functools.partial(_conv_s2_kernel, Ws=Ws, pad_top=pad_top),
        out_shape=jax.ShapeDtypeStruct((N, R, Cout), jnp.bfloat16),
        grid=(N,),
        in_specs=[
            pl.BlockSpec((1, pad_top + R, C4), lambda n: (n, 0, 0)),
            pl.BlockSpec((4 * C4, Cout), lambda n: (0, 0)),
            pl.BlockSpec((1, Cout), lambda n: (0, 0)),
            pl.BlockSpec((1, Cout), lambda n: (0, 0)),
        ],
        out_specs=pl.BlockSpec((1, R, Cout), lambda n: (n, 0, 0)),
        compiler_params=pltpu.CompilerParams(
            dimension_semantics=("parallel",),
            vmem_limit_bytes=_vmem_limit()),
        cost_estimate=pl.CostEstimate(flops=int(flops), transcendentals=0,
                                      bytes_accessed=int(bytes_acc)),
    )(xs, w2, b2, a2)

    # valid outputs live at grid positions (i + 1, j + 1)
    return out.reshape(N, Ho + 1, Ws, Cout)[:, 1:, 1:1 + Wo, :]


# ----------------------------------------------------------------------------
# Kernel 2: fused [6 x (3x3 s1 conv + PReLU)] + ConvTranspose2d(4,2,1), VMEM resident
# ----------------------------------------------------------------------------
def _convblock_deconv_kernel(x_ref, wcb_ref, bcb_ref, acb_ref, mask_ref,
                             wd_ref, bd_ref, o_ref, x_scr,
                             *, Wp, C, pad, n_layers, fuse_taps):
    # x_ref   : (1, R0, C) bf16        zero-halo flat activation
    # wcb_ref : (n_layers*9*C, C) bf16
    # bcb/acb : (n_layers, C) f32
    # mask_ref: (R0, 1) f32            1 = interior, 0 = halo
    # wd_ref  : (9*C, 4*Cout) bf16     shift-major rows, phase-major columns
    # bd_ref  : (1, 4*Cout) f32
    # o_ref   : (1, R0, 4*Cout) bf16
    # x_scr   : (2*pad + R0, C) bf16   zero-padded activation staging buffer
    R0 = o_ref.shape[1]
    zpad = jnp.zeros((pad, C), x_scr.dtype)
    x_scr[0:pad, :] = zpad
    x_scr[pad + R0:pad + R0 + pad, :] = zpad
    x_scr[pad:pad + R0, :] = x_ref[0]

    # hoisted halo mask (broadcast once, not per unrolled layer)
    maskC = jnp.broadcast_to(mask_ref[...], (R0, C)).astype(jnp.bfloat16)
    deltas = [di * Wp + dj for di in (-1, 0, 1) for dj in (-1, 0, 1)]

    def conv9(w_slab_ref, row0, n_out):
        # sum_t view(delta_t) @ W_t ; views are zero-cost static windows of x_scr
        if fuse_taps:
            xk = jnp.concatenate(
                [x_scr[pad + d:pad + d + R0, :] for d in deltas], axis=1)  # (R0, 9C)
            return jnp.dot(xk, w_slab_ref[row0:row0 + 9 * C, :],
                           preferred_element_type=jnp.float32)
        acc = jnp.zeros((R0, n_out), jnp.float32)
        for t, d in enumerate(deltas):
            acc = acc + jnp.dot(x_scr[pad + d:pad + d + R0, :],
                                w_slab_ref[row0 + t * C:row0 + (t + 1) * C, :],
                                preferred_element_type=jnp.float32)
        return acc

    for l in range(n_layers):
        y = conv9(wcb_ref, l * 9 * C, C) + bcb_ref[l:l + 1, :]
        y = jnp.where(y >= 0.0, y, y * acb_ref[l:l + 1, :])        # PReLU
        x_scr[pad:pad + R0, :] = y.astype(jnp.bfloat16) * maskC    # re-zero halo

    # ConvTranspose2d(4, 2, 1) == conv over the same 9 shifts with phase-packed
    # weights: one matmul, one lane-dense (4*Cout)-wide bf16 store.
    yd = conv9(wd_ref, 0, o_ref.shape[2]) + bd_ref[...]
    o_ref[0] = yd.astype(o_ref.dtype)


def convblock_deconv(x_nhwc, cb_params, wd, bd):
    """Fused [6 x (3x3 s1 conv + PReLU)] + ConvTranspose2d(4,2,1); VMEM resident."""
    N, H, W, C = x_nhwc.shape
    Cout = wd.shape[1]
    n_layers = len(cb_params)
    Hp = H + 2
    Wp = _round_up(W + 2, 8)                 # sublane-aligned row stride
    R0 = Hp * Wp
    pad = Wp + 8                             # covers the largest shift magnitude (Wp+1)
    fuse_taps = (C % 128 == 0)               # lane aligned -> fuse 9 taps into K = 9*C

    xp = jnp.pad(x_nhwc, ((0, 0), (1, 1), (1, Wp - 1 - W), (0, 0)))
    xp = xp.reshape(N, R0, C).astype(jnp.bfloat16)

    wcb = jnp.concatenate(
        [jnp.transpose(w, (2, 3, 1, 0)).reshape(9 * C, C) for (w, _, _) in cb_params],
        axis=0).astype(jnp.bfloat16)                       # (n_layers*9*C, C)
    bcb = jnp.stack([b for (_, b, _) in cb_params]).astype(jnp.float32)
    acb = jnp.stack([a for (_, _, a) in cb_params]).astype(jnp.float32)

    wd2 = _pack_deconv_weight(wd, C, Cout).astype(jnp.bfloat16)    # (9*C, 4*Cout)
    bd2 = jnp.tile(bd.reshape(1, Cout), (1, 4)).astype(jnp.float32)

    hh = jnp.arange(Hp)
    ww = jnp.arange(Wp)
    interior = ((hh[:, None] >= 1) & (hh[:, None] <= H) &
                (ww[None, :] >= 1) & (ww[None, :] <= W))
    mask = interior.astype(jnp.float32).reshape(R0, 1)

    flops = 2 * N * R0 * 9 * C * (C * n_layers + 4 * Cout)
    bytes_acc = xp.size * 2 + wcb.size * 2 + wd2.size * 2 + N * R0 * 4 * Cout * 2

    out = pl.pallas_call(
        functools.partial(_convblock_deconv_kernel, Wp=Wp, C=C, pad=pad,
                          n_layers=n_layers, fuse_taps=fuse_taps),
        out_shape=jax.ShapeDtypeStruct((N, R0, 4 * Cout), jnp.bfloat16),
        grid=(N,),
        in_specs=[
            pl.BlockSpec((1, R0, C), lambda n: (n, 0, 0)),
            pl.BlockSpec((n_layers * 9 * C, C), lambda n: (0, 0)),
            pl.BlockSpec((n_layers, C), lambda n: (0, 0)),
            pl.BlockSpec((n_layers, C), lambda n: (0, 0)),
            pl.BlockSpec((R0, 1), lambda n: (0, 0)),
            pl.BlockSpec((9 * C, 4 * Cout), lambda n: (0, 0)),
            pl.BlockSpec((1, 4 * Cout), lambda n: (0, 0)),
        ],
        out_specs=pl.BlockSpec((1, R0, 4 * Cout), lambda n: (n, 0, 0)),
        scratch_shapes=[pltpu.VMEM((2 * pad + R0, C), jnp.bfloat16)],
        compiler_params=pltpu.CompilerParams(
            dimension_semantics=("parallel",),
            vmem_limit_bytes=_vmem_limit()),
        cost_estimate=pl.CostEstimate(flops=int(flops), transcendentals=0,
                                      bytes_accessed=int(bytes_acc)),
    )(xp, wcb, bcb, acb, mask, wd2, bd2)

    # de-interleave the 4 output phases, drop the halo, restore f32 in the wrapper
    out = out.reshape(N, Hp, Wp, 2, 2, Cout)[:, 1:1 + H, 1:1 + W]
    out = out.transpose(0, 1, 3, 2, 4, 5).reshape(N, 2 * H, 2 * W, Cout)
    return out.astype(jnp.float32)


# ----------------------------------------------------------------------------
# Parameter init (deterministic, PyTorch-like uniform fan-in init)
# ----------------------------------------------------------------------------
def _conv_prelu_params(key, cin, cout, k):
    kw, kb = jax.random.split(key)
    bound = 1.0 / math.sqrt(cin * k * k)
    w = jax.random.uniform(kw, (cout, cin, k, k), jnp.float32, -bound, bound)
    b = jax.random.uniform(kb, (cout,), jnp.float32, -bound, bound)
    a = jnp.full((cout,), 0.25, jnp.float32)               # PReLU default
    return (w, b, a)


def init_ifblock_params(key, in_planes, c=64, num_flows=3, mode='backward'):
    keys = jax.random.split(key, 10)
    params = {
        'conv0_0': _conv_prelu_params(keys[0], in_planes, c, 3),
        'conv0_1': _conv_prelu_params(keys[1], c, 2 * c, 3),
        'convblock': [_conv_prelu_params(keys[2 + i], 2 * c, 2 * c, 3)
                      for i in range(6)],
    }
    if mode == 'backward':
        cout = 2 * num_flows * 2
    elif mode == 'forward':
        cout = 2 * num_flows * 3
    else:
        raise ValueError
    kw, kb = jax.random.split(keys[8])
    bound = 1.0 / math.sqrt(2 * c * 4 * 4)
    params['conv1_w'] = jax.random.uniform(kw, (2 * c, cout, 4, 4), jnp.float32,
                                           -bound, bound)
    params['conv1_b'] = jax.random.uniform(kb, (cout,), jnp.float32, -bound, bound)
    return params


# ----------------------------------------------------------------------------
# IFBlock forward
# ----------------------------------------------------------------------------
def ifblock_forward(params, x_nchw, scale=1):
    x = jnp.transpose(x_nchw, (0, 2, 3, 1))                 # NCHW -> NHWC
    if scale != 1:
        # TODO(synk): jax.image.resize(bilinear) is not bit-exact vs PyTorch
        # F.interpolate(align_corners=False) when downsampling.
        N, H, W, C = x.shape
        x = jax.image.resize(x, (N, int(H / scale), int(W / scale), C), 'bilinear')
    x = conv2d_s2_prelu(x, *params['conv0_0'])
    x = conv2d_s2_prelu(x, *params['conv0_1'])
    flow = convblock_deconv(x, params['convblock'],
                            params['conv1_w'], params['conv1_b'])
    if scale != 1:
        N, H, W, C = flow.shape
        flow = jax.image.resize(flow, (N, H * scale, W * scale, C), 'bilinear')
    return jnp.transpose(flow, (0, 3, 1, 2))                # NHWC -> NCHW


if __name__ == "__main__":
    key = jax.random.PRNGKey(0)
    # reference config: c = 64 (so the convblock runs at C = 2c = 128 lanes)
    in_planes, c, num_flows = 8, 64, 3
    kp, kx = jax.random.split(key)
    params = init_ifblock_params(kp, in_planes, c=c, num_flows=num_flows,
                                 mode='backward')
    x = jax.random.normal(kx, (2, in_planes, 16, 16), jnp.float32)

    fwd = jax.jit(functools.partial(ifblock_forward, scale=1))
    flow = jax.block_until_ready(fwd(params, x))

    # conv0 downsamples x4, conv1 (transposed, stride 2) upsamples x2 -> H/2, W/2
    assert flow.shape == (2, 2 * num_flows * 2, 8, 8), flow.shape
    assert bool(jnp.all(jnp.isfinite(flow)))
    print("KERNEL_OK")
</pallas_src>

<mosaic_0001>
module attributes {stable_mosaic.version = 11 : i64} {
  func.func @_conv_s2_kernel(%arg0: i32, %arg1: memref<1x168x32xbf16, #tpu.memory_space<vmem>>, %arg2: memref<128x64xbf16, #tpu.memory_space<vmem>>, %arg3: memref<1x64xf32, #tpu.memory_space<vmem>>, %arg4: memref<1x64xf32, #tpu.memory_space<vmem>>, %arg5: memref<1x144x64xbf16, #tpu.memory_space<vmem>>) attributes {dimension_semantics = [#tpu.dimension_semantics<parallel>], iteration_bounds = array<i64: 2>, scalar_prefetch = 0 : i64, scratch_operands = 0 : i64, tpu.core_type = #tpu.core_type<tc>, window_params = [{transform_indices = @transform_0, window_bounds = array<i64: 1, 168, 32>}, {pipeline_mode = #tpu.pipeline_mode<synchronous>, transform_indices = @transform_1, window_bounds = array<i64: 128, 64>}, {pipeline_mode = #tpu.pipeline_mode<synchronous>, transform_indices = @transform_2, window_bounds = array<i64: 1, 64>}, {pipeline_mode = #tpu.pipeline_mode<synchronous>, transform_indices = @transform_3, window_bounds = array<i64: 1, 64>}, {transform_indices = @transform_4, window_bounds = array<i64: 1, 144, 64>}]} {
    %cst = arith.constant 0.000000e+00 : f32
    %0 = vector.broadcast %cst : f32 to vector<144x64xf32>
    %c0 = arith.constant 0 : index
    %c7 = arith.constant 7 : index
    %c0_0 = arith.constant 0 : index
    %1 = vector.load %arg1[%c0, %c7, %c0_0] : memref<1x168x32xbf16, #tpu.memory_space<vmem>>, vector<1x144x32xbf16>
    %2 = vector.shape_cast %1 : vector<1x144x32xbf16> to vector<144x32xbf16>
    %c0_1 = arith.constant 0 : index
    %c0_2 = arith.constant 0 : index
    %3 = vector.load %arg2[%c0_1, %c0_2] : memref<128x64xbf16, #tpu.memory_space<vmem>>, vector<32x64xbf16>
    %cst_3 = arith.constant dense<0.000000e+00> : vector<144x64xf32>
    %4 = tpu.matmul %2, %3, %cst_3 {dimension_numbers = #tpu.dot_dimension_numbers<[1], [0], [0], [1], [0, 0, 1, 1], [], []>} : vector<144x32xbf16>, vector<32x64xbf16>, vector<144x64xf32> -> vector<144x64xf32>
    %5 = arith.addf %0, %4 : vector<144x64xf32>
    %c0_4 = arith.constant 0 : index
    %c8 = arith.constant 8 : index
    %c0_5 = arith.constant 0 : index
    %6 = vector.load %arg1[%c0_4, %c8, %c0_5] : memref<1x168x32xbf16, #tpu.memory_space<vmem>>, vector<1x144x32xbf16>
    %7 = vector.shape_cast %6 : vector<1x144x32xbf16> to vector<144x32xbf16>
    %c32 = arith.constant 32 : index
    %c0_6 = arith.constant 0 : index
    %8 = vector.load %arg2[%c32, %c0_6] : memref<128x64xbf16, #tpu.memory_space<vmem>>, vector<32x64xbf16>
    %cst_7 = arith.constant dense<0.000000e+00> : vector<144x64xf32>
    %9 = tpu.matmul %7, %8, %cst_7 {dimension_numbers = #tpu.dot_dimension_numbers<[1], [0], [0], [1], [0, 0, 1, 1], [], []>} : vector<144x32xbf16>, vector<32x64xbf16>, vector<144x64xf32> -> vector<144x64xf32>
    %10 = arith.addf %5, %9 : vector<144x64xf32>
    %c0_8 = arith.constant 0 : index
    %c23 = arith.constant 23 : index
    %c0_9 = arith.constant 0 : index
    %11 = vector.load %arg1[%c0_8, %c23, %c0_9] : memref<1x168x32xbf16, #tpu.memory_space<vmem>>, vector<1x144x32xbf16>
    %12 = vector.shape_cast %11 : vector<1x144x32xbf16> to vector<144x32xbf16>
    %c64 = arith.constant 64 : index
    %c0_10 = arith.constant 0 : index
    %13 = vector.load %arg2[%c64, %c0_10] : memref<128x64xbf16, #tpu.memory_space<vmem>>, vector<32x64xbf16>
    %cst_11 = arith.constant dense<0.000000e+00> : vector<144x64xf32>
    %14 = tpu.matmul %12, %13, %cst_11 {dimension_numbers = #tpu.dot_dimension_numbers<[1], [0], [0], [1], [0, 0, 1, 1], [], []>} : vector<144x32xbf16>, vector<32x64xbf16>, vector<144x64xf32> -> vector<144x64xf32>
    %15 = arith.addf %10, %14 : vector<144x64xf32>
    %c0_12 = arith.constant 0 : index
    %c24 = arith.constant 24 : index
    %c0_13 = arith.constant 0 : index
    %16 = vector.load %arg1[%c0_12, %c24, %c0_13] : memref<1x168x32xbf16, #tpu.memory_space<vmem>>, vector<1x144x32xbf16>
    %17 = vector.shape_cast %16 : vector<1x144x32xbf16> to vector<144x32xbf16>
    %c96 = arith.constant 96 : index
    %c0_14 = arith.constant 0 : index
    %18 = vector.load %arg2[%c96, %c0_14] : memref<128x64xbf16, #tpu.memory_space<vmem>>, vector<32x64xbf16>
    %cst_15 = arith.constant dense<0.000000e+00> : vector<144x64xf32>
    %19 = tpu.matmul %17, %18, %cst_15 {dimension_numbers = #tpu.dot_dimension_numbers<[1], [0], [0], [1], [0, 0, 1, 1], [], []>} : vector<144x32xbf16>, vector<32x64xbf16>, vector<144x64xf32> -> vector<144x64xf32>
    %20 = arith.addf %15, %19 : vector<144x64xf32>
    %c0_16 = arith.constant 0 : index
    %c0_17 = arith.constant 0 : index
    %21 = vector.load %arg3[%c0_16, %c0_17] : memref<1x64xf32, #tpu.memory_space<vmem>>, vector<1x64xf32>
    %22 = vector.broadcast %21 : vector<1x64xf32> to vector<144x64xf32>
    %23 = arith.addf %20, %22 : vector<144x64xf32>
    %cst_18 = arith.constant 0.000000e+00 : f32
    %24 = vector.broadcast %cst_18 : f32 to vector<144x64xf32>
    %25 = arith.cmpf oge, %23, %24 : vector<144x64xf32>
    %c0_19 = arith.constant 0 : index
    %c0_20 = arith.constant 0 : index
    %26 = vector.load %arg4[%c0_19, %c0_20] : memref<1x64xf32, #tpu.memory_space<vmem>>, vector<1x64xf32>
    %27 = vector.broadcast %26 : vector<1x64xf32> to vector<144x64xf32>
    %28 = arith.mulf %23, %27 : vector<144x64xf32>
    %29 = arith.select %25, %23, %28 : vector<144x64xi1>, vector<144x64xf32>
    %30 = arith.truncf %29 : vector<144x64xf32> to vector<144x64xbf16>
    %c0_21 = arith.constant 0 : index
    %c0_22 = arith.constant 0 : index
    %c0_23 = arith.constant 0 : index
    %31 = vector.load %arg5[%c0_21, %c0_22, %c0_23] : memref<1x144x64xbf16, #tpu.memory_space<vmem>>, vector<1x144x64xbf16>
    %32 = vector.shape_cast %31 : vector<1x144x64xbf16> to vector<144x64xbf16>
    %33 = vector.shape_cast %30 : vector<144x64xbf16> to vector<1x144x64xbf16>
    tpu.vector_store %arg5[%c0_21, %c0_22, %c0_23], %33 {strides = array<i32>} : memref<1x144x64xbf16, #tpu.memory_space<vmem>>, vector<1x144x64xbf16>,
    return
  }
  func.func @transform_0(%arg0: i32) -> (i32, i32, i32) {
    %c0_i32 = arith.constant 0 : i32
    %c0_i32_0 = arith.constant 0 : i32
    %c0_i32_1 = arith.constant 0 : i32
    return %arg0, %c0_i32, %c0_i32_0 : i32, i32, i32
  }
  func.func @transform_1(%arg0: i32) -> (i32, i32) {
    %c0_i32 = arith.constant 0 : i32
    %c0_i32_0 = arith.constant 0 : i32
    %c0_i32_1 = arith.constant 0 : i32
    return %c0_i32, %c0_i32_0 : i32, i32
  }
  func.func @transform_2(%arg0: i32) -> (i32, i32) {
    %c0_i32 = arith.constant 0 : i32
    %c0_i32_0 = arith.constant 0 : i32
    %c0_i32_1 = arith.constant 0 : i32
    return %c0_i32, %c0_i32_0 : i32, i32
  }
  func.func @transform_3(%arg0: i32) -> (i32, i32) {
    %c0_i32 = arith.constant 0 : i32
    %c0_i32_0 = arith.constant 0 : i32
    %c0_i32_1 = arith.constant 0 : i32
    return %c0_i32, %c0_i32_0 : i32, i32
  }
  func.func @transform_4(%arg0: i32) -> (i32, i32, i32) {
    %c0_i32 = arith.constant 0 : i32
    %c0_i32_0 = arith.constant 0 : i32
    %c0_i32_1 = arith.constant 0 : i32
    return %arg0, %c0_i32, %c0_i32_0 : i32, i32, i32
  }
}

module attributes {stable_mosaic.version = 11 : i64} {
  func.func @_conv_s2_kernel(%arg0: i32, %arg1: memref<1x56x256xbf16, #tpu.memory_space<vmem>>, %arg2: memref<1024x128xbf16, #tpu.memory_space<vmem>>, %arg3: memref<1x128xf32, #tpu.memory_space<vmem>>, %arg4: memref<1x128xf32, #tpu.memory_space<vmem>>, %arg5: memref<1x40x128xbf16, #tpu.memory_space<vmem>>) attributes {dimension_semantics = [#tpu.dimension_semantics<parallel>], iteration_bounds = array<i64: 2>, scalar_prefetch = 0 : i64, scratch_operands = 0 : i64, tpu.core_type = #tpu.core_type<tc>, window_params = [{transform_indices = @transform_0, window_bounds = array<i64: 1, 56, 256>}, {pipeline_mode = #tpu.pipeline_mode<synchronous>, transform_indices = @transform_1, window_bounds = array<i64: 1024, 128>}, {pipeline_mode = #tpu.pipeline_mode<synchronous>, transform_indices = @transform_2, window_bounds = array<i64: 1, 128>}, {pipeline_mode = #tpu.pipeline_mode<synchronous>, transform_indices = @transform_3, window_bounds = array<i64: 1, 128>}, {transform_indices = @transform_4, window_bounds = array<i64: 1, 40, 128>}]} {
    %cst = arith.constant 0.000000e+00 : f32
    %0 = vector.broadcast %cst : f32 to vector<40x128xf32>
    %c0 = arith.constant 0 : index
    %c7 = arith.constant 7 : index
    %c0_0 = arith.constant 0 : index
    %1 = vector.load %arg1[%c0, %c7, %c0_0] : memref<1x56x256xbf16, #tpu.memory_space<vmem>>, vector<1x40x256xbf16>
    %2 = vector.shape_cast %1 : vector<1x40x256xbf16> to vector<40x256xbf16>
    %c0_1 = arith.constant 0 : index
    %c0_2 = arith.constant 0 : index
    %3 = vector.load %arg2[%c0_1, %c0_2] : memref<1024x128xbf16, #tpu.memory_space<vmem>>, vector<256x128xbf16>
    %cst_3 = arith.constant dense<0.000000e+00> : vector<40x128xf32>
    %4 = tpu.matmul %2, %3, %cst_3 {dimension_numbers = #tpu.dot_dimension_numbers<[1], [0], [0], [1], [0, 0, 1, 1], [], []>} : vector<40x256xbf16>, vector<256x128xbf16>, vector<40x128xf32> -> vector<40x128xf32>
    %5 = arith.addf %0, %4 : vector<40x128xf32>
    %c0_4 = arith.constant 0 : index
    %c8 = arith.constant 8 : index
    %c0_5 = arith.constant 0 : index
    %6 = vector.load %arg1[%c0_4, %c8, %c0_5] : memref<1x56x256xbf16, #tpu.memory_space<vmem>>, vector<1x40x256xbf16>
    %7 = vector.shape_cast %6 : vector<1x40x256xbf16> to vector<40x256xbf16>
    %c256 = arith.constant 256 : index
    %c0_6 = arith.constant 0 : index
    %8 = vector.load %arg2[%c256, %c0_6] : memref<1024x128xbf16, #tpu.memory_space<vmem>>, vector<256x128xbf16>
    %cst_7 = arith.constant dense<0.000000e+00> : vector<40x128xf32>
    %9 = tpu.matmul %7, %8, %cst_7 {dimension_numbers = #tpu.dot_dimension_numbers<[1], [0], [0], [1], [0, 0, 1, 1], [], []>} : vector<40x256xbf16>, vector<256x128xbf16>, vector<40x128xf32> -> vector<40x128xf32>
    %10 = arith.addf %5, %9 : vector<40x128xf32>
    %c0_8 = arith.constant 0 : index
    %c15 = arith.constant 15 : index
    %c0_9 = arith.constant 0 : index
    %11 = vector.load %arg1[%c0_8, %c15, %c0_9] : memref<1x56x256xbf16, #tpu.memory_space<vmem>>, vector<1x40x256xbf16>
    %12 = vector.shape_cast %11 : vector<1x40x256xbf16> to vector<40x256xbf16>
    %c512 = arith.constant 512 : index
    %c0_10 = arith.constant 0 : index
    %13 = vector.load %arg2[%c512, %c0_10] : memref<1024x128xbf16, #tpu.memory_space<vmem>>, vector<256x128xbf16>
    %cst_11 = arith.constant dense<0.000000e+00> : vector<40x128xf32>
    %14 = tpu.matmul %12, %13, %cst_11 {dimension_numbers = #tpu.dot_dimension_numbers<[1], [0], [0], [1], [0, 0, 1, 1], [], []>} : vector<40x256xbf16>, vector<256x128xbf16>, vector<40x128xf32> -> vector<40x128xf32>
    %15 = arith.addf %10, %14 : vector<40x128xf32>
    %c0_12 = arith.constant 0 : index
    %c16 = arith.constant 16 : index
    %c0_13 = arith.constant 0 : index
    %16 = vector.load %arg1[%c0_12, %c16, %c0_13] : memref<1x56x256xbf16, #tpu.memory_space<vmem>>, vector<1x40x256xbf16>
    %17 = vector.shape_cast %16 : vector<1x40x256xbf16> to vector<40x256xbf16>
    %c768 = arith.constant 768 : index
    %c0_14 = arith.constant 0 : index
    %18 = vector.load %arg2[%c768, %c0_14] : memref<1024x128xbf16, #tpu.memory_space<vmem>>, vector<256x128xbf16>
    %cst_15 = arith.constant dense<0.000000e+00> : vector<40x128xf32>
    %19 = tpu.matmul %17, %18, %cst_15 {dimension_numbers = #tpu.dot_dimension_numbers<[1], [0], [0], [1], [0, 0, 1, 1], [], []>} : vector<40x256xbf16>, vector<256x128xbf16>, vector<40x128xf32> -> vector<40x128xf32>
    %20 = arith.addf %15, %19 : vector<40x128xf32>
    %c0_16 = arith.constant 0 : index
    %c0_17 = arith.constant 0 : index
    %21 = vector.load %arg3[%c0_16, %c0_17] : memref<1x128xf32, #tpu.memory_space<vmem>>, vector<1x128xf32>
    %22 = vector.broadcast %21 : vector<1x128xf32> to vector<40x128xf32>
    %23 = arith.addf %20, %22 : vector<40x128xf32>
    %cst_18 = arith.constant 0.000000e+00 : f32
    %24 = vector.broadcast %cst_18 : f32 to vector<40x128xf32>
    %25 = arith.cmpf oge, %23, %24 : vector<40x128xf32>
    %c0_19 = arith.constant 0 : index
    %c0_20 = arith.constant 0 : index
    %26 = vector.load %arg4[%c0_19, %c0_20] : memref<1x128xf32, #tpu.memory_space<vmem>>, vector<1x128xf32>
    %27 = vector.broadcast %26 : vector<1x128xf32> to vector<40x128xf32>
    %28 = arith.mulf %23, %27 : vector<40x128xf32>
    %29 = arith.select %25, %23, %28 : vector<40x128xi1>, vector<40x128xf32>
    %30 = arith.truncf %29 : vector<40x128xf32> to vector<40x128xbf16>
    %c0_21 = arith.constant 0 : index
    %c0_22 = arith.constant 0 : index
    %c0_23 = arith.constant 0 : index
    %31 = vector.load %arg5[%c0_21, %c0_22, %c0_23] : memref<1x40x128xbf16, #tpu.memory_space<vmem>>, vector<1x40x128xbf16>
    %32 = vector.shape_cast %31 : vector<1x40x128xbf16> to vector<40x128xbf16>
    %33 = vector.shape_cast %30 : vector<40x128xbf16> to vector<1x40x128xbf16>
    tpu.vector_store %arg5[%c0_21, %c0_22, %c0_23], %33 {strides = array<i32>} : memref<1x40x128xbf16, #tpu.memory_space<vmem>>, vector<1x40x128xbf16>,
    return
  }
  func.func @transform_0(%arg0: i32) -> (i32, i32, i32) {
    %c0_i32 = arith.constant 0 : i32
    %c0_i32_0 = arith.constant 0 : i32
    %c0_i32_1 = arith.constant 0 : i32
    return %arg0, %c0_i32, %c0_i32_0 : i32, i32, i32
  }
  func.func @transform_1(%arg0: i32) -> (i32, i32) {
    %c0_i32 = arith.constant 0 : i32
    %c0_i32_0 = arith.constant 0 : i32
    %c0_i32_1 = arith.constant 0 : i32
    return %c0_i32, %c0_i32_0 : i32, i32
  }
  func.func @transform_2(%arg0: i32) -> (i32, i32) {
    %c0_i32 = arith.constant 0 : i32
    %c0_i32_0 = arith.constant 0 : i32
    %c0_i32_1 = arith.constant 0 : i32
    return %c0_i32, %c0_i32_0 : i32, i32
  }
  func.func @transform_3(%arg0: i32) -> (i32, i32) {
    %c0_i32 = arith.constant 0 : i32
    %c0_i32_0 = arith.constant 0 : i32
    %c0_i32_1 = arith.constant 0 : i32
    return %c0_i32, %c0_i32_0 : i32, i32
  }
  func.func @transform_4(%arg0: i32) -> (i32, i32, i32) {
    %c0_i32 = arith.constant 0 : i32
    %c0_i32_0 = arith.constant 0 : i32
    %c0_i32_1 = arith.constant 0 : i32
    return %arg0, %c0_i32, %c0_i32_0 : i32, i32, i32
  }
}

module attributes {stable_mosaic.version = 11 : i64} {
  func.func @_convblock_deconv_kernel(%arg0: i32, %arg1: memref<1x48x128xbf16, #tpu.memory_space<vmem>>, %arg2: memref<6912x128xbf16, #tpu.memory_space<vmem>>, %arg3: memref<6x128xf32, #tpu.memory_space<vmem>>, %arg4: memref<6x128xf32, #tpu.memory_space<vmem>>, %arg5: memref<48x1xf32, #tpu.memory_space<vmem>>, %arg6: memref<1152x48xbf16, #tpu.memory_space<vmem>>, %arg7: memref<1x48xf32, #tpu.memory_space<vmem>>, %arg8: memref<1x48x48xbf16, #tpu.memory_space<vmem>>, %arg9: memref<80x128xbf16, #tpu.memory_space<vmem>>) attributes {dimension_semantics = [#tpu.dimension_semantics<parallel>], iteration_bounds = array<i64: 2>, scalar_prefetch = 0 : i64, scratch_operands = 1 : i64, tpu.core_type = #tpu.core_type<tc>, window_params = [{transform_indices = @transform_0, window_bounds = array<i64: 1, 48, 128>}, {pipeline_mode = #tpu.pipeline_mode<synchronous>, transform_indices = @transform_1, window_bounds = array<i64: 6912, 128>}, {pipeline_mode = #tpu.pipeline_mode<synchronous>, transform_indices = @transform_2, window_bounds = array<i64: 6, 128>}, {pipeline_mode = #tpu.pipeline_mode<synchronous>, transform_indices = @transform_3, window_bounds = array<i64: 6, 128>}, {pipeline_mode = #tpu.pipeline_mode<synchronous>, transform_indices = @transform_4, window_bounds = array<i64: 48, 1>}, {pipeline_mode = #tpu.pipeline_mode<synchronous>, transform_indices = @transform_5, window_bounds = array<i64: 1152, 48>}, {pipeline_mode = #tpu.pipeline_mode<synchronous>, transform_indices = @transform_6, window_bounds = array<i64: 1, 48>}, {transform_indices = @transform_7, window_bounds = array<i64: 1, 48, 48>}]} {
    %cst = arith.constant 0.000000e+00 : bf16
    %0 = vector.broadcast %cst : bf16 to vector<16x128xbf16>
    %c0 = arith.constant 0 : index
    %c0_0 = arith.constant 0 : index
    %1 = vector.load %arg9[%c0, %c0_0] : memref<80x128xbf16, #tpu.memory_space<vmem>>, vector<16x128xbf16>
    tpu.vector_store %arg9[%c0, %c0_0], %0 {strides = array<i32>} : memref<80x128xbf16, #tpu.memory_space<vmem>>, vector<16x128xbf16>,
    %c64 = arith.constant 64 : index
    %c0_1 = arith.constant 0 : index
    %2 = vector.load %arg9[%c64, %c0_1] : memref<80x128xbf16, #tpu.memory_space<vmem>>, vector<16x128xbf16>
    tpu.vector_store %arg9[%c64, %c0_1], %0 {strides = array<i32>} : memref<80x128xbf16, #tpu.memory_space<vmem>>, vector<16x128xbf16>,
    %c0_2 = arith.constant 0 : index
    %c0_3 = arith.constant 0 : index
    %c0_4 = arith.constant 0 : index
    %3 = vector.load %arg1[%c0_2, %c0_3, %c0_4] : memref<1x48x128xbf16, #tpu.memory_space<vmem>>, vector<1x48x128xbf16>
    %4 = vector.shape_cast %3 : vector<1x48x128xbf16> to vector<48x128xbf16>
    %c16 = arith.constant 16 : index
    %c0_5 = arith.constant 0 : index
    %5 = vector.load %arg9[%c16, %c0_5] : memref<80x128xbf16, #tpu.memory_space<vmem>>, vector<48x128xbf16>
    tpu.vector_store %arg9[%c16, %c0_5], %4 {strides = array<i32>} : memref<80x128xbf16, #tpu.memory_space<vmem>>, vector<48x128xbf16>,
    %c0_6 = arith.constant 0 : index
    %c0_7 = arith.constant 0 : index
    %6 = vector.load %arg5[%c0_6, %c0_7] : memref<48x1xf32, #tpu.memory_space<vmem>>, vector<48x1xf32>
    %7 = vector.shape_cast %6 : vector<48x1xf32> to vector<48x1xf32>
    %8 = vector.broadcast %7 : vector<48x1xf32> to vector<48x128xf32>
    %9 = arith.truncf %8 : vector<48x128xf32> to vector<48x128xbf16>
    %c7 = arith.constant 7 : index
    %c0_8 = arith.constant 0 : index
    %10 = vector.load %arg9[%c7, %c0_8] : memref<80x128xbf16, #tpu.memory_space<vmem>>, vector<48x128xbf16>
    %c8 = arith.constant 8 : index
    %c0_9 = arith.constant 0 : index
    %11 = vector.load %arg9[%c8, %c0_9] : memref<80x128xbf16, #tpu.memory_space<vmem>>, vector<48x128xbf16>
    %c9 = arith.constant 9 : index
    %c0_10 = arith.constant 0 : index
    %12 = vector.load %arg9[%c9, %c0_10] : memref<80x128xbf16, #tpu.memory_space<vmem>>, vector<48x128xbf16>
    %c15 = arith.constant 15 : index
    %c0_11 = arith.constant 0 : index
    %13 = vector.load %arg9[%c15, %c0_11] : memref<80x128xbf16, #tpu.memory_space<vmem>>, vector<48x128xbf16>
    %c16_12 = arith.constant 16 : index
    %c0_13 = arith.constant 0 : index
    %14 = vector.load %arg9[%c16_12, %c0_13] : memref<80x128xbf16, #tpu.memory_space<vmem>>, vector<48x128xbf16>
    %c17 = arith.constant 17 : index
    %c0_14 = arith.constant 0 : index
    %15 = vector.load %arg9[%c17, %c0_14] : memref<80x128xbf16, #tpu.memory_space<vmem>>, vector<48x128xbf16>
    %c23 = arith.constant 23 : index
    %c0_15 = arith.constant 0 : index
    %16 = vector.load %arg9[%c23, %c0_15] : memref<80x128xbf16, #tpu.memory_space<vmem>>, vector<48x128xbf16>
    %c24 = arith.constant 24 : index
    %c0_16 = arith.constant 0 : index
    %17 = vector.load %arg9[%c24, %c0_16] : memref<80x128xbf16, #tpu.memory_space<vmem>>, vector<48x128xbf16>
    %c25 = arith.constant 25 : index
    %c0_17 = arith.constant 0 : index
    %18 = vector.load %arg9[%c25, %c0_17] : memref<80x128xbf16, #tpu.memory_space<vmem>>, vector<48x128xbf16>
    %19 = tpu.concatenate %10, %11, %12, %13, %14, %15, %16, %17, %18 in 1 : vector<48x128xbf16>, vector<48x128xbf16>, vector<48x128xbf16>, vector<48x128xbf16>, vector<48x128xbf16>, vector<48x128xbf16>, vector<48x128xbf16>, vector<48x128xbf16>, vector<48x128xbf16> -> vector<48x1152xbf16>
    %c0_18 = arith.constant 0 : index
    %c0_19 = arith.constant 0 : index
    %20 = vector.load %arg2[%c0_18, %c0_19] : memref<6912x128xbf16, #tpu.memory_space<vmem>>, vector<1152x128xbf16>
    %cst_20 = arith.constant dense<0.000000e+00> : vector<48x128xf32>
    %21 = tpu.matmul %19, %20, %cst_20 {dimension_numbers = #tpu.dot_dimension_numbers<[1], [0], [0], [1], [0, 0, 1, 1], [], []>} : vector<48x1152xbf16>, vector<1152x128xbf16>, vector<48x128xf32> -> vector<48x128xf32>
    %c0_21 = arith.constant 0 : index
    %c0_22 = arith.constant 0 : index
    %22 = vector.load %arg3[%c0_21, %c0_22] : memref<6x128xf32, #tpu.memory_space<vmem>>, vector<1x128xf32>
    %23 = vector.broadcast %22 : vector<1x128xf32> to vector<48x128xf32>
    %24 = arith.addf %21, %23 : vector<48x128xf32>
    %cst_23 = arith.constant 0.000000e+00 : f32
    %25 = vector.broadcast %cst_23 : f32 to vector<48x128xf32>
    %26 = arith.cmpf oge, %24, %25 : vector<48x128xf32>
    %c0_24 = arith.constant 0 : index
    %c0_25 = arith.constant 0 : index
    %27 = vector.load %arg4[%c0_24, %c0_25] : memref<6x128xf32, #tpu.memory_space<vmem>>, vector<1x128xf32>
    %28 = vector.broadcast %27 : vector<1x128xf32> to vector<48x128xf32>
    %29 = arith.mulf %24, %28 : vector<48x128xf32>
    %30 = arith.select %26, %24, %29 : vector<48x128xi1>, vector<48x128xf32>
    %31 = arith.truncf %30 : vector<48x128xf32> to vector<48x128xbf16>
    %32 = arith.mulf %31, %9 : vector<48x128xbf16>
    %c16_26 = arith.constant 16 : index
    %c0_27 = arith.constant 0 : index
    %33 = vector.load %arg9[%c16_26, %c0_27] : memref<80x128xbf16, #tpu.memory_space<vmem>>, vector<48x128xbf16>
    tpu.vector_store %arg9[%c16_26, %c0_27], %32 {strides = array<i32>} : memref<80x128xbf16, #tpu.memory_space<vmem>>, vector<48x128xbf16>,
    %c7_28 = arith.constant 7 : index
    %c0_29 = arith.constant 0 : index
    %34 = vector.load %arg9[%c7_28, %c0_29] : memref<80x128xbf16, #tpu.memory_space<vmem>>, vector<48x128xbf16>
    %c8_30 = arith.constant 8 : index
    %c0_31 = arith.constant 0 : index
    %35 = vector.load %arg9[%c8_30, %c0_31] : memref<80x128xbf16, #tpu.memory_space<vmem>>, vector<48x128xbf16>
    %c9_32 = arith.constant 9 : index
    %c0_33 = arith.constant 0 : index
    %36 = vector.load %arg9[%c9_32, %c0_33] : memref<80x128xbf16, #tpu.memory_space<vmem>>, vector<48x128xbf16>
    %c15_34 = arith.constant 15 : index
    %c0_35 = arith.constant 0 : index
    %37 = vector.load %arg9[%c15_34, %c0_35] : memref<80x128xbf16, #tpu.memory_space<vmem>>, vector<48x128xbf16>
    %c16_36 = arith.constant 16 : index
    %c0_37 = arith.constant 0 : index
    %38 = vector.load %arg9[%c16_36, %c0_37] : memref<80x128xbf16, #tpu.memory_space<vmem>>, vector<48x128xbf16>
    %c17_38 = arith.constant 17 : index
    %c0_39 = arith.constant 0 : index
    %39 = vector.load %arg9[%c17_38, %c0_39] : memref<80x128xbf16, #tpu.memory_space<vmem>>, vector<48x128xbf16>
    %c23_40 = arith.constant 23 : index
    %c0_41 = arith.constant 0 : index
    %40 = vector.load %arg9[%c23_40, %c0_41] : memref<80x128xbf16, #tpu.memory_space<vmem>>, vector<48x128xbf16>
    %c24_42 = arith.constant 24 : index
    %c0_43 = arith.constant 0 : index
    %41 = vector.load %arg9[%c24_42, %c0_43] : memref<80x128xbf16, #tpu.memory_space<vmem>>, vector<48x128xbf16>
    %c25_44 = arith.constant 25 : index
    %c0_45 = arith.constant 0 : index
    %42 = vector.load %arg9[%c25_44, %c0_45] : memref<80x128xbf16, #tpu.memory_space<vmem>>, vector<48x128xbf16>
    %43 = tpu.concatenate %34, %35, %36, %37, %38, %39, %40, %41, %42 in 1 : vector<48x128xbf16>, vector<48x128xbf16>, vector<48x128xbf16>, vector<48x128xbf16>, vector<48x128xbf16>, vector<48x128xbf16>, vector<48x128xbf16>, vector<48x128xbf16>, vector<48x128xbf16> -> vector<48x1152xbf16>
    %c1152 = arith.constant 1152 : index
    %c0_46 = arith.constant 0 : index
    %44 = vector.load %arg2[%c1152, %c0_46] : memref<6912x128xbf16, #tpu.memory_space<vmem>>, vector<1152x128xbf16>
    %cst_47 = arith.constant dense<0.000000e+00> : vector<48x128xf32>
    %45 = tpu.matmul %43, %44, %cst_47 {dimension_numbers = #tpu.dot_dimension_numbers<[1], [0], [0], [1], [0, 0, 1, 1], [], []>} : vector<48x1152xbf16>, vector<1152x128xbf16>, vector<48x128xf32> -> vector<48x128xf32>
    %c1 = arith.constant 1 : index
    %c0_48 = arith.constant 0 : index
    %46 = vector.load %arg3[%c1, %c0_48] : memref<6x128xf32, #tpu.memory_space<vmem>>, vector<1x128xf32>
    %47 = vector.broadcast %46 : vector<1x128xf32> to vector<48x128xf32>
    %48 = arith.addf %45, %47 : vector<48x128xf32>
    %cst_49 = arith.constant 0.000000e+00 : f32
    %49 = vector.broadcast %cst_49 : f32 to vector<48x128xf32>
    %50 = arith.cmpf oge, %48, %49 : vector<48x128xf32>
    %c1_50 = arith.constant 1 : index
    %c0_51 = arith.constant 0 : index
    %51 = vector.load %arg4[%c1_50, %c0_51] : memref<6x128xf32, #tpu.memory_space<vmem>>, vector<1x128xf32>
    %52 = vector.broadcast %51 : vector<1x128xf32> to vector<48x128xf32>
    %53 = arith.mulf %48, %52 : vector<48x128xf32>
    %54 = arith.select %50, %48, %53 : vector<48x128xi1>, vector<48x128xf32>
    %55 = arith.truncf %54 : vector<48x128xf32> to vector<48x128xbf16>
    %56 = arith.mulf %55, %9 : vector<48x128xbf16>
    %c16_52 = arith.constant 16 : index
    %c0_53 = arith.constant 0 : index
    %57 = vector.load %arg9[%c16_52, %c0_53] : memref<80x128xbf16, #tpu.memory_space<vmem>>, vector<48x128xbf16>
    tpu.vector_store %arg9[%c16_52, %c0_53], %56 {strides = array<i32>} : memref<80x128xbf16, #tpu.memory_space<vmem>>, vector<48x128xbf16>,
    %c7_54 = arith.constant 7 : index
    %c0_55 = arith.constant 0 : index
    %58 = vector.load %arg9[%c7_54, %c0_55] : memref<80x128xbf16, #tpu.memory_space<vmem>>, vector<48x128xbf16>
    %c8_56 = arith.constant 8 : index
    %c0_57 = arith.constant 0 : index
    %59 = vector.load %arg9[%c8_56, %c0_57] : memref<80x128xbf16, #tpu.memory_space<vmem>>, vector<48x128xbf16>
    %c9_58 = arith.constant 9 : index
    %c0_59 = arith.constant 0 : index
    %60 = vector.load %arg9[%c9_58, %c0_59] : memref<80x128xbf16, #tpu.memory_space<vmem>>, vector<48x128xbf16>
    %c15_60 = arith.constant 15 : index
    %c0_61 = arith.constant 0 : index
    %61 = vector.load %arg9[%c15_60, %c0_61] : memref<80x128xbf16, #tpu.memory_space<vmem>>, vector<48x128xbf16>
    %c16_62 = arith.constant 16 : index
    %c0_63 = arith.constant 0 : index
    %62 = vector.load %arg9[%c16_62, %c0_63] : memref<80x128xbf16, #tpu.memory_space<vmem>>, vector<48x128xbf16>
    %c17_64 = arith.constant 17 : index
    %c0_65 = arith.constant 0 : index
    %63 = vector.load %arg9[%c17_64, %c0_65] : memref<80x128xbf16, #tpu.memory_space<vmem>>, vector<48x128xbf16>
    %c23_66 = arith.constant 23 : index
    %c0_67 = arith.constant 0 : index
    %64 = vector.load %arg9[%c23_66, %c0_67] : memref<80x128xbf16, #tpu.memory_space<vmem>>, vector<48x128xbf16>
    %c24_68 = arith.constant 24 : index
    %c0_69 = arith.constant 0 : index
    %65 = vector.load %arg9[%c24_68, %c0_69] : memref<80x128xbf16, #tpu.memory_space<vmem>>, vector<48x128xbf16>
    %c25_70 = arith.constant 25 : index
    %c0_71 = arith.constant 0 : index
    %66 = vector.load %arg9[%c25_70, %c0_71] : memref<80x128xbf16, #tpu.memory_space<vmem>>, vector<48x128xbf16>
    %67 = tpu.concatenate %58, %59, %60, %61, %62, %63, %64, %65, %66 in 1 : vector<48x128xbf16>, vector<48x128xbf16>, vector<48x128xbf16>, vector<48x128xbf16>, vector<48x128xbf16>, vector<48x128xbf16>, vector<48x128xbf16>, vector<48x128xbf16>, vector<48x128xbf16> -> vector<48x1152xbf16>
    %c2304 = arith.constant 2304 : index
    %c0_72 = arith.constant 0 : index
    %68 = vector.load %arg2[%c2304, %c0_72] : memref<6912x128xbf16, #tpu.memory_space<vmem>>, vector<1152x128xbf16>
    %cst_73 = arith.constant dense<0.000000e+00> : vector<48x128xf32>
    %69 = tpu.matmul %67, %68, %cst_73 {dimension_numbers = #tpu.dot_dimension_numbers<[1], [0], [0], [1], [0, 0, 1, 1], [], []>} : vector<48x1152xbf16>, vector<1152x128xbf16>, vector<48x128xf32> -> vector<48x128xf32>
    %c2 = arith.constant 2 : index
    %c0_74 = arith.constant 0 : index
    %70 = vector.load %arg3[%c2, %c0_74] : memref<6x128xf32, #tpu.memory_space<vmem>>, vector<1x128xf32>
    %71 = vector.broadcast %70 : vector<1x128xf32> to vector<48x128xf32>
    %72 = arith.addf %69, %71 : vector<48x128xf32>
    %cst_75 = arith.constant 0.000000e+00 : f32
    %73 = vector.broadcast %cst_75 : f32 to vector<48x128xf32>
    %74 = arith.cmpf oge, %72, %73 : vector<48x128xf32>
    %c2_76 = arith.constant 2 : index
    %c0_77 = arith.constant 0 : index
    %75 = vector.load %arg4[%c2_76, %c0_77] : memref<6x128xf32, #tpu.memory_space<vmem>>, vector<1x128xf32>
    %76 = vector.broadcast %75 : vector<1x128xf32> to vector<48x128xf32>
    %77 = arith.mulf %72, %76 : vector<48x128xf32>
    %78 = arith.select %74, %72, %77 : vector<48x128xi1>, vector<48x128xf32>
    %79 = arith.truncf %78 : vector<48x128xf32> to vector<48x128xbf16>
    %80 = arith.mulf %79, %9 : vector<48x128xbf16>
    %c16_78 = arith.constant 16 : index
    %c0_79 = arith.constant 0 : index
    %81 = vector.load %arg9[%c16_78, %c0_79] : memref<80x128xbf16, #tpu.memory_space<vmem>>, vector<48x128xbf16>
    tpu.vector_store %arg9[%c16_78, %c0_79], %80 {strides = array<i32>} : memref<80x128xbf16, #tpu.memory_space<vmem>>, vector<48x128xbf16>,
    %c7_80 = arith.constant 7 : index
    %c0_81 = arith.constant 0 : index
    %82 = vector.load %arg9[%c7_80, %c0_81] : memref<80x128xbf16, #tpu.memory_space<vmem>>, vector<48x128xbf16>
    %c8_82 = arith.constant 8 : index
    %c0_83 = arith.constant 0 : index
    %83 = vector.load %arg9[%c8_82, %c0_83] : memref<80x128xbf16, #tpu.memory_space<vmem>>, vector<48x128xbf16>
    %c9_84 = arith.constant 9 : index
    %c0_85 = arith.constant 0 : index
    %84 = vector.load %arg9[%c9_84, %c0_85] : memref<80x128xbf16, #tpu.memory_space<vmem>>, vector<48x128xbf16>
    %c15_86 = arith.constant 15 : index
    %c0_87 = arith.constant 0 : index
    %85 = vector.load %arg9[%c15_86, %c0_87] : memref<80x128xbf16, #tpu.memory_space<vmem>>, vector<48x128xbf16>
    %c16_88 = arith.constant 16 : index
    %c0_89 = arith.constant 0 : index
    %86 = vector.load %arg9[%c16_88, %c0_89] : memref<80x128xbf16, #tpu.memory_space<vmem>>, vector<48x128xbf16>
    %c17_90 = arith.constant 17 : index
    %c0_91 = arith.constant 0 : index
    %87 = vector.load %arg9[%c17_90, %c0_91] : memref<80x128xbf16, #tpu.memory_space<vmem>>, vector<48x128xbf16>
    %c23_92 = arith.constant 23 : index
    %c0_93 = arith.constant 0 : index
    %88 = vector.load %arg9[%c23_92, %c0_93] : memref<80x128xbf16, #tpu.memory_space<vmem>>, vector<48x128xbf16>
    %c24_94 = arith.constant 24 : index
    %c0_95 = arith.constant 0 : index
    %89 = vector.load %arg9[%c24_94, %c0_95] : memref<80x128xbf16, #tpu.memory_space<vmem>>, vector<48x128xbf16>
    %c25_96 = arith.constant 25 : index
    %c0_97 = arith.constant 0 : index
    %90 = vector.load %arg9[%c25_96, %c0_97] : memref<80x128xbf16, #tpu.memory_space<vmem>>, vector<48x128xbf16>
    %91 = tpu.concatenate %82, %83, %84, %85, %86, %87, %88, %89, %90 in 1 : vector<48x128xbf16>, vector<48x128xbf16>, vector<48x128xbf16>, vector<48x128xbf16>, vector<48x128xbf16>, vector<48x128xbf16>, vector<48x128xbf16>, vector<48x128xbf16>, vector<48x128xbf16> -> vector<48x1152xbf16>
    %c3456 = arith.constant 3456 : index
    %c0_98 = arith.constant 0 : index
    %92 = vector.load %arg2[%c3456, %c0_98] : memref<6912x128xbf16, #tpu.memory_space<vmem>>, vector<1152x128xbf16>
    %cst_99 = arith.constant dense<0.000000e+00> : vector<48x128xf32>
    %93 = tpu.matmul %91, %92, %cst_99 {dimension_numbers = #tpu.dot_dimension_numbers<[1], [0], [0], [1], [0, 0, 1, 1], [], []>} : vector<48x1152xbf16>, vector<1152x128xbf16>, vector<48x128xf32> -> vector<48x128xf32>
    %c3 = arith.constant 3 : index
    %c0_100 = arith.constant 0 : index
    %94 = vector.load %arg3[%c3, %c0_100] : memref<6x128xf32, #tpu.memory_space<vmem>>, vector<1x128xf32>
    %95 = vector.broadcast %94 : vector<1x128xf32> to vector<48x128xf32>
    %96 = arith.addf %93, %95 : vector<48x128xf32>
    %cst_101 = arith.constant 0.000000e+00 : f32
    %97 = vector.broadcast %cst_101 : f32 to vector<48x128xf32>
    %98 = arith.cmpf oge, %96, %97 : vector<48x128xf32>
    %c3_102 = arith.constant 3 : index
    %c0_103 = arith.constant 0 : index
    %99 = vector.load %arg4[%c3_102, %c0_103] : memref<6x128xf32, #tpu.memory_space<vmem>>, vector<1x128xf32>
    %100 = vector.broadcast %99 : vector<1x128xf32> to vector<48x128xf32>
    %101 = arith.mulf %96, %100 : vector<48x128xf32>
    %102 = arith.select %98, %96, %101 : vector<48x128xi1>, vector<48x128xf32>
    %103 = arith.truncf %102 : vector<48x128xf32> to vector<48x128xbf16>
    %104 = arith.mulf %103, %9 : vector<48x128xbf16>
    %c16_104 = arith.constant 16 : index
    %c0_105 = arith.constant 0 : index
    %105 = vector.load %arg9[%c16_104, %c0_105] : memref<80x128xbf16, #tpu.memory_space<vmem>>, vector<48x128xbf16>
    tpu.vector_store %arg9[%c16_104, %c0_105], %104 {strides = array<i32>} : memref<80x128xbf16, #tpu.memory_space<vmem>>, vector<48x128xbf16>,
    %c7_106 = arith.constant 7 : index
    %c0_107 = arith.constant 0 : index
    %106 = vector.load %arg9[%c7_106, %c0_107] : memref<80x128xbf16, #tpu.memory_space<vmem>>, vector<48x128xbf16>
    %c8_108 = arith.constant 8 : index
    %c0_109 = arith.constant 0 : index
    %107 = vector.load %arg9[%c8_108, %c0_109] : memref<80x128xbf16, #tpu.memory_space<vmem>>, vector<48x128xbf16>
    %c9_110 = arith.constant 9 : index
    %c0_111 = arith.constant 0 : index
    %108 = vector.load %arg9[%c9_110, %c0_111] : memref<80x128xbf16, #tpu.memory_space<vmem>>, vector<48x128xbf16>
    %c15_112 = arith.constant 15 : index
    %c0_113 = arith.constant 0 : index
    %109 = vector.load %arg9[%c15_112, %c0_113] : memref<80x128xbf16, #tpu.memory_space<vmem>>, vector<48x128xbf16>
    %c16_114 = arith.constant 16 : index
    %c0_115 = arith.constant 0 : index
    %110 = vector.load %arg9[%c16_114, %c0_115] : memref<80x128xbf16, #tpu.memory_space<vmem>>, vector<48x128xbf16>
    %c17_116 = arith.constant 17 : index
    %c0_117 = arith.constant 0 : index
    %111 = vector.load %arg9[%c17_116, %c0_117] : memref<80x128xbf16, #tpu.memory_space<vmem>>, vector<48x128xbf16>
    %c23_118 = arith.constant 23 : index
    %c0_119 = arith.constant 0 : index
    %112 = vector.load %arg9[%c23_118, %c0_119] : memref<80x128xbf16, #tpu.memory_space<vmem>>, vector<48x128xbf16>
    %c24_120 = arith.constant 24 : index
    %c0_121 = arith.constant 0 : index
    %113 = vector.load %arg9[%c24_120, %c0_121] : memref<80x128xbf16, #tpu.memory_space<vmem>>, vector<48x128xbf16>
    %c25_122 = arith.constant 25 : index
    %c0_123 = arith.constant 0 : index
    %114 = vector.load %arg9[%c25_122, %c0_123] : memref<80x128xbf16, #tpu.memory_space<vmem>>, vector<48x128xbf16>
    %115 = tpu.concatenate %106, %107, %108, %109, %110, %111, %112, %113, %114 in 1 : vector<48x128xbf16>, vector<48x128xbf16>, vector<48x128xbf16>, vector<48x128xbf16>, vector<48x128xbf16>, vector<48x128xbf16>, vector<48x128xbf16>, vector<48x128xbf16>, vector<48x128xbf16> -> vector<48x1152xbf16>
    %c4608 = arith.constant 4608 : index
    %c0_124 = arith.constant 0 : index
    %116 = vector.load %arg2[%c4608, %c0_124] : memref<6912x128xbf16, #tpu.memory_space<vmem>>, vector<1152x128xbf16>
    %cst_125 = arith.constant dense<0.000000e+00> : vector<48x128xf32>
    %117 = tpu.matmul %115, %116, %cst_125 {dimension_numbers = #tpu.dot_dimension_numbers<[1], [0], [0], [1], [0, 0, 1, 1], [], []>} : vector<48x1152xbf16>, vector<1152x128xbf16>, vector<48x128xf32> -> vector<48x128xf32>
    %c4 = arith.constant 4 : index
    %c0_126 = arith.constant 0 : index
    %118 = vector.load %arg3[%c4, %c0_126] : memref<6x128xf32, #tpu.memory_space<vmem>>, vector<1x128xf32>
    %119 = vector.broadcast %118 : vector<1x128xf32> to vector<48x128xf32>
    %120 = arith.addf %117, %119 : vector<48x128xf32>
    %cst_127 = arith.constant 0.000000e+00 : f32
    %121 = vector.broadcast %cst_127 : f32 to vector<48x128xf32>
    %122 = arith.cmpf oge, %120, %121 : vector<48x128xf32>
    %c4_128 = arith.constant 4 : index
    %c0_129 = arith.constant 0 : index
    %123 = vector.load %arg4[%c4_128, %c0_129] : memref<6x128xf32, #tpu.memory_space<vmem>>, vector<1x128xf32>
    %124 = vector.broadcast %123 : vector<1x128xf32> to vector<48x128xf32>
    %125 = arith.mulf %120, %124 : vector<48x128xf32>
    %126 = arith.select %122, %120, %125 : vector<48x128xi1>, vector<48x128xf32>
    %127 = arith.truncf %126 : vector<48x128xf32> to vector<48x128xbf16>
    %128 = arith.mulf %127, %9 : vector<48x128xbf16>
    %c16_130 = arith.constant 16 : index
    %c0_131 = arith.constant 0 : index
    %129 = vector.load %arg9[%c16_130, %c0_131] : memref<80x128xbf16, #tpu.memory_space<vmem>>, vector<48x128xbf16>
    tpu.vector_store %arg9[%c16_130, %c0_131], %128 {strides = array<i32>} : memref<80x128xbf16, #tpu.memory_space<vmem>>, vector<48x128xbf16>,
    %c7_132 = arith.constant 7 : index
    %c0_133 = arith.constant 0 : index
    %130 = vector.load %arg9[%c7_132, %c0_133] : memref<80x128xbf16, #tpu.memory_space<vmem>>, vector<48x128xbf16>
    %c8_134 = arith.constant 8 : index
    %c0_135 = arith.constant 0 : index
    %131 = vector.load %arg9[%c8_134, %c0_135] : memref<80x128xbf16, #tpu.memory_space<vmem>>, vector<48x128xbf16>
    %c9_136 = arith.constant 9 : index
    %c0_137 = arith.constant 0 : index
    %132 = vector.load %arg9[%c9_136, %c0_137] : memref<80x128xbf16, #tpu.memory_space<vmem>>, vector<48x128xbf16>
    %c15_138 = arith.constant 15 : index
    %c0_139 = arith.constant 0 : index
    %133 = vector.load %arg9[%c15_138, %c0_139] : memref<80x128xbf16, #tpu.memory_space<vmem>>, vector<48x128xbf16>
    %c16_140 = arith.constant 16 : index
    %c0_141 = arith.constant 0 : index
    %134 = vector.load %arg9[%c16_140, %c0_141] : memref<80x128xbf16, #tpu.memory_space<vmem>>, vector<48x128xbf16>
    %c17_142 = arith.constant 17 : index
    %c0_143 = arith.constant 0 : index
    %135 = vector.load %arg9[%c17_142, %c0_143] : memref<80x128xbf16, #tpu.memory_space<vmem>>, vector<48x128xbf16>
    %c23_144 = arith.constant 23 : index
    %c0_145 = arith.constant 0 : index
    %136 = vector.load %arg9[%c23_144, %c0_145] : memref<80x128xbf16, #tpu.memory_space<vmem>>, vector<48x128xbf16>
    %c24_146 = arith.constant 24 : index
    %c0_147 = arith.constant 0 : index
    %137 = vector.load %arg9[%c24_146, %c0_147] : memref<80x128xbf16, #tpu.memory_space<vmem>>, vector<48x128xbf16>
    %c25_148 = arith.constant 25 : index
    %c0_149 = arith.constant 0 : index
    %138 = vector.load %arg9[%c25_148, %c0_149] : memref<80x128xbf16, #tpu.memory_space<vmem>>, vector<48x128xbf16>
    %139 = tpu.concatenate %130, %131, %132, %133, %134, %135, %136, %137, %138 in 1 : vector<48x128xbf16>, vector<48x128xbf16>, vector<48x128xbf16>, vector<48x128xbf16>, vector<48x128xbf16>, vector<48x128xbf16>, vector<48x128xbf16>, vector<48x128xbf16>, vector<48x128xbf16> -> vector<48x1152xbf16>
    %c5760 = arith.constant 5760 : index
    %c0_150 = arith.constant 0 : index
    %140 = vector.load %arg2[%c5760, %c0_150] : memref<6912x128xbf16, #tpu.memory_space<vmem>>, vector<1152x128xbf16>
    %cst_151 = arith.constant dense<0.000000e+00> : vector<48x128xf32>
    %141 = tpu.matmul %139, %140, %cst_151 {dimension_numbers = #tpu.dot_dimension_numbers<[1], [0], [0], [1], [0, 0, 1, 1], [], []>} : vector<48x1152xbf16>, vector<1152x128xbf16>, vector<48x128xf32> -> vector<48x128xf32>
    %c5 = arith.constant 5 : index
    %c0_152 = arith.constant 0 : index
    %142 = vector.load %arg3[%c5, %c0_152] : memref<6x128xf32, #tpu.memory_space<vmem>>, vector<1x128xf32>
    %143 = vector.broadcast %142 : vector<1x128xf32> to vector<48x128xf32>
    %144 = arith.addf %141, %143 : vector<48x128xf32>
    %cst_153 = arith.constant 0.000000e+00 : f32
    %145 = vector.broadcast %cst_153 : f32 to vector<48x128xf32>
    %146 = arith.cmpf oge, %144, %145 : vector<48x128xf32>
    %c5_154 = arith.constant 5 : index
    %c0_155 = arith.constant 0 : index
    %147 = vector.load %arg4[%c5_154, %c0_155] : memref<6x128xf32, #tpu.memory_space<vmem>>, vector<1x128xf32>
    %148 = vector.broadcast %147 : vector<1x128xf32> to vector<48x128xf32>
    %149 = arith.mulf %144, %148 : vector<48x128xf32>
    %150 = arith.select %146, %144, %149 : vector<48x128xi1>, vector<48x128xf32>
    %151 = arith.truncf %150 : vector<48x128xf32> to vector<48x128xbf16>
    %152 = arith.mulf %151, %9 : vector<48x128xbf16>
    %c16_156 = arith.constant 16 : index
    %c0_157 = arith.constant 0 : index
    %153 = vector.load %arg9[%c16_156, %c0_157] : memref<80x128xbf16, #tpu.memory_space<vmem>>, vector<48x128xbf16>
    tpu.vector_store %arg9[%c16_156, %c0_157], %152 {strides = array<i32>} : memref<80x128xbf16, #tpu.memory_space<vmem>>, vector<48x128xbf16>,
    %c7_158 = arith.constant 7 : index
    %c0_159 = arith.constant 0 : index
    %154 = vector.load %arg9[%c7_158, %c0_159] : memref<80x128xbf16, #tpu.memory_space<vmem>>, vector<48x128xbf16>
    %c8_160 = arith.constant 8 : index
    %c0_161 = arith.constant 0 : index
    %155 = vector.load %arg9[%c8_160, %c0_161] : memref<80x128xbf16, #tpu.memory_space<vmem>>, vector<48x128xbf16>
    %c9_162 = arith.constant 9 : index
    %c0_163 = arith.constant 0 : index
    %156 = vector.load %arg9[%c9_162, %c0_163] : memref<80x128xbf16, #tpu.memory_space<vmem>>, vector<48x128xbf16>
    %c15_164 = arith.constant 15 : index
    %c0_165 = arith.constant 0 : index
    %157 = vector.load %arg9[%c15_164, %c0_165] : memref<80x128xbf16, #tpu.memory_space<vmem>>, vector<48x128xbf16>
    %c16_166 = arith.constant 16 : index
    %c0_167 = arith.constant 0 : index
    %158 = vector.load %arg9[%c16_166, %c0_167] : memref<80x128xbf16, #tpu.memory_space<vmem>>, vector<48x128xbf16>
    %c17_168 = arith.constant 17 : index
    %c0_169 = arith.constant 0 : index
    %159 = vector.load %arg9[%c17_168, %c0_169] : memref<80x128xbf16, #tpu.memory_space<vmem>>, vector<48x128xbf16>
    %c23_170 = arith.constant 23 : index
    %c0_171 = arith.constant 0 : index
    %160 = vector.load %arg9[%c23_170, %c0_171] : memref<80x128xbf16, #tpu.memory_space<vmem>>, vector<48x128xbf16>
    %c24_172 = arith.constant 24 : index
    %c0_173 = arith.constant 0 : index
    %161 = vector.load %arg9[%c24_172, %c0_173] : memref<80x128xbf16, #tpu.memory_space<vmem>>, vector<48x128xbf16>
    %c25_174 = arith.constant 25 : index
    %c0_175 = arith.constant 0 : index
    %162 = vector.load %arg9[%c25_174, %c0_175] : memref<80x128xbf16, #tpu.memory_space<vmem>>, vector<48x128xbf16>
    %163 = tpu.concatenate %154, %155, %156, %157, %158, %159, %160, %161, %162 in 1 : vector<48x128xbf16>, vector<48x128xbf16>, vector<48x128xbf16>, vector<48x128xbf16>, vector<48x128xbf16>, vector<48x128xbf16>, vector<48x128xbf16>, vector<48x128xbf16>, vector<48x128xbf16> -> vector<48x1152xbf16>
    %c0_176 = arith.constant 0 : index
    %c0_177 = arith.constant 0 : index
    %164 = vector.load %arg6[%c0_176, %c0_177] : memref<1152x48xbf16, #tpu.memory_space<vmem>>, vector<1152x48xbf16>
    %cst_178 = arith.constant dense<0.000000e+00> : vector<48x48xf32>
    %165 = tpu.matmul %163, %164, %cst_178 {dimension_numbers = #tpu.dot_dimension_numbers<[1], [0], [0], [1], [0, 0, 1, 1], [], []>} : vector<48x1152xbf16>, vector<1152x48xbf16>, vector<48x48xf32> -> vector<48x48xf32>
    %c0_179 = arith.constant 0 : index
    %c0_180 = arith.constant 0 : index
    %166 = vector.load %arg7[%c0_179, %c0_180] : memref<1x48xf32, #tpu.memory_space<vmem>>, vector<1x48xf32>
    %167 = vector.broadcast %166 : vector<1x48xf32> to vector<48x48xf32>
    %168 = arith.addf %165, %167 : vector<48x48xf32>
    %169 = arith.truncf %168 : vector<48x48xf32> to vector<48x48xbf16>
    %c0_181 = arith.constant 0 : index
    %c0_182 = arith.constant 0 : index
    %c0_183 = arith.constant 0 : index
    %170 = vector.load %arg8[%c0_181, %c0_182, %c0_183] : memref<1x48x48xbf16, #tpu.memory_space<vmem>>, vector<1x48x48xbf16>
    %171 = vector.shape_cast %170 : vector<1x48x48xbf16> to vector<48x48xbf16>
    %172 = vector.shape_cast %169 : vector<48x48xbf16> to vector<1x48x48xbf16>
    tpu.vector_store %arg8[%c0_181, %c0_182, %c0_183], %172 {strides = array<i32>} : memref<1x48x48xbf16, #tpu.memory_space<vmem>>, vector<1x48x48xbf16>,
    return
  }
  func.func @transform_0(%arg0: i32) -> (i32, i32, i32) {
    %c0_i32 = arith.constant 0 : i32
    %c0_i32_0 = arith.constant 0 : i32
    %c0_i32_1 = arith.constant 0 : i32
    return %arg0, %c0_i32, %c0_i32_0 : i32, i32, i32
  }
  func.func @transform_1(%arg0: i32) -> (i32, i32) {
    %c0_i32 = arith.constant 0 : i32
    %c0_i32_0 = arith.constant 0 : i32
    %c0_i32_1 = arith.constant 0 : i32
    return %c0_i32, %c0_i32_0 : i32, i32
  }
  func.func @transform_2(%arg0: i32) -> (i32, i32) {
    %c0_i32 = arith.constant 0 : i32
    %c0_i32_0 = arith.constant 0 : i32
    %c0_i32_1 = arith.constant 0 : i32
    return %c0_i32, %c0_i32_0 : i32, i32
  }
  func.func @transform_3(%arg0: i32) -> (i32, i32) {
    %c0_i32 = arith.constant 0 : i32
    %c0_i32_0 = arith.constant 0 : i32
    %c0_i32_1 = arith.constant 0 : i32
    return %c0_i32, %c0_i32_0 : i32, i32
  }
  func.func @transform_4(%arg0: i32) -> (i32, i32) {
    %c0_i32 = arith.constant 0 : i32
    %c0_i32_0 = arith.constant 0 : i32
    %c0_i32_1 = arith.constant 0 : i32
    return %c0_i32, %c0_i32_0 : i32, i32
  }
  func.func @transform_5(%arg0: i32) -> (i32, i32) {
    %c0_i32 = arith.constant 0 : i32
    %c0_i32_0 = arith.constant 0 : i32
    %c0_i32_1 = arith.constant 0 : i32
    return %c0_i32, %c0_i32_0 : i32, i32
  }
  func.func @transform_6(%arg0: i32) -> (i32, i32) {
    %c0_i32 = arith.constant 0 : i32
    %c0_i32_0 = arith.constant 0 : i32
    %c0_i32_1 = arith.constant 0 : i32
    return %c0_i32, %c0_i32_0 : i32, i32
  }
  func.func @transform_7(%arg0: i32) -> (i32, i32, i32) {
    %c0_i32 = arith.constant 0 : i32
    %c0_i32_0 = arith.constant 0 : i32
    %c0_i32_1 = arith.constant 0 : i32
    return %arg0, %c0_i32, %c0_i32_0 : i32, i32, i32
  }
}

</mosaic_0001>

<llo_original>
// kernel: ifblock_forward.4
$region0: #{ifblock_forward.4}
  #allocation0 [shape = 'u32[]', space=smem, size = 0x4, offset = 0x4, fixed_abs, tag = 'smem constant byte address 0x4 - core index']
  #allocation1 [shape = 'u32[144,128]{1,0:T(1,128)}', space=vmem, size = 0x12000, scoped, tag = 'internal scratch']
  %s0 = inlined_call_operand.hbm [shape: bf16[2,56,256], index: 0, kind: input, shape index: {}]
  %s1 = inlined_call_operand.hbm [shape: bf16[1024,128], index: 1, kind: input, shape index: {}]
  %s2 = inlined_call_operand.hbm [shape: f32[1,128], index: 2, kind: input, shape index: {}]
  %s3 = inlined_call_operand.hbm [shape: f32[1,128], index: 3, kind: input, shape index: {}]
  %s4 = inlined_call_operand.hbm [shape: bf16[2,40,128], index: 4, kind: output, shape index: {}]
  %s5 = sld [smem:[#allocation0]]
  $region65: #{ifblock_forward.4} parent=0
    _
  %s7 = ssub.s32 1, %s5
  %s8 = scalar_select 0, %s7, %s5
  $region1: #{ifblock_forward.4} parent=0
    #allocation2 [shape = 'u8[57344]{0}', space=vmem, size = 0xe000, scoped, tag = 'input window, operand 0']
    #allocation3 [shape = 's32[2]{0}', space=sflag, size = 0x8, scoped, tag = 'scoped memory for ifblock_forward.4']
    #allocation4 [shape = 's32[2]{0}', space=sflag, size = 0x8, scoped, tag = 'scoped memory for ifblock_forward.4']
    #allocation5 [shape = 'u8[262144]{0}', space=vmem, size = 0x40000, scoped, tag = 'input window, operand 1, single buffered']
    #allocation6 [shape = 's32[1]{0}', space=sflag, size = 0x4, scoped, tag = 'scoped memory for ifblock_forward.4']
    #allocation7 [shape = 'u8[512]{0}', space=vmem, size = 0x400, scoped, tag = 'input window, operand 2, single buffered']
    #allocation8 [shape = 'u8[512]{0}', space=vmem, size = 0x400, scoped, tag = 'input window, operand 3, single buffered']
    #allocation9 [shape = 's32[1]{0}', space=sflag, size = 0x4, scoped, tag = 'scoped memory for ifblock_forward.4']
    #allocation10 [shape = 'u8[20480]{0}', space=vmem, size = 0x5000, scoped, tag = 'output window, operand 0']
    %9 = vsyncpa [#allocation3], 0
    %s10 = scalar_lea.sflag [#allocation3], 1
    %11 = vsyncpa %s10, 0
    %12 = vsyncpa [#allocation6], 0
    %13 = vsyncpa [#allocation9], 0
    %14 = vsyncpa [#allocation4], 0
    %s15 = scalar_lea.sflag [#allocation4], 1
    %16 = vsyncpa %s15, 0
    loop: start=0, step=1, limit=4
    $region2: #{ifblock_forward.4} parent=1 // loop_pre_header
      _
    $region3: #{ifblock_forward.4} parent=1 // loop_header
      %s18 = sphi 0, %s22
      %p19 = scmp.ge.s32.totalorder %s18, 4
      %s28 = sphi 0, %s30
      %s31 = sphi 0, %s28
      %s32 = sphi 0, %s31
      %s48 = sphi 0, %s32
      %s52 = sphi 0, %s52
      %s54 = sphi 0, %s52
      %s55 = sphi 0, %s54
      %s69 = sphi 0, %s55
      %s73 = sphi 0, %s73
      %s75 = sphi 0, %s73
      %s76 = sphi 0, %s75
      %s90 = sphi 0, %s76
      %s94 = sphi 0, %s94
      %s96 = sphi 0, %s94
      %s97 = sphi 0, %s96
      %s111 = sphi 0, %s97
      %s117 = sphi 0, %s119
      %s120 = sphi 0, %s117
      %s121 = sphi 0, %s120
      %s137 = sphi 0, %s121
    $region4: #{ifblock_forward.4} parent=1 // loop_header_branch
      %21 = sbr.rel (%p19) target = $region8
    $region5: #{ifblock_forward.4} parent=1 // loop_body
      %s23 = ssub.s32 %s18, 1
      %s24 = ssub.s32 %s18, 2
      %s25 = sadd.s32 %s18, 1
      %s26 = ssub.s32 %s18, %s25
      %p27 = scmp.eq.s32.totalorder %s26, 0
      %s29 = sadd.s32 %s28, 1
      %s30 = scalar_select %p27, %s28, %s29
      %p33 = pneg %p27
      %p34 = scmp.eq.s32.totalorder %s18, 1
      %p35 = por %p33, %p34
      %p36 = scmp.ne.s32.totalorder %s28, %s31
      %p37 = scmp.eq.s32.totalorder %s18, 0
      %p38 = por %p36, %p37
      %p39 = scmp.ne.s32.totalorder %s28, %s31
      %p40 = scmp.eq.s32.totalorder %s23, 1
      %p41 = por %p39, %p40
      %p42 = scmp.ne.s32.totalorder %s31, %s32
      %p43 = scmp.eq.s32.totalorder %s23, 0
      %p44 = por %p42, %p43
      %p45 = scmp.ne.s32.totalorder %s31, %s32
      %p46 = scmp.eq.s32.totalorder %s24, 1
      %p47 = por %p45, %p46
      %p49 = scmp.ne.s32.totalorder %s32, %s48
      %p50 = scmp.eq.s32.totalorder %s24, 0
      %p51 = por %p49, %p50
      %s53 = sadd.s32 %s52, 1
      %p56 = scmp.eq.s32.totalorder %s18, 1
      %p57 = scmp.ne.s32.totalorder %s52, %s54
      %p58 = scmp.eq.s32.totalorder %s18, 0
      %p59 = por %p57, %p58
      %p60 = scmp.ne.s32.totalorder %s52, %s54
      %p61 = scmp.eq.s32.totalorder %s23, 1
      %p62 = por %p60, %p61
      %p63 = scmp.ne.s32.totalorder %s54, %s55
      %p64 = scmp.eq.s32.totalorder %s23, 0
      %p65 = por %p63, %p64
      %p66 = scmp.ne.s32.totalorder %s54, %s55
      %p67 = scmp.eq.s32.totalorder %s24, 1
      %p68 = por %p66, %p67
      %p70 = scmp.ne.s32.totalorder %s55, %s69
      %p71 = scmp.eq.s32.totalorder %s24, 0
      %p72 = por %p70, %p71
      %s74 = sadd.s32 %s73, 1
      %p77 = scmp.eq.s32.totalorder %s18, 1
      %p78 = scmp.ne.s32.totalorder %s73, %s75
      %p79 = scmp.eq.s32.totalorder %s18, 0
      %p80 = por %p78, %p79
      %p81 = scmp.ne.s32.totalorder %s73, %s75
      %p82 = scmp.eq.s32.totalorder %s23, 1
      %p83 = por %p81, %p82
      %p84 = scmp.ne.s32.totalorder %s75, %s76
      %p85 = scmp.eq.s32.totalorder %s23, 0
      %p86 = por %p84, %p85
      %p87 = scmp.ne.s32.totalorder %s75, %s76
      %p88 = scmp.eq.s32.totalorder %s24, 1
      %p89 = por %p87, %p88
      %p91 = scmp.ne.s32.totalorder %s76, %s90
      %p92 = scmp.eq.s32.totalorder %s24, 0
      %p93 = por %p91, %p92
      %s95 = sadd.s32 %s94, 1
      %p98 = scmp.eq.s32.totalorder %s18, 1
      %p99 = scmp.ne.s32.totalorder %s94, %s96
      %p100 = scmp.eq.s32.totalorder %s18, 0
      %p101 = por %p99, %p100
      %p102 = scmp.ne.s32.totalorder %s94, %s96
      %p103 = scmp.eq.s32.totalorder %s23, 1
      %p104 = por %p102, %p103
      %p105 = scmp.ne.s32.totalorder %s96, %s97
      %p106 = scmp.eq.s32.totalorder %s23, 0
      %p107 = por %p105, %p106
      %p108 = scmp.ne.s32.totalorder %s96, %s97
      %p109 = scmp.eq.s32.totalorder %s24, 1
      %p110 = por %p108, %p109
      %p112 = scmp.ne.s32.totalorder %s97, %s111
      %p113 = scmp.eq.s32.totalorder %s24, 0
      %p114 = por %p112, %p113
      %s115 = ssub.s32 %s18, %s25
      %p116 = scmp.eq.s32.totalorder %s115, 0
      %s118 = sadd.s32 %s117, 1
      %s119 = scalar_select %p116, %s117, %s118
      %p122 = pneg %p116
      %p123 = scmp.eq.s32.totalorder %s18, 1
      %p124 = por %p122, %p123
      %p125 = scmp.ne.s32.totalorder %s117, %s120
      %p126 = scmp.eq.s32.totalorder %s18, 0
      %p127 = por %p125, %p126
      %p128 = scmp.ne.s32.totalorder %s117, %s120
      %p129 = scmp.eq.s32.totalorder %s23, 1
      %p130 = por %p128, %p129
      %p131 = scmp.ne.s32.totalorder %s120, %s121
      %p132 = scmp.eq.s32.totalorder %s23, 0
      %p133 = por %p131, %p132
      %p134 = scmp.ne.s32.totalorder %s120, %s121
      %p135 = scmp.eq.s32.totalorder %s24, 1
      %p136 = por %p134, %p135
      %p138 = scmp.ne.s32.totalorder %s121, %s137
      %p139 = scmp.eq.s32.totalorder %s24, 0
      %p140 = por %p138, %p139
      %p141 = scmp.le.s32.totalorder 1, %s18
      %p142 = scmp.lt.s32.totalorder %s18, 3
      %p143 = pnand %p141, %p142
      %p144 = pneg %p143
      // Predicated region
      $region9: #{ifblock_forward.4} parent=5 // pred_check
        _
      $region10: #{ifblock_forward.4} parent=5 // pred_check_branch
        %146 = sbr.rel (%p143) target = $region12
      $region11: #{ifblock_forward.4} parent=5 // pred_region
        %s147 = ssub.s32 %s18, 1
        // Predicated region
        $region13: #{ifblock_forward.4} parent=11 // pred_check
          %p148 = pneg %p65
        $region14: #{ifblock_forward.4} parent=11 // pred_check_branch
          %150 = sbr.rel (%p148) target = $region16
        $region15: #{ifblock_forward.4} parent=11 // pred_region
          %s152 = ssub.s32 8192, 8192
          %153 = vsyncadd [#allocation6], %s152
          %s154 = sshll.u32 [#allocation5], 4
          %s155 = int_to_ptr.vmem [resolvable:$true] %s154
          %160 = dma.hbm_to_vmem [thread:$0]  %s1, 8192, %s155, [#allocation6], 64, 64, 4
        $region16: #{ifblock_forward.4} parent=11 // pred_fallthru
          _
        // Predicated region
        $region17: #{ifblock_forward.4} parent=11 // pred_check
          %p161 = pneg %p86
        $region18: #{ifblock_forward.4} parent=11 // pred_check_branch
          %163 = sbr.rel (%p161) target = $region20
        $region19: #{ifblock_forward.4} parent=11 // pred_region
          %s165 = ssub.s32 16, 16
          %166 = vsyncadd [#allocation6], %s165
          %s168 = sshll.u32 [#allocation7], 4
          %s169 = int_to_ptr.vmem [resolvable:$true] %s168
          %171 = dma.hbm_to_vmem [thread:$0]  %s2, 16, %s169, [#allocation6]
        $region20: #{ifblock_forward.4} parent=11 // pred_fallthru
          _
        // Predicated region
        $region21: #{ifblock_forward.4} parent=11 // pred_check
          %p172 = pneg %p107
        $region22: #{ifblock_forward.4} parent=11 // pred_check_branch
          %174 = sbr.rel (%p172) target = $region24
        $region23: #{ifblock_forward.4} parent=11 // pred_region
          %s176 = ssub.s32 16, 16
          %177 = vsyncadd [#allocation9], %s176
          %s179 = sshll.u32 [#allocation8], 4
          %s180 = int_to_ptr.vmem [resolvable:$true] %s179
          %182 = dma.hbm_to_vmem [thread:$0]  %s3, 16, %s180, [#allocation9]
        $region24: #{ifblock_forward.4} parent=11 // pred_fallthru
          _
      $region12: #{ifblock_forward.4} parent=5 // pred_fallthru
        _
      %p183 = scmp.lt.s32.totalorder %s18, 2
      // Predicated region
      $region25: #{ifblock_forward.4} parent=5 // pred_check
        %p184 = pneg %p183
      $region26: #{ifblock_forward.4} parent=5 // pred_check_branch
        %186 = sbr.rel (%p184) target = $region28
      $region27: #{ifblock_forward.4} parent=5 // pred_region
        // Predicated region
        $region29: #{ifblock_forward.4} parent=27 // pred_check
          %p187 = pneg %p38
        $region30: #{ifblock_forward.4} parent=27 // pred_check_branch
          %189 = sbr.rel (%p187) target = $region32
        $region31: #{ifblock_forward.4} parent=27 // pred_region
          %s190 = sand.u32 %s28, 1
          %s191 = scalar_lea.sflag [#allocation3], %s190
          %s192 = sand.u32 %s28, 1
          %s193 = smul.addr %s192, 56
          %s194 = scalar_lea.vmem [#allocation2], %s193
          %s196 = ssub.s32 896, 896
          %197 = vsyncadd %s191, %s196
          %s198 = smul.addr %s18, 14
          %s199 = smul.addr %s198, 64
          %s200 = scalar_lea.hbm %s0, %s199
          %s201 = sshll.u32 %s194, 4
          %s202 = int_to_ptr.vmem [resolvable:$true] %s201
          %207 = dma.hbm_to_vmem [thread:$0]  %s200, 896, %s202, %s191, 128, 128, 8
        $region32: #{ifblock_forward.4} parent=27 // pred_fallthru
          _
      $region28: #{ifblock_forward.4} parent=5 // pred_fallthru
        _
      %p208 = scmp.le.s32.totalorder 1, %s18
      %p209 = scmp.lt.s32.totalorder %s18, 3
      %p210 = pnand %p208, %p209
      %p211 = pneg %p210
      // Predicated region
      $region33: #{ifblock_forward.4} parent=5 // pred_check
        _
      $region34: #{ifblock_forward.4} parent=5 // pred_check_branch
        %213 = sbr.rel (%p210) target = $region36
      $region35: #{ifblock_forward.4} parent=5 // pred_region
        %s214 = ssub.s32 %s18, 1
        %s215 = sand.u32 %s31, 1
        %s216 = scalar_lea.sflag [#allocation3], %s215
        %s217 = sand.u32 %s31, 1
        %s218 = smul.addr %s217, 56
        %s219 = scalar_lea.vmem [#allocation2], %s218
        // Predicated region
        $region37: #{ifblock_forward.4} parent=35 // pred_check
          %p220 = pneg %p44
        $region38: #{ifblock_forward.4} parent=35 // pred_check_branch
          %222 = sbr.rel (%p220) target = $region40
        $region39: #{ifblock_forward.4} parent=35 // pred_region
          %223 = dma.done %s216, 896
        $region40: #{ifblock_forward.4} parent=35 // pred_fallthru
          _
        // Predicated region
        $region41: #{ifblock_forward.4} parent=35 // pred_check
          %p224 = pneg %p65
        $region42: #{ifblock_forward.4} parent=35 // pred_check_branch
          %226 = sbr.rel (%p224) target = $region44
        $region43: #{ifblock_forward.4} parent=35 // pred_region
          %227 = dma.done [#allocation6], 8192
        $region44: #{ifblock_forward.4} parent=35 // pred_fallthru
          _
        // Predicated region
        $region45: #{ifblock_forward.4} parent=35 // pred_check
          %p228 = pneg %p86
        $region46: #{ifblock_forward.4} parent=35 // pred_check_branch
          %230 = sbr.rel (%p228) target = $region48
        $region47: #{ifblock_forward.4} parent=35 // pred_region
          %231 = dma.done [#allocation6], 16
        $region48: #{ifblock_forward.4} parent=35 // pred_fallthru
          _
        // Predicated region
        $region49: #{ifblock_forward.4} parent=35 // pred_check
          %p232 = pneg %p107
        $region50: #{ifblock_forward.4} parent=35 // pred_check_branch
          %234 = sbr.rel (%p232) target = $region52
        $region51: #{ifblock_forward.4} parent=35 // pred_region
          %235 = dma.done [#allocation9], 16
        $region52: #{ifblock_forward.4} parent=35 // pred_fallthru
          _
        %s236 = sand.u32 %s31, 1
        %s237 = scalar_lea.sflag [#allocation3], %s236
        %s238 = sand.u32 %s31, 1
        %s239 = smul.addr %s238, 56
        %s240 = scalar_lea.vmem [#allocation2], %s239
        %p241 = pneg %p44
        %p242 = pneg %p41
        %p243 = pneg %p65
        %p244 = pneg %p62
        %p245 = pneg %p86
        %p246 = pneg %p83
        %p247 = pneg %p107
        %p248 = pneg %p104
        %p249 = pneg %p133
        %p250 = pneg %p130
        %s251 = sand.u32 %s120, 1
        %s252 = scalar_lea.sflag [#allocation4], %s251
        %s253 = sand.u32 %s120, 1
        %s254 = smul.addr %s253, 20
        %s255 = scalar_lea.vmem [#allocation10], %s254
        %v257 = vld [vmem:[%s219] sm:$0x88]
        %v258 = vld [vmem:[%s219 + $0x8] sm:$0xff]
        %v259 = vld [vmem:[%s219 + $0x10] sm:$0xff]
        %v260 = vld [vmem:[%s219 + $0x18] sm:$0xff]
        %v261 = vld [vmem:[%s219 + $0x20] sm:$0xff]
        %v262 = vld [vmem:[%s219 + $0x28] sm:$0xff]
        %v263 = vld [vmem:[#allocation5] sm:$0xf]
        %v264 = vld [vmem:[#allocation5 + $0x4] sm:$0xf]
        %v265 = vld [vmem:[#allocation5 + $0x8] sm:$0xf]
        %v266 = vld [vmem:[#allocation5 + $0xc] sm:$0xf]
        %v267 = vld [vmem:[#allocation5 + $0x10] sm:$0xf]
        %v268 = vld [vmem:[#allocation5 + $0x14] sm:$0xf]
        %v269 = vld [vmem:[#allocation5 + $0x18] sm:$0xf]
        %v270 = vld [vmem:[#allocation5 + $0x1c] sm:$0xf]
        %v271 = vld [vmem:[#allocation5 + $0x20] sm:$0xf]
        %v272 = vld [vmem:[#allocation5 + $0x24] sm:$0xf]
        %v273 = vld [vmem:[#allocation5 + $0x28] sm:$0xf]
        %v274 = vld [vmem:[#allocation5 + $0x2c] sm:$0xf]
        %v275 = vld [vmem:[#allocation5 + $0x30] sm:$0xf]
        %v276 = vld [vmem:[#allocation5 + $0x34] sm:$0xf]
        %v277 = vld [vmem:[#allocation5 + $0x38] sm:$0xf]
        %v278 = vld [vmem:[#allocation5 + $0x3c] sm:$0xf]
        %v279 = vld [vmem:[#allocation5 + $0x40] sm:$0xf]
        %v280 = vld [vmem:[#allocation5 + $0x44] sm:$0xf]
        %v281 = vld [vmem:[#allocation5 + $0x48] sm:$0xf]
        %v282 = vld [vmem:[#allocation5 + $0x4c] sm:$0xf]
        %v283 = vld [vmem:[#allocation5 + $0x50] sm:$0xf]
        %v284 = vld [vmem:[#allocation5 + $0x54] sm:$0xf]
        %v285 = vld [vmem:[#allocation5 + $0x58] sm:$0xf]
        %v286 = vld [vmem:[#allocation5 + $0x5c] sm:$0xf]
        %v287 = vld [vmem:[#allocation5 + $0x60] sm:$0xf]
        %v288 = vld [vmem:[#allocation5 + $0x64] sm:$0xf]
        %v289 = vld [vmem:[#allocation5 + $0x68] sm:$0xf]
        %v290 = vld [vmem:[#allocation5 + $0x6c] sm:$0xf]
        %v291 = vld [vmem:[#allocation5 + $0x70] sm:$0xf]
        %v292 = vld [vmem:[#allocation5 + $0x74] sm:$0xf]
        %v293 = vld [vmem:[#allocation5 + $0x78] sm:$0xf]
        %v294 = vld [vmem:[#allocation5 + $0x7c] sm:$0xf]
        %v295 = vld [vmem:[#allocation5 + $0x80] sm:$0xf]
        %v296 = vld [vmem:[#allocation5 + $0x84] sm:$0xf]
        %v297 = vld [vmem:[#allocation5 + $0x88] sm:$0xf]
        %v298 = vld [vmem:[#allocation5 + $0x8c] sm:$0xf]
        %v299 = vld [vmem:[#allocation5 + $0x90] sm:$0xf]
        %v300 = vld [vmem:[#allocation5 + $0x94] sm:$0xf]
        %v301 = vld [vmem:[#allocation5 + $0x98] sm:$0xf]
        %v302 = vld [vmem:[#allocation5 + $0x9c] sm:$0xf]
        %v303 = vld [vmem:[#allocation5 + $0xa0] sm:$0xf]
        %v304 = vld [vmem:[#allocation5 + $0xa4] sm:$0xf]
        %v305 = vld [vmem:[#allocation5 + $0xa8] sm:$0xf]
        %v306 = vld [vmem:[#allocation5 + $0xac] sm:$0xf]
        %v307 = vld [vmem:[#allocation5 + $0xb0] sm:$0xf]
        %v308 = vld [vmem:[#allocation5 + $0xb4] sm:$0xf]
        %v309 = vld [vmem:[#allocation5 + $0xb8] sm:$0xf]
        %v310 = vld [vmem:[#allocation5 + $0xbc] sm:$0xf]
        %v311 = vld [vmem:[#allocation5 + $0xc0] sm:$0xf]
        %v312 = vld [vmem:[#allocation5 + $0xc4] sm:$0xf]
        %v313 = vld [vmem:[#allocation5 + $0xc8] sm:$0xf]
        %v314 = vld [vmem:[#allocation5 + $0xcc] sm:$0xf]
        %v315 = vld [vmem:[#allocation5 + $0xd0] sm:$0xf]
        %v316 = vld [vmem:[#allocation5 + $0xd4] sm:$0xf]
        %v317 = vld [vmem:[#allocation5 + $0xd8] sm:$0xf]
        %v318 = vld [vmem:[#allocation5 + $0xdc] sm:$0xf]
        %v319 = vld [vmem:[#allocation5 + $0xe0] sm:$0xf]
        %v320 = vld [vmem:[#allocation5 + $0xe4] sm:$0xf]
        %v321 = vld [vmem:[#allocation5 + $0xe8] sm:$0xf]
        %v322 = vld [vmem:[#allocation5 + $0xec] sm:$0xf]
        %v323 = vld [vmem:[#allocation5 + $0xf0] sm:$0xf]
        %v324 = vld [vmem:[#allocation5 + $0xf4] sm:$0xf]
        %v325 = vld [vmem:[#allocation5 + $0xf8] sm:$0xf]
        %v326 = vld [vmem:[#allocation5 + $0xfc] sm:$0xf]
        %v332 = vunpack.c.l.b16 %v258
        %v333 = vunpack.c.h.b16 %v258
        %v334 = vunpack.c.l.b16 %v259
        %v335 = vunpack.c.h.b16 %v259
        %v336 = vunpack.c.l.b16 %v260
        %v337 = vunpack.c.h.b16 %v260
        %v338 = vunpack.c.l.b16 %v261
        %v339 = vunpack.c.h.b16 %v261
        %v340 = vunpack.c.l.b16 %v262
        %v341 = vunpack.c.h.b16 %v262
        %v342 = vpack.c.b16 %v334, %v332
        %v343 = vpack.c.b16 %v335, %v333
        %v344 = vpack.c.b16 %v338, %v336
        %v345 = vpack.c.b16 %v339, %v337
        %v346 = vpack.c.b16 %v340, %v340
        %v347 = vpack.c.b16 %v341, %v341
        %v386 = vunpack.c.l.b16 %v295
        %v387 = vunpack.c.l.b16 %v296
        %v388 = vunpack.c.l.b16 %v297
        %v389 = vunpack.c.l.b16 %v298
        %v390 = vunpack.c.l.b16 %v299
        %v391 = vunpack.c.l.b16 %v300
        %v392 = vunpack.c.l.b16 %v301
        %v393 = vunpack.c.l.b16 %v302
        %v394 = vunpack.c.l.b16 %v303
        %v395 = vunpack.c.l.b16 %v304
        %v396 = vunpack.c.l.b16 %v305
        %v397 = vunpack.c.l.b16 %v306
        %v398 = vunpack.c.l.b16 %v307
        %v399 = vunpack.c.l.b16 %v308
        %v400 = vunpack.c.l.b16 %v309
        %v401 = vunpack.c.l.b16 %v310
        %v402 = vunpack.c.l.b16 %v311
        %v403 = vunpack.c.l.b16 %v312
        %v404 = vunpack.c.l.b16 %v313
        %v405 = vunpack.c.l.b16 %v314
        %v406 = vunpack.c.l.b16 %v315
        %v407 = vunpack.c.l.b16 %v316
        %v408 = vunpack.c.l.b16 %v317
        %v409 = vunpack.c.l.b16 %v318
        %v410 = vunpack.c.l.b16 %v319
        %v411 = vunpack.c.l.b16 %v320
        %v412 = vunpack.c.l.b16 %v321
        %v413 = vunpack.c.l.b16 %v322
        %v414 = vunpack.c.l.b16 %v323
        %v415 = vunpack.c.l.b16 %v324
        %v416 = vunpack.c.l.b16 %v325
        %v417 = vunpack.c.l.b16 %v326
        %v418 = vpack.c.b16 %v387, %v386
        %v419 = vpack.c.b16 %v389, %v388
        %v420 = vpack.c.b16 %v391, %v390
        %v421 = vpack.c.b16 %v393, %v392
        %v422 = vpack.c.b16 %v395, %v394
        %v423 = vpack.c.b16 %v397, %v396
        %v424 = vpack.c.b16 %v399, %v398
        %v425 = vpack.c.b16 %v401, %v400
        %v426 = vpack.c.b16 %v403, %v402
        %v427 = vpack.c.b16 %v405, %v404
        %v428 = vpack.c.b16 %v407, %v406
        %v429 = vpack.c.b16 %v409, %v408
        %v430 = vpack.c.b16 %v411, %v410
        %v431 = vpack.c.b16 %v413, %v412
        %v432 = vpack.c.b16 %v415, %v414
        %v433 = vpack.c.b16 %v417, %v416
        %450 = vmatprep.subr.bf16.mxu0 0
        %451 = vmatpush1.bf16.msra.mxu0 %v418
        %452 = vmatprep.subr.bf16.mxu0 0
        %453 = vmatpush1.bf16.msra.mxu0 %v419
        %454 = vmatprep.subr.bf16.mxu0 0
        %455 = vmatpush1.bf16.msra.mxu0 %v420
        %456 = vmatprep.subr.bf16.mxu0 0
        %457 = vmatpush1.bf16.msra.mxu0 %v421
        %458 = vmatprep.subr.bf16.mxu0 0
        %459 = vmatpush1.bf16.msra.mxu0 %v422
        %460 = vmatprep.subr.bf16.mxu0 0
        %461 = vmatpush1.bf16.msra.mxu0 %v423
        %462 = vmatprep.subr.bf16.mxu0 0
        %463 = vmatpush1.bf16.msra.mxu0 %v424
        %464 = vmatprep.subr.bf16.mxu0 0
        %465 = vmatpush1.bf16.msra.mxu0 %v425
        %466 = vmatprep.subr.bf16.mxu0 0
        %467 = vmatpush1.bf16.msra.mxu0 %v426
        %468 = vmatprep.subr.bf16.mxu0 0
        %469 = vmatpush1.bf16.msra.mxu0 %v427
        %470 = vmatprep.subr.bf16.mxu0 0
        %471 = vmatpush1.bf16.msra.mxu0 %v428
        %472 = vmatprep.subr.bf16.mxu0 0
        %473 = vmatpush1.bf16.msra.mxu0 %v429
        %474 = vmatprep.subr.bf16.mxu0 0
        %475 = vmatpush1.bf16.msra.mxu0 %v430
        %476 = vmatprep.subr.bf16.mxu0 0
        %477 = vmatpush1.bf16.msra.mxu0 %v431
        %478 = vmatprep.subr.bf16.mxu0 0
        %479 = vmatpush1.bf16.msra.mxu0 %v432
        %480 = vmatprep.subr.bf16.mxu0 0
        %481 = vmatpush1.bf16.msra.mxu0 %v433
        %482 = vmatprep.mubr.bf16.mxu0 %v343
        %483 = vmatmul.mubr.bf16.gmra.mrb[0].mxu0 %v342
        %v484 = vpop.f32.mrb[0].mxu0
        %v485 = vadd.f32 0.0, %v484
        %v486 = vpop.f32.mrb[0].mxu0
        %v487 = vpop.f32.mrb[0].mxu0
        %v488 = vadd.f32 0.0, %v487
        %v489 = vpop.f32.mrb[0].mxu0
        %490 = vmatprep.mubr.bf16.mxu0 %v345
        %491 = vmatmul.mubr.bf16.gmra.mrb[0].mxu0 %v344
        %v492 = vpop.f32.mrb[0].mxu0
        %v493 = vadd.f32 0.0, %v492
        %v494 = vpop.f32.mrb[0].mxu0
        %v495 = vpop.f32.mrb[0].mxu0
        %v496 = vadd.f32 0.0, %v495
        %v497 = vpop.f32.mrb[0].mxu0
        %498 = vmatprep.mubr.bf16.mxu0 %v347
        %499 = vmatmul.mubr.bf16.gmra.mrb[0].mxu0 %v346
        %v500 = vpop.f32.mrb[0].mxu0
        %v501 = vadd.f32 0.0, %v500
        %v502 = vpop.f32.mrb[0].mxu0
        %v503 = vpop.f32.mrb[0].mxu0
        %v504 = vpop.f32.mrb[0].mxu0
        %505 = vdwg.mxu0
        %v507 = vunpack.c.l.b16 %v257
        %v508 = vunpack.c.h.b16 %v257
        %v509 = vpack.c.b16 %v332, %v507
        %v510 = vpack.c.b16 %v333, %v508
        %v511 = vpack.c.b16 %v336, %v334
        %v512 = vpack.c.b16 %v337, %v335
        %v513 = vpack.c.b16 %v340, %v338
        %v514 = vpack.c.b16 %v341, %v339
        %vm515 = vsmask.f32 4352
        %v517 = vshrl.u32 %v509, 16
        %v519 = vrot.slane %v517, 3
        %v520 = vshll.u32 %v509, 16
        %v522 = vrot.slane %v520, 4
        %v523 = vor.u32 %v519, %v522
        %v525 = vshrl.u32 %v511, 16
        %v527 = vrot.slane %v525, 3
        %v528 = vshll.u32 %v511, 16
        %v530 = vrot.slane %v528, 4
        %v531 = vor.u32 %v527, %v530
        %v532 = vsel %vm515, %v523, %v531
        %v534 = vshrl.u32 %v510, 16
        %v536 = vrot.slane %v534, 3
        %v537 = vshll.u32 %v510, 16
        %v539 = vrot.slane %v537, 4
        %v540 = vor.u32 %v536, %v539
        %v542 = vshrl.u32 %v512, 16
        %v544 = vrot.slane %v542, 3
        %v545 = vshll.u32 %v512, 16
        %v547 = vrot.slane %v545, 4
        %v548 = vor.u32 %v544, %v547
        %v549 = vsel %vm515, %v540, %v548
        %v551 = vshrl.u32 %v513, 16
        %v553 = vrot.slane %v551, 3
        %v554 = vshll.u32 %v513, 16
        %v556 = vrot.slane %v554, 4
        %v557 = vor.u32 %v553, %v556
        %v558 = vsel %vm515, %v531, %v557
        %v560 = vshrl.u32 %v514, 16
        %v562 = vrot.slane %v560, 3
        %v563 = vshll.u32 %v514, 16
        %v565 = vrot.slane %v563, 4
        %v566 = vor.u32 %v562, %v565
        %v567 = vsel %vm515, %v548, %v566
        %v606 = vunpack.c.l.b16 %v263
        %v607 = vunpack.c.l.b16 %v264
        %v608 = vunpack.c.l.b16 %v265
        %v609 = vunpack.c.l.b16 %v266
        %v610 = vunpack.c.l.b16 %v267
        %v611 = vunpack.c.l.b16 %v268
        %v612 = vunpack.c.l.b16 %v269
        %v613 = vunpack.c.l.b16 %v270
        %v614 = vunpack.c.l.b16 %v271
        %v615 = vunpack.c.l.b16 %v272
        %v616 = vunpack.c.l.b16 %v273
        %v617 = vunpack.c.l.b16 %v274
        %v618 = vunpack.c.l.b16 %v275
        %v619 = vunpack.c.l.b16 %v276
        %v620 = vunpack.c.l.b16 %v277
        %v621 = vunpack.c.l.b16 %v278
        %v622 = vunpack.c.l.b16 %v279
        %v623 = vunpack.c.l.b16 %v280
        %v624 = vunpack.c.l.b16 %v281
        %v625 = vunpack.c.l.b16 %v282
        %v626 = vunpack.c.l.b16 %v283
        %v627 = vunpack.c.l.b16 %v284
        %v628 = vunpack.c.l.b16 %v285
        %v629 = vunpack.c.l.b16 %v286
        %v630 = vunpack.c.l.b16 %v287
        %v631 = vunpack.c.l.b16 %v288
        %v632 = vunpack.c.l.b16 %v289
        %v633 = vunpack.c.l.b16 %v290
        %v634 = vunpack.c.l.b16 %v291
        %v635 = vunpack.c.l.b16 %v292
        %v636 = vunpack.c.l.b16 %v293
        %v637 = vunpack.c.l.b16 %v294
        %v638 = vpack.c.b16 %v607, %v606
        %v639 = vpack.c.b16 %v609, %v608
        %v640 = vpack.c.b16 %v611, %v610
        %v641 = vpack.c.b16 %v613, %v612
        %v642 = vpack.c.b16 %v615, %v614
        %v643 = vpack.c.b16 %v617, %v616
        %v644 = vpack.c.b16 %v619, %v618
        %v645 = vpack.c.b16 %v621, %v620
        %v646 = vpack.c.b16 %v623, %v622
        %v647 = vpack.c.b16 %v625, %v624
        %v648 = vpack.c.b16 %v627, %v626
        %v649 = vpack.c.b16 %v629, %v628
        %v650 = vpack.c.b16 %v631, %v630
        %v651 = vpack.c.b16 %v633, %v632
        %v652 = vpack.c.b16 %v635, %v634
        %v653 = vpack.c.b16 %v637, %v636
        %670 = vmatprep.subr.bf16.mxu0 0
        %671 = vmatpush1.bf16.msra.mxu0 %v638
        %672 = vmatprep.subr.bf16.mxu0 0
        %673 = vmatpush1.bf16.msra.mxu0 %v639
        %674 = vmatprep.subr.bf16.mxu0 0
        %675 = vmatpush1.bf16.msra.mxu0 %v640
        %676 = vmatprep.subr.bf16.mxu0 0
        %677 = vmatpush1.bf16.msra.mxu0 %v641
        %678 = vmatprep.subr.bf16.mxu0 0
        %679 = vmatpush1.bf16.msra.mxu0 %v642
        %680 = vmatprep.subr.bf16.mxu0 0
        %681 = vmatpush1.bf16.msra.mxu0 %v643
        %682 = vmatprep.subr.bf16.mxu0 0
        %683 = vmatpush1.bf16.msra.mxu0 %v644
        %684 = vmatprep.subr.bf16.mxu0 0
        %685 = vmatpush1.bf16.msra.mxu0 %v645
        %686 = vmatprep.subr.bf16.mxu0 0
        %687 = vmatpush1.bf16.msra.mxu0 %v646
        %688 = vmatprep.subr.bf16.mxu0 0
        %689 = vmatpush1.bf16.msra.mxu0 %v647
        %690 = vmatprep.subr.bf16.mxu0 0
        %691 = vmatpush1.bf16.msra.mxu0 %v648
        %692 = vmatprep.subr.bf16.mxu0 0
        %693 = vmatpush1.bf16.msra.mxu0 %v649
        %694 = vmatprep.subr.bf16.mxu0 0
        %695 = vmatpush1.bf16.msra.mxu0 %v650
        %696 = vmatprep.subr.bf16.mxu0 0
        %697 = vmatpush1.bf16.msra.mxu0 %v651
        %698 = vmatprep.subr.bf16.mxu0 0
        %699 = vmatpush1.bf16.msra.mxu0 %v652
        %700 = vmatprep.subr.bf16.mxu0 0
        %701 = vmatpush1.bf16.msra.mxu0 %v653
        %702 = vmatprep.mubr.bf16.mxu0 %v549
        %703 = vmatmul.mubr.bf16.gmra.mrb[0].mxu0 %v532
        %v704 = vpop.f32.mrb[0].mxu0
        %v705 = vadd.f32 %v485, %v704
        %v706 = vpop.f32.mrb[0].mxu0
        %v707 = vpop.f32.mrb[0].mxu0
        %v708 = vadd.f32 %v488, %v707
        %v709 = vpop.f32.mrb[0].mxu0
        %710 = vmatprep.mubr.bf16.mxu0 %v567
        %711 = vmatmul.mubr.bf16.gmra.mrb[0].mxu0 %v558
        %v712 = vpop.f32.mrb[0].mxu0
        %v713 = vadd.f32 %v493, %v712
        %v714 = vpop.f32.mrb[0].mxu0
        %v715 = vpop.f32.mrb[0].mxu0
        %v716 = vadd.f32 %v496, %v715
        %v717 = vpop.f32.mrb[0].mxu0
        %718 = vmatprep.mubr.bf16.mxu0 %v566
        %719 = vmatmul.mubr.bf16.gmra.mrb[0].mxu0 %v557
        %v720 = vpop.f32.mrb[0].mxu0
        %v721 = vadd.f32 %v501, %v720
        %v722 = vpop.f32.mrb[0].mxu0
        %v723 = vpop.f32.mrb[0].mxu0
        %v724 = vpop.f32.mrb[0].mxu0
        %725 = vdwg.mxu0
        %v726 = vld [vmem:[%s219 + $0x8] sm:$0x88]
        %v727 = vld [vmem:[%s219 + $0x10] sm:$0xff]
        %v728 = vld [vmem:[%s219 + $0x18] sm:$0xff]
        %v729 = vld [vmem:[%s219 + $0x20] sm:$0xff]
        %v730 = vld [vmem:[%s219 + $0x28] sm:$0xff]
        %v731 = vld [vmem:[%s219 + $0x30] sm:$0xff]
        %v732 = vld [vmem:[#allocation5 + $0x100] sm:$0xf]
        %v733 = vld [vmem:[#allocation5 + $0x104] sm:$0xf]
        %v734 = vld [vmem:[#allocation5 + $0x108] sm:$0xf]
        %v735 = vld [vmem:[#allocation5 + $0x10c] sm:$0xf]
        %v736 = vld [vmem:[#allocation5 + $0x110] sm:$0xf]
        %v737 = vld [vmem:[#allocation5 + $0x114] sm:$0xf]
        %v738 = vld [vmem:[#allocation5 + $0x118] sm:$0xf]
        %v739 = vld [vmem:[#allocation5 + $0x11c] sm:$0xf]
        %v740 = vld [vmem:[#allocation5 + $0x120] sm:$0xf]
        %v741 = vld [vmem:[#allocation5 + $0x124] sm:$0xf]
        %v742 = vld [vmem:[#allocation5 + $0x128] sm:$0xf]
        %v743 = vld [vmem:[#allocation5 + $0x12c] sm:$0xf]
        %v744 = vld [vmem:[#allocation5 + $0x130] sm:$0xf]
        %v745 = vld [vmem:[#allocation5 + $0x134] sm:$0xf]
        %v746 = vld [vmem:[#allocation5 + $0x138] sm:$0xf]
        %v747 = vld [vmem:[#allocation5 + $0x13c] sm:$0xf]
        %v748 = vld [vmem:[#allocation5 + $0x140] sm:$0xf]
        %v749 = vld [vmem:[#allocation5 + $0x144] sm:$0xf]
        %v750 = vld [vmem:[#allocation5 + $0x148] sm:$0xf]
        %v751 = vld [vmem:[#allocation5 + $0x14c] sm:$0xf]
        %v752 = vld [vmem:[#allocation5 + $0x150] sm:$0xf]
        %v753 = vld [vmem:[#allocation5 + $0x154] sm:$0xf]
        %v754 = vld [vmem:[#allocation5 + $0x158] sm:$0xf]
        %v755 = vld [vmem:[#allocation5 + $0x15c] sm:$0xf]
        %v756 = vld [vmem:[#allocation5 + $0x160] sm:$0xf]
        %v757 = vld [vmem:[#allocation5 + $0x164] sm:$0xf]
        %v758 = vld [vmem:[#allocation5 + $0x168] sm:$0xf]
        %v759 = vld [vmem:[#allocation5 + $0x16c] sm:$0xf]
        %v760 = vld [vmem:[#allocation5 + $0x170] sm:$0xf]
        %v761 = vld [vmem:[#allocation5 + $0x174] sm:$0xf]
        %v762 = vld [vmem:[#allocation5 + $0x178] sm:$0xf]
        %v763 = vld [vmem:[#allocation5 + $0x17c] sm:$0xf]
        %v770 = vunpack.c.l.b16 %v726
        %v771 = vunpack.c.h.b16 %v726
        %v772 = vunpack.c.l.b16 %v727
        %v773 = vunpack.c.h.b16 %v727
        %v774 = vunpack.c.l.b16 %v728
        %v775 = vunpack.c.h.b16 %v728
        %v776 = vunpack.c.l.b16 %v729
        %v777 = vunpack.c.h.b16 %v729
        %v778 = vunpack.c.l.b16 %v730
        %v779 = vunpack.c.h.b16 %v730
        %v780 = vunpack.c.l.b16 %v731
        %v781 = vunpack.c.h.b16 %v731
        %v782 = vpack.c.b16 %v772, %v770
        %v783 = vpack.c.b16 %v773, %v771
        %v784 = vpack.c.b16 %v776, %v774
        %v785 = vpack.c.b16 %v777, %v775
        %v786 = vpack.c.b16 %v780, %v778
        %v787 = vpack.c.b16 %v781, %v779
        %v789 = vshrl.u32 %v782, 16
        %v791 = vrot.slane %v789, 3
        %v792 = vshll.u32 %v782, 16
        %v794 = vrot.slane %v792, 4
        %v795 = vor.u32 %v791, %v794
        %v797 = vshrl.u32 %v784, 16
        %v799 = vrot.slane %v797, 3
        %v800 = vshll.u32 %v784, 16
        %v802 = vrot.slane %v800, 4
        %v803 = vor.u32 %v799, %v802
        %v804 = vsel %vm515, %v795, %v803
        %v806 = vshrl.u32 %v783, 16
        %v808 = vrot.slane %v806, 3
        %v809 = vshll.u32 %v783, 16
        %v811 = vrot.slane %v809, 4
        %v812 = vor.u32 %v808, %v811
        %v814 = vshrl.u32 %v785, 16
        %v816 = vrot.slane %v814, 3
        %v817 = vshll.u32 %v785, 16
        %v819 = vrot.slane %v817, 4
        %v820 = vor.u32 %v816, %v819
        %v821 = vsel %vm515, %v812, %v820
        %v823 = vshrl.u32 %v786, 16
        %v825 = vrot.slane %v823, 3
        %v826 = vshll.u32 %v786, 16
        %v828 = vrot.slane %v826, 4
        %v829 = vor.u32 %v825, %v828
        %v830 = vsel %vm515, %v803, %v829
        %v832 = vshrl.u32 %v787, 16
        %v834 = vrot.slane %v832, 3
        %v835 = vshll.u32 %v787, 16
        %v837 = vrot.slane %v835, 4
        %v838 = vor.u32 %v834, %v837
        %v839 = vsel %vm515, %v820, %v838
        %v878 = vunpack.c.l.b16 %v732
        %v879 = vunpack.c.l.b16 %v733
        %v880 = vunpack.c.l.b16 %v734
        %v881 = vunpack.c.l.b16 %v735
        %v882 = vunpack.c.l.b16 %v736
        %v883 = vunpack.c.l.b16 %v737
        %v884 = vunpack.c.l.b16 %v738
        %v885 = vunpack.c.l.b16 %v739
        %v886 = vunpack.c.l.b16 %v740
        %v887 = vunpack.c.l.b16 %v741
        %v888 = vunpack.c.l.b16 %v742
        %v889 = vunpack.c.l.b16 %v743
        %v890 = vunpack.c.l.b16 %v744
        %v891 = vunpack.c.l.b16 %v745
        %v892 = vunpack.c.l.b16 %v746
        %v893 = vunpack.c.l.b16 %v747
        %v894 = vunpack.c.l.b16 %v748
        %v895 = vunpack.c.l.b16 %v749
        %v896 = vunpack.c.l.b16 %v750
        %v897 = vunpack.c.l.b16 %v751
        %v898 = vunpack.c.l.b16 %v752
        %v899 = vunpack.c.l.b16 %v753
        %v900 = vunpack.c.l.b16 %v754
        %v901 = vunpack.c.l.b16 %v755
        %v902 = vunpack.c.l.b16 %v756
        %v903 = vunpack.c.l.b16 %v757
        %v904 = vunpack.c.l.b16 %v758
        %v905 = vunpack.c.l.b16 %v759
        %v906 = vunpack.c.l.b16 %v760
        %v907 = vunpack.c.l.b16 %v761
        %v908 = vunpack.c.l.b16 %v762
        %v909 = vunpack.c.l.b16 %v763
        %v910 = vpack.c.b16 %v879, %v878
        %v911 = vpack.c.b16 %v881, %v880
        %v912 = vpack.c.b16 %v883, %v882
        %v913 = vpack.c.b16 %v885, %v884
        %v914 = vpack.c.b16 %v887, %v886
        %v915 = vpack.c.b16 %v889, %v888
        %v916 = vpack.c.b16 %v891, %v890
        %v917 = vpack.c.b16 %v893, %v892
        %v918 = vpack.c.b16 %v895, %v894
        %v919 = vpack.c.b16 %v897, %v896
        %v920 = vpack.c.b16 %v899, %v898
        %v921 = vpack.c.b16 %v901, %v900
        %v922 = vpack.c.b16 %v903, %v902
        %v923 = vpack.c.b16 %v905, %v904
        %v924 = vpack.c.b16 %v907, %v906
        %v925 = vpack.c.b16 %v909, %v908
        %942 = vmatprep.subr.bf16.mxu0 0
        %943 = vmatpush1.bf16.msra.mxu0 %v910
        %944 = vmatprep.subr.bf16.mxu0 0
        %945 = vmatpush1.bf16.msra.mxu0 %v911
        %946 = vmatprep.subr.bf16.mxu0 0
        %947 = vmatpush1.bf16.msra.mxu0 %v912
        %948 = vmatprep.subr.bf16.mxu0 0
        %949 = vmatpush1.bf16.msra.mxu0 %v913
        %950 = vmatprep.subr.bf16.mxu0 0
        %951 = vmatpush1.bf16.msra.mxu0 %v914
        %952 = vmatprep.subr.bf16.mxu0 0
        %953 = vmatpush1.bf16.msra.mxu0 %v915
        %954 = vmatprep.subr.bf16.mxu0 0
        %955 = vmatpush1.bf16.msra.mxu0 %v916
        %956 = vmatprep.subr.bf16.mxu0 0
        %957 = vmatpush1.bf16.msra.mxu0 %v917
        %958 = vmatprep.subr.bf16.mxu0 0
        %959 = vmatpush1.bf16.msra.mxu0 %v918
        %960 = vmatprep.subr.bf16.mxu0 0
        %961 = vmatpush1.bf16.msra.mxu0 %v919
        %962 = vmatprep.subr.bf16.mxu0 0
        %963 = vmatpush1.bf16.msra.mxu0 %v920
        %964 = vmatprep.subr.bf16.mxu0 0
        %965 = vmatpush1.bf16.msra.mxu0 %v921
        %966 = vmatprep.subr.bf16.mxu0 0
        %967 = vmatpush1.bf16.msra.mxu0 %v922
        %968 = vmatprep.subr.bf16.mxu0 0
        %969 = vmatpush1.bf16.msra.mxu0 %v923
        %970 = vmatprep.subr.bf16.mxu0 0
        %971 = vmatpush1.bf16.msra.mxu0 %v924
        %972 = vmatprep.subr.bf16.mxu0 0
        %973 = vmatpush1.bf16.msra.mxu0 %v925
        %974 = vmatprep.mubr.bf16.mxu0 %v821
        %975 = vmatmul.mubr.bf16.gmra.mrb[0].mxu0 %v804
        %v976 = vpop.f32.mrb[0].mxu0
        %v977 = vadd.f32 0.0, %v976
        %v978 = vpop.f32.mrb[0].mxu0
        %v979 = vpop.f32.mrb[0].mxu0
        %v980 = vadd.f32 0.0, %v979
        %v981 = vpop.f32.mrb[0].mxu0
        %982 = vmatprep.mubr.bf16.mxu0 %v839
        %983 = vmatmul.mubr.bf16.gmra.mrb[0].mxu0 %v830
        %v984 = vpop.f32.mrb[0].mxu0
        %v985 = vadd.f32 0.0, %v984
        %v986 = vpop.f32.mrb[0].mxu0
        %v987 = vpop.f32.mrb[0].mxu0
        %v988 = vadd.f32 0.0, %v987
        %v989 = vpop.f32.mrb[0].mxu0
        %990 = vmatprep.mubr.bf16.mxu0 %v838
        %991 = vmatmul.mubr.bf16.gmra.mrb[0].mxu0 %v829
        %v992 = vpop.f32.mrb[0].mxu0
        %v993 = vadd.f32 0.0, %v992
        %v994 = vpop.f32.mrb[0].mxu0
        %v995 = vpop.f32.mrb[0].mxu0
        %v996 = vpop.f32.mrb[0].mxu0
        %997 = vdwg.mxu0
        %v998 = vadd.f32 %v705, %v977
        %v999 = vadd.f32 %v708, %v980
        %v1000 = vadd.f32 %v713, %v985
        %v1001 = vadd.f32 %v716, %v988
        %v1002 = vadd.f32 %v721, %v993
        %v1003 = vld [vmem:[#allocation5 + $0x180] sm:$0xf]
        %v1004 = vld [vmem:[#allocation5 + $0x184] sm:$0xf]
        %v1005 = vld [vmem:[#allocation5 + $0x188] sm:$0xf]
        %v1006 = vld [vmem:[#allocation5 + $0x18c] sm:$0xf]
        %v1007 = vld [vmem:[#allocation5 + $0x190] sm:$0xf]
        %v1008 = vld [vmem:[#allocation5 + $0x194] sm:$0xf]
        %v1009 = vld [vmem:[#allocation5 + $0x198] sm:$0xf]
        %v1010 = vld [vmem:[#allocation5 + $0x19c] sm:$0xf]
        %v1011 = vld [vmem:[#allocation5 + $0x1a0] sm:$0xf]
        %v1012 = vld [vmem:[#allocation5 + $0x1a4] sm:$0xf]
        %v1013 = vld [vmem:[#allocation5 + $0x1a8] sm:$0xf]
        %v1014 = vld [vmem:[#allocation5 + $0x1ac] sm:$0xf]
        %v1015 = vld [vmem:[#allocation5 + $0x1b0] sm:$0xf]
        %v1016 = vld [vmem:[#allocation5 + $0x1b4] sm:$0xf]
        %v1017 = vld [vmem:[#allocation5 + $0x1b8] sm:$0xf]
        %v1018 = vld [vmem:[#allocation5 + $0x1bc] sm:$0xf]
        %v1019 = vld [vmem:[#allocation5 + $0x1c0] sm:$0xf]
        %v1020 = vld [vmem:[#allocation5 + $0x1c4] sm:$0xf]
        %v1021 = vld [vmem:[#allocation5 + $0x1c8] sm:$0xf]
        %v1022 = vld [vmem:[#allocation5 + $0x1cc] sm:$0xf]
        %v1023 = vld [vmem:[#allocation5 + $0x1d0] sm:$0xf]
        %v1024 = vld [vmem:[#allocation5 + $0x1d4] sm:$0xf]
        %v1025 = vld [vmem:[#allocation5 + $0x1d8] sm:$0xf]
        %v1026 = vld [vmem:[#allocation5 + $0x1dc] sm:$0xf]
        %v1027 = vld [vmem:[#allocation5 + $0x1e0] sm:$0xf]
        %v1028 = vld [vmem:[#allocation5 + $0x1e4] sm:$0xf]
        %v1029 = vld [vmem:[#allocation5 + $0x1e8] sm:$0xf]
        %v1030 = vld [vmem:[#allocation5 + $0x1ec] sm:$0xf]
        %v1031 = vld [vmem:[#allocation5 + $0x1f0] sm:$0xf]
        %v1032 = vld [vmem:[#allocation5 + $0x1f4] sm:$0xf]
        %v1033 = vld [vmem:[#allocation5 + $0x1f8] sm:$0xf]
        %v1034 = vld [vmem:[#allocation5 + $0x1fc] sm:$0xf]
        %v1035 = vpack.c.b16 %v774, %v772
        %v1036 = vpack.c.b16 %v775, %v773
        %v1037 = vpack.c.b16 %v778, %v776
        %v1038 = vpack.c.b16 %v779, %v777
        %v1039 = vpack.c.b16 %v780, %v780
        %v1040 = vpack.c.b16 %v781, %v781
        %v1079 = vunpack.c.l.b16 %v1003
        %v1080 = vunpack.c.l.b16 %v1004
        %v1081 = vunpack.c.l.b16 %v1005
        %v1082 = vunpack.c.l.b16 %v1006
        %v1083 = vunpack.c.l.b16 %v1007
        %v1084 = vunpack.c.l.b16 %v1008
        %v1085 = vunpack.c.l.b16 %v1009
        %v1086 = vunpack.c.l.b16 %v1010
        %v1087 = vunpack.c.l.b16 %v1011
        %v1088 = vunpack.c.l.b16 %v1012
        %v1089 = vunpack.c.l.b16 %v1013
        %v1090 = vunpack.c.l.b16 %v1014
        %v1091 = vunpack.c.l.b16 %v1015
        %v1092 = vunpack.c.l.b16 %v1016
        %v1093 = vunpack.c.l.b16 %v1017
        %v1094 = vunpack.c.l.b16 %v1018
        %v1095 = vunpack.c.l.b16 %v1019
        %v1096 = vunpack.c.l.b16 %v1020
        %v1097 = vunpack.c.l.b16 %v1021
        %v1098 = vunpack.c.l.b16 %v1022
        %v1099 = vunpack.c.l.b16 %v1023
        %v1100 = vunpack.c.l.b16 %v1024
        %v1101 = vunpack.c.l.b16 %v1025
        %v1102 = vunpack.c.l.b16 %v1026
        %v1103 = vunpack.c.l.b16 %v1027
        %v1104 = vunpack.c.l.b16 %v1028
        %v1105 = vunpack.c.l.b16 %v1029
        %v1106 = vunpack.c.l.b16 %v1030
        %v1107 = vunpack.c.l.b16 %v1031
        %v1108 = vunpack.c.l.b16 %v1032
        %v1109 = vunpack.c.l.b16 %v1033
        %v1110 = vunpack.c.l.b16 %v1034
        %v1111 = vpack.c.b16 %v1080, %v1079
        %v1112 = vpack.c.b16 %v1082, %v1081
        %v1113 = vpack.c.b16 %v1084, %v1083
        %v1114 = vpack.c.b16 %v1086, %v1085
        %v1115 = vpack.c.b16 %v1088, %v1087
        %v1116 = vpack.c.b16 %v1090, %v1089
        %v1117 = vpack.c.b16 %v1092, %v1091
        %v1118 = vpack.c.b16 %v1094, %v1093
        %v1119 = vpack.c.b16 %v1096, %v1095
        %v1120 = vpack.c.b16 %v1098, %v1097
        %v1121 = vpack.c.b16 %v1100, %v1099
        %v1122 = vpack.c.b16 %v1102, %v1101
        %v1123 = vpack.c.b16 %v1104, %v1103
        %v1124 = vpack.c.b16 %v1106, %v1105
        %v1125 = vpack.c.b16 %v1108, %v1107
        %v1126 = vpack.c.b16 %v1110, %v1109
        %1143 = vmatprep.subr.bf16.mxu0 0
        %1144 = vmatpush1.bf16.msra.mxu0 %v1111
        %1145 = vmatprep.subr.bf16.mxu0 0
        %1146 = vmatpush1.bf16.msra.mxu0 %v1112
        %1147 = vmatprep.subr.bf16.mxu0 0
        %1148 = vmatpush1.bf16.msra.mxu0 %v1113
        %1149 = vmatprep.subr.bf16.mxu0 0
        %1150 = vmatpush1.bf16.msra.mxu0 %v1114
        %1151 = vmatprep.subr.bf16.mxu0 0
        %1152 = vmatpush1.bf16.msra.mxu0 %v1115
        %1153 = vmatprep.subr.bf16.mxu0 0
        %1154 = vmatpush1.bf16.msra.mxu0 %v1116
        %1155 = vmatprep.subr.bf16.mxu0 0
        %1156 = vmatpush1.bf16.msra.mxu0 %v1117
        %1157 = vmatprep.subr.bf16.mxu0 0
        %1158 = vmatpush1.bf16.msra.mxu0 %v1118
        %1159 = vmatprep.subr.bf16.mxu0 0
        %1160 = vmatpush1.bf16.msra.mxu0 %v1119
        %1161 = vmatprep.subr.bf16.mxu0 0
        %1162 = vmatpush1.bf16.msra.mxu0 %v1120
        %1163 = vmatprep.subr.bf16.mxu0 0
        %1164 = vmatpush1.bf16.msra.mxu0 %v1121
        %1165 = vmatprep.subr.bf16.mxu0 0
        %1166 = vmatpush1.bf16.msra.mxu0 %v1122
        %1167 = vmatprep.subr.bf16.mxu0 0
        %1168 = vmatpush1.bf16.msra.mxu0 %v1123
        %1169 = vmatprep.subr.bf16.mxu0 0
        %1170 = vmatpush1.bf16.msra.mxu0 %v1124
        %1171 = vmatprep.subr.bf16.mxu0 0
        %1172 = vmatpush1.bf16.msra.mxu0 %v1125
        %1173 = vmatprep.subr.bf16.mxu0 0
        %1174 = vmatpush1.bf16.msra.mxu0 %v1126
        %1175 = vmatprep.mubr.bf16.mxu0 %v1036
        %1176 = vmatmul.mubr.bf16.gmra.mrb[0].mxu0 %v1035
        %v1177 = vpop.f32.mrb[0].mxu0
        %v1178 = vadd.f32 0.0, %v1177
        %v1179 = vpop.f32.mrb[0].mxu0
        %v1180 = vpop.f32.mrb[0].mxu0
        %v1181 = vadd.f32 0.0, %v1180
        %v1182 = vpop.f32.mrb[0].mxu0
        %1183 = vmatprep.mubr.bf16.mxu0 %v1038
        %1184 = vmatmul.mubr.bf16.gmra.mrb[0].mxu0 %v1037
        %v1185 = vpop.f32.mrb[0].mxu0
        %v1186 = vadd.f32 0.0, %v1185
        %v1187 = vpop.f32.mrb[0].mxu0
        %v1188 = vpop.f32.mrb[0].mxu0
        %v1189 = vadd.f32 0.0, %v1188
        %v1190 = vpop.f32.mrb[0].mxu0
        %1191 = vmatprep.mubr.bf16.mxu0 %v1040
        %1192 = vmatmul.mubr.bf16.gmra.mrb[0].mxu0 %v1039
        %v1193 = vpop.f32.mrb[0].mxu0
        %v1194 = vadd.f32 0.0, %v1193
        %v1195 = vpop.f32.mrb[0].mxu0
        %v1196 = vpop.f32.mrb[0].mxu0
        %v1197 = vpop.f32.mrb[0].mxu0
        %1198 = vdwg.mxu0
        %v1199 = vadd.f32 %v998, %v1178
        %v1200 = vadd.f32 %v999, %v1181
        %v1201 = vadd.f32 %v1000, %v1186
        %v1202 = vadd.f32 %v1001, %v1189
        %v1203 = vadd.f32 %v1002, %v1194
        %v1204 = vld [vmem:[#allocation7] sm:$0x1]
        %v1206 = vlaneseq
        %v1207 = vshrl.u32 %v1206, 7
        %v1208 = vsub.s32 0, %v1207
        %v1209 = vrot.slane %v1204, %v1208
        %v1211 = vadd.f32 %v1199, %v1209
        %v1212 = vadd.f32 %v1200, %v1209
        %v1213 = vadd.f32 %v1201, %v1209
        %v1214 = vadd.f32 %v1202, %v1209
        %v1215 = vadd.f32 %v1203, %v1209
        %vm1216 = vcmp.ge.f32.partialorder %v1211, 0.0
        %vm1217 = vcmp.ge.f32.partialorder %v1212, 0.0
        %vm1218 = vcmp.ge.f32.partialorder %v1213, 0.0
        %vm1219 = vcmp.ge.f32.partialorder %v1214, 0.0
        %vm1220 = vcmp.ge.f32.partialorder %v1215, 0.0
        %v1221 = vld [vmem:[#allocation8] sm:$0x1]
        %v1223 = vlaneseq
        %v1224 = vshrl.u32 %v1223, 7
        %v1225 = vsub.s32 0, %v1224
        %v1226 = vrot.slane %v1221, %v1225
        %v1228 = vmul.f32 %v1211, %v1226
        %v1229 = vmul.f32 %v1212, %v1226
        %v1230 = vmul.f32 %v1213, %v1226
        %v1231 = vmul.f32 %v1214, %v1226
        %v1232 = vmul.f32 %v1215, %v1226
        %v1233 = vsel %vm1216, %v1211, %v1228
        %v1234 = vsel %vm1217, %v1212, %v1229
        %v1235 = vsel %vm1218, %v1213, %v1230
        %v1236 = vsel %vm1219, %v1214, %v1231
        %v1237 = vsel %vm1220, %v1215, %v1232
        %v1238 = vpack.c.bf16 %v1234, %v1233
        %v1239 = vpack.c.bf16 %v1236, %v1235
        %v1240 = vpack.c.bf16 %v1237, %v1237
        %v1244 = vunpack.c.l.b16 %v1238
        %v1245 = vunpack.c.h.b16 %v1238
        %v1246 = vunpack.c.l.b16 %v1239
        %v1247 = vunpack.c.h.b16 %v1239
        %v1248 = vunpack.c.l.b16 %v1240
        %v1249 = vpack.c.b16 %v1244, %v1244
        %v1250 = vpack.c.b16 %v1245, %v1245
        %v1251 = vpack.c.b16 %v1246, %v1246
        %v1252 = vpack.c.b16 %v1247, %v1247
        %v1253 = vpack.c.b16 %v1248, %v1248
        %1259 = vst [vmem:[%s255] sm:$0xf] %v1249
        %1260 = vst [vmem:[%s255 + $0x4] sm:$0xf] %v1250
        %1261 = vst [vmem:[%s255 + $0x8] sm:$0xf] %v1251
        %1262 = vst [vmem:[%s255 + $0xc] sm:$0xf] %v1252
        %1263 = vst [vmem:[%s255 + $0x10] sm:$0xf] %v1253
        %s1264 = sand.u32 %s120, 1
        %s1265 = scalar_lea.sflag [#allocation4], %s1264
        %s1266 = sand.u32 %s120, 1
        %s1267 = smul.addr %s1266, 20
        %s1268 = scalar_lea.vmem [#allocation10], %s1267
        // Predicated region
        $region53: #{ifblock_forward.4} parent=35 // pred_check
          %p1269 = pneg %p130
        $region54: #{ifblock_forward.4} parent=35 // pred_check_branch
          %1271 = sbr.rel (%p1269) target = $region56
        $region55: #{ifblock_forward.4} parent=35 // pred_region
          %s1273 = ssub.s32 320, 320
          %1274 = vsyncadd %s1265, %s1273
          %s1275 = smul.addr %s23, 5
          %s1276 = smul.addr %s1275, 64
          %s1277 = scalar_lea.hbm %s4, %s1276
          %s1278 = sshll.u32 %s1268, 4
          %s1279 = int_to_ptr.vmem [resolvable:$true] %s1278
          %1284 = dma.vmem_to_hbm [thread:$0]  %s1279, 320, %s1277, %s1265, 64, 64, 4
        $region56: #{ifblock_forward.4} parent=35 // pred_fallthru
          _
      $region36: #{ifblock_forward.4} parent=5 // pred_fallthru
        _
      %p1285 = scmp.le.s32.totalorder 2, %s18
      // Predicated region
      $region57: #{ifblock_forward.4} parent=5 // pred_check
        %p1286 = pneg %p1285
      $region58: #{ifblock_forward.4} parent=5 // pred_check_branch
        %1288 = sbr.rel (%p1286) target = $region60
      $region59: #{ifblock_forward.4} parent=5 // pred_region
        %s1289 = ssub.s32 %s18, 2
        // Predicated region
        $region61: #{ifblock_forward.4} parent=59 // pred_check
          %p1290 = pneg %p136
        $region62: #{ifblock_forward.4} parent=59 // pred_check_branch
          %1292 = sbr.rel (%p1290) target = $region64
        $region63: #{ifblock_forward.4} parent=59 // pred_region
          %s1293 = sand.u32 %s121, 1
          %s1294 = scalar_lea.sflag [#allocation4], %s1293
          %s1295 = sand.u32 %s121, 1
          %s1296 = smul.addr %s1295, 20
          %s1297 = scalar_lea.vmem [#allocation10], %s1296
          %1298 = dma.done %s1294, 320
        $region64: #{ifblock_forward.4} parent=59 // pred_fallthru
          _
      $region60: #{ifblock_forward.4} parent=5 // pred_fallthru
        _
    $region6: #{ifblock_forward.4} parent=1 // loop_footer
      %s22 = sadd.s32 1, %s18
    $region7: #{ifblock_forward.4} parent=1 // loop_footer_branch
      %17 = sbr.rel target = $region3
    $region8: #{ifblock_forward.4} parent=1 // loop_exit
      _
    %1299 = vsyncpa [#allocation3], 1
    %s1300 = scalar_lea.sflag [#allocation3], 1
    %1301 = vsyncpa %s1300, 1
    %1302 = vsyncpa [#allocation6], 1
    %1303 = vsyncpa [#allocation9], 1
    %1304 = vsyncpa [#allocation4], 1
    %s1305 = scalar_lea.sflag [#allocation4], 1
    %1306 = vsyncpa %s1305, 1

// kernel: ifblock_forward.3
$region0: #{ifblock_forward.3}
  #allocation0 [shape = 'u32[]', space=smem, size = 0x4, offset = 0x4, fixed_abs, tag = 'smem constant byte address 0x4 - core index']
  #allocation1 [shape = 'u32[144,128]{1,0:T(1,128)}', space=vmem, size = 0x12000, scoped, tag = 'internal scratch']
  %s0 = inlined_call_operand.hbm [shape: bf16[2,168,32], index: 0, kind: input, shape index: {}]
  %s1 = inlined_call_operand.hbm [shape: bf16[128,64], index: 1, kind: input, shape index: {}]
  %s2 = inlined_call_operand.hbm [shape: f32[1,64], index: 2, kind: input, shape index: {}]
  %s3 = inlined_call_operand.hbm [shape: f32[1,64], index: 3, kind: input, shape index: {}]
  %s4 = inlined_call_operand.hbm [shape: bf16[2,144,64], index: 4, kind: output, shape index: {}]
  %s5 = sld [smem:[#allocation0]]
  $region65: #{ifblock_forward.3} parent=0
    _
  %s7 = ssub.s32 1, %s5
  %s8 = scalar_select 0, %s7, %s5
  $region1: #{ifblock_forward.3} parent=0
    #allocation2 [shape = 'u8[86016]{0}', space=vmem, size = 0x15000, scoped, tag = 'input window, operand 0']
    #allocation3 [shape = 's32[2]{0}', space=sflag, size = 0x8, scoped, tag = 'scoped memory for ifblock_forward.3']
    #allocation4 [shape = 's32[2]{0}', space=sflag, size = 0x8, scoped, tag = 'scoped memory for ifblock_forward.3']
    #allocation5 [shape = 'u8[32768]{0}', space=vmem, size = 0x8000, scoped, tag = 'input window, operand 1, single buffered']
    #allocation6 [shape = 's32[1]{0}', space=sflag, size = 0x4, scoped, tag = 'scoped memory for ifblock_forward.3']
    #allocation7 [shape = 'u8[512]{0}', space=vmem, size = 0x400, scoped, tag = 'input window, operand 2, single buffered']
    #allocation8 [shape = 'u8[512]{0}', space=vmem, size = 0x400, scoped, tag = 'input window, operand 3, single buffered']
    #allocation9 [shape = 's32[1]{0}', space=sflag, size = 0x4, scoped, tag = 'scoped memory for ifblock_forward.3']
    #allocation10 [shape = 'u8[73728]{0}', space=vmem, size = 0x12000, scoped, tag = 'output window, operand 0']
    %9 = vsyncpa [#allocation3], 0
    %s10 = scalar_lea.sflag [#allocation3], 1
    %11 = vsyncpa %s10, 0
    %12 = vsyncpa [#allocation6], 0
    %13 = vsyncpa [#allocation9], 0
    %14 = vsyncpa [#allocation4], 0
    %s15 = scalar_lea.sflag [#allocation4], 1
    %16 = vsyncpa %s15, 0
    loop: start=0, step=1, limit=4
    $region2: #{ifblock_forward.3} parent=1 // loop_pre_header
      _
    $region3: #{ifblock_forward.3} parent=1 // loop_header
      %s18 = sphi 0, %s22
      %p19 = scmp.ge.s32.totalorder %s18, 4
      %s28 = sphi 0, %s30
      %s31 = sphi 0, %s28
      %s32 = sphi 0, %s31
      %s48 = sphi 0, %s32
      %s52 = sphi 0, %s52
      %s54 = sphi 0, %s52
      %s55 = sphi 0, %s54
      %s69 = sphi 0, %s55
      %s73 = sphi 0, %s73
      %s75 = sphi 0, %s73
      %s76 = sphi 0, %s75
      %s90 = sphi 0, %s76
      %s94 = sphi 0, %s94
      %s96 = sphi 0, %s94
      %s97 = sphi 0, %s96
      %s111 = sphi 0, %s97
      %s117 = sphi 0, %s119
      %s120 = sphi 0, %s117
      %s121 = sphi 0, %s120
      %s137 = sphi 0, %s121
    $region4: #{ifblock_forward.3} parent=1 // loop_header_branch
      %21 = sbr.rel (%p19) target = $region8
    $region5: #{ifblock_forward.3} parent=1 // loop_body
      %s23 = ssub.s32 %s18, 1
      %s24 = ssub.s32 %s18, 2
      %s25 = sadd.s32 %s18, 1
      %s26 = ssub.s32 %s18, %s25
      %p27 = scmp.eq.s32.totalorder %s26, 0
      %s29 = sadd.s32 %s28, 1
      %s30 = scalar_select %p27, %s28, %s29
      %p33 = pneg %p27
      %p34 = scmp.eq.s32.totalorder %s18, 1
      %p35 = por %p33, %p34
      %p36 = scmp.ne.s32.totalorder %s28, %s31
      %p37 = scmp.eq.s32.totalorder %s18, 0
      %p38 = por %p36, %p37
      %p39 = scmp.ne.s32.totalorder %s28, %s31
      %p40 = scmp.eq.s32.totalorder %s23, 1
      %p41 = por %p39, %p40
      %p42 = scmp.ne.s32.totalorder %s31, %s32
      %p43 = scmp.eq.s32.totalorder %s23, 0
      %p44 = por %p42, %p43
      %p45 = scmp.ne.s32.totalorder %s31, %s32
      %p46 = scmp.eq.s32.totalorder %s24, 1
      %p47 = por %p45, %p46
      %p49 = scmp.ne.s32.totalorder %s32, %s48
      %p50 = scmp.eq.s32.totalorder %s24, 0
      %p51 = por %p49, %p50
      %s53 = sadd.s32 %s52, 1
      %p56 = scmp.eq.s32.totalorder %s18, 1
      %p57 = scmp.ne.s32.totalorder %s52, %s54
      %p58 = scmp.eq.s32.totalorder %s18, 0
      %p59 = por %p57, %p58
      %p60 = scmp.ne.s32.totalorder %s52, %s54
      %p61 = scmp.eq.s32.totalorder %s23, 1
      %p62 = por %p60, %p61
      %p63 = scmp.ne.s32.totalorder %s54, %s55
      %p64 = scmp.eq.s32.totalorder %s23, 0
      %p65 = por %p63, %p64
      %p66 = scmp.ne.s32.totalorder %s54, %s55
      %p67 = scmp.eq.s32.totalorder %s24, 1
      %p68 = por %p66, %p67
      %p70 = scmp.ne.s32.totalorder %s55, %s69
      %p71 = scmp.eq.s32.totalorder %s24, 0
      %p72 = por %p70, %p71
      %s74 = sadd.s32 %s73, 1
      %p77 = scmp.eq.s32.totalorder %s18, 1
      %p78 = scmp.ne.s32.totalorder %s73, %s75
      %p79 = scmp.eq.s32.totalorder %s18, 0
      %p80 = por %p78, %p79
      %p81 = scmp.ne.s32.totalorder %s73, %s75
      %p82 = scmp.eq.s32.totalorder %s23, 1
      %p83 = por %p81, %p82
      %p84 = scmp.ne.s32.totalorder %s75, %s76
      %p85 = scmp.eq.s32.totalorder %s23, 0
      %p86 = por %p84, %p85
      %p87 = scmp.ne.s32.totalorder %s75, %s76
      %p88 = scmp.eq.s32.totalorder %s24, 1
      %p89 = por %p87, %p88
      %p91 = scmp.ne.s32.totalorder %s76, %s90
      %p92 = scmp.eq.s32.totalorder %s24, 0
      %p93 = por %p91, %p92
      %s95 = sadd.s32 %s94, 1
      %p98 = scmp.eq.s32.totalorder %s18, 1
      %p99 = scmp.ne.s32.totalorder %s94, %s96
      %p100 = scmp.eq.s32.totalorder %s18, 0
      %p101 = por %p99, %p100
      %p102 = scmp.ne.s32.totalorder %s94, %s96
      %p103 = scmp.eq.s32.totalorder %s23, 1
      %p104 = por %p102, %p103
      %p105 = scmp.ne.s32.totalorder %s96, %s97
      %p106 = scmp.eq.s32.totalorder %s23, 0
      %p107 = por %p105, %p106
      %p108 = scmp.ne.s32.totalorder %s96, %s97
      %p109 = scmp.eq.s32.totalorder %s24, 1
      %p110 = por %p108, %p109
      %p112 = scmp.ne.s32.totalorder %s97, %s111
      %p113 = scmp.eq.s32.totalorder %s24, 0
      %p114 = por %p112, %p113
      %s115 = ssub.s32 %s18, %s25
      %p116 = scmp.eq.s32.totalorder %s115, 0
      %s118 = sadd.s32 %s117, 1
      %s119 = scalar_select %p116, %s117, %s118
      %p122 = pneg %p116
      %p123 = scmp.eq.s32.totalorder %s18, 1
      %p124 = por %p122, %p123
      %p125 = scmp.ne.s32.totalorder %s117, %s120
      %p126 = scmp.eq.s32.totalorder %s18, 0
      %p127 = por %p125, %p126
      %p128 = scmp.ne.s32.totalorder %s117, %s120
      %p129 = scmp.eq.s32.totalorder %s23, 1
      %p130 = por %p128, %p129
      %p131 = scmp.ne.s32.totalorder %s120, %s121
      %p132 = scmp.eq.s32.totalorder %s23, 0
      %p133 = por %p131, %p132
      %p134 = scmp.ne.s32.totalorder %s120, %s121
      %p135 = scmp.eq.s32.totalorder %s24, 1
      %p136 = por %p134, %p135
      %p138 = scmp.ne.s32.totalorder %s121, %s137
      %p139 = scmp.eq.s32.totalorder %s24, 0
      %p140 = por %p138, %p139
      %p141 = scmp.le.s32.totalorder 1, %s18
      %p142 = scmp.lt.s32.totalorder %s18, 3
      %p143 = pnand %p141, %p142
      %p144 = pneg %p143
      // Predicated region
      $region9: #{ifblock_forward.3} parent=5 // pred_check
        _
      $region10: #{ifblock_forward.3} parent=5 // pred_check_branch
        %146 = sbr.rel (%p143) target = $region12
      $region11: #{ifblock_forward.3} parent=5 // pred_region
        %s147 = ssub.s32 %s18, 1
        // Predicated region
        $region13: #{ifblock_forward.3} parent=11 // pred_check
          %p148 = pneg %p65
        $region14: #{ifblock_forward.3} parent=11 // pred_check_branch
          %150 = sbr.rel (%p148) target = $region16
        $region15: #{ifblock_forward.3} parent=11 // pred_region
          %s152 = ssub.s32 1024, 1024
          %153 = vsyncadd [#allocation6], %s152
          %s154 = sshll.u32 [#allocation5], 4
          %s155 = int_to_ptr.vmem [resolvable:$true] %s154
          %160 = dma.hbm_to_vmem [thread:$0]  %s1, 1024, %s155, [#allocation6], 64, 64, 4
        $region16: #{ifblock_forward.3} parent=11 // pred_fallthru
          _
        // Predicated region
        $region17: #{ifblock_forward.3} parent=11 // pred_check
          %p161 = pneg %p86
        $region18: #{ifblock_forward.3} parent=11 // pred_check_branch
          %163 = sbr.rel (%p161) target = $region20
        $region19: #{ifblock_forward.3} parent=11 // pred_region
          %s165 = ssub.s32 16, 16
          %166 = vsyncadd [#allocation6], %s165
          %s168 = sshll.u32 [#allocation7], 4
          %s169 = int_to_ptr.vmem [resolvable:$true] %s168
          %171 = dma.hbm_to_vmem [thread:$0]  %s2, 16, %s169, [#allocation6]
        $region20: #{ifblock_forward.3} parent=11 // pred_fallthru
          _
        // Predicated region
        $region21: #{ifblock_forward.3} parent=11 // pred_check
          %p172 = pneg %p107
        $region22: #{ifblock_forward.3} parent=11 // pred_check_branch
          %174 = sbr.rel (%p172) target = $region24
        $region23: #{ifblock_forward.3} parent=11 // pred_region
          %s176 = ssub.s32 16, 16
          %177 = vsyncadd [#allocation9], %s176
          %s179 = sshll.u32 [#allocation8], 4
          %s180 = int_to_ptr.vmem [resolvable:$true] %s179
          %182 = dma.hbm_to_vmem [thread:$0]  %s3, 16, %s180, [#allocation9]
        $region24: #{ifblock_forward.3} parent=11 // pred_fallthru
          _
      $region12: #{ifblock_forward.3} parent=5 // pred_fallthru
        _
      %p183 = scmp.lt.s32.totalorder %s18, 2
      // Predicated region
      $region25: #{ifblock_forward.3} parent=5 // pred_check
        %p184 = pneg %p183
      $region26: #{ifblock_forward.3} parent=5 // pred_check_branch
        %186 = sbr.rel (%p184) target = $region28
      $region27: #{ifblock_forward.3} parent=5 // pred_region
        // Predicated region
        $region29: #{ifblock_forward.3} parent=27 // pred_check
          %p187 = pneg %p38
        $region30: #{ifblock_forward.3} parent=27 // pred_check_branch
          %189 = sbr.rel (%p187) target = $region32
        $region31: #{ifblock_forward.3} parent=27 // pred_region
          %s190 = sand.u32 %s28, 1
          %s191 = scalar_lea.sflag [#allocation3], %s190
          %s192 = sand.u32 %s28, 1
          %s193 = smul.addr %s192, 84
          %s194 = scalar_lea.vmem [#allocation2], %s193
          %s196 = ssub.s32 1344, 1344
          %197 = vsyncadd %s191, %s196
          %s198 = smul.addr %s18, 21
          %s199 = smul.addr %s198, 64
          %s200 = scalar_lea.hbm %s0, %s199
          %s201 = sshll.u32 %s194, 4
          %s202 = int_to_ptr.vmem [resolvable:$true] %s201
          %207 = dma.hbm_to_vmem [thread:$0]  %s200, 1344, %s202, %s191, 64, 64, 4
        $region32: #{ifblock_forward.3} parent=27 // pred_fallthru
          _
      $region28: #{ifblock_forward.3} parent=5 // pred_fallthru
        _
      %p208 = scmp.le.s32.totalorder 1, %s18
      %p209 = scmp.lt.s32.totalorder %s18, 3
      %p210 = pnand %p208, %p209
      %p211 = pneg %p210
      // Predicated region
      $region33: #{ifblock_forward.3} parent=5 // pred_check
        _
      $region34: #{ifblock_forward.3} parent=5 // pred_check_branch
        %213 = sbr.rel (%p210) target = $region36
      $region35: #{ifblock_forward.3} parent=5 // pred_region
        %s214 = ssub.s32 %s18, 1
        %s215 = sand.u32 %s31, 1
        %s216 = scalar_lea.sflag [#allocation3], %s215
        %s217 = sand.u32 %s31, 1
        %s218 = smul.addr %s217, 84
        %s219 = scalar_lea.vmem [#allocation2], %s218
        // Predicated region
        $region37: #{ifblock_forward.3} parent=35 // pred_check
          %p220 = pneg %p44
        $region38: #{ifblock_forward.3} parent=35 // pred_check_branch
          %222 = sbr.rel (%p220) target = $region40
        $region39: #{ifblock_forward.3} parent=35 // pred_region
          %223 = dma.done %s216, 1344
        $region40: #{ifblock_forward.3} parent=35 // pred_fallthru
          _
        // Predicated region
        $region41: #{ifblock_forward.3} parent=35 // pred_check
          %p224 = pneg %p65
        $region42: #{ifblock_forward.3} parent=35 // pred_check_branch
          %226 = sbr.rel (%p224) target = $region44
        $region43: #{ifblock_forward.3} parent=35 // pred_region
          %227 = dma.done [#allocation6], 1024
        $region44: #{ifblock_forward.3} parent=35 // pred_fallthru
          _
        // Predicated region
        $region45: #{ifblock_forward.3} parent=35 // pred_check
          %p228 = pneg %p86
        $region46: #{ifblock_forward.3} parent=35 // pred_check_branch
          %230 = sbr.rel (%p228) target = $region48
        $region47: #{ifblock_forward.3} parent=35 // pred_region
          %231 = dma.done [#allocation6], 16
        $region48: #{ifblock_forward.3} parent=35 // pred_fallthru
          _
        // Predicated region
        $region49: #{ifblock_forward.3} parent=35 // pred_check
          %p232 = pneg %p107
        $region50: #{ifblock_forward.3} parent=35 // pred_check_branch
          %234 = sbr.rel (%p232) target = $region52
        $region51: #{ifblock_forward.3} parent=35 // pred_region
          %235 = dma.done [#allocation9], 16
        $region52: #{ifblock_forward.3} parent=35 // pred_fallthru
          _
        %s236 = sand.u32 %s31, 1
        %s237 = scalar_lea.sflag [#allocation3], %s236
        %s238 = sand.u32 %s31, 1
        %s239 = smul.addr %s238, 84
        %s240 = scalar_lea.vmem [#allocation2], %s239
        %p241 = pneg %p44
        %p242 = pneg %p41
        %p243 = pneg %p65
        %p244 = pneg %p62
        %p245 = pneg %p86
        %p246 = pneg %p83
        %p247 = pneg %p107
        %p248 = pneg %p104
        %p249 = pneg %p133
        %p250 = pneg %p130
        %s251 = sand.u32 %s120, 1
        %s252 = scalar_lea.sflag [#allocation4], %s251
        %s253 = sand.u32 %s120, 1
        %s254 = smul.addr %s253, 72
        %s255 = scalar_lea.vmem [#allocation10], %s254
        %v257 = vld [vmem:[%s219] sm:$0x8]
        %v258 = vld [vmem:[%s219 + $0x4] sm:$0xf]
        %v259 = vld [vmem:[%s219 + $0x8] sm:$0xf]
        %v260 = vld [vmem:[%s219 + $0xc] sm:$0xf]
        %v261 = vld [vmem:[%s219 + $0x10] sm:$0xf]
        %v262 = vld [vmem:[%s219 + $0x14] sm:$0xf]
        %v263 = vld [vmem:[%s219 + $0x18] sm:$0xf]
        %v264 = vld [vmem:[%s219 + $0x1c] sm:$0xf]
        %v265 = vld [vmem:[%s219 + $0x20] sm:$0xf]
        %v266 = vld [vmem:[%s219 + $0x24] sm:$0xf]
        %v267 = vld [vmem:[%s219 + $0x28] sm:$0xf]
        %v268 = vld [vmem:[%s219 + $0x2c] sm:$0xf]
        %v269 = vld [vmem:[%s219 + $0x30] sm:$0xf]
        %v270 = vld [vmem:[%s219 + $0x34] sm:$0xf]
        %v271 = vld [vmem:[%s219 + $0x38] sm:$0xf]
        %v272 = vld [vmem:[%s219 + $0x3c] sm:$0xf]
        %v273 = vld [vmem:[%s219 + $0x40] sm:$0xf]
        %v274 = vld [vmem:[%s219 + $0x44] sm:$0xf]
        %v275 = vld [vmem:[%s219 + $0x48] sm:$0xf]
        %v276 = vld [vmem:[#allocation5] sm:$0xf]
        %v277 = vld [vmem:[#allocation5 + $0x4] sm:$0xf]
        %v278 = vld [vmem:[#allocation5 + $0x8] sm:$0xf]
        %v279 = vld [vmem:[#allocation5 + $0xc] sm:$0xf]
        %v280 = vld [vmem:[#allocation5 + $0x10] sm:$0xf]
        %v281 = vld [vmem:[#allocation5 + $0x14] sm:$0xf]
        %v282 = vld [vmem:[#allocation5 + $0x18] sm:$0xf]
        %v283 = vld [vmem:[#allocation5 + $0x1c] sm:$0xf]
        %v302 = vunpack.c.l.b16 %v258
        %v303 = vunpack.c.l.b16 %v259
        %v304 = vunpack.c.l.b16 %v260
        %v305 = vunpack.c.l.b16 %v261
        %v306 = vunpack.c.l.b16 %v262
        %v307 = vunpack.c.l.b16 %v263
        %v308 = vunpack.c.l.b16 %v264
        %v309 = vunpack.c.l.b16 %v265
        %v310 = vunpack.c.l.b16 %v266
        %v311 = vunpack.c.l.b16 %v267
        %v312 = vunpack.c.l.b16 %v268
        %v313 = vunpack.c.l.b16 %v269
        %v314 = vunpack.c.l.b16 %v270
        %v315 = vunpack.c.l.b16 %v271
        %v316 = vunpack.c.l.b16 %v272
        %v317 = vunpack.c.l.b16 %v273
        %v318 = vunpack.c.l.b16 %v274
        %v319 = vunpack.c.l.b16 %v275
        %v320 = vpack.c.b16 %v303, %v302
        %v321 = vpack.c.b16 %v305, %v304
        %v322 = vpack.c.b16 %v307, %v306
        %v323 = vpack.c.b16 %v309, %v308
        %v324 = vpack.c.b16 %v311, %v310
        %v325 = vpack.c.b16 %v313, %v312
        %v326 = vpack.c.b16 %v315, %v314
        %v327 = vpack.c.b16 %v317, %v316
        %v328 = vpack.c.b16 %v319, %v318
        %v333 = vunpack.c.l.b16 %v280
        %v334 = vunpack.c.l.b16 %v281
        %v335 = vunpack.c.l.b16 %v282
        %v336 = vunpack.c.l.b16 %v283
        %v337 = vpack.c.b16 %v334, %v333
        %v338 = vpack.c.b16 %v336, %v335
        %vm341 = vcmask 261120
        %v343 = vsel %vm341, %v320, 0
        %v346 = vsel %vm341, %v321, 0
        %v349 = vsel %vm341, %v322, 0
        %v352 = vsel %vm341, %v323, 0
        %v355 = vsel %vm341, %v324, 0
        %v358 = vsel %vm341, %v325, 0
        %v361 = vsel %vm341, %v326, 0
        %v364 = vsel %vm341, %v327, 0
        %v367 = vsel %vm341, %v328, 0
        %369 = vmatprep.subr.bf16.mxu0 0
        %370 = vmatpush1.bf16.msra.mxu0 %v337
        %371 = vmatprep.subr.bf16.mxu0 0
        %372 = vmatpush1.bf16.msra.mxu0 %v338
        %373 = vmatprep.subr.bf16.mxu0 0
        %374 = vmatpush1.bf16.msra.mxu0 0
        %375 = vmatprep.subr.bf16.mxu0 0
        %376 = vmatpush1.bf16.msra.mxu0 0
        %377 = vmatprep.subr.bf16.mxu0 0
        %378 = vmatpush1.bf16.msra.mxu0 0
        %379 = vmatprep.subr.bf16.mxu0 0
        %380 = vmatpush1.bf16.msra.mxu0 0
        %381 = vmatprep.subr.bf16.mxu0 0
        %382 = vmatpush1.bf16.msra.mxu0 0
        %383 = vmatprep.subr.bf16.mxu0 0
        %384 = vmatpush1.bf16.msra.mxu0 0
        %385 = vmatprep.subr.bf16.mxu0 0
        %386 = vmatpush1.bf16.msra.mxu0 0
        %387 = vmatprep.subr.bf16.mxu0 0
        %388 = vmatpush1.bf16.msra.mxu0 0
        %389 = vmatprep.subr.bf16.mxu0 0
        %390 = vmatpush1.bf16.msra.mxu0 0
        %391 = vmatprep.subr.bf16.mxu0 0
        %392 = vmatpush1.bf16.msra.mxu0 0
        %393 = vmatprep.subr.bf16.mxu0 0
        %394 = vmatpush1.bf16.msra.mxu0 0
        %395 = vmatprep.subr.bf16.mxu0 0
        %396 = vmatpush1.bf16.msra.mxu0 0
        %397 = vmatprep.subr.bf16.mxu0 0
        %398 = vmatpush1.bf16.msra.mxu0 0
        %399 = vmatprep.subr.bf16.mxu0 0
        %400 = vmatpush1.bf16.msra.mxu0 0
        %401 = vmatprep.mubr.bf16.mxu0 0
        %402 = vmatmul.mubr.bf16.gmra.mrb[0].mxu0 %v343
        %v403 = vpop.f32.mrb[0].mxu0
        %v404 = vadd.f32 0.0, %v403
        %v405 = vpop.f32.mrb[0].mxu0
        %v406 = vpop.f32.mrb[0].mxu0
        %v407 = vadd.f32 0.0, %v406
        %v408 = vpop.f32.mrb[0].mxu0
        %409 = vmatprep.mubr.bf16.mxu0 0
        %410 = vmatmul.mubr.bf16.gmra.mrb[0].mxu0 %v346
        %v411 = vpop.f32.mrb[0].mxu0
        %v412 = vadd.f32 0.0, %v411
        %v413 = vpop.f32.mrb[0].mxu0
        %v414 = vpop.f32.mrb[0].mxu0
        %v415 = vadd.f32 0.0, %v414
        %v416 = vpop.f32.mrb[0].mxu0
        %417 = vmatprep.mubr.bf16.mxu0 0
        %418 = vmatmul.mubr.bf16.gmra.mrb[0].mxu0 %v349
        %v419 = vpop.f32.mrb[0].mxu0
        %v420 = vadd.f32 0.0, %v419
        %v421 = vpop.f32.mrb[0].mxu0
        %v422 = vpop.f32.mrb[0].mxu0
        %v423 = vadd.f32 0.0, %v422
        %v424 = vpop.f32.mrb[0].mxu0
        %425 = vmatprep.mubr.bf16.mxu0 0
        %426 = vmatmul.mubr.bf16.gmra.mrb[0].mxu0 %v352
        %v427 = vpop.f32.mrb[0].mxu0
        %v428 = vadd.f32 0.0, %v427
        %v429 = vpop.f32.mrb[0].mxu0
        %v430 = vpop.f32.mrb[0].mxu0
        %v431 = vadd.f32 0.0, %v430
        %v432 = vpop.f32.mrb[0].mxu0
        %433 = vmatprep.mubr.bf16.mxu0 0
        %434 = vmatmul.mubr.bf16.gmra.mrb[0].mxu0 %v355
        %v435 = vpop.f32.mrb[0].mxu0
        %v436 = vadd.f32 0.0, %v435
        %v437 = vpop.f32.mrb[0].mxu0
        %v438 = vpop.f32.mrb[0].mxu0
        %v439 = vadd.f32 0.0, %v438
        %v440 = vpop.f32.mrb[0].mxu0
        %441 = vmatprep.mubr.bf16.mxu0 0
        %442 = vmatmul.mubr.bf16.gmra.mrb[0].mxu0 %v358
        %v443 = vpop.f32.mrb[0].mxu0
        %v444 = vadd.f32 0.0, %v443
        %v445 = vpop.f32.mrb[0].mxu0
        %v446 = vpop.f32.mrb[0].mxu0
        %v447 = vadd.f32 0.0, %v446
        %v448 = vpop.f32.mrb[0].mxu0
        %449 = vmatprep.mubr.bf16.mxu0 0
        %450 = vmatmul.mubr.bf16.gmra.mrb[0].mxu0 %v361
        %v451 = vpop.f32.mrb[0].mxu0
        %v452 = vadd.f32 0.0, %v451
        %v453 = vpop.f32.mrb[0].mxu0
        %v454 = vpop.f32.mrb[0].mxu0
        %v455 = vadd.f32 0.0, %v454
        %v456 = vpop.f32.mrb[0].mxu0
        %457 = vmatprep.mubr.bf16.mxu0 0
        %458 = vmatmul.mubr.bf16.gmra.mrb[0].mxu0 %v364
        %v459 = vpop.f32.mrb[0].mxu0
        %v460 = vadd.f32 0.0, %v459
        %v461 = vpop.f32.mrb[0].mxu0
        %v462 = vpop.f32.mrb[0].mxu0
        %v463 = vadd.f32 0.0, %v462
        %v464 = vpop.f32.mrb[0].mxu0
        %465 = vmatprep.mubr.bf16.mxu0 0
        %466 = vmatmul.mubr.bf16.gmra.mrb[0].mxu0 %v367
        %v467 = vpop.f32.mrb[0].mxu0
        %v468 = vadd.f32 0.0, %v467
        %v469 = vpop.f32.mrb[0].mxu0
        %v470 = vpop.f32.mrb[0].mxu0
        %v471 = vadd.f32 0.0, %v470
        %v472 = vpop.f32.mrb[0].mxu0
        %473 = vdwg.mxu0
        %v475 = vunpack.c.l.b16 %v257
        %v476 = vpack.c.b16 %v302, %v475
        %v477 = vpack.c.b16 %v304, %v303
        %v478 = vpack.c.b16 %v306, %v305
        %v479 = vpack.c.b16 %v308, %v307
        %v480 = vpack.c.b16 %v310, %v309
        %v481 = vpack.c.b16 %v312, %v311
        %v482 = vpack.c.b16 %v314, %v313
        %v483 = vpack.c.b16 %v316, %v315
        %v484 = vpack.c.b16 %v318, %v317
        %v485 = vpack.c.b16 %v319, %v319
        %vm486 = vsmask.f32 4352
        %v488 = vshrl.u32 %v476, 16
        %v490 = vrot.slane %v488, 3
        %v491 = vshll.u32 %v476, 16
        %v493 = vrot.slane %v491, 4
        %v494 = vor.u32 %v490, %v493
        %v496 = vshrl.u32 %v477, 16
        %v498 = vrot.slane %v496, 3
        %v499 = vshll.u32 %v477, 16
        %v501 = vrot.slane %v499, 4
        %v502 = vor.u32 %v498, %v501
        %v503 = vsel %vm486, %v494, %v502
        %v505 = vshrl.u32 %v478, 16
        %v507 = vrot.slane %v505, 3
        %v508 = vshll.u32 %v478, 16
        %v510 = vrot.slane %v508, 4
        %v511 = vor.u32 %v507, %v510
        %v512 = vsel %vm486, %v502, %v511
        %v514 = vshrl.u32 %v479, 16
        %v516 = vrot.slane %v514, 3
        %v517 = vshll.u32 %v479, 16
        %v519 = vrot.slane %v517, 4
        %v520 = vor.u32 %v516, %v519
        %v521 = vsel %vm486, %v511, %v520
        %v523 = vshrl.u32 %v480, 16
        %v525 = vrot.slane %v523, 3
        %v526 = vshll.u32 %v480, 16
        %v528 = vrot.slane %v526, 4
        %v529 = vor.u32 %v525, %v528
        %v530 = vsel %vm486, %v520, %v529
        %v532 = vshrl.u32 %v481, 16
        %v534 = vrot.slane %v532, 3
        %v535 = vshll.u32 %v481, 16
        %v537 = vrot.slane %v535, 4
        %v538 = vor.u32 %v534, %v537
        %v539 = vsel %vm486, %v529, %v538
        %v541 = vshrl.u32 %v482, 16
        %v543 = vrot.slane %v541, 3
        %v544 = vshll.u32 %v482, 16
        %v546 = vrot.slane %v544, 4
        %v547 = vor.u32 %v543, %v546
        %v548 = vsel %vm486, %v538, %v547
        %v550 = vshrl.u32 %v483, 16
        %v552 = vrot.slane %v550, 3
        %v553 = vshll.u32 %v483, 16
        %v555 = vrot.slane %v553, 4
        %v556 = vor.u32 %v552, %v555
        %v557 = vsel %vm486, %v547, %v556
        %v559 = vshrl.u32 %v484, 16
        %v561 = vrot.slane %v559, 3
        %v562 = vshll.u32 %v484, 16
        %v564 = vrot.slane %v562, 4
        %v565 = vor.u32 %v561, %v564
        %v566 = vsel %vm486, %v556, %v565
        %v568 = vshrl.u32 %v485, 16
        %v570 = vrot.slane %v568, 3
        %v571 = vshll.u32 %v485, 16
        %v573 = vrot.slane %v571, 4
        %v574 = vor.u32 %v570, %v573
        %v575 = vsel %vm486, %v565, %v574
        %v580 = vunpack.c.l.b16 %v276
        %v581 = vunpack.c.l.b16 %v277
        %v582 = vunpack.c.l.b16 %v278
        %v583 = vunpack.c.l.b16 %v279
        %v584 = vpack.c.b16 %v581, %v580
        %v585 = vpack.c.b16 %v583, %v582
        %v589 = vsel %vm341, %v503, 0
        %v592 = vsel %vm341, %v512, 0
        %v595 = vsel %vm341, %v521, 0
        %v598 = vsel %vm341, %v530, 0
        %v601 = vsel %vm341, %v539, 0
        %v604 = vsel %vm341, %v548, 0
        %v607 = vsel %vm341, %v557, 0
        %v610 = vsel %vm341, %v566, 0
        %v613 = vsel %vm341, %v575, 0
        %615 = vmatprep.subr.bf16.mxu0 0
        %616 = vmatpush1.bf16.msra.mxu0 %v584
        %617 = vmatprep.subr.bf16.mxu0 0
        %618 = vmatpush1.bf16.msra.mxu0 %v585
        %619 = vmatprep.subr.bf16.mxu0 0
        %620 = vmatpush1.bf16.msra.mxu0 0
        %621 = vmatprep.subr.bf16.mxu0 0
        %622 = vmatpush1.bf16.msra.mxu0 0
        %623 = vmatprep.subr.bf16.mxu0 0
        %624 = vmatpush1.bf16.msra.mxu0 0
        %625 = vmatprep.subr.bf16.mxu0 0
        %626 = vmatpush1.bf16.msra.mxu0 0
        %627 = vmatprep.subr.bf16.mxu0 0
        %628 = vmatpush1.bf16.msra.mxu0 0
        %629 = vmatprep.subr.bf16.mxu0 0
        %630 = vmatpush1.bf16.msra.mxu0 0
        %631 = vmatprep.subr.bf16.mxu0 0
        %632 = vmatpush1.bf16.msra.mxu0 0
        %633 = vmatprep.subr.bf16.mxu0 0
        %634 = vmatpush1.bf16.msra.mxu0 0
        %635 = vmatprep.subr.bf16.mxu0 0
        %636 = vmatpush1.bf16.msra.mxu0 0
        %637 = vmatprep.subr.bf16.mxu0 0
        %638 = vmatpush1.bf16.msra.mxu0 0
        %639 = vmatprep.subr.bf16.mxu0 0
        %640 = vmatpush1.bf16.msra.mxu0 0
        %641 = vmatprep.subr.bf16.mxu0 0
        %642 = vmatpush1.bf16.msra.mxu0 0
        %643 = vmatprep.subr.bf16.mxu0 0
        %644 = vmatpush1.bf16.msra.mxu0 0
        %645 = vmatprep.subr.bf16.mxu0 0
        %646 = vmatpush1.bf16.msra.mxu0 0
        %647 = vmatprep.mubr.bf16.mxu0 0
        %648 = vmatmul.mubr.bf16.gmra.mrb[0].mxu0 %v589
        %v649 = vpop.f32.mrb[0].mxu0
        %v650 = vadd.f32 %v404, %v649
        %v651 = vpop.f32.mrb[0].mxu0
        %v652 = vpop.f32.mrb[0].mxu0
        %v653 = vadd.f32 %v407, %v652
        %v654 = vpop.f32.mrb[0].mxu0
        %655 = vmatprep.mubr.bf16.mxu0 0
        %656 = vmatmul.mubr.bf16.gmra.mrb[0].mxu0 %v592
        %v657 = vpop.f32.mrb[0].mxu0
        %v658 = vadd.f32 %v412, %v657
        %v659 = vpop.f32.mrb[0].mxu0
        %v660 = vpop.f32.mrb[0].mxu0
        %v661 = vadd.f32 %v415, %v660
        %v662 = vpop.f32.mrb[0].mxu0
        %663 = vmatprep.mubr.bf16.mxu0 0
        %664 = vmatmul.mubr.bf16.gmra.mrb[0].mxu0 %v595
        %v665 = vpop.f32.mrb[0].mxu0
        %v666 = vadd.f32 %v420, %v665
        %v667 = vpop.f32.mrb[0].mxu0
        %v668 = vpop.f32.mrb[0].mxu0
        %v669 = vadd.f32 %v423, %v668
        %v670 = vpop.f32.mrb[0].mxu0
        %671 = vmatprep.mubr.bf16.mxu0 0
        %672 = vmatmul.mubr.bf16.gmra.mrb[0].mxu0 %v598
        %v673 = vpop.f32.mrb[0].mxu0
        %v674 = vadd.f32 %v428, %v673
        %v675 = vpop.f32.mrb[0].mxu0
        %v676 = vpop.f32.mrb[0].mxu0
        %v677 = vadd.f32 %v431, %v676
        %v678 = vpop.f32.mrb[0].mxu0
        %679 = vmatprep.mubr.bf16.mxu0 0
        %680 = vmatmul.mubr.bf16.gmra.mrb[0].mxu0 %v601
        %v681 = vpop.f32.mrb[0].mxu0
        %v682 = vadd.f32 %v436, %v681
        %v683 = vpop.f32.mrb[0].mxu0
        %v684 = vpop.f32.mrb[0].mxu0
        %v685 = vadd.f32 %v439, %v684
        %v686 = vpop.f32.mrb[0].mxu0
        %687 = vmatprep.mubr.bf16.mxu0 0
        %688 = vmatmul.mubr.bf16.gmra.mrb[0].mxu0 %v604
        %v689 = vpop.f32.mrb[0].mxu0
        %v690 = vadd.f32 %v444, %v689
        %v691 = vpop.f32.mrb[0].mxu0
        %v692 = vpop.f32.mrb[0].mxu0
        %v693 = vadd.f32 %v447, %v692
        %v694 = vpop.f32.mrb[0].mxu0
        %695 = vmatprep.mubr.bf16.mxu0 0
        %696 = vmatmul.mubr.bf16.gmra.mrb[0].mxu0 %v607
        %v697 = vpop.f32.mrb[0].mxu0
        %v698 = vadd.f32 %v452, %v697
        %v699 = vpop.f32.mrb[0].mxu0
        %v700 = vpop.f32.mrb[0].mxu0
        %v701 = vadd.f32 %v455, %v700
        %v702 = vpop.f32.mrb[0].mxu0
        %703 = vmatprep.mubr.bf16.mxu0 0
        %704 = vmatmul.mubr.bf16.gmra.mrb[0].mxu0 %v610
        %v705 = vpop.f32.mrb[0].mxu0
        %v706 = vadd.f32 %v460, %v705
        %v707 = vpop.f32.mrb[0].mxu0
        %v708 = vpop.f32.mrb[0].mxu0
        %v709 = vadd.f32 %v463, %v708
        %v710 = vpop.f32.mrb[0].mxu0
        %711 = vmatprep.mubr.bf16.mxu0 0
        %712 = vmatmul.mubr.bf16.gmra.mrb[0].mxu0 %v613
        %v713 = vpop.f32.mrb[0].mxu0
        %v714 = vadd.f32 %v468, %v713
        %v715 = vpop.f32.mrb[0].mxu0
        %v716 = vpop.f32.mrb[0].mxu0
        %v717 = vadd.f32 %v471, %v716
        %v718 = vpop.f32.mrb[0].mxu0
        %719 = vdwg.mxu0
        %v720 = vld [vmem:[%s219 + $0x8] sm:$0x8]
        %v721 = vld [vmem:[%s219 + $0xc] sm:$0xf]
        %v722 = vld [vmem:[%s219 + $0x10] sm:$0xf]
        %v723 = vld [vmem:[%s219 + $0x14] sm:$0xf]
        %v724 = vld [vmem:[%s219 + $0x18] sm:$0xf]
        %v725 = vld [vmem:[%s219 + $0x1c] sm:$0xf]
        %v726 = vld [vmem:[%s219 + $0x20] sm:$0xf]
        %v727 = vld [vmem:[%s219 + $0x24] sm:$0xf]
        %v728 = vld [vmem:[%s219 + $0x28] sm:$0xf]
        %v729 = vld [vmem:[%s219 + $0x2c] sm:$0xf]
        %v730 = vld [vmem:[%s219 + $0x30] sm:$0xf]
        %v731 = vld [vmem:[%s219 + $0x34] sm:$0xf]
        %v732 = vld [vmem:[%s219 + $0x38] sm:$0xf]
        %v733 = vld [vmem:[%s219 + $0x3c] sm:$0xf]
        %v734 = vld [vmem:[%s219 + $0x40] sm:$0xf]
        %v735 = vld [vmem:[%s219 + $0x44] sm:$0xf]
        %v736 = vld [vmem:[%s219 + $0x48] sm:$0xf]
        %v737 = vld [vmem:[%s219 + $0x4c] sm:$0xf]
        %v738 = vld [vmem:[%s219 + $0x50] sm:$0xf]
        %v739 = vld [vmem:[#allocation5 + $0x20] sm:$0xf]
        %v740 = vld [vmem:[#allocation5 + $0x24] sm:$0xf]
        %v741 = vld [vmem:[#allocation5 + $0x28] sm:$0xf]
        %v742 = vld [vmem:[#allocation5 + $0x2c] sm:$0xf]
        %v762 = vunpack.c.l.b16 %v720
        %v763 = vunpack.c.l.b16 %v721
        %v764 = vunpack.c.l.b16 %v722
        %v765 = vunpack.c.l.b16 %v723
        %v766 = vunpack.c.l.b16 %v724
        %v767 = vunpack.c.l.b16 %v725
        %v768 = vunpack.c.l.b16 %v726
        %v769 = vunpack.c.l.b16 %v727
        %v770 = vunpack.c.l.b16 %v728
        %v771 = vunpack.c.l.b16 %v729
        %v772 = vunpack.c.l.b16 %v730
        %v773 = vunpack.c.l.b16 %v731
        %v774 = vunpack.c.l.b16 %v732
        %v775 = vunpack.c.l.b16 %v733
        %v776 = vunpack.c.l.b16 %v734
        %v777 = vunpack.c.l.b16 %v735
        %v778 = vunpack.c.l.b16 %v736
        %v779 = vunpack.c.l.b16 %v737
        %v780 = vunpack.c.l.b16 %v738
        %v781 = vpack.c.b16 %v763, %v762
        %v782 = vpack.c.b16 %v765, %v764
        %v783 = vpack.c.b16 %v767, %v766
        %v784 = vpack.c.b16 %v769, %v768
        %v785 = vpack.c.b16 %v771, %v770
        %v786 = vpack.c.b16 %v773, %v772
        %v787 = vpack.c.b16 %v775, %v774
        %v788 = vpack.c.b16 %v777, %v776
        %v789 = vpack.c.b16 %v779, %v778
        %v790 = vpack.c.b16 %v780, %v780
        %v792 = vshrl.u32 %v781, 16
        %v794 = vrot.slane %v792, 3
        %v795 = vshll.u32 %v781, 16
        %v797 = vrot.slane %v795, 4
        %v798 = vor.u32 %v794, %v797
        %v800 = vshrl.u32 %v782, 16
        %v802 = vrot.slane %v800, 3
        %v803 = vshll.u32 %v782, 16
        %v805 = vrot.slane %v803, 4
        %v806 = vor.u32 %v802, %v805
        %v807 = vsel %vm486, %v798, %v806
        %v809 = vshrl.u32 %v783, 16
        %v811 = vrot.slane %v809, 3
        %v812 = vshll.u32 %v783, 16
        %v814 = vrot.slane %v812, 4
        %v815 = vor.u32 %v811, %v814
        %v816 = vsel %vm486, %v806, %v815
        %v818 = vshrl.u32 %v784, 16
        %v820 = vrot.slane %v818, 3
        %v821 = vshll.u32 %v784, 16
        %v823 = vrot.slane %v821, 4
        %v824 = vor.u32 %v820, %v823
        %v825 = vsel %vm486, %v815, %v824
        %v827 = vshrl.u32 %v785, 16
        %v829 = vrot.slane %v827, 3
        %v830 = vshll.u32 %v785, 16
        %v832 = vrot.slane %v830, 4
        %v833 = vor.u32 %v829, %v832
        %v834 = vsel %vm486, %v824, %v833
        %v836 = vshrl.u32 %v786, 16
        %v838 = vrot.slane %v836, 3
        %v839 = vshll.u32 %v786, 16
        %v841 = vrot.slane %v839, 4
        %v842 = vor.u32 %v838, %v841
        %v843 = vsel %vm486, %v833, %v842
        %v845 = vshrl.u32 %v787, 16
        %v847 = vrot.slane %v845, 3
        %v848 = vshll.u32 %v787, 16
        %v850 = vrot.slane %v848, 4
        %v851 = vor.u32 %v847, %v850
        %v852 = vsel %vm486, %v842, %v851
        %v854 = vshrl.u32 %v788, 16
        %v856 = vrot.slane %v854, 3
        %v857 = vshll.u32 %v788, 16
        %v859 = vrot.slane %v857, 4
        %v860 = vor.u32 %v856, %v859
        %v861 = vsel %vm486, %v851, %v860
        %v863 = vshrl.u32 %v789, 16
        %v865 = vrot.slane %v863, 3
        %v866 = vshll.u32 %v789, 16
        %v868 = vrot.slane %v866, 4
        %v869 = vor.u32 %v865, %v868
        %v870 = vsel %vm486, %v860, %v869
        %v872 = vshrl.u32 %v790, 16
        %v874 = vrot.slane %v872, 3
        %v875 = vshll.u32 %v790, 16
        %v877 = vrot.slane %v875, 4
        %v878 = vor.u32 %v874, %v877
        %v879 = vsel %vm486, %v869, %v878
        %v884 = vunpack.c.l.b16 %v739
        %v885 = vunpack.c.l.b16 %v740
        %v886 = vunpack.c.l.b16 %v741
        %v887 = vunpack.c.l.b16 %v742
        %v888 = vpack.c.b16 %v885, %v884
        %v889 = vpack.c.b16 %v887, %v886
        %v893 = vsel %vm341, %v807, 0
        %v896 = vsel %vm341, %v816, 0
        %v899 = vsel %vm341, %v825, 0
        %v902 = vsel %vm341, %v834, 0
        %v905 = vsel %vm341, %v843, 0
        %v908 = vsel %vm341, %v852, 0
        %v911 = vsel %vm341, %v861, 0
        %v914 = vsel %vm341, %v870, 0
        %v917 = vsel %vm341, %v879, 0
        %919 = vmatprep.subr.bf16.mxu0 0
        %920 = vmatpush1.bf16.msra.mxu0 %v888
        %921 = vmatprep.subr.bf16.mxu0 0
        %922 = vmatpush1.bf16.msra.mxu0 %v889
        %923 = vmatprep.subr.bf16.mxu0 0
        %924 = vmatpush1.bf16.msra.mxu0 0
        %925 = vmatprep.subr.bf16.mxu0 0
        %926 = vmatpush1.bf16.msra.mxu0 0
        %927 = vmatprep.subr.bf16.mxu0 0
        %928 = vmatpush1.bf16.msra.mxu0 0
        %929 = vmatprep.subr.bf16.mxu0 0
        %930 = vmatpush1.bf16.msra.mxu0 0
        %931 = vmatprep.subr.bf16.mxu0 0
        %932 = vmatpush1.bf16.msra.mxu0 0
        %933 = vmatprep.subr.bf16.mxu0 0
        %934 = vmatpush1.bf16.msra.mxu0 0
        %935 = vmatprep.subr.bf16.mxu0 0
        %936 = vmatpush1.bf16.msra.mxu0 0
        %937 = vmatprep.subr.bf16.mxu0 0
        %938 = vmatpush1.bf16.msra.mxu0 0
        %939 = vmatprep.subr.bf16.mxu0 0
        %940 = vmatpush1.bf16.msra.mxu0 0
        %941 = vmatprep.subr.bf16.mxu0 0
        %942 = vmatpush1.bf16.msra.mxu0 0
        %943 = vmatprep.subr.bf16.mxu0 0
        %944 = vmatpush1.bf16.msra.mxu0 0
        %945 = vmatprep.subr.bf16.mxu0 0
        %946 = vmatpush1.bf16.msra.mxu0 0
        %947 = vmatprep.subr.bf16.mxu0 0
        %948 = vmatpush1.bf16.msra.mxu0 0
        %949 = vmatprep.subr.bf16.mxu0 0
        %950 = vmatpush1.bf16.msra.mxu0 0
        %951 = vmatprep.mubr.bf16.mxu0 0
        %952 = vmatmul.mubr.bf16.gmra.mrb[0].mxu0 %v893
        %v953 = vpop.f32.mrb[0].mxu0
        %v954 = vadd.f32 0.0, %v953
        %v955 = vpop.f32.mrb[0].mxu0
        %v956 = vpop.f32.mrb[0].mxu0
        %v957 = vadd.f32 0.0, %v956
        %v958 = vpop.f32.mrb[0].mxu0
        %959 = vmatprep.mubr.bf16.mxu0 0
        %960 = vmatmul.mubr.bf16.gmra.mrb[0].mxu0 %v896
        %v961 = vpop.f32.mrb[0].mxu0
        %v962 = vadd.f32 0.0, %v961
        %v963 = vpop.f32.mrb[0].mxu0
        %v964 = vpop.f32.mrb[0].mxu0
        %v965 = vadd.f32 0.0, %v964
        %v966 = vpop.f32.mrb[0].mxu0
        %967 = vmatprep.mubr.bf16.mxu0 0
        %968 = vmatmul.mubr.bf16.gmra.mrb[0].mxu0 %v899
        %v969 = vpop.f32.mrb[0].mxu0
        %v970 = vadd.f32 0.0, %v969
        %v971 = vpop.f32.mrb[0].mxu0
        %v972 = vpop.f32.mrb[0].mxu0
        %v973 = vadd.f32 0.0, %v972
        %v974 = vpop.f32.mrb[0].mxu0
        %975 = vmatprep.mubr.bf16.mxu0 0
        %976 = vmatmul.mubr.bf16.gmra.mrb[0].mxu0 %v902
        %v977 = vpop.f32.mrb[0].mxu0
        %v978 = vadd.f32 0.0, %v977
        %v979 = vpop.f32.mrb[0].mxu0
        %v980 = vpop.f32.mrb[0].mxu0
        %v981 = vadd.f32 0.0, %v980
        %v982 = vpop.f32.mrb[0].mxu0
        %983 = vmatprep.mubr.bf16.mxu0 0
        %984 = vmatmul.mubr.bf16.gmra.mrb[0].mxu0 %v905
        %v985 = vpop.f32.mrb[0].mxu0
        %v986 = vadd.f32 0.0, %v985
        %v987 = vpop.f32.mrb[0].mxu0
        %v988 = vpop.f32.mrb[0].mxu0
        %v989 = vadd.f32 0.0, %v988
        %v990 = vpop.f32.mrb[0].mxu0
        %991 = vmatprep.mubr.bf16.mxu0 0
        %992 = vmatmul.mubr.bf16.gmra.mrb[0].mxu0 %v908
        %v993 = vpop.f32.mrb[0].mxu0
        %v994 = vadd.f32 0.0, %v993
        %v995 = vpop.f32.mrb[0].mxu0
        %v996 = vpop.f32.mrb[0].mxu0
        %v997 = vadd.f32 0.0, %v996
        %v998 = vpop.f32.mrb[0].mxu0
        %999 = vmatprep.mubr.bf16.mxu0 0
        %1000 = vmatmul.mubr.bf16.gmra.mrb[0].mxu0 %v911
        %v1001 = vpop.f32.mrb[0].mxu0
        %v1002 = vadd.f32 0.0, %v1001
        %v1003 = vpop.f32.mrb[0].mxu0
        %v1004 = vpop.f32.mrb[0].mxu0
        %v1005 = vadd.f32 0.0, %v1004
        %v1006 = vpop.f32.mrb[0].mxu0
        %1007 = vmatprep.mubr.bf16.mxu0 0
        %1008 = vmatmul.mubr.bf16.gmra.mrb[0].mxu0 %v914
        %v1009 = vpop.f32.mrb[0].mxu0
        %v1010 = vadd.f32 0.0, %v1009
        %v1011 = vpop.f32.mrb[0].mxu0
        %v1012 = vpop.f32.mrb[0].mxu0
        %v1013 = vadd.f32 0.0, %v1012
        %v1014 = vpop.f32.mrb[0].mxu0
        %1015 = vmatprep.mubr.bf16.mxu0 0
        %1016 = vmatmul.mubr.bf16.gmra.mrb[0].mxu0 %v917
        %v1017 = vpop.f32.mrb[0].mxu0
        %v1018 = vadd.f32 0.0, %v1017
        %v1019 = vpop.f32.mrb[0].mxu0
        %v1020 = vpop.f32.mrb[0].mxu0
        %v1021 = vadd.f32 0.0, %v1020
        %v1022 = vpop.f32.mrb[0].mxu0
        %1023 = vdwg.mxu0
        %v1024 = vadd.f32 %v650, %v954
        %v1025 = vadd.f32 %v653, %v957
        %v1026 = vadd.f32 %v658, %v962
        %v1027 = vadd.f32 %v661, %v965
        %v1028 = vadd.f32 %v666, %v970
        %v1029 = vadd.f32 %v669, %v973
        %v1030 = vadd.f32 %v674, %v978
        %v1031 = vadd.f32 %v677, %v981
        %v1032 = vadd.f32 %v682, %v986
        %v1033 = vadd.f32 %v685, %v989
        %v1034 = vadd.f32 %v690, %v994
        %v1035 = vadd.f32 %v693, %v997
        %v1036 = vadd.f32 %v698, %v1002
        %v1037 = vadd.f32 %v701, %v1005
        %v1038 = vadd.f32 %v706, %v1010
        %v1039 = vadd.f32 %v709, %v1013
        %v1040 = vadd.f32 %v714, %v1018
        %v1041 = vadd.f32 %v717, %v1021
        %v1042 = vld [vmem:[#allocation5 + $0x30] sm:$0xf]
        %v1043 = vld [vmem:[#allocation5 + $0x34] sm:$0xf]
        %v1044 = vld [vmem:[#allocation5 + $0x38] sm:$0xf]
        %v1045 = vld [vmem:[#allocation5 + $0x3c] sm:$0xf]
        %v1046 = vpack.c.b16 %v764, %v763
        %v1047 = vpack.c.b16 %v766, %v765
        %v1048 = vpack.c.b16 %v768, %v767
        %v1049 = vpack.c.b16 %v770, %v769
        %v1050 = vpack.c.b16 %v772, %v771
        %v1051 = vpack.c.b16 %v774, %v773
        %v1052 = vpack.c.b16 %v776, %v775
        %v1053 = vpack.c.b16 %v778, %v777
        %v1054 = vpack.c.b16 %v780, %v779
        %v1059 = vunpack.c.l.b16 %v1042
        %v1060 = vunpack.c.l.b16 %v1043
        %v1061 = vunpack.c.l.b16 %v1044
        %v1062 = vunpack.c.l.b16 %v1045
        %v1063 = vpack.c.b16 %v1060, %v1059
        %v1064 = vpack.c.b16 %v1062, %v1061
        %v1068 = vsel %vm341, %v1046, 0
        %v1071 = vsel %vm341, %v1047, 0
        %v1074 = vsel %vm341, %v1048, 0
        %v1077 = vsel %vm341, %v1049, 0
        %v1080 = vsel %vm341, %v1050, 0
        %v1083 = vsel %vm341, %v1051, 0
        %v1086 = vsel %vm341, %v1052, 0
        %v1089 = vsel %vm341, %v1053, 0
        %v1092 = vsel %vm341, %v1054, 0
        %1094 = vmatprep.subr.bf16.mxu0 0
        %1095 = vmatpush1.bf16.msra.mxu0 %v1063
        %1096 = vmatprep.subr.bf16.mxu0 0
        %1097 = vmatpush1.bf16.msra.mxu0 %v1064
        %1098 = vmatprep.subr.bf16.mxu0 0
        %1099 = vmatpush1.bf16.msra.mxu0 0
        %1100 = vmatprep.subr.bf16.mxu0 0
        %1101 = vmatpush1.bf16.msra.mxu0 0
        %1102 = vmatprep.subr.bf16.mxu0 0
        %1103 = vmatpush1.bf16.msra.mxu0 0
        %1104 = vmatprep.subr.bf16.mxu0 0
        %1105 = vmatpush1.bf16.msra.mxu0 0
        %1106 = vmatprep.subr.bf16.mxu0 0
        %1107 = vmatpush1.bf16.msra.mxu0 0
        %1108 = vmatprep.subr.bf16.mxu0 0
        %1109 = vmatpush1.bf16.msra.mxu0 0
        %1110 = vmatprep.subr.bf16.mxu0 0
        %1111 = vmatpush1.bf16.msra.mxu0 0
        %1112 = vmatprep.subr.bf16.mxu0 0
        %1113 = vmatpush1.bf16.msra.mxu0 0
        %1114 = vmatprep.subr.bf16.mxu0 0
        %1115 = vmatpush1.bf16.msra.mxu0 0
        %1116 = vmatprep.subr.bf16.mxu0 0
        %1117 = vmatpush1.bf16.msra.mxu0 0
        %1118 = vmatprep.subr.bf16.mxu0 0
        %1119 = vmatpush1.bf16.msra.mxu0 0
        %1120 = vmatprep.subr.bf16.mxu0 0
        %1121 = vmatpush1.bf16.msra.mxu0 0
        %1122 = vmatprep.subr.bf16.mxu0 0
        %1123 = vmatpush1.bf16.msra.mxu0 0
        %1124 = vmatprep.subr.bf16.mxu0 0
        %1125 = vmatpush1.bf16.msra.mxu0 0
        %1126 = vmatprep.mubr.bf16.mxu0 0
        %1127 = vmatmul.mubr.bf16.gmra.mrb[0].mxu0 %v1068
        %v1128 = vpop.f32.mrb[0].mxu0
        %v1129 = vadd.f32 0.0, %v1128
        %v1130 = vpop.f32.mrb[0].mxu0
        %v1131 = vpop.f32.mrb[0].mxu0
        %v1132 = vadd.f32 0.0, %v1131
        %v1133 = vpop.f32.mrb[0].mxu0
        %1134 = vmatprep.mubr.bf16.mxu0 0
        %1135 = vmatmul.mubr.bf16.gmra.mrb[0].mxu0 %v1071
        %v1136 = vpop.f32.mrb[0].mxu0
        %v1137 = vadd.f32 0.0, %v1136
        %v1138 = vpop.f32.mrb[0].mxu0
        %v1139 = vpop.f32.mrb[0].mxu0
        %v1140 = vadd.f32 0.0, %v1139
        %v1141 = vpop.f32.mrb[0].mxu0
        %1142 = vmatprep.mubr.bf16.mxu0 0
        %1143 = vmatmul.mubr.bf16.gmra.mrb[0].mxu0 %v1074
        %v1144 = vpop.f32.mrb[0].mxu0
        %v1145 = vadd.f32 0.0, %v1144
        %v1146 = vpop.f32.mrb[0].mxu0
        %v1147 = vpop.f32.mrb[0].mxu0
        %v1148 = vadd.f32 0.0, %v1147
        %v1149 = vpop.f32.mrb[0].mxu0
        %1150 = vmatprep.mubr.bf16.mxu0 0
        %1151 = vmatmul.mubr.bf16.gmra.mrb[0].mxu0 %v1077
        %v1152 = vpop.f32.mrb[0].mxu0
        %v1153 = vadd.f32 0.0, %v1152
        %v1154 = vpop.f32.mrb[0].mxu0
        %v1155 = vpop.f32.mrb[0].mxu0
        %v1156 = vadd.f32 0.0, %v1155
        %v1157 = vpop.f32.mrb[0].mxu0
        %1158 = vmatprep.mubr.bf16.mxu0 0
        %1159 = vmatmul.mubr.bf16.gmra.mrb[0].mxu0 %v1080
        %v1160 = vpop.f32.mrb[0].mxu0
        %v1161 = vadd.f32 0.0, %v1160
        %v1162 = vpop.f32.mrb[0].mxu0
        %v1163 = vpop.f32.mrb[0].mxu0
        %v1164 = vadd.f32 0.0, %v1163
        %v1165 = vpop.f32.mrb[0].mxu0
        %1166 = vmatprep.mubr.bf16.mxu0 0
        %1167 = vmatmul.mubr.bf16.gmra.mrb[0].mxu0 %v1083
        %v1168 = vpop.f32.mrb[0].mxu0
        %v1169 = vadd.f32 0.0, %v1168
        %v1170 = vpop.f32.mrb[0].mxu0
        %v1171 = vpop.f32.mrb[0].mxu0
        %v1172 = vadd.f32 0.0, %v1171
        %v1173 = vpop.f32.mrb[0].mxu0
        %1174 = vmatprep.mubr.bf16.mxu0 0
        %1175 = vmatmul.mubr.bf16.gmra.mrb[0].mxu0 %v1086
        %v1176 = vpop.f32.mrb[0].mxu0
        %v1177 = vadd.f32 0.0, %v1176
        %v1178 = vpop.f32.mrb[0].mxu0
        %v1179 = vpop.f32.mrb[0].mxu0
        %v1180 = vadd.f32 0.0, %v1179
        %v1181 = vpop.f32.mrb[0].mxu0
        %1182 = vmatprep.mubr.bf16.mxu0 0
        %1183 = vmatmul.mubr.bf16.gmra.mrb[0].mxu0 %v1089
        %v1184 = vpop.f32.mrb[0].mxu0
        %v1185 = vadd.f32 0.0, %v1184
        %v1186 = vpop.f32.mrb[0].mxu0
        %v1187 = vpop.f32.mrb[0].mxu0
        %v1188 = vadd.f32 0.0, %v1187
        %v1189 = vpop.f32.mrb[0].mxu0
        %1190 = vmatprep.mubr.bf16.mxu0 0
        %1191 = vmatmul.mubr.bf16.gmra.mrb[0].mxu0 %v1092
        %v1192 = vpop.f32.mrb[0].mxu0
        %v1193 = vadd.f32 0.0, %v1192
        %v1194 = vpop.f32.mrb[0].mxu0
        %v1195 = vpop.f32.mrb[0].mxu0
        %v1196 = vadd.f32 0.0, %v1195
        %v1197 = vpop.f32.mrb[0].mxu0
        %1198 = vdwg.mxu0
        %v1199 = vadd.f32 %v1024, %v1129
        %v1200 = vadd.f32 %v1025, %v1132
        %v1201 = vadd.f32 %v1026, %v1137
        %v1202 = vadd.f32 %v1027, %v1140
        %v1203 = vadd.f32 %v1028, %v1145
        %v1204 = vadd.f32 %v1029, %v1148
        %v1205 = vadd.f32 %v1030, %v1153
        %v1206 = vadd.f32 %v1031, %v1156
        %v1207 = vadd.f32 %v1032, %v1161
        %v1208 = vadd.f32 %v1033, %v1164
        %v1209 = vadd.f32 %v1034, %v1169
        %v1210 = vadd.f32 %v1035, %v1172
        %v1211 = vadd.f32 %v1036, %v1177
        %v1212 = vadd.f32 %v1037, %v1180
        %v1213 = vadd.f32 %v1038, %v1185
        %v1214 = vadd.f32 %v1039, %v1188
        %v1215 = vadd.f32 %v1040, %v1193
        %v1216 = vadd.f32 %v1041, %v1196
        %v1217 = vld [vmem:[#allocation7] sm:$0x1]
        %v1219 = vlaneseq
        %v1220 = vshrl.u32 %v1219, 7
        %v1221 = vsub.s32 0, %v1220
        %v1222 = vrot.slane %v1217, %v1221
        %v1224 = vadd.f32 %v1199, %v1222
        %v1225 = vadd.f32 %v1200, %v1222
        %v1226 = vadd.f32 %v1201, %v1222
        %v1227 = vadd.f32 %v1202, %v1222
        %v1228 = vadd.f32 %v1203, %v1222
        %v1229 = vadd.f32 %v1204, %v1222
        %v1230 = vadd.f32 %v1205, %v1222
        %v1231 = vadd.f32 %v1206, %v1222
        %v1232 = vadd.f32 %v1207, %v1222
        %v1233 = vadd.f32 %v1208, %v1222
        %v1234 = vadd.f32 %v1209, %v1222
        %v1235 = vadd.f32 %v1210, %v1222
        %v1236 = vadd.f32 %v1211, %v1222
        %v1237 = vadd.f32 %v1212, %v1222
        %v1238 = vadd.f32 %v1213, %v1222
        %v1239 = vadd.f32 %v1214, %v1222
        %v1240 = vadd.f32 %v1215, %v1222
        %v1241 = vadd.f32 %v1216, %v1222
        %vm1242 = vcmp.ge.f32.partialorder %v1224, 0.0
        %vm1243 = vcmp.ge.f32.partialorder %v1225, 0.0
        %vm1244 = vcmp.ge.f32.partialorder %v1226, 0.0
        %vm1245 = vcmp.ge.f32.partialorder %v1227, 0.0
        %vm1246 = vcmp.ge.f32.partialorder %v1228, 0.0
        %vm1247 = vcmp.ge.f32.partialorder %v1229, 0.0
        %vm1248 = vcmp.ge.f32.partialorder %v1230, 0.0
        %vm1249 = vcmp.ge.f32.partialorder %v1231, 0.0
        %vm1250 = vcmp.ge.f32.partialorder %v1232, 0.0
        %vm1251 = vcmp.ge.f32.partialorder %v1233, 0.0
        %vm1252 = vcmp.ge.f32.partialorder %v1234, 0.0
        %vm1253 = vcmp.ge.f32.partialorder %v1235, 0.0
        %vm1254 = vcmp.ge.f32.partialorder %v1236, 0.0
        %vm1255 = vcmp.ge.f32.partialorder %v1237, 0.0
        %vm1256 = vcmp.ge.f32.partialorder %v1238, 0.0
        %vm1257 = vcmp.ge.f32.partialorder %v1239, 0.0
        %vm1258 = vcmp.ge.f32.partialorder %v1240, 0.0
        %vm1259 = vcmp.ge.f32.partialorder %v1241, 0.0
        %v1260 = vld [vmem:[#allocation8] sm:$0x1]
        %v1262 = vlaneseq
        %v1263 = vshrl.u32 %v1262, 7
        %v1264 = vsub.s32 0, %v1263
        %v1265 = vrot.slane %v1260, %v1264
        %v1267 = vmul.f32 %v1224, %v1265
        %v1268 = vmul.f32 %v1225, %v1265
        %v1269 = vmul.f32 %v1226, %v1265
        %v1270 = vmul.f32 %v1227, %v1265
        %v1271 = vmul.f32 %v1228, %v1265
        %v1272 = vmul.f32 %v1229, %v1265
        %v1273 = vmul.f32 %v1230, %v1265
        %v1274 = vmul.f32 %v1231, %v1265
        %v1275 = vmul.f32 %v1232, %v1265
        %v1276 = vmul.f32 %v1233, %v1265
        %v1277 = vmul.f32 %v1234, %v1265
        %v1278 = vmul.f32 %v1235, %v1265
        %v1279 = vmul.f32 %v1236, %v1265
        %v1280 = vmul.f32 %v1237, %v1265
        %v1281 = vmul.f32 %v1238, %v1265
        %v1282 = vmul.f32 %v1239, %v1265
        %v1283 = vmul.f32 %v1240, %v1265
        %v1284 = vmul.f32 %v1241, %v1265
        %v1285 = vsel %vm1242, %v1224, %v1267
        %v1286 = vsel %vm1243, %v1225, %v1268
        %v1287 = vsel %vm1244, %v1226, %v1269
        %v1288 = vsel %vm1245, %v1227, %v1270
        %v1289 = vsel %vm1246, %v1228, %v1271
        %v1290 = vsel %vm1247, %v1229, %v1272
        %v1291 = vsel %vm1248, %v1230, %v1273
        %v1292 = vsel %vm1249, %v1231, %v1274
        %v1293 = vsel %vm1250, %v1232, %v1275
        %v1294 = vsel %vm1251, %v1233, %v1276
        %v1295 = vsel %vm1252, %v1234, %v1277
        %v1296 = vsel %vm1253, %v1235, %v1278
        %v1297 = vsel %vm1254, %v1236, %v1279
        %v1298 = vsel %vm1255, %v1237, %v1280
        %v1299 = vsel %vm1256, %v1238, %v1281
        %v1300 = vsel %vm1257, %v1239, %v1282
        %v1301 = vsel %vm1258, %v1240, %v1283
        %v1302 = vsel %vm1259, %v1241, %v1284
        %v1303 = vpack.c.bf16 %v1286, %v1285
        %v1304 = vpack.c.bf16 %v1288, %v1287
        %v1305 = vpack.c.bf16 %v1290, %v1289
        %v1306 = vpack.c.bf16 %v1292, %v1291
        %v1307 = vpack.c.bf16 %v1294, %v1293
        %v1308 = vpack.c.bf16 %v1296, %v1295
        %v1309 = vpack.c.bf16 %v1298, %v1297
        %v1310 = vpack.c.bf16 %v1300, %v1299
        %v1311 = vpack.c.bf16 %v1302, %v1301
        %v1321 = vunpack.c.l.b16 %v1303
        %v1322 = vunpack.c.h.b16 %v1303
        %v1323 = vunpack.c.l.b16 %v1304
        %v1324 = vunpack.c.h.b16 %v1304
        %v1325 = vunpack.c.l.b16 %v1305
        %v1326 = vunpack.c.h.b16 %v1305
        %v1327 = vunpack.c.l.b16 %v1306
        %v1328 = vunpack.c.h.b16 %v1306
        %v1329 = vunpack.c.l.b16 %v1307
        %v1330 = vunpack.c.h.b16 %v1307
        %v1331 = vunpack.c.l.b16 %v1308
        %v1332 = vunpack.c.h.b16 %v1308
        %v1333 = vunpack.c.l.b16 %v1309
        %v1334 = vunpack.c.h.b16 %v1309
        %v1335 = vunpack.c.l.b16 %v1310
        %v1336 = vunpack.c.h.b16 %v1310
        %v1337 = vunpack.c.l.b16 %v1311
        %v1338 = vunpack.c.h.b16 %v1311
        %v1339 = vpack.c.b16 %v1321, %v1321
        %v1340 = vpack.c.b16 %v1322, %v1322
        %v1341 = vpack.c.b16 %v1323, %v1323
        %v1342 = vpack.c.b16 %v1324, %v1324
        %v1343 = vpack.c.b16 %v1325, %v1325
        %v1344 = vpack.c.b16 %v1326, %v1326
        %v1345 = vpack.c.b16 %v1327, %v1327
        %v1346 = vpack.c.b16 %v1328, %v1328
        %v1347 = vpack.c.b16 %v1329, %v1329
        %v1348 = vpack.c.b16 %v1330, %v1330
        %v1349 = vpack.c.b16 %v1331, %v1331
        %v1350 = vpack.c.b16 %v1332, %v1332
        %v1351 = vpack.c.b16 %v1333, %v1333
        %v1352 = vpack.c.b16 %v1334, %v1334
        %v1353 = vpack.c.b16 %v1335, %v1335
        %v1354 = vpack.c.b16 %v1336, %v1336
        %v1355 = vpack.c.b16 %v1337, %v1337
        %v1356 = vpack.c.b16 %v1338, %v1338
        %vm1375 = vcmask 519168
        %1376 = vst.msk [vmem:[%s255] sm:$0xf] %vm1375, %v1339
        %1377 = vst.msk [vmem:[%s255 + $0x4] sm:$0xf] %vm1375, %v1340
        %1378 = vst.msk [vmem:[%s255 + $0x8] sm:$0xf] %vm1375, %v1341
        %1379 = vst.msk [vmem:[%s255 + $0xc] sm:$0xf] %vm1375, %v1342
        %1380 = vst.msk [vmem:[%s255 + $0x10] sm:$0xf] %vm1375, %v1343
        %1381 = vst.msk [vmem:[%s255 + $0x14] sm:$0xf] %vm1375, %v1344
        %1382 = vst.msk [vmem:[%s255 + $0x18] sm:$0xf] %vm1375, %v1345
        %1383 = vst.msk [vmem:[%s255 + $0x1c] sm:$0xf] %vm1375, %v1346
        %1384 = vst.msk [vmem:[%s255 + $0x20] sm:$0xf] %vm1375, %v1347
        %1385 = vst.msk [vmem:[%s255 + $0x24] sm:$0xf] %vm1375, %v1348
        %1386 = vst.msk [vmem:[%s255 + $0x28] sm:$0xf] %vm1375, %v1349
        %1387 = vst.msk [vmem:[%s255 + $0x2c] sm:$0xf] %vm1375, %v1350
        %1388 = vst.msk [vmem:[%s255 + $0x30] sm:$0xf] %vm1375, %v1351
        %1389 = vst.msk [vmem:[%s255 + $0x34] sm:$0xf] %vm1375, %v1352
        %1390 = vst.msk [vmem:[%s255 + $0x38] sm:$0xf] %vm1375, %v1353
        %1391 = vst.msk [vmem:[%s255 + $0x3c] sm:$0xf] %vm1375, %v1354
        %1392 = vst.msk [vmem:[%s255 + $0x40] sm:$0xf] %vm1375, %v1355
        %1393 = vst.msk [vmem:[%s255 + $0x44] sm:$0xf] %vm1375, %v1356
        %s1394 = sand.u32 %s120, 1
        %s1395 = scalar_lea.sflag [#allocation4], %s1394
        %s1396 = sand.u32 %s120, 1
        %s1397 = smul.addr %s1396, 72
        %s1398 = scalar_lea.vmem [#allocation10], %s1397
        // Predicated region
        $region53: #{ifblock_forward.3} parent=35 // pred_check
          %p1399 = pneg %p130
        $region54: #{ifblock_forward.3} parent=35 // pred_check_branch
          %1401 = sbr.rel (%p1399) target = $region56
        $region55: #{ifblock_forward.3} parent=35 // pred_region
          %s1403 = ssub.s32 1152, 1152
          %1404 = vsyncadd %s1395, %s1403
          %s1405 = smul.addr %s23, 18
          %s1406 = smul.addr %s1405, 64
          %s1407 = scalar_lea.hbm %s4, %s1406
          %s1408 = sshll.u32 %s1398, 4
          %s1409 = int_to_ptr.vmem [resolvable:$true] %s1408
          %1414 = dma.vmem_to_hbm [thread:$0]  %s1409, 1152, %s1407, %s1395, 64, 64, 4
        $region56: #{ifblock_forward.3} parent=35 // pred_fallthru
          _
      $region36: #{ifblock_forward.3} parent=5 // pred_fallthru
        _
      %p1415 = scmp.le.s32.totalorder 2, %s18
      // Predicated region
      $region57: #{ifblock_forward.3} parent=5 // pred_check
        %p1416 = pneg %p1415
      $region58: #{ifblock_forward.3} parent=5 // pred_check_branch
        %1418 = sbr.rel (%p1416) target = $region60
      $region59: #{ifblock_forward.3} parent=5 // pred_region
        %s1419 = ssub.s32 %s18, 2
        // Predicated region
        $region61: #{ifblock_forward.3} parent=59 // pred_check
          %p1420 = pneg %p136
        $region62: #{ifblock_forward.3} parent=59 // pred_check_branch
          %1422 = sbr.rel (%p1420) target = $region64
        $region63: #{ifblock_forward.3} parent=59 // pred_region
          %s1423 = sand.u32 %s121, 1
          %s1424 = scalar_lea.sflag [#allocation4], %s1423
          %s1425 = sand.u32 %s121, 1
          %s1426 = smul.addr %s1425, 72
          %s1427 = scalar_lea.vmem [#allocation10], %s1426
          %1428 = dma.done %s1424, 1152
        $region64: #{ifblock_forward.3} parent=59 // pred_fallthru
          _
      $region60: #{ifblock_forward.3} parent=5 // pred_fallthru
        _
    $region6: #{ifblock_forward.3} parent=1 // loop_footer
      %s22 = sadd.s32 1, %s18
    $region7: #{ifblock_forward.3} parent=1 // loop_footer_branch
      %17 = sbr.rel target = $region3
    $region8: #{ifblock_forward.3} parent=1 // loop_exit
      _
    %1429 = vsyncpa [#allocation3], 1
    %s1430 = scalar_lea.sflag [#allocation3], 1
    %1431 = vsyncpa %s1430, 1
    %1432 = vsyncpa [#allocation6], 1
    %1433 = vsyncpa [#allocation9], 1
    %1434 = vsyncpa [#allocation4], 1
    %s1435 = scalar_lea.sflag [#allocation4], 1
    %1436 = vsyncpa %s1435, 1

// kernel: ifblock_forward.5
$region0: #{ifblock_forward.5}
  #allocation0 [shape = 'u32[]', space=smem, size = 0x4, offset = 0x4, fixed_abs, tag = 'smem constant byte address 0x4 - core index']
  #allocation1 [shape = 'u32[144,128]{1,0:T(1,128)}', space=vmem, size = 0x12000, scoped, tag = 'internal scratch']
  #allocation2 [shape = 'bf16[80,128]{1,0:T(16,128)(2,1)}', space=vmem, size = 0x5000, scoped, tag = 'scratch operand']
  %s0 = inlined_call_operand.hbm [shape: bf16[2,48,128], index: 0, kind: input, shape index: {}]
  %s1 = inlined_call_operand.hbm [shape: bf16[6912,128], index: 1, kind: input, shape index: {}]
  %s2 = inlined_call_operand.hbm [shape: f32[6,128], index: 2, kind: input, shape index: {}]
  %s3 = inlined_call_operand.hbm [shape: f32[6,128], index: 3, kind: input, shape index: {}]
  %s4 = inlined_call_operand.hbm [shape: f32[48,1], index: 4, kind: input, shape index: {}]
  %s5 = inlined_call_operand.hbm [shape: bf16[1152,48], index: 5, kind: input, shape index: {}]
  %s6 = inlined_call_operand.hbm [shape: f32[1,48], index: 6, kind: input, shape index: {}]
  %s7 = inlined_call_operand.hbm [shape: bf16[2,48,48], index: 7, kind: output, shape index: {}]
  %s8 = sld [smem:[#allocation0]]
  $region89: #{ifblock_forward.5} parent=0
    _
  %s10 = ssub.s32 1, %s8
  %s11 = scalar_select 0, %s10, %s8
  $region1: #{ifblock_forward.5} parent=0
    #allocation3 [shape = 'u8[24576]{0}', space=vmem, size = 0x6000, scoped, tag = 'input window, operand 0']
    #allocation4 [shape = 's32[2]{0}', space=sflag, size = 0x8, scoped, tag = 'scoped memory for ifblock_forward.5']
    #allocation5 [shape = 's32[2]{0}', space=sflag, size = 0x8, scoped, tag = 'scoped memory for ifblock_forward.5']
    #allocation6 [shape = 'u8[1769472]{0}', space=vmem, size = 0x1b0000, scoped, tag = 'input window, operand 1, single buffered']
    #allocation7 [shape = 's32[1]{0}', space=sflag, size = 0x4, scoped, tag = 'scoped memory for ifblock_forward.5']
    #allocation8 [shape = 'u8[4096]{0}', space=vmem, size = 0x1000, scoped, tag = 'input window, operand 2, single buffered']
    #allocation9 [shape = 'u8[4096]{0}', space=vmem, size = 0x1000, scoped, tag = 'input window, operand 3, single buffered']
    #allocation10 [shape = 's32[1]{0}', space=sflag, size = 0x4, scoped, tag = 'scoped memory for ifblock_forward.5']
    #allocation11 [shape = 'u8[24576]{0}', space=vmem, size = 0x6000, scoped, tag = 'input window, operand 4, single buffered']
    #allocation12 [shape = 'u8[294912]{0}', space=vmem, size = 0x48000, scoped, tag = 'input window, operand 5, single buffered']
    #allocation13 [shape = 's32[1]{0}', space=sflag, size = 0x4, scoped, tag = 'scoped memory for ifblock_forward.5']
    #allocation14 [shape = 'u8[512]{0}', space=vmem, size = 0x400, scoped, tag = 'input window, operand 6, single buffered']
    #allocation15 [shape = 'u8[24576]{0}', space=vmem, size = 0x6000, scoped, tag = 'output window, operand 0']
    %12 = vsyncpa [#allocation4], 0
    %s13 = scalar_lea.sflag [#allocation4], 1
    %14 = vsyncpa %s13, 0
    %15 = vsyncpa [#allocation7], 0
    %16 = vsyncpa [#allocation10], 0
    %17 = vsyncpa [#allocation13], 0
    %18 = vsyncpa [#allocation5], 0
    %s19 = scalar_lea.sflag [#allocation5], 1
    %20 = vsyncpa %s19, 0
    loop: start=0, step=1, limit=4
    $region2: #{ifblock_forward.5} parent=1 // loop_pre_header
      _
    $region3: #{ifblock_forward.5} parent=1 // loop_header
      %s22 = sphi 0, %s26
      %p23 = scmp.ge.s32.totalorder %s22, 4
      %s32 = sphi 0, %s34
      %s35 = sphi 0, %s32
      %s36 = sphi 0, %s35
      %s52 = sphi 0, %s36
      %s56 = sphi 0, %s56
      %s58 = sphi 0, %s56
      %s59 = sphi 0, %s58
      %s73 = sphi 0, %s59
      %s77 = sphi 0, %s77
      %s79 = sphi 0, %s77
      %s80 = sphi 0, %s79
      %s94 = sphi 0, %s80
      %s98 = sphi 0, %s98
      %s100 = sphi 0, %s98
      %s101 = sphi 0, %s100
      %s115 = sphi 0, %s101
      %s119 = sphi 0, %s119
      %s121 = sphi 0, %s119
      %s122 = sphi 0, %s121
      %s136 = sphi 0, %s122
      %s140 = sphi 0, %s140
      %s142 = sphi 0, %s140
      %s143 = sphi 0, %s142
      %s157 = sphi 0, %s143
      %s161 = sphi 0, %s161
      %s163 = sphi 0, %s161
      %s164 = sphi 0, %s163
      %s178 = sphi 0, %s164
      %s184 = sphi 0, %s186
      %s187 = sphi 0, %s184
      %s188 = sphi 0, %s187
      %s204 = sphi 0, %s188
    $region4: #{ifblock_forward.5} parent=1 // loop_header_branch
      %25 = sbr.rel (%p23) target = $region8
    $region5: #{ifblock_forward.5} parent=1 // loop_body
      %s27 = ssub.s32 %s22, 1
      %s28 = ssub.s32 %s22, 2
      %s29 = sadd.s32 %s22, 1
      %s30 = ssub.s32 %s22, %s29
      %p31 = scmp.eq.s32.totalorder %s30, 0
      %s33 = sadd.s32 %s32, 1
      %s34 = scalar_select %p31, %s32, %s33
      %p37 = pneg %p31
      %p38 = scmp.eq.s32.totalorder %s22, 1
      %p39 = por %p37, %p38
      %p40 = scmp.ne.s32.totalorder %s32, %s35
      %p41 = scmp.eq.s32.totalorder %s22, 0
      %p42 = por %p40, %p41
      %p43 = scmp.ne.s32.totalorder %s32, %s35
      %p44 = scmp.eq.s32.totalorder %s27, 1
      %p45 = por %p43, %p44
      %p46 = scmp.ne.s32.totalorder %s35, %s36
      %p47 = scmp.eq.s32.totalorder %s27, 0
      %p48 = por %p46, %p47
      %p49 = scmp.ne.s32.totalorder %s35, %s36
      %p50 = scmp.eq.s32.totalorder %s28, 1
      %p51 = por %p49, %p50
      %p53 = scmp.ne.s32.totalorder %s36, %s52
      %p54 = scmp.eq.s32.totalorder %s28, 0
      %p55 = por %p53, %p54
      %s57 = sadd.s32 %s56, 1
      %p60 = scmp.eq.s32.totalorder %s22, 1
      %p61 = scmp.ne.s32.totalorder %s56, %s58
      %p62 = scmp.eq.s32.totalorder %s22, 0
      %p63 = por %p61, %p62
      %p64 = scmp.ne.s32.totalorder %s56, %s58
      %p65 = scmp.eq.s32.totalorder %s27, 1
      %p66 = por %p64, %p65
      %p67 = scmp.ne.s32.totalorder %s58, %s59
      %p68 = scmp.eq.s32.totalorder %s27, 0
      %p69 = por %p67, %p68
      %p70 = scmp.ne.s32.totalorder %s58, %s59
      %p71 = scmp.eq.s32.totalorder %s28, 1
      %p72 = por %p70, %p71
      %p74 = scmp.ne.s32.totalorder %s59, %s73
      %p75 = scmp.eq.s32.totalorder %s28, 0
      %p76 = por %p74, %p75
      %s78 = sadd.s32 %s77, 1
      %p81 = scmp.eq.s32.totalorder %s22, 1
      %p82 = scmp.ne.s32.totalorder %s77, %s79
      %p83 = scmp.eq.s32.totalorder %s22, 0
      %p84 = por %p82, %p83
      %p85 = scmp.ne.s32.totalorder %s77, %s79
      %p86 = scmp.eq.s32.totalorder %s27, 1
      %p87 = por %p85, %p86
      %p88 = scmp.ne.s32.totalorder %s79, %s80
      %p89 = scmp.eq.s32.totalorder %s27, 0
      %p90 = por %p88, %p89
      %p91 = scmp.ne.s32.totalorder %s79, %s80
      %p92 = scmp.eq.s32.totalorder %s28, 1
      %p93 = por %p91, %p92
      %p95 = scmp.ne.s32.totalorder %s80, %s94
      %p96 = scmp.eq.s32.totalorder %s28, 0
      %p97 = por %p95, %p96
      %s99 = sadd.s32 %s98, 1
      %p102 = scmp.eq.s32.totalorder %s22, 1
      %p103 = scmp.ne.s32.totalorder %s98, %s100
      %p104 = scmp.eq.s32.totalorder %s22, 0
      %p105 = por %p103, %p104
      %p106 = scmp.ne.s32.totalorder %s98, %s100
      %p107 = scmp.eq.s32.totalorder %s27, 1
      %p108 = por %p106, %p107
      %p109 = scmp.ne.s32.totalorder %s100, %s101
      %p110 = scmp.eq.s32.totalorder %s27, 0
      %p111 = por %p109, %p110
      %p112 = scmp.ne.s32.totalorder %s100, %s101
      %p113 = scmp.eq.s32.totalorder %s28, 1
      %p114 = por %p112, %p113
      %p116 = scmp.ne.s32.totalorder %s101, %s115
      %p117 = scmp.eq.s32.totalorder %s28, 0
      %p118 = por %p116, %p117
      %s120 = sadd.s32 %s119, 1
      %p123 = scmp.eq.s32.totalorder %s22, 1
      %p124 = scmp.ne.s32.totalorder %s119, %s121
      %p125 = scmp.eq.s32.totalorder %s22, 0
      %p126 = por %p124, %p125
      %p127 = scmp.ne.s32.totalorder %s119, %s121
      %p128 = scmp.eq.s32.totalorder %s27, 1
      %p129 = por %p127, %p128
      %p130 = scmp.ne.s32.totalorder %s121, %s122
      %p131 = scmp.eq.s32.totalorder %s27, 0
      %p132 = por %p130, %p131
      %p133 = scmp.ne.s32.totalorder %s121, %s122
      %p134 = scmp.eq.s32.totalorder %s28, 1
      %p135 = por %p133, %p134
      %p137 = scmp.ne.s32.totalorder %s122, %s136
      %p138 = scmp.eq.s32.totalorder %s28, 0
      %p139 = por %p137, %p138
      %s141 = sadd.s32 %s140, 1
      %p144 = scmp.eq.s32.totalorder %s22, 1
      %p145 = scmp.ne.s32.totalorder %s140, %s142
      %p146 = scmp.eq.s32.totalorder %s22, 0
      %p147 = por %p145, %p146
      %p148 = scmp.ne.s32.totalorder %s140, %s142
      %p149 = scmp.eq.s32.totalorder %s27, 1
      %p150 = por %p148, %p149
      %p151 = scmp.ne.s32.totalorder %s142, %s143
      %p152 = scmp.eq.s32.totalorder %s27, 0
      %p153 = por %p151, %p152
      %p154 = scmp.ne.s32.totalorder %s142, %s143
      %p155 = scmp.eq.s32.totalorder %s28, 1
      %p156 = por %p154, %p155
      %p158 = scmp.ne.s32.totalorder %s143, %s157
      %p159 = scmp.eq.s32.totalorder %s28, 0
      %p160 = por %p158, %p159
      %s162 = sadd.s32 %s161, 1
      %p165 = scmp.eq.s32.totalorder %s22, 1
      %p166 = scmp.ne.s32.totalorder %s161, %s163
      %p167 = scmp.eq.s32.totalorder %s22, 0
      %p168 = por %p166, %p167
      %p169 = scmp.ne.s32.totalorder %s161, %s163
      %p170 = scmp.eq.s32.totalorder %s27, 1
      %p171 = por %p169, %p170
      %p172 = scmp.ne.s32.totalorder %s163, %s164
      %p173 = scmp.eq.s32.totalorder %s27, 0
      %p174 = por %p172, %p173
      %p175 = scmp.ne.s32.totalorder %s163, %s164
      %p176 = scmp.eq.s32.totalorder %s28, 1
      %p177 = por %p175, %p176
      %p179 = scmp.ne.s32.totalorder %s164, %s178
      %p180 = scmp.eq.s32.totalorder %s28, 0
      %p181 = por %p179, %p180
      %s182 = ssub.s32 %s22, %s29
      %p183 = scmp.eq.s32.totalorder %s182, 0
      %s185 = sadd.s32 %s184, 1
      %s186 = scalar_select %p183, %s184, %s185
      %p189 = pneg %p183
      %p190 = scmp.eq.s32.totalorder %s22, 1
      %p191 = por %p189, %p190
      %p192 = scmp.ne.s32.totalorder %s184, %s187
      %p193 = scmp.eq.s32.totalorder %s22, 0
      %p194 = por %p192, %p193
      %p195 = scmp.ne.s32.totalorder %s184, %s187
      %p196 = scmp.eq.s32.totalorder %s27, 1
      %p197 = por %p195, %p196
      %p198 = scmp.ne.s32.totalorder %s187, %s188
      %p199 = scmp.eq.s32.totalorder %s27, 0
      %p200 = por %p198, %p199
      %p201 = scmp.ne.s32.totalorder %s187, %s188
      %p202 = scmp.eq.s32.totalorder %s28, 1
      %p203 = por %p201, %p202
      %p205 = scmp.ne.s32.totalorder %s188, %s204
      %p206 = scmp.eq.s32.totalorder %s28, 0
      %p207 = por %p205, %p206
      %p208 = scmp.le.s32.totalorder 1, %s22
      %p209 = scmp.lt.s32.totalorder %s22, 3
      %p210 = pnand %p208, %p209
      %p211 = pneg %p210
      // Predicated region
      $region9: #{ifblock_forward.5} parent=5 // pred_check
        _
      $region10: #{ifblock_forward.5} parent=5 // pred_check_branch
        %213 = sbr.rel (%p210) target = $region12
      $region11: #{ifblock_forward.5} parent=5 // pred_region
        %s214 = ssub.s32 %s22, 1
        // Predicated region
        $region13: #{ifblock_forward.5} parent=11 // pred_check
          %p215 = pneg %p69
        $region14: #{ifblock_forward.5} parent=11 // pred_check_branch
          %217 = sbr.rel (%p215) target = $region16
        $region15: #{ifblock_forward.5} parent=11 // pred_region
          %s219 = ssub.s32 55296, 55296
          %220 = vsyncadd [#allocation7], %s219
          %s221 = sshll.u32 [#allocation6], 4
          %s222 = int_to_ptr.vmem [resolvable:$true] %s221
          %227 = dma.hbm_to_vmem [thread:$0]  %s1, 55296, %s222, [#allocation7], 64, 64, 4
        $region16: #{ifblock_forward.5} parent=11 // pred_fallthru
          _
        // Predicated region
        $region17: #{ifblock_forward.5} parent=11 // pred_check
          %p228 = pneg %p90
        $region18: #{ifblock_forward.5} parent=11 // pred_check_branch
          %230 = sbr.rel (%p228) target = $region20
        $region19: #{ifblock_forward.5} parent=11 // pred_region
          %s232 = ssub.s32 128, 128
          %233 = vsyncadd [#allocation7], %s232
          %s235 = sshll.u32 [#allocation8], 4
          %s236 = int_to_ptr.vmem [resolvable:$true] %s235
          %238 = dma.hbm_to_vmem [thread:$0]  %s2, 128, %s236, [#allocation7]
        $region20: #{ifblock_forward.5} parent=11 // pred_fallthru
          _
        // Predicated region
        $region21: #{ifblock_forward.5} parent=11 // pred_check
          %p239 = pneg %p111
        $region22: #{ifblock_forward.5} parent=11 // pred_check_branch
          %241 = sbr.rel (%p239) target = $region24
        $region23: #{ifblock_forward.5} parent=11 // pred_region
          %s243 = ssub.s32 128, 128
          %244 = vsyncadd [#allocation10], %s243
          %s246 = sshll.u32 [#allocation9], 4
          %s247 = int_to_ptr.vmem [resolvable:$true] %s246
          %249 = dma.hbm_to_vmem [thread:$0]  %s3, 128, %s247, [#allocation10]
        $region24: #{ifblock_forward.5} parent=11 // pred_fallthru
          _
        // Predicated region
        $region25: #{ifblock_forward.5} parent=11 // pred_check
          %p250 = pneg %p132
        $region26: #{ifblock_forward.5} parent=11 // pred_check_branch
          %252 = sbr.rel (%p250) target = $region28
        $region27: #{ifblock_forward.5} parent=11 // pred_region
          %s254 = ssub.s32 768, 768
          %255 = vsyncadd [#allocation10], %s254
          %s256 = sshll.u32 [#allocation11], 4
          %s257 = int_to_ptr.vmem [resolvable:$true] %s256
          %262 = dma.hbm_to_vmem [thread:$0]  %s4, 768, %s257, [#allocation10], 128, 128, 8
        $region28: #{ifblock_forward.5} parent=11 // pred_fallthru
          _
        // Predicated region
        $region29: #{ifblock_forward.5} parent=11 // pred_check
          %p263 = pneg %p153
        $region30: #{ifblock_forward.5} parent=11 // pred_check_branch
          %265 = sbr.rel (%p263) target = $region32
        $region31: #{ifblock_forward.5} parent=11 // pred_region
          %s267 = ssub.s32 9216, 9216
          %268 = vsyncadd [#allocation13], %s267
          %s269 = sshll.u32 [#allocation12], 4
          %s270 = int_to_ptr.vmem [resolvable:$true] %s269
          %275 = dma.hbm_to_vmem [thread:$0]  %s5, 9216, %s270, [#allocation13], 64, 64, 4
        $region32: #{ifblock_forward.5} parent=11 // pred_fallthru
          _
        // Predicated region
        $region33: #{ifblock_forward.5} parent=11 // pred_check
          %p276 = pneg %p174
        $region34: #{ifblock_forward.5} parent=11 // pred_check_branch
          %278 = sbr.rel (%p276) target = $region36
        $region35: #{ifblock_forward.5} parent=11 // pred_region
          %s280 = ssub.s32 16, 16
          %281 = vsyncadd [#allocation13], %s280
          %s283 = sshll.u32 [#allocation14], 4
          %s284 = int_to_ptr.vmem [resolvable:$true] %s283
          %286 = dma.hbm_to_vmem [thread:$0]  %s6, 16, %s284, [#allocation13]
        $region36: #{ifblock_forward.5} parent=11 // pred_fallthru
          _
      $region12: #{ifblock_forward.5} parent=5 // pred_fallthru
        _
      %p287 = scmp.lt.s32.totalorder %s22, 2
      // Predicated region
      $region37: #{ifblock_forward.5} parent=5 // pred_check
        %p288 = pneg %p287
      $region38: #{ifblock_forward.5} parent=5 // pred_check_branch
        %290 = sbr.rel (%p288) target = $region40
      $region39: #{ifblock_forward.5} parent=5 // pred_region
        // Predicated region
        $region41: #{ifblock_forward.5} parent=39 // pred_check
          %p291 = pneg %p42
        $region42: #{ifblock_forward.5} parent=39 // pred_check_branch
          %293 = sbr.rel (%p291) target = $region44
        $region43: #{ifblock_forward.5} parent=39 // pred_region
          %s294 = sand.u32 %s32, 1
          %s295 = scalar_lea.sflag [#allocation4], %s294
          %s296 = sand.u32 %s32, 1
          %s297 = smul.addr %s296, 24
          %s298 = scalar_lea.vmem [#allocation3], %s297
          %s300 = ssub.s32 384, 384
          %301 = vsyncadd %s295, %s300
          %s302 = smul.addr %s22, 6
          %s303 = smul.addr %s302, 64
          %s304 = scalar_lea.hbm %s0, %s303
          %s305 = sshll.u32 %s298, 4
          %s306 = int_to_ptr.vmem [resolvable:$true] %s305
          %311 = dma.hbm_to_vmem [thread:$0]  %s304, 384, %s306, %s295, 64, 64, 4
        $region44: #{ifblock_forward.5} parent=39 // pred_fallthru
          _
      $region40: #{ifblock_forward.5} parent=5 // pred_fallthru
        _
      %p312 = scmp.le.s32.totalorder 1, %s22
      %p313 = scmp.lt.s32.totalorder %s22, 3
      %p314 = pnand %p312, %p313
      %p315 = pneg %p314
      // Predicated region
      $region45: #{ifblock_forward.5} parent=5 // pred_check
        _
      $region46: #{ifblock_forward.5} parent=5 // pred_check_branch
        %317 = sbr.rel (%p314) target = $region48
      $region47: #{ifblock_forward.5} parent=5 // pred_region
        %s318 = ssub.s32 %s22, 1
        %s319 = sand.u32 %s35, 1
        %s320 = scalar_lea.sflag [#allocation4], %s319
        %s321 = sand.u32 %s35, 1
        %s322 = smul.addr %s321, 24
        %s323 = scalar_lea.vmem [#allocation3], %s322
        // Predicated region
        $region49: #{ifblock_forward.5} parent=47 // pred_check
          %p324 = pneg %p48
        $region50: #{ifblock_forward.5} parent=47 // pred_check_branch
          %326 = sbr.rel (%p324) target = $region52
        $region51: #{ifblock_forward.5} parent=47 // pred_region
          %327 = dma.done %s320, 384
        $region52: #{ifblock_forward.5} parent=47 // pred_fallthru
          _
        // Predicated region
        $region53: #{ifblock_forward.5} parent=47 // pred_check
          %p328 = pneg %p69
        $region54: #{ifblock_forward.5} parent=47 // pred_check_branch
          %330 = sbr.rel (%p328) target = $region56
        $region55: #{ifblock_forward.5} parent=47 // pred_region
          %331 = dma.done [#allocation7], 55296
        $region56: #{ifblock_forward.5} parent=47 // pred_fallthru
          _
        // Predicated region
        $region57: #{ifblock_forward.5} parent=47 // pred_check
          %p332 = pneg %p90
        $region58: #{ifblock_forward.5} parent=47 // pred_check_branch
          %334 = sbr.rel (%p332) target = $region60
        $region59: #{ifblock_forward.5} parent=47 // pred_region
          %335 = dma.done [#allocation7], 128
        $region60: #{ifblock_forward.5} parent=47 // pred_fallthru
          _
        // Predicated region
        $region61: #{ifblock_forward.5} parent=47 // pred_check
          %p336 = pneg %p111
        $region62: #{ifblock_forward.5} parent=47 // pred_check_branch
          %338 = sbr.rel (%p336) target = $region64
        $region63: #{ifblock_forward.5} parent=47 // pred_region
          %339 = dma.done [#allocation10], 128
        $region64: #{ifblock_forward.5} parent=47 // pred_fallthru
          _
        // Predicated region
        $region65: #{ifblock_forward.5} parent=47 // pred_check
          %p340 = pneg %p132
        $region66: #{ifblock_forward.5} parent=47 // pred_check_branch
          %342 = sbr.rel (%p340) target = $region68
        $region67: #{ifblock_forward.5} parent=47 // pred_region
          %343 = dma.done [#allocation10], 768
        $region68: #{ifblock_forward.5} parent=47 // pred_fallthru
          _
        // Predicated region
        $region69: #{ifblock_forward.5} parent=47 // pred_check
          %p344 = pneg %p153
        $region70: #{ifblock_forward.5} parent=47 // pred_check_branch
          %346 = sbr.rel (%p344) target = $region72
        $region71: #{ifblock_forward.5} parent=47 // pred_region
          %347 = dma.done [#allocation13], 9216
        $region72: #{ifblock_forward.5} parent=47 // pred_fallthru
          _
        // Predicated region
        $region73: #{ifblock_forward.5} parent=47 // pred_check
          %p348 = pneg %p174
        $region74: #{ifblock_forward.5} parent=47 // pred_check_branch
          %350 = sbr.rel (%p348) target = $region76
        $region75: #{ifblock_forward.5} parent=47 // pred_region
          %351 = dma.done [#allocation13], 16
        $region76: #{ifblock_forward.5} parent=47 // pred_fallthru
          _
        %s352 = sand.u32 %s35, 1
        %s353 = scalar_lea.sflag [#allocation4], %s352
        %s354 = sand.u32 %s35, 1
        %s355 = smul.addr %s354, 24
        %s356 = scalar_lea.vmem [#allocation3], %s355
        %p357 = pneg %p48
        %p358 = pneg %p45
        %p359 = pneg %p69
        %p360 = pneg %p66
        %p361 = pneg %p90
        %p362 = pneg %p87
        %p363 = pneg %p111
        %p364 = pneg %p108
        %p365 = pneg %p132
        %p366 = pneg %p129
        %p367 = pneg %p153
        %p368 = pneg %p150
        %p369 = pneg %p174
        %p370 = pneg %p171
        %p371 = pneg %p200
        %p372 = pneg %p197
        %s373 = sand.u32 %s187, 1
        %s374 = scalar_lea.sflag [#allocation5], %s373
        %s375 = sand.u32 %s187, 1
        %s376 = smul.addr %s375, 24
        %s377 = scalar_lea.vmem [#allocation15], %s376
        %379 = vst [vmem:[#allocation2] sm:$0xff] 0
        %380 = vst [vmem:[#allocation2 + $0x20] sm:$0xff] 0
        %v381 = vld [vmem:[%s323] sm:$0xf]
        %v382 = vld [vmem:[%s323 + $0x4] sm:$0xf]
        %v383 = vld [vmem:[%s323 + $0x8] sm:$0xf]
        %v384 = vld [vmem:[%s323 + $0xc] sm:$0xf]
        %v385 = vld [vmem:[%s323 + $0x10] sm:$0xf]
        %v386 = vld [vmem:[%s323 + $0x14] sm:$0xf]
        %v393 = vunpack.c.l.b16 %v381
        %v394 = vunpack.c.l.b16 %v382
        %v395 = vunpack.c.l.b16 %v383
        %v396 = vunpack.c.l.b16 %v384
        %v397 = vunpack.c.l.b16 %v385
        %v398 = vunpack.c.l.b16 %v386
        %v399 = vpack.c.b16 %v394, %v393
        %v400 = vpack.c.b16 %v396, %v395
        %v401 = vpack.c.b16 %v398, %v397
        %405 = vst [vmem:[#allocation2 + $0x8] sm:$0xff] %v399
        %406 = vst [vmem:[#allocation2 + $0x10] sm:$0xff] %v400
        %407 = vst [vmem:[#allocation2 + $0x18] sm:$0xff] %v401
        %v408 = vld [vmem:[#allocation11] sm:$0xff]
        %v409 = vld [vmem:[#allocation11 + $0x8] sm:$0xff]
        %v410 = vld [vmem:[#allocation11 + $0x10] sm:$0xff]
        %v411 = vld [vmem:[#allocation11 + $0x18] sm:$0xff]
        %v412 = vld [vmem:[#allocation11 + $0x20] sm:$0xff]
        %v413 = vld [vmem:[#allocation11 + $0x28] sm:$0xff]
        %415 = vset.pattern.permute.xlu0 0
        %416 = vperm.xlu0 %415, %v408
        %v417 = vpop.permute.xlu0 %416
        %420 = vset.pattern.permute.xlu0 0
        %421 = vperm.xlu0 %420, %v409
        %v422 = vpop.permute.xlu0 %421
        %425 = vset.pattern.permute.xlu0 0
        %426 = vperm.xlu0 %425, %v410
        %v427 = vpop.permute.xlu0 %426
        %430 = vset.pattern.permute.xlu0 0
        %431 = vperm.xlu0 %430, %v411
        %v432 = vpop.permute.xlu0 %431
        %435 = vset.pattern.permute.xlu0 0
        %436 = vperm.xlu0 %435, %v412
        %v437 = vpop.permute.xlu0 %436
        %440 = vset.pattern.permute.xlu0 0
        %441 = vperm.xlu0 %440, %v413
        %v442 = vpop.permute.xlu0 %441
        %v444 = vpack.c.bf16 %v422, %v417
        %v445 = vpack.c.bf16 %v432, %v427
        %v446 = vpack.c.bf16 %v442, %v437
        %v447 = vld [vmem:[#allocation2] sm:$0xf8]
        %v448 = vld [vmem:[#allocation2 + $0x8] sm:$0xff]
        %v449 = vld [vmem:[#allocation2 + $0x10] sm:$0xff]
        %v450 = vld [vmem:[#allocation2 + $0x18] sm:$0xf]
        %v451 = vld [vmem:[#allocation2] sm:$0xf0]
        %v452 = vld [vmem:[#allocation2 + $0x18] sm:$0x1f]
        %v453 = vld [vmem:[#allocation2] sm:$0x80]
        %v454 = vld [vmem:[#allocation2 + $0x18] sm:$0xff]
        %v455 = vld [vmem:[#allocation2 + $0x8] sm:$0xff]
        %v456 = vld [vmem:[#allocation2 + $0x10] sm:$0xff]
        %v457 = vld [vmem:[#allocation2 + $0x18] sm:$0xff]
        %v458 = vld [vmem:[#allocation2 + $0x20] sm:$0x1]
        %v459 = vld [vmem:[#allocation2 + $0x8] sm:$0xf8]
        %v460 = vld [vmem:[#allocation2 + $0x20] sm:$0xf]
        %v461 = vld [vmem:[#allocation2 + $0x8] sm:$0xf0]
        %v462 = vld [vmem:[#allocation2 + $0x20] sm:$0x1f]
        %vm463 = vsmask.f32 7424
        %v465 = vshrl.u32 %v451, 16
        %v467 = vshll.u32 %v451, 16
        %v469 = vrot.slane %v467, 1
        %v470 = vor.u32 %v465, %v469
        %v472 = vshll.u32 %v448, 16
        %v474 = vrot.slane %v472, 1
        %v475 = vsel %vm463, %v470, %v474
        %v476 = vshrl.u32 %v448, 16
        %v478 = vor.u32 %v476, %v474
        %v480 = vshll.u32 %v449, 16
        %v482 = vrot.slane %v480, 1
        %v483 = vsel %vm463, %v478, %v482
        %v484 = vshrl.u32 %v449, 16
        %v486 = vor.u32 %v484, %v482
        %v488 = vshll.u32 %v450, 16
        %v490 = vrot.slane %v488, 1
        %v491 = vsel %vm463, %v486, %v490
        %v492 = vshrl.u32 %v450, 16
        %v494 = vor.u32 %v492, %v490
        %vm499 = vcmask 1046528
        %v500 = vrot.slane %v451, 1
        %v501 = vrot.slane %v448, 1
        %v502 = vsel %vm499, %v500, %v501
        %v503 = vrot.slane %v449, 1
        %v504 = vsel %vm499, %v501, %v503
        %v505 = vrot.slane %v452, 1
        %v506 = vsel %vm499, %v503, %v505
        %vm509 = vcmask 1043456
        %v510 = vrot.slane %v453, 4
        %v511 = vrot.slane %v448, 4
        %v512 = vsel %vm509, %v510, %v511
        %v513 = vrot.slane %v449, 4
        %v514 = vsel %vm509, %v511, %v513
        %v515 = vrot.slane %v454, 4
        %v516 = vsel %vm509, %v513, %v515
        %vm517 = vsmask.f32 3328
        %v518 = vrot.slane %v476, 4
        %v519 = vrot.slane %v472, 5
        %v520 = vor.u32 %v518, %v519
        %v521 = vrot.slane %v484, 4
        %v522 = vrot.slane %v480, 5
        %v523 = vor.u32 %v521, %v522
        %v524 = vsel %vm517, %v520, %v523
        %v526 = vshrl.u32 %v454, 16
        %v528 = vrot.slane %v526, 4
        %v529 = vshll.u32 %v454, 16
        %v531 = vrot.slane %v529, 5
        %v532 = vor.u32 %v528, %v531
        %v533 = vsel %vm517, %v523, %v532
        %vm538 = vcmask 1042432
        %v539 = vrot.slane %v455, 5
        %v540 = vrot.slane %v456, 5
        %v541 = vsel %vm538, %v539, %v540
        %v542 = vrot.slane %v457, 5
        %v543 = vsel %vm538, %v540, %v542
        %v544 = vrot.slane %v458, 5
        %v545 = vsel %vm538, %v542, %v544
        %v547 = vshrl.u32 %v461, 16
        %v549 = vshll.u32 %v461, 16
        %v551 = vrot.slane %v549, 1
        %v552 = vor.u32 %v547, %v551
        %v554 = vshll.u32 %v456, 16
        %v556 = vrot.slane %v554, 1
        %v557 = vsel %vm463, %v552, %v556
        %v558 = vshrl.u32 %v456, 16
        %v560 = vor.u32 %v558, %v556
        %v562 = vshll.u32 %v457, 16
        %v564 = vrot.slane %v562, 1
        %v565 = vsel %vm463, %v560, %v564
        %v566 = vshrl.u32 %v457, 16
        %v568 = vor.u32 %v566, %v564
        %v570 = vshll.u32 %v460, 16
        %v572 = vrot.slane %v570, 1
        %v573 = vsel %vm463, %v568, %v572
        %v574 = vshrl.u32 %v460, 16
        %v576 = vor.u32 %v574, %v572
        %v579 = vrot.slane %v461, 1
        %v580 = vrot.slane %v456, 1
        %v581 = vsel %vm499, %v579, %v580
        %v582 = vrot.slane %v457, 1
        %v583 = vsel %vm499, %v580, %v582
        %v584 = vrot.slane %v462, 1
        %v585 = vsel %vm499, %v582, %v584
        %v586 = vld [vmem:[#allocation6] sm:$0xf]
        %v587 = vld [vmem:[#allocation6 + $0x4] sm:$0xf]
        %v588 = vld [vmem:[#allocation6 + $0x8] sm:$0xf]
        %v589 = vld [vmem:[#allocation6 + $0xc] sm:$0xf]
        %v590 = vld [vmem:[#allocation6 + $0x10] sm:$0xf]
        %v591 = vld [vmem:[#allocation6 + $0x14] sm:$0xf]
        %v592 = vld [vmem:[#allocation6 + $0x18] sm:$0xf]
        %v593 = vld [vmem:[#allocation6 + $0x1c] sm:$0xf]
        %v594 = vld [vmem:[#allocation6 + $0x20] sm:$0xf]
        %v595 = vld [vmem:[#allocation6 + $0x24] sm:$0xf]
        %v596 = vld [vmem:[#allocation6 + $0x28] sm:$0xf]
        %v597 = vld [vmem:[#allocation6 + $0x2c] sm:$0xf]
        %v598 = vld [vmem:[#allocation6 + $0x30] sm:$0xf]
        %v599 = vld [vmem:[#allocation6 + $0x34] sm:$0xf]
        %v600 = vld [vmem:[#allocation6 + $0x38] sm:$0xf]
        %v601 = vld [vmem:[#allocation6 + $0x3c] sm:$0xf]
        %v602 = vld [vmem:[#allocation6 + $0x40] sm:$0xf]
        %v603 = vld [vmem:[#allocation6 + $0x44] sm:$0xf]
        %v604 = vld [vmem:[#allocation6 + $0x48] sm:$0xf]
        %v605 = vld [vmem:[#allocation6 + $0x4c] sm:$0xf]
        %v606 = vld [vmem:[#allocation6 + $0x50] sm:$0xf]
        %v607 = vld [vmem:[#allocation6 + $0x54] sm:$0xf]
        %v608 = vld [vmem:[#allocation6 + $0x58] sm:$0xf]
        %v609 = vld [vmem:[#allocation6 + $0x5c] sm:$0xf]
        %v610 = vld [vmem:[#allocation6 + $0x60] sm:$0xf]
        %v611 = vld [vmem:[#allocation6 + $0x64] sm:$0xf]
        %v612 = vld [vmem:[#allocation6 + $0x68] sm:$0xf]
        %v613 = vld [vmem:[#allocation6 + $0x6c] sm:$0xf]
        %v614 = vld [vmem:[#allocation6 + $0x70] sm:$0xf]
        %v615 = vld [vmem:[#allocation6 + $0x74] sm:$0xf]
        %v616 = vld [vmem:[#allocation6 + $0x78] sm:$0xf]
        %v617 = vld [vmem:[#allocation6 + $0x7c] sm:$0xf]
        %v618 = vld [vmem:[#allocation6 + $0x80] sm:$0xf]
        %v619 = vld [vmem:[#allocation6 + $0x84] sm:$0xf]
        %v620 = vld [vmem:[#allocation6 + $0x88] sm:$0xf]
        %v621 = vld [vmem:[#allocation6 + $0x8c] sm:$0xf]
        %v622 = vld [vmem:[#allocation6 + $0x90] sm:$0xf]
        %v623 = vld [vmem:[#allocation6 + $0x94] sm:$0xf]
        %v624 = vld [vmem:[#allocation6 + $0x98] sm:$0xf]
        %v625 = vld [vmem:[#allocation6 + $0x9c] sm:$0xf]
        %v626 = vld [vmem:[#allocation6 + $0xa0] sm:$0xf]
        %v627 = vld [vmem:[#allocation6 + $0xa4] sm:$0xf]
        %v628 = vld [vmem:[#allocation6 + $0xa8] sm:$0xf]
        %v629 = vld [vmem:[#allocation6 + $0xac] sm:$0xf]
        %v630 = vld [vmem:[#allocation6 + $0xb0] sm:$0xf]
        %v631 = vld [vmem:[#allocation6 + $0xb4] sm:$0xf]
        %v632 = vld [vmem:[#allocation6 + $0xb8] sm:$0xf]
        %v633 = vld [vmem:[#allocation6 + $0xbc] sm:$0xf]
        %v634 = vld [vmem:[#allocation6 + $0xc0] sm:$0xf]
        %v635 = vld [vmem:[#allocation6 + $0xc4] sm:$0xf]
        %v636 = vld [vmem:[#allocation6 + $0xc8] sm:$0xf]
        %v637 = vld [vmem:[#allocation6 + $0xcc] sm:$0xf]
        %v638 = vld [vmem:[#allocation6 + $0xd0] sm:$0xf]
        %v639 = vld [vmem:[#allocation6 + $0xd4] sm:$0xf]
        %v640 = vld [vmem:[#allocation6 + $0xd8] sm:$0xf]
        %v641 = vld [vmem:[#allocation6 + $0xdc] sm:$0xf]
        %v642 = vld [vmem:[#allocation6 + $0xe0] sm:$0xf]
        %v643 = vld [vmem:[#allocation6 + $0xe4] sm:$0xf]
        %v644 = vld [vmem:[#allocation6 + $0xe8] sm:$0xf]
        %v645 = vld [vmem:[#allocation6 + $0xec] sm:$0xf]
        %v646 = vld [vmem:[#allocation6 + $0xf0] sm:$0xf]
        %v647 = vld [vmem:[#allocation6 + $0xf4] sm:$0xf]
        %v648 = vld [vmem:[#allocation6 + $0xf8] sm:$0xf]
        %v649 = vld [vmem:[#allocation6 + $0xfc] sm:$0xf]
        %v650 = vld [vmem:[#allocation6 + $0x100] sm:$0xf]
        %v651 = vld [vmem:[#allocation6 + $0x104] sm:$0xf]
        %v652 = vld [vmem:[#allocation6 + $0x108] sm:$0xf]
        %v653 = vld [vmem:[#allocation6 + $0x10c] sm:$0xf]
        %v654 = vld [vmem:[#allocation6 + $0x110] sm:$0xf]
        %v655 = vld [vmem:[#allocation6 + $0x114] sm:$0xf]
        %v656 = vld [vmem:[#allocation6 + $0x118] sm:$0xf]
        %v657 = vld [vmem:[#allocation6 + $0x11c] sm:$0xf]
        %v658 = vld [vmem:[#allocation6 + $0x120] sm:$0xf]
        %v659 = vld [vmem:[#allocation6 + $0x124] sm:$0xf]
        %v660 = vld [vmem:[#allocation6 + $0x128] sm:$0xf]
        %v661 = vld [vmem:[#allocation6 + $0x12c] sm:$0xf]
        %v662 = vld [vmem:[#allocation6 + $0x130] sm:$0xf]
        %v663 = vld [vmem:[#allocation6 + $0x134] sm:$0xf]
        %v664 = vld [vmem:[#allocation6 + $0x138] sm:$0xf]
        %v665 = vld [vmem:[#allocation6 + $0x13c] sm:$0xf]
        %v666 = vld [vmem:[#allocation6 + $0x140] sm:$0xf]
        %v667 = vld [vmem:[#allocation6 + $0x144] sm:$0xf]
        %v668 = vld [vmem:[#allocation6 + $0x148] sm:$0xf]
        %v669 = vld [vmem:[#allocation6 + $0x14c] sm:$0xf]
        %v670 = vld [vmem:[#allocation6 + $0x150] sm:$0xf]
        %v671 = vld [vmem:[#allocation6 + $0x154] sm:$0xf]
        %v672 = vld [vmem:[#allocation6 + $0x158] sm:$0xf]
        %v673 = vld [vmem:[#allocation6 + $0x15c] sm:$0xf]
        %v674 = vld [vmem:[#allocation6 + $0x160] sm:$0xf]
        %v675 = vld [vmem:[#allocation6 + $0x164] sm:$0xf]
        %v676 = vld [vmem:[#allocation6 + $0x168] sm:$0xf]
        %v677 = vld [vmem:[#allocation6 + $0x16c] sm:$0xf]
        %v678 = vld [vmem:[#allocation6 + $0x170] sm:$0xf]
        %v679 = vld [vmem:[#allocation6 + $0x174] sm:$0xf]
        %v680 = vld [vmem:[#allocation6 + $0x178] sm:$0xf]
        %v681 = vld [vmem:[#allocation6 + $0x17c] sm:$0xf]
        %v682 = vld [vmem:[#allocation6 + $0x180] sm:$0xf]
        %v683 = vld [vmem:[#allocation6 + $0x184] sm:$0xf]
        %v684 = vld [vmem:[#allocation6 + $0x188] sm:$0xf]
        %v685 = vld [vmem:[#allocation6 + $0x18c] sm:$0xf]
        %v686 = vld [vmem:[#allocation6 + $0x190] sm:$0xf]
        %v687 = vld [vmem:[#allocation6 + $0x194] sm:$0xf]
        %v688 = vld [vmem:[#allocation6 + $0x198] sm:$0xf]
        %v689 = vld [vmem:[#allocation6 + $0x19c] sm:$0xf]
        %v690 = vld [vmem:[#allocation6 + $0x1a0] sm:$0xf]
        %v691 = vld [vmem:[#allocation6 + $0x1a4] sm:$0xf]
        %v692 = vld [vmem:[#allocation6 + $0x1a8] sm:$0xf]
        %v693 = vld [vmem:[#allocation6 + $0x1ac] sm:$0xf]
        %v694 = vld [vmem:[#allocation6 + $0x1b0] sm:$0xf]
        %v695 = vld [vmem:[#allocation6 + $0x1b4] sm:$0xf]
        %v696 = vld [vmem:[#allocation6 + $0x1b8] sm:$0xf]
        %v697 = vld [vmem:[#allocation6 + $0x1bc] sm:$0xf]
        %v698 = vld [vmem:[#allocation6 + $0x1c0] sm:$0xf]
        %v699 = vld [vmem:[#allocation6 + $0x1c4] sm:$0xf]
        %v700 = vld [vmem:[#allocation6 + $0x1c8] sm:$0xf]
        %v701 = vld [vmem:[#allocation6 + $0x1cc] sm:$0xf]
        %v702 = vld [vmem:[#allocation6 + $0x1d0] sm:$0xf]
        %v703 = vld [vmem:[#allocation6 + $0x1d4] sm:$0xf]
        %v704 = vld [vmem:[#allocation6 + $0x1d8] sm:$0xf]
        %v705 = vld [vmem:[#allocation6 + $0x1dc] sm:$0xf]
        %v706 = vld [vmem:[#allocation6 + $0x1e0] sm:$0xf]
        %v707 = vld [vmem:[#allocation6 + $0x1e4] sm:$0xf]
        %v708 = vld [vmem:[#allocation6 + $0x1e8] sm:$0xf]
        %v709 = vld [vmem:[#allocation6 + $0x1ec] sm:$0xf]
        %v710 = vld [vmem:[#allocation6 + $0x1f0] sm:$0xf]
        %v711 = vld [vmem:[#allocation6 + $0x1f4] sm:$0xf]
        %v712 = vld [vmem:[#allocation6 + $0x1f8] sm:$0xf]
        %v713 = vld [vmem:[#allocation6 + $0x1fc] sm:$0xf]
        %v714 = vld [vmem:[#allocation6 + $0x200] sm:$0xf]
        %v715 = vld [vmem:[#allocation6 + $0x204] sm:$0xf]
        %v716 = vld [vmem:[#allocation6 + $0x208] sm:$0xf]
        %v717 = vld [vmem:[#allocation6 + $0x20c] sm:$0xf]
        %v718 = vld [vmem:[#allocation6 + $0x210] sm:$0xf]
        %v719 = vld [vmem:[#allocation6 + $0x214] sm:$0xf]
        %v720 = vld [vmem:[#allocation6 + $0x218] sm:$0xf]
        %v721 = vld [vmem:[#allocation6 + $0x21c] sm:$0xf]
        %v722 = vld [vmem:[#allocation6 + $0x220] sm:$0xf]
        %v723 = vld [vmem:[#allocation6 + $0x224] sm:$0xf]
        %v724 = vld [vmem:[#allocation6 + $0x228] sm:$0xf]
        %v725 = vld [vmem:[#allocation6 + $0x22c] sm:$0xf]
        %v726 = vld [vmem:[#allocation6 + $0x230] sm:$0xf]
        %v727 = vld [vmem:[#allocation6 + $0x234] sm:$0xf]
        %v728 = vld [vmem:[#allocation6 + $0x238] sm:$0xf]
        %v729 = vld [vmem:[#allocation6 + $0x23c] sm:$0xf]
        %v730 = vld [vmem:[#allocation8] sm:$0x1]
        %v731 = vlaneseq
        %v732 = vshrl.u32 %v731, 7
        %v733 = vsub.s32 0, %v732
        %v734 = vrot.slane %v730, %v733
        %vm735 = vsmask.f32 4352
        %v737 = vshrl.u32 %v447, 16
        %v739 = vrot.slane %v737, 3
        %v740 = vshll.u32 %v447, 16
        %v742 = vrot.slane %v740, 4
        %v743 = vor.u32 %v739, %v742
        %v744 = vrot.slane %v476, 3
        %v745 = vrot.slane %v472, 4
        %v746 = vor.u32 %v744, %v745
        %v747 = vsel %vm735, %v743, %v746
        %v749 = vshrl.u32 %v475, 16
        %v751 = vrot.slane %v749, 3
        %v752 = vshll.u32 %v475, 16
        %v754 = vrot.slane %v752, 4
        %v755 = vor.u32 %v751, %v754
        %v757 = vshrl.u32 %v483, 16
        %v759 = vrot.slane %v757, 3
        %v760 = vshll.u32 %v483, 16
        %v762 = vrot.slane %v760, 4
        %v763 = vor.u32 %v759, %v762
        %v764 = vsel %vm735, %v755, %v763
        %v766 = vshrl.u32 %v502, 16
        %v768 = vrot.slane %v766, 3
        %v769 = vshll.u32 %v502, 16
        %v771 = vrot.slane %v769, 4
        %v772 = vor.u32 %v768, %v771
        %v774 = vshrl.u32 %v504, 16
        %v776 = vrot.slane %v774, 3
        %v777 = vshll.u32 %v504, 16
        %v779 = vrot.slane %v777, 4
        %v780 = vor.u32 %v776, %v779
        %v781 = vsel %vm735, %v772, %v780
        %v783 = vshrl.u32 %v512, 16
        %v785 = vrot.slane %v783, 3
        %v786 = vshll.u32 %v512, 16
        %v788 = vrot.slane %v786, 4
        %v789 = vor.u32 %v785, %v788
        %v791 = vshrl.u32 %v514, 16
        %v793 = vrot.slane %v791, 3
        %v794 = vshll.u32 %v514, 16
        %v796 = vrot.slane %v794, 4
        %v797 = vor.u32 %v793, %v796
        %v798 = vsel %vm735, %v789, %v797
        %v800 = vshrl.u32 %v520, 16
        %v802 = vrot.slane %v800, 3
        %v803 = vshll.u32 %v520, 16
        %v805 = vrot.slane %v803, 4
        %v806 = vor.u32 %v802, %v805
        %v808 = vshrl.u32 %v524, 16
        %v810 = vrot.slane %v808, 3
        %v811 = vshll.u32 %v524, 16
        %v813 = vrot.slane %v811, 4
        %v814 = vor.u32 %v810, %v813
        %v815 = vsel %vm735, %v806, %v814
        %v817 = vshrl.u32 %v539, 16
        %v819 = vrot.slane %v817, 3
        %v820 = vshll.u32 %v539, 16
        %v822 = vrot.slane %v820, 4
        %v823 = vor.u32 %v819, %v822
        %v825 = vshrl.u32 %v541, 16
        %v827 = vrot.slane %v825, 3
        %v828 = vshll.u32 %v541, 16
        %v830 = vrot.slane %v828, 4
        %v831 = vor.u32 %v827, %v830
        %v832 = vsel %vm735, %v823, %v831
        %v834 = vshrl.u32 %v459, 16
        %v836 = vrot.slane %v834, 3
        %v837 = vshll.u32 %v459, 16
        %v839 = vrot.slane %v837, 4
        %v840 = vor.u32 %v836, %v839
        %v841 = vrot.slane %v558, 3
        %v842 = vrot.slane %v554, 4
        %v843 = vor.u32 %v841, %v842
        %v844 = vsel %vm735, %v840, %v843
        %v846 = vshrl.u32 %v557, 16
        %v848 = vrot.slane %v846, 3
        %v849 = vshll.u32 %v557, 16
        %v851 = vrot.slane %v849, 4
        %v852 = vor.u32 %v848, %v851
        %v854 = vshrl.u32 %v565, 16
        %v856 = vrot.slane %v854, 3
        %v857 = vshll.u32 %v565, 16
        %v859 = vrot.slane %v857, 4
        %v860 = vor.u32 %v856, %v859
        %v861 = vsel %vm735, %v852, %v860
        %v863 = vshrl.u32 %v581, 16
        %v865 = vrot.slane %v863, 3
        %v866 = vshll.u32 %v581, 16
        %v868 = vrot.slane %v866, 4
        %v869 = vor.u32 %v865, %v868
        %v871 = vshrl.u32 %v583, 16
        %v873 = vrot.slane %v871, 3
        %v874 = vshll.u32 %v583, 16
        %v876 = vrot.slane %v874, 4
        %v877 = vor.u32 %v873, %v876
        %v878 = vsel %vm735, %v869, %v877
        %v879 = vrot.slane %v484, 3
        %v880 = vrot.slane %v480, 4
        %v881 = vor.u32 %v879, %v880
        %v882 = vsel %vm735, %v746, %v881
        %v884 = vshrl.u32 %v491, 16
        %v886 = vrot.slane %v884, 3
        %v887 = vshll.u32 %v491, 16
        %v889 = vrot.slane %v887, 4
        %v890 = vor.u32 %v886, %v889
        %v891 = vsel %vm735, %v763, %v890
        %v893 = vshrl.u32 %v506, 16
        %v895 = vrot.slane %v893, 3
        %v896 = vshll.u32 %v506, 16
        %v898 = vrot.slane %v896, 4
        %v899 = vor.u32 %v895, %v898
        %v900 = vsel %vm735, %v780, %v899
        %v902 = vshrl.u32 %v516, 16
        %v904 = vrot.slane %v902, 3
        %v905 = vshll.u32 %v516, 16
        %v907 = vrot.slane %v905, 4
        %v908 = vor.u32 %v904, %v907
        %v909 = vsel %vm735, %v797, %v908
        %v911 = vshrl.u32 %v533, 16
        %v913 = vrot.slane %v911, 3
        %v914 = vshll.u32 %v533, 16
        %v916 = vrot.slane %v914, 4
        %v917 = vor.u32 %v913, %v916
        %v918 = vsel %vm735, %v814, %v917
        %v920 = vshrl.u32 %v543, 16
        %v922 = vrot.slane %v920, 3
        %v923 = vshll.u32 %v543, 16
        %v925 = vrot.slane %v923, 4
        %v926 = vor.u32 %v922, %v925
        %v927 = vsel %vm735, %v831, %v926
        %v928 = vrot.slane %v566, 3
        %v929 = vrot.slane %v562, 4
        %v930 = vor.u32 %v928, %v929
        %v931 = vsel %vm735, %v843, %v930
        %v933 = vshrl.u32 %v573, 16
        %v935 = vrot.slane %v933, 3
        %v936 = vshll.u32 %v573, 16
        %v938 = vrot.slane %v936, 4
        %v939 = vor.u32 %v935, %v938
        %v940 = vsel %vm735, %v860, %v939
        %v942 = vshrl.u32 %v585, 16
        %v944 = vrot.slane %v942, 3
        %v945 = vshll.u32 %v585, 16
        %v947 = vrot.slane %v945, 4
        %v948 = vor.u32 %v944, %v947
        %v949 = vsel %vm735, %v877, %v948
        %v950 = vrot.slane %v492, 3
        %v951 = vrot.slane %v488, 4
        %v952 = vor.u32 %v950, %v951
        %v953 = vsel %vm735, %v881, %v952
        %v955 = vshrl.u32 %v494, 16
        %v957 = vrot.slane %v955, 3
        %v958 = vshll.u32 %v494, 16
        %v960 = vrot.slane %v958, 4
        %v961 = vor.u32 %v957, %v960
        %v962 = vsel %vm735, %v890, %v961
        %v964 = vshrl.u32 %v505, 16
        %v966 = vrot.slane %v964, 3
        %v967 = vshll.u32 %v505, 16
        %v969 = vrot.slane %v967, 4
        %v970 = vor.u32 %v966, %v969
        %v971 = vsel %vm735, %v899, %v970
        %v973 = vshrl.u32 %v515, 16
        %v975 = vrot.slane %v973, 3
        %v976 = vshll.u32 %v515, 16
        %v978 = vrot.slane %v976, 4
        %v979 = vor.u32 %v975, %v978
        %v980 = vsel %vm735, %v908, %v979
        %v982 = vshrl.u32 %v532, 16
        %v984 = vrot.slane %v982, 3
        %v985 = vshll.u32 %v532, 16
        %v987 = vrot.slane %v985, 4
        %v988 = vor.u32 %v984, %v987
        %v989 = vsel %vm735, %v917, %v988
        %v991 = vshrl.u32 %v545, 16
        %v993 = vrot.slane %v991, 3
        %v994 = vshll.u32 %v545, 16
        %v996 = vrot.slane %v994, 4
        %v997 = vor.u32 %v993, %v996
        %v998 = vsel %vm735, %v926, %v997
        %v999 = vrot.slane %v574, 3
        %v1000 = vrot.slane %v570, 4
        %v1001 = vor.u32 %v999, %v1000
        %v1002 = vsel %vm735, %v930, %v1001
        %v1004 = vshrl.u32 %v576, 16
        %v1006 = vrot.slane %v1004, 3
        %v1007 = vshll.u32 %v576, 16
        %v1009 = vrot.slane %v1007, 4
        %v1010 = vor.u32 %v1006, %v1009
        %v1011 = vsel %vm735, %v939, %v1010
        %v1013 = vshrl.u32 %v584, 16
        %v1015 = vrot.slane %v1013, 3
        %v1016 = vshll.u32 %v584, 16
        %v1018 = vrot.slane %v1016, 4
        %v1019 = vor.u32 %v1015, %v1018
        %v1020 = vsel %vm735, %v948, %v1019
        %v1192 = vunpack.c.l.b16 %v586
        %v1193 = vunpack.c.l.b16 %v587
        %v1194 = vunpack.c.l.b16 %v588
        %v1195 = vunpack.c.l.b16 %v589
        %v1196 = vunpack.c.l.b16 %v590
        %v1197 = vunpack.c.l.b16 %v591
        %v1198 = vunpack.c.l.b16 %v592
        %v1199 = vunpack.c.l.b16 %v593
        %v1200 = vunpack.c.l.b16 %v594
        %v1201 = vunpack.c.l.b16 %v595
        %v1202 = vunpack.c.l.b16 %v596
        %v1203 = vunpack.c.l.b16 %v597
        %v1204 = vunpack.c.l.b16 %v598
        %v1205 = vunpack.c.l.b16 %v599
        %v1206 = vunpack.c.l.b16 %v600
        %v1207 = vunpack.c.l.b16 %v601
        %v1208 = vunpack.c.l.b16 %v602
        %v1209 = vunpack.c.l.b16 %v603
        %v1210 = vunpack.c.l.b16 %v604
        %v1211 = vunpack.c.l.b16 %v605
        %v1212 = vunpack.c.l.b16 %v606
        %v1213 = vunpack.c.l.b16 %v607
        %v1214 = vunpack.c.l.b16 %v608
        %v1215 = vunpack.c.l.b16 %v609
        %v1216 = vunpack.c.l.b16 %v610
        %v1217 = vunpack.c.l.b16 %v611
        %v1218 = vunpack.c.l.b16 %v612
        %v1219 = vunpack.c.l.b16 %v613
        %v1220 = vunpack.c.l.b16 %v614
        %v1221 = vunpack.c.l.b16 %v615
        %v1222 = vunpack.c.l.b16 %v616
        %v1223 = vunpack.c.l.b16 %v617
        %v1224 = vunpack.c.l.b16 %v618
        %v1225 = vunpack.c.l.b16 %v619
        %v1226 = vunpack.c.l.b16 %v620
        %v1227 = vunpack.c.l.b16 %v621
        %v1228 = vunpack.c.l.b16 %v622
        %v1229 = vunpack.c.l.b16 %v623
        %v1230 = vunpack.c.l.b16 %v624
        %v1231 = vunpack.c.l.b16 %v625
        %v1232 = vunpack.c.l.b16 %v626
        %v1233 = vunpack.c.l.b16 %v627
        %v1234 = vunpack.c.l.b16 %v628
        %v1235 = vunpack.c.l.b16 %v629
        %v1236 = vunpack.c.l.b16 %v630
        %v1237 = vunpack.c.l.b16 %v631
        %v1238 = vunpack.c.l.b16 %v632
        %v1239 = vunpack.c.l.b16 %v633
        %v1240 = vunpack.c.l.b16 %v634
        %v1241 = vunpack.c.l.b16 %v635
        %v1242 = vunpack.c.l.b16 %v636
        %v1243 = vunpack.c.l.b16 %v637
        %v1244 = vunpack.c.l.b16 %v638
        %v1245 = vunpack.c.l.b16 %v639
        %v1246 = vunpack.c.l.b16 %v640
        %v1247 = vunpack.c.l.b16 %v641
        %v1248 = vunpack.c.l.b16 %v642
        %v1249 = vunpack.c.l.b16 %v643
        %v1250 = vunpack.c.l.b16 %v644
        %v1251 = vunpack.c.l.b16 %v645
        %v1252 = vunpack.c.l.b16 %v646
        %v1253 = vunpack.c.l.b16 %v647
        %v1254 = vunpack.c.l.b16 %v648
        %v1255 = vunpack.c.l.b16 %v649
        %v1256 = vunpack.c.l.b16 %v650
        %v1257 = vunpack.c.l.b16 %v651
        %v1258 = vunpack.c.l.b16 %v652
        %v1259 = vunpack.c.l.b16 %v653
        %v1260 = vunpack.c.l.b16 %v654
        %v1261 = vunpack.c.l.b16 %v655
        %v1262 = vunpack.c.l.b16 %v656
        %v1263 = vunpack.c.l.b16 %v657
        %v1264 = vunpack.c.l.b16 %v658
        %v1265 = vunpack.c.l.b16 %v659
        %v1266 = vunpack.c.l.b16 %v660
        %v1267 = vunpack.c.l.b16 %v661
        %v1268 = vunpack.c.l.b16 %v662
        %v1269 = vunpack.c.l.b16 %v663
        %v1270 = vunpack.c.l.b16 %v664
        %v1271 = vunpack.c.l.b16 %v665
        %v1272 = vunpack.c.l.b16 %v666
        %v1273 = vunpack.c.l.b16 %v667
        %v1274 = vunpack.c.l.b16 %v668
        %v1275 = vunpack.c.l.b16 %v669
        %v1276 = vunpack.c.l.b16 %v670
        %v1277 = vunpack.c.l.b16 %v671
        %v1278 = vunpack.c.l.b16 %v672
        %v1279 = vunpack.c.l.b16 %v673
        %v1280 = vunpack.c.l.b16 %v674
        %v1281 = vunpack.c.l.b16 %v675
        %v1282 = vunpack.c.l.b16 %v676
        %v1283 = vunpack.c.l.b16 %v677
        %v1284 = vunpack.c.l.b16 %v678
        %v1285 = vunpack.c.l.b16 %v679
        %v1286 = vunpack.c.l.b16 %v680
        %v1287 = vunpack.c.l.b16 %v681
        %v1288 = vunpack.c.l.b16 %v682
        %v1289 = vunpack.c.l.b16 %v683
        %v1290 = vunpack.c.l.b16 %v684
        %v1291 = vunpack.c.l.b16 %v685
        %v1292 = vunpack.c.l.b16 %v686
        %v1293 = vunpack.c.l.b16 %v687
        %v1294 = vunpack.c.l.b16 %v688
        %v1295 = vunpack.c.l.b16 %v689
        %v1296 = vunpack.c.l.b16 %v690
        %v1297 = vunpack.c.l.b16 %v691
        %v1298 = vunpack.c.l.b16 %v692
        %v1299 = vunpack.c.l.b16 %v693
        %v1300 = vunpack.c.l.b16 %v694
        %v1301 = vunpack.c.l.b16 %v695
        %v1302 = vunpack.c.l.b16 %v696
        %v1303 = vunpack.c.l.b16 %v697
        %v1304 = vunpack.c.l.b16 %v698
        %v1305 = vunpack.c.l.b16 %v699
        %v1306 = vunpack.c.l.b16 %v700
        %v1307 = vunpack.c.l.b16 %v701
        %v1308 = vunpack.c.l.b16 %v702
        %v1309 = vunpack.c.l.b16 %v703
        %v1310 = vunpack.c.l.b16 %v704
        %v1311 = vunpack.c.l.b16 %v705
        %v1312 = vunpack.c.l.b16 %v706
        %v1313 = vunpack.c.l.b16 %v707
        %v1314 = vunpack.c.l.b16 %v708
        %v1315 = vunpack.c.l.b16 %v709
        %v1316 = vunpack.c.l.b16 %v710
        %v1317 = vunpack.c.l.b16 %v711
        %v1318 = vunpack.c.l.b16 %v712
        %v1319 = vunpack.c.l.b16 %v713
        %v1320 = vunpack.c.l.b16 %v714
        %v1321 = vunpack.c.l.b16 %v715
        %v1322 = vunpack.c.l.b16 %v716
        %v1323 = vunpack.c.l.b16 %v717
        %v1324 = vunpack.c.l.b16 %v718
        %v1325 = vunpack.c.l.b16 %v719
        %v1326 = vunpack.c.l.b16 %v720
        %v1327 = vunpack.c.l.b16 %v721
        %v1328 = vunpack.c.l.b16 %v722
        %v1329 = vunpack.c.l.b16 %v723
        %v1330 = vunpack.c.l.b16 %v724
        %v1331 = vunpack.c.l.b16 %v725
        %v1332 = vunpack.c.l.b16 %v726
        %v1333 = vunpack.c.l.b16 %v727
        %v1334 = vunpack.c.l.b16 %v728
        %v1335 = vunpack.c.l.b16 %v729
        %v1336 = vpack.c.b16 %v1193, %v1192
        %v1337 = vpack.c.b16 %v1195, %v1194
        %v1338 = vpack.c.b16 %v1197, %v1196
        %v1339 = vpack.c.b16 %v1199, %v1198
        %v1340 = vpack.c.b16 %v1201, %v1200
        %v1341 = vpack.c.b16 %v1203, %v1202
        %v1342 = vpack.c.b16 %v1205, %v1204
        %v1343 = vpack.c.b16 %v1207, %v1206
        %v1344 = vpack.c.b16 %v1209, %v1208
        %v1345 = vpack.c.b16 %v1211, %v1210
        %v1346 = vpack.c.b16 %v1213, %v1212
        %v1347 = vpack.c.b16 %v1215, %v1214
        %v1348 = vpack.c.b16 %v1217, %v1216
        %v1349 = vpack.c.b16 %v1219, %v1218
        %v1350 = vpack.c.b16 %v1221, %v1220
        %v1351 = vpack.c.b16 %v1223, %v1222
        %v1352 = vpack.c.b16 %v1225, %v1224
        %v1353 = vpack.c.b16 %v1227, %v1226
        %v1354 = vpack.c.b16 %v1229, %v1228
        %v1355 = vpack.c.b16 %v1231, %v1230
        %v1356 = vpack.c.b16 %v1233, %v1232
        %v1357 = vpack.c.b16 %v1235, %v1234
        %v1358 = vpack.c.b16 %v1237, %v1236
        %v1359 = vpack.c.b16 %v1239, %v1238
        %v1360 = vpack.c.b16 %v1241, %v1240
        %v1361 = vpack.c.b16 %v1243, %v1242
        %v1362 = vpack.c.b16 %v1245, %v1244
        %v1363 = vpack.c.b16 %v1247, %v1246
        %v1364 = vpack.c.b16 %v1249, %v1248
        %v1365 = vpack.c.b16 %v1251, %v1250
        %v1366 = vpack.c.b16 %v1253, %v1252
        %v1367 = vpack.c.b16 %v1255, %v1254
        %v1368 = vpack.c.b16 %v1257, %v1256
        %v1369 = vpack.c.b16 %v1259, %v1258
        %v1370 = vpack.c.b16 %v1261, %v1260
        %v1371 = vpack.c.b16 %v1263, %v1262
        %v1372 = vpack.c.b16 %v1265, %v1264
        %v1373 = vpack.c.b16 %v1267, %v1266
        %v1374 = vpack.c.b16 %v1269, %v1268
        %v1375 = vpack.c.b16 %v1271, %v1270
        %v1376 = vpack.c.b16 %v1273, %v1272
        %v1377 = vpack.c.b16 %v1275, %v1274
        %v1378 = vpack.c.b16 %v1277, %v1276
        %v1379 = vpack.c.b16 %v1279, %v1278
        %v1380 = vpack.c.b16 %v1281, %v1280
        %v1381 = vpack.c.b16 %v1283, %v1282
        %v1382 = vpack.c.b16 %v1285, %v1284
        %v1383 = vpack.c.b16 %v1287, %v1286
        %v1384 = vpack.c.b16 %v1289, %v1288
        %v1385 = vpack.c.b16 %v1291, %v1290
        %v1386 = vpack.c.b16 %v1293, %v1292
        %v1387 = vpack.c.b16 %v1295, %v1294
        %v1388 = vpack.c.b16 %v1297, %v1296
        %v1389 = vpack.c.b16 %v1299, %v1298
        %v1390 = vpack.c.b16 %v1301, %v1300
        %v1391 = vpack.c.b16 %v1303, %v1302
        %v1392 = vpack.c.b16 %v1305, %v1304
        %v1393 = vpack.c.b16 %v1307, %v1306
        %v1394 = vpack.c.b16 %v1309, %v1308
        %v1395 = vpack.c.b16 %v1311, %v1310
        %v1396 = vpack.c.b16 %v1313, %v1312
        %v1397 = vpack.c.b16 %v1315, %v1314
        %v1398 = vpack.c.b16 %v1317, %v1316
        %v1399 = vpack.c.b16 %v1319, %v1318
        %v1400 = vpack.c.b16 %v1321, %v1320
        %v1401 = vpack.c.b16 %v1323, %v1322
        %v1402 = vpack.c.b16 %v1325, %v1324
        %v1403 = vpack.c.b16 %v1327, %v1326
        %v1404 = vpack.c.b16 %v1329, %v1328
        %v1405 = vpack.c.b16 %v1331, %v1330
        %v1406 = vpack.c.b16 %v1333, %v1332
        %v1407 = vpack.c.b16 %v1335, %v1334
        %1480 = vmatprep.subr.bf16.mxu0 0
        %1481 = vmatpush1.bf16.msra.mxu0 %v1336
        %1482 = vmatprep.subr.bf16.mxu0 0
        %1483 = vmatpush1.bf16.msra.mxu0 %v1337
        %1484 = vmatprep.subr.bf16.mxu0 0
        %1485 = vmatpush1.bf16.msra.mxu0 %v1338
        %1486 = vmatprep.subr.bf16.mxu0 0
        %1487 = vmatpush1.bf16.msra.mxu0 %v1339
        %1488 = vmatprep.subr.bf16.mxu0 0
        %1489 = vmatpush1.bf16.msra.mxu0 %v1340
        %1490 = vmatprep.subr.bf16.mxu0 0
        %1491 = vmatpush1.bf16.msra.mxu0 %v1341
        %1492 = vmatprep.subr.bf16.mxu0 0
        %1493 = vmatpush1.bf16.msra.mxu0 %v1342
        %1494 = vmatprep.subr.bf16.mxu0 0
        %1495 = vmatpush1.bf16.msra.mxu0 %v1343
        %1496 = vmatprep.subr.bf16.mxu0 0
        %1497 = vmatpush1.bf16.msra.mxu0 %v1344
        %1498 = vmatprep.subr.bf16.mxu0 0
        %1499 = vmatpush1.bf16.msra.mxu0 %v1345
        %1500 = vmatprep.subr.bf16.mxu0 0
        %1501 = vmatpush1.bf16.msra.mxu0 %v1346
        %1502 = vmatprep.subr.bf16.mxu0 0
        %1503 = vmatpush1.bf16.msra.mxu0 %v1347
        %1504 = vmatprep.subr.bf16.mxu0 0
        %1505 = vmatpush1.bf16.msra.mxu0 %v1348
        %1506 = vmatprep.subr.bf16.mxu0 0
        %1507 = vmatpush1.bf16.msra.mxu0 %v1349
        %1508 = vmatprep.subr.bf16.mxu0 0
        %1509 = vmatpush1.bf16.msra.mxu0 %v1350
        %1510 = vmatprep.subr.bf16.mxu0 0
        %1511 = vmatpush1.bf16.msra.mxu0 %v1351
        %1512 = vmatprep.mubr.bf16.mxu0 %v764
        %1513 = vmatmul.mubr.bf16.gmra.mrb[0].mxu0 %v747
        %v1514 = vpop.f32.mrb[0].mxu0
        %v1515 = vadd.f32 %v734, %v1514
        %v1516 = vpop.f32.mrb[0].mxu0
        %v1517 = vpop.f32.mrb[0].mxu0
        %v1518 = vadd.f32 %v734, %v1517
        %v1519 = vpop.f32.mrb[0].mxu0
        %1520 = vmatprep.mubr.bf16.mxu0 %v891
        %1521 = vmatmul.mubr.bf16.gmra.mrb[0].mxu0 %v882
        %v1522 = vpop.f32.mrb[0].mxu0
        %v1523 = vadd.f32 %v734, %v1522
        %v1524 = vpop.f32.mrb[0].mxu0
        %v1525 = vpop.f32.mrb[0].mxu0
        %v1526 = vadd.f32 %v734, %v1525
        %v1527 = vpop.f32.mrb[0].mxu0
        %1528 = vmatprep.mubr.bf16.mxu0 %v962
        %1529 = vmatmul.mubr.bf16.gmra.mrb[0].mxu0 %v953
        %v1530 = vpop.f32.mrb[0].mxu0
        %v1531 = vadd.f32 %v734, %v1530
        %v1532 = vpop.f32.mrb[0].mxu0
        %v1533 = vpop.f32.mrb[0].mxu0
        %v1534 = vadd.f32 %v734, %v1533
        %v1535 = vpop.f32.mrb[0].mxu0
        %1536 = vdwg.mxu0
        %1537 = vmatprep.subr.bf16.mxu0 0
        %1538 = vmatpush1.bf16.msra.mxu0 %v1352
        %1539 = vmatprep.subr.bf16.mxu0 0
        %1540 = vmatpush1.bf16.msra.mxu0 %v1353
        %1541 = vmatprep.subr.bf16.mxu0 0
        %1542 = vmatpush1.bf16.msra.mxu0 %v1354
        %1543 = vmatprep.subr.bf16.mxu0 0
        %1544 = vmatpush1.bf16.msra.mxu0 %v1355
        %1545 = vmatprep.subr.bf16.mxu0 0
        %1546 = vmatpush1.bf16.msra.mxu0 %v1356
        %1547 = vmatprep.subr.bf16.mxu0 0
        %1548 = vmatpush1.bf16.msra.mxu0 %v1357
        %1549 = vmatprep.subr.bf16.mxu0 0
        %1550 = vmatpush1.bf16.msra.mxu0 %v1358
        %1551 = vmatprep.subr.bf16.mxu0 0
        %1552 = vmatpush1.bf16.msra.mxu0 %v1359
        %1553 = vmatprep.subr.bf16.mxu0 0
        %1554 = vmatpush1.bf16.msra.mxu0 %v1360
        %1555 = vmatprep.subr.bf16.mxu0 0
        %1556 = vmatpush1.bf16.msra.mxu0 %v1361
        %1557 = vmatprep.subr.bf16.mxu0 0
        %1558 = vmatpush1.bf16.msra.mxu0 %v1362
        %1559 = vmatprep.subr.bf16.mxu0 0
        %1560 = vmatpush1.bf16.msra.mxu0 %v1363
        %1561 = vmatprep.subr.bf16.mxu0 0
        %1562 = vmatpush1.bf16.msra.mxu0 %v1364
        %1563 = vmatprep.subr.bf16.mxu0 0
        %1564 = vmatpush1.bf16.msra.mxu0 %v1365
        %1565 = vmatprep.subr.bf16.mxu0 0
        %1566 = vmatpush1.bf16.msra.mxu0 %v1366
        %1567 = vmatprep.subr.bf16.mxu0 0
        %1568 = vmatpush1.bf16.msra.mxu0 %v1367
        %1569 = vmatprep.mubr.bf16.mxu0 %v798
        %1570 = vmatmul.mubr.bf16.gmra.mrb[0].mxu0 %v781
        %v1571 = vpop.f32.mrb[0].mxu0
        %v1572 = vadd.f32 %v1515, %v1571
        %v1573 = vpop.f32.mrb[0].mxu0
        %v1574 = vpop.f32.mrb[0].mxu0
        %v1575 = vadd.f32 %v1518, %v1574
        %v1576 = vpop.f32.mrb[0].mxu0
        %1577 = vmatprep.mubr.bf16.mxu0 %v909
        %1578 = vmatmul.mubr.bf16.gmra.mrb[0].mxu0 %v900
        %v1579 = vpop.f32.mrb[0].mxu0
        %v1580 = vadd.f32 %v1523, %v1579
        %v1581 = vpop.f32.mrb[0].mxu0
        %v1582 = vpop.f32.mrb[0].mxu0
        %v1583 = vadd.f32 %v1526, %v1582
        %v1584 = vpop.f32.mrb[0].mxu0
        %1585 = vmatprep.mubr.bf16.mxu0 %v980
        %1586 = vmatmul.mubr.bf16.gmra.mrb[0].mxu0 %v971
        %v1587 = vpop.f32.mrb[0].mxu0
        %v1588 = vadd.f32 %v1531, %v1587
        %v1589 = vpop.f32.mrb[0].mxu0
        %v1590 = vpop.f32.mrb[0].mxu0
        %v1591 = vadd.f32 %v1534, %v1590
        %v1592 = vpop.f32.mrb[0].mxu0
        %1593 = vdwg.mxu0
        %1594 = vmatprep.subr.bf16.mxu0 0
        %1595 = vmatpush1.bf16.msra.mxu0 %v1368
        %1596 = vmatprep.subr.bf16.mxu0 0
        %1597 = vmatpush1.bf16.msra.mxu0 %v1369
        %1598 = vmatprep.subr.bf16.mxu0 0
        %1599 = vmatpush1.bf16.msra.mxu0 %v1370
        %1600 = vmatprep.subr.bf16.mxu0 0
        %1601 = vmatpush1.bf16.msra.mxu0 %v1371
        %1602 = vmatprep.subr.bf16.mxu0 0
        %1603 = vmatpush1.bf16.msra.mxu0 %v1372
        %1604 = vmatprep.subr.bf16.mxu0 0
        %1605 = vmatpush1.bf16.msra.mxu0 %v1373
        %1606 = vmatprep.subr.bf16.mxu0 0
        %1607 = vmatpush1.bf16.msra.mxu0 %v1374
        %1608 = vmatprep.subr.bf16.mxu0 0
        %1609 = vmatpush1.bf16.msra.mxu0 %v1375
        %1610 = vmatprep.subr.bf16.mxu0 0
        %1611 = vmatpush1.bf16.msra.mxu0 %v1376
        %1612 = vmatprep.subr.bf16.mxu0 0
        %1613 = vmatpush1.bf16.msra.mxu0 %v1377
        %1614 = vmatprep.subr.bf16.mxu0 0
        %1615 = vmatpush1.bf16.msra.mxu0 %v1378
        %1616 = vmatprep.subr.bf16.mxu0 0
        %1617 = vmatpush1.bf16.msra.mxu0 %v1379
        %1618 = vmatprep.subr.bf16.mxu0 0
        %1619 = vmatpush1.bf16.msra.mxu0 %v1380
        %1620 = vmatprep.subr.bf16.mxu0 0
        %1621 = vmatpush1.bf16.msra.mxu0 %v1381
        %1622 = vmatprep.subr.bf16.mxu0 0
        %1623 = vmatpush1.bf16.msra.mxu0 %v1382
        %1624 = vmatprep.subr.bf16.mxu0 0
        %1625 = vmatpush1.bf16.msra.mxu0 %v1383
        %1626 = vmatprep.mubr.bf16.mxu0 %v832
        %1627 = vmatmul.mubr.bf16.gmra.mrb[0].mxu0 %v815
        %v1628 = vpop.f32.mrb[0].mxu0
        %v1629 = vadd.f32 %v1572, %v1628
        %v1630 = vpop.f32.mrb[0].mxu0
        %v1631 = vpop.f32.mrb[0].mxu0
        %v1632 = vadd.f32 %v1575, %v1631
        %v1633 = vpop.f32.mrb[0].mxu0
        %1634 = vmatprep.mubr.bf16.mxu0 %v927
        %1635 = vmatmul.mubr.bf16.gmra.mrb[0].mxu0 %v918
        %v1636 = vpop.f32.mrb[0].mxu0
        %v1637 = vadd.f32 %v1580, %v1636
        %v1638 = vpop.f32.mrb[0].mxu0
        %v1639 = vpop.f32.mrb[0].mxu0
        %v1640 = vadd.f32 %v1583, %v1639
        %v1641 = vpop.f32.mrb[0].mxu0
        %1642 = vmatprep.mubr.bf16.mxu0 %v998
        %1643 = vmatmul.mubr.bf16.gmra.mrb[0].mxu0 %v989
        %v1644 = vpop.f32.mrb[0].mxu0
        %v1645 = vadd.f32 %v1588, %v1644
        %v1646 = vpop.f32.mrb[0].mxu0
        %v1647 = vpop.f32.mrb[0].mxu0
        %v1648 = vadd.f32 %v1591, %v1647
        %v1649 = vpop.f32.mrb[0].mxu0
        %1650 = vdwg.mxu0
        %1651 = vmatprep.subr.bf16.mxu0 0
        %1652 = vmatpush1.bf16.msra.mxu0 %v1384
        %1653 = vmatprep.subr.bf16.mxu0 0
        %1654 = vmatpush1.bf16.msra.mxu0 %v1385
        %1655 = vmatprep.subr.bf16.mxu0 0
        %1656 = vmatpush1.bf16.msra.mxu0 %v1386
        %1657 = vmatprep.subr.bf16.mxu0 0
        %1658 = vmatpush1.bf16.msra.mxu0 %v1387
        %1659 = vmatprep.subr.bf16.mxu0 0
        %1660 = vmatpush1.bf16.msra.mxu0 %v1388
        %1661 = vmatprep.subr.bf16.mxu0 0
        %1662 = vmatpush1.bf16.msra.mxu0 %v1389
        %1663 = vmatprep.subr.bf16.mxu0 0
        %1664 = vmatpush1.bf16.msra.mxu0 %v1390
        %1665 = vmatprep.subr.bf16.mxu0 0
        %1666 = vmatpush1.bf16.msra.mxu0 %v1391
        %1667 = vmatprep.subr.bf16.mxu0 0
        %1668 = vmatpush1.bf16.msra.mxu0 %v1392
        %1669 = vmatprep.subr.bf16.mxu0 0
        %1670 = vmatpush1.bf16.msra.mxu0 %v1393
        %1671 = vmatprep.subr.bf16.mxu0 0
        %1672 = vmatpush1.bf16.msra.mxu0 %v1394
        %1673 = vmatprep.subr.bf16.mxu0 0
        %1674 = vmatpush1.bf16.msra.mxu0 %v1395
        %1675 = vmatprep.subr.bf16.mxu0 0
        %1676 = vmatpush1.bf16.msra.mxu0 %v1396
        %1677 = vmatprep.subr.bf16.mxu0 0
        %1678 = vmatpush1.bf16.msra.mxu0 %v1397
        %1679 = vmatprep.subr.bf16.mxu0 0
        %1680 = vmatpush1.bf16.msra.mxu0 %v1398
        %1681 = vmatprep.subr.bf16.mxu0 0
        %1682 = vmatpush1.bf16.msra.mxu0 %v1399
        %1683 = vmatprep.mubr.bf16.mxu0 %v861
        %1684 = vmatmul.mubr.bf16.gmra.mrb[0].mxu0 %v844
        %v1685 = vpop.f32.mrb[0].mxu0
        %v1686 = vadd.f32 %v1629, %v1685
        %v1687 = vpop.f32.mrb[0].mxu0
        %v1688 = vpop.f32.mrb[0].mxu0
        %v1689 = vadd.f32 %v1632, %v1688
        %v1690 = vpop.f32.mrb[0].mxu0
        %1691 = vmatprep.mubr.bf16.mxu0 %v940
        %1692 = vmatmul.mubr.bf16.gmra.mrb[0].mxu0 %v931
        %v1693 = vpop.f32.mrb[0].mxu0
        %v1694 = vadd.f32 %v1637, %v1693
        %v1695 = vpop.f32.mrb[0].mxu0
        %v1696 = vpop.f32.mrb[0].mxu0
        %v1697 = vadd.f32 %v1640, %v1696
        %v1698 = vpop.f32.mrb[0].mxu0
        %1699 = vmatprep.mubr.bf16.mxu0 %v1011
        %1700 = vmatmul.mubr.bf16.gmra.mrb[0].mxu0 %v1002
        %v1701 = vpop.f32.mrb[0].mxu0
        %v1702 = vadd.f32 %v1645, %v1701
        %v1703 = vpop.f32.mrb[0].mxu0
        %v1704 = vpop.f32.mrb[0].mxu0
        %v1705 = vadd.f32 %v1648, %v1704
        %v1706 = vpop.f32.mrb[0].mxu0
        %1707 = vdwg.mxu0
        %1708 = vmatprep.subr.bf16.mxu0 0
        %1709 = vmatpush1.bf16.msra.mxu0 %v1400
        %1710 = vmatprep.subr.bf16.mxu0 0
        %1711 = vmatpush1.bf16.msra.mxu0 %v1401
        %1712 = vmatprep.subr.bf16.mxu0 0
        %1713 = vmatpush1.bf16.msra.mxu0 %v1402
        %1714 = vmatprep.subr.bf16.mxu0 0
        %1715 = vmatpush1.bf16.msra.mxu0 %v1403
        %1716 = vmatprep.subr.bf16.mxu0 0
        %1717 = vmatpush1.bf16.msra.mxu0 %v1404
        %1718 = vmatprep.subr.bf16.mxu0 0
        %1719 = vmatpush1.bf16.msra.mxu0 %v1405
        %1720 = vmatprep.subr.bf16.mxu0 0
        %1721 = vmatpush1.bf16.msra.mxu0 %v1406
        %1722 = vmatprep.subr.bf16.mxu0 0
        %1723 = vmatpush1.bf16.msra.mxu0 %v1407
        %1724 = vmatprep.subr.bf16.mxu0 0
        %1725 = vmatpush1.bf16.msra.mxu0 0
        %1726 = vmatprep.subr.bf16.mxu0 0
        %1727 = vmatpush1.bf16.msra.mxu0 0
        %1728 = vmatprep.subr.bf16.mxu0 0
        %1729 = vmatpush1.bf16.msra.mxu0 0
        %1730 = vmatprep.subr.bf16.mxu0 0
        %1731 = vmatpush1.bf16.msra.mxu0 0
        %1732 = vmatprep.subr.bf16.mxu0 0
        %1733 = vmatpush1.bf16.msra.mxu0 0
        %1734 = vmatprep.subr.bf16.mxu0 0
        %1735 = vmatpush1.bf16.msra.mxu0 0
        %1736 = vmatprep.subr.bf16.mxu0 0
        %1737 = vmatpush1.bf16.msra.mxu0 0
        %1738 = vmatprep.subr.bf16.mxu0 0
        %1739 = vmatpush1.bf16.msra.mxu0 0
        %1740 = vmatprep.mubr.bf16.mxu0 0
        %1741 = vmatmul.mubr.bf16.gmra.mrb[0].mxu0 %v878
        %v1742 = vpop.f32.mrb[0].mxu0
        %v1743 = vadd.f32 %v1686, %v1742
        %v1744 = vpop.f32.mrb[0].mxu0
        %v1745 = vpop.f32.mrb[0].mxu0
        %v1746 = vadd.f32 %v1689, %v1745
        %v1747 = vpop.f32.mrb[0].mxu0
        %1748 = vmatprep.mubr.bf16.mxu0 0
        %1749 = vmatmul.mubr.bf16.gmra.mrb[0].mxu0 %v949
        %v1750 = vpop.f32.mrb[0].mxu0
        %v1751 = vadd.f32 %v1694, %v1750
        %v1752 = vpop.f32.mrb[0].mxu0
        %v1753 = vpop.f32.mrb[0].mxu0
        %v1754 = vadd.f32 %v1697, %v1753
        %v1755 = vpop.f32.mrb[0].mxu0
        %1756 = vmatprep.mubr.bf16.mxu0 0
        %1757 = vmatmul.mubr.bf16.gmra.mrb[0].mxu0 %v1020
        %v1758 = vpop.f32.mrb[0].mxu0
        %v1759 = vadd.f32 %v1702, %v1758
        %v1760 = vpop.f32.mrb[0].mxu0
        %v1761 = vpop.f32.mrb[0].mxu0
        %v1762 = vadd.f32 %v1705, %v1761
        %v1763 = vpop.f32.mrb[0].mxu0
        %1764 = vdwg.mxu0
        %vm1765 = vcmp.ge.f32.partialorder %v1743, 0.0
        %vm1766 = vcmp.ge.f32.partialorder %v1746, 0.0
        %vm1767 = vcmp.ge.f32.partialorder %v1751, 0.0
        %vm1768 = vcmp.ge.f32.partialorder %v1754, 0.0
        %vm1769 = vcmp.ge.f32.partialorder %v1759, 0.0
        %vm1770 = vcmp.ge.f32.partialorder %v1762, 0.0
        %v1771 = vld [vmem:[#allocation9] sm:$0x1]
        %v1772 = vlaneseq
        %v1773 = vshrl.u32 %v1772, 7
        %v1774 = vsub.s32 0, %v1773
        %v1775 = vrot.slane %v1771, %v1774
        %v1776 = vmul.f32 %v1743, %v1775
        %v1777 = vmul.f32 %v1746, %v1775
        %v1778 = vmul.f32 %v1751, %v1775
        %v1779 = vmul.f32 %v1754, %v1775
        %v1780 = vmul.f32 %v1759, %v1775
        %v1781 = vmul.f32 %v1762, %v1775
        %v1782 = vsel %vm1765, %v1743, %v1776
        %v1783 = vsel %vm1766, %v1746, %v1777
        %v1784 = vsel %vm1767, %v1751, %v1778
        %v1785 = vsel %vm1768, %v1754, %v1779
        %v1786 = vsel %vm1769, %v1759, %v1780
        %v1787 = vsel %vm1770, %v1762, %v1781
        %v1788 = vpack.c.bf16 %v1783, %v1782
        %v1789 = vpack.c.bf16 %v1785, %v1784
        %v1790 = vpack.c.bf16 %v1787, %v1786
        %v1791 = vmul.bf16 %v1788, %v444
        %v1792 = vmul.bf16 %v1789, %v445
        %v1793 = vmul.bf16 %v1790, %v446
        %1794 = vst [vmem:[#allocation2 + $0x8] sm:$0xff] %v1791
        %1795 = vst [vmem:[#allocation2 + $0x10] sm:$0xff] %v1792
        %1796 = vst [vmem:[#allocation2 + $0x18] sm:$0xff] %v1793
        %v1797 = vld [vmem:[#allocation2] sm:$0xf8]
        %v1798 = vld [vmem:[#allocation2 + $0x8] sm:$0xff]
        %v1799 = vld [vmem:[#allocation2 + $0x10] sm:$0xff]
        %v1800 = vld [vmem:[#allocation2 + $0x18] sm:$0xf]
        %v1801 = vld [vmem:[#allocation2] sm:$0xf0]
        %v1802 = vld [vmem:[#allocation2 + $0x18] sm:$0x1f]
        %v1803 = vld [vmem:[#allocation2] sm:$0x80]
        %v1804 = vld [vmem:[#allocation2 + $0x18] sm:$0xff]
        %v1805 = vld [vmem:[#allocation2 + $0x8] sm:$0xff]
        %v1806 = vld [vmem:[#allocation2 + $0x10] sm:$0xff]
        %v1807 = vld [vmem:[#allocation2 + $0x18] sm:$0xff]
        %v1808 = vld [vmem:[#allocation2 + $0x20] sm:$0x1]
        %v1809 = vld [vmem:[#allocation2 + $0x8] sm:$0xf8]
        %v1810 = vld [vmem:[#allocation2 + $0x20] sm:$0xf]
        %v1811 = vld [vmem:[#allocation2 + $0x8] sm:$0xf0]
        %v1812 = vld [vmem:[#allocation2 + $0x20] sm:$0x1f]
        %v1814 = vshrl.u32 %v1801, 16
        %v1816 = vshll.u32 %v1801, 16
        %v1818 = vrot.slane %v1816, 1
        %v1819 = vor.u32 %v1814, %v1818
        %v1821 = vshll.u32 %v1798, 16
        %v1823 = vrot.slane %v1821, 1
        %v1824 = vsel %vm463, %v1819, %v1823
        %v1825 = vshrl.u32 %v1798, 16
        %v1827 = vor.u32 %v1825, %v1823
        %v1829 = vshll.u32 %v1799, 16
        %v1831 = vrot.slane %v1829, 1
        %v1832 = vsel %vm463, %v1827, %v1831
        %v1833 = vshrl.u32 %v1799, 16
        %v1835 = vor.u32 %v1833, %v1831
        %v1837 = vshll.u32 %v1800, 16
        %v1839 = vrot.slane %v1837, 1
        %v1840 = vsel %vm463, %v1835, %v1839
        %v1841 = vshrl.u32 %v1800, 16
        %v1843 = vor.u32 %v1841, %v1839
        %v1848 = vrot.slane %v1801, 1
        %v1849 = vrot.slane %v1798, 1
        %v1850 = vsel %vm499, %v1848, %v1849
        %v1851 = vrot.slane %v1799, 1
        %v1852 = vsel %vm499, %v1849, %v1851
        %v1853 = vrot.slane %v1802, 1
        %v1854 = vsel %vm499, %v1851, %v1853
        %v1857 = vrot.slane %v1803, 4
        %v1858 = vrot.slane %v1798, 4
        %v1859 = vsel %vm509, %v1857, %v1858
        %v1860 = vrot.slane %v1799, 4
        %v1861 = vsel %vm509, %v1858, %v1860
        %v1862 = vrot.slane %v1804, 4
        %v1863 = vsel %vm509, %v1860, %v1862
        %v1864 = vrot.slane %v1825, 4
        %v1865 = vrot.slane %v1821, 5
        %v1866 = vor.u32 %v1864, %v1865
        %v1867 = vrot.slane %v1833, 4
        %v1868 = vrot.slane %v1829, 5
        %v1869 = vor.u32 %v1867, %v1868
        %v1870 = vsel %vm517, %v1866, %v1869
        %v1872 = vshrl.u32 %v1804, 16
        %v1874 = vrot.slane %v1872, 4
        %v1875 = vshll.u32 %v1804, 16
        %v1877 = vrot.slane %v1875, 5
        %v1878 = vor.u32 %v1874, %v1877
        %v1879 = vsel %vm517, %v1869, %v1878
        %v1884 = vrot.slane %v1805, 5
        %v1885 = vrot.slane %v1806, 5
        %v1886 = vsel %vm538, %v1884, %v1885
        %v1887 = vrot.slane %v1807, 5
        %v1888 = vsel %vm538, %v1885, %v1887
        %v1889 = vrot.slane %v1808, 5
        %v1890 = vsel %vm538, %v1887, %v1889
        %v1892 = vshrl.u32 %v1811, 16
        %v1894 = vshll.u32 %v1811, 16
        %v1896 = vrot.slane %v1894, 1
        %v1897 = vor.u32 %v1892, %v1896
        %v1899 = vshll.u32 %v1806, 16
        %v1901 = vrot.slane %v1899, 1
        %v1902 = vsel %vm463, %v1897, %v1901
        %v1903 = vshrl.u32 %v1806, 16
        %v1905 = vor.u32 %v1903, %v1901
        %v1907 = vshll.u32 %v1807, 16
        %v1909 = vrot.slane %v1907, 1
        %v1910 = vsel %vm463, %v1905, %v1909
        %v1911 = vshrl.u32 %v1807, 16
        %v1913 = vor.u32 %v1911, %v1909
        %v1915 = vshll.u32 %v1810, 16
        %v1917 = vrot.slane %v1915, 1
        %v1918 = vsel %vm463, %v1913, %v1917
        %v1919 = vshrl.u32 %v1810, 16
        %v1921 = vor.u32 %v1919, %v1917
        %v1924 = vrot.slane %v1811, 1
        %v1925 = vrot.slane %v1806, 1
        %v1926 = vsel %vm499, %v1924, %v1925
        %v1927 = vrot.slane %v1807, 1
        %v1928 = vsel %vm499, %v1925, %v1927
        %v1929 = vrot.slane %v1812, 1
        %v1930 = vsel %vm499, %v1927, %v1929
        %v1931 = vld [vmem:[#allocation6 + $0x240] sm:$0xf]
        %v1932 = vld [vmem:[#allocation6 + $0x244] sm:$0xf]
        %v1933 = vld [vmem:[#allocation6 + $0x248] sm:$0xf]
        %v1934 = vld [vmem:[#allocation6 + $0x24c] sm:$0xf]
        %v1935 = vld [vmem:[#allocation6 + $0x250] sm:$0xf]
        %v1936 = vld [vmem:[#allocation6 + $0x254] sm:$0xf]
        %v1937 = vld [vmem:[#allocation6 + $0x258] sm:$0xf]
        %v1938 = vld [vmem:[#allocation6 + $0x25c] sm:$0xf]
        %v1939 = vld [vmem:[#allocation6 + $0x260] sm:$0xf]
        %v1940 = vld [vmem:[#allocation6 + $0x264] sm:$0xf]
        %v1941 = vld [vmem:[#allocation6 + $0x268] sm:$0xf]
        %v1942 = vld [vmem:[#allocation6 + $0x26c] sm:$0xf]
        %v1943 = vld [vmem:[#allocation6 + $0x270] sm:$0xf]
        %v1944 = vld [vmem:[#allocation6 + $0x274] sm:$0xf]
        %v1945 = vld [vmem:[#allocation6 + $0x278] sm:$0xf]
        %v1946 = vld [vmem:[#allocation6 + $0x27c] sm:$0xf]
        %v1947 = vld [vmem:[#allocation6 + $0x280] sm:$0xf]
        %v1948 = vld [vmem:[#allocation6 + $0x284] sm:$0xf]
        %v1949 = vld [vmem:[#allocation6 + $0x288] sm:$0xf]
        %v1950 = vld [vmem:[#allocation6 + $0x28c] sm:$0xf]
        %v1951 = vld [vmem:[#allocation6 + $0x290] sm:$0xf]
        %v1952 = vld [vmem:[#allocation6 + $0x294] sm:$0xf]
        %v1953 = vld [vmem:[#allocation6 + $0x298] sm:$0xf]
        %v1954 = vld [vmem:[#allocation6 + $0x29c] sm:$0xf]
        %v1955 = vld [vmem:[#allocation6 + $0x2a0] sm:$0xf]
        %v1956 = vld [vmem:[#allocation6 + $0x2a4] sm:$0xf]
        %v1957 = vld [vmem:[#allocation6 + $0x2a8] sm:$0xf]
        %v1958 = vld [vmem:[#allocation6 + $0x2ac] sm:$0xf]
        %v1959 = vld [vmem:[#allocation6 + $0x2b0] sm:$0xf]
        %v1960 = vld [vmem:[#allocation6 + $0x2b4] sm:$0xf]
        %v1961 = vld [vmem:[#allocation6 + $0x2b8] sm:$0xf]
        %v1962 = vld [vmem:[#allocation6 + $0x2bc] sm:$0xf]
        %v1963 = vld [vmem:[#allocation6 + $0x2c0] sm:$0xf]
        %v1964 = vld [vmem:[#allocation6 + $0x2c4] sm:$0xf]
        %v1965 = vld [vmem:[#allocation6 + $0x2c8] sm:$0xf]
        %v1966 = vld [vmem:[#allocation6 + $0x2cc] sm:$0xf]
        %v1967 = vld [vmem:[#allocation6 + $0x2d0] sm:$0xf]
        %v1968 = vld [vmem:[#allocation6 + $0x2d4] sm:$0xf]
        %v1969 = vld [vmem:[#allocation6 + $0x2d8] sm:$0xf]
        %v1970 = vld [vmem:[#allocation6 + $0x2dc] sm:$0xf]
        %v1971 = vld [vmem:[#allocation6 + $0x2e0] sm:$0xf]
        %v1972 = vld [vmem:[#allocation6 + $0x2e4] sm:$0xf]
        %v1973 = vld [vmem:[#allocation6 + $0x2e8] sm:$0xf]
        %v1974 = vld [vmem:[#allocation6 + $0x2ec] sm:$0xf]
        %v1975 = vld [vmem:[#allocation6 + $0x2f0] sm:$0xf]
        %v1976 = vld [vmem:[#allocation6 + $0x2f4] sm:$0xf]
        %v1977 = vld [vmem:[#allocation6 + $0x2f8] sm:$0xf]
        %v1978 = vld [vmem:[#allocation6 + $0x2fc] sm:$0xf]
        %v1979 = vld [vmem:[#allocation6 + $0x300] sm:$0xf]
        %v1980 = vld [vmem:[#allocation6 + $0x304] sm:$0xf]
        %v1981 = vld [vmem:[#allocation6 + $0x308] sm:$0xf]
        %v1982 = vld [vmem:[#allocation6 + $0x30c] sm:$0xf]
        %v1983 = vld [vmem:[#allocation6 + $0x310] sm:$0xf]
        %v1984 = vld [vmem:[#allocation6 + $0x314] sm:$0xf]
        %v1985 = vld [vmem:[#allocation6 + $0x318] sm:$0xf]
        %v1986 = vld [vmem:[#allocation6 + $0x31c] sm:$0xf]
        %v1987 = vld [vmem:[#allocation6 + $0x320] sm:$0xf]
        %v1988 = vld [vmem:[#allocation6 + $0x324] sm:$0xf]
        %v1989 = vld [vmem:[#allocation6 + $0x328] sm:$0xf]
        %v1990 = vld [vmem:[#allocation6 + $0x32c] sm:$0xf]
        %v1991 = vld [vmem:[#allocation6 + $0x330] sm:$0xf]
        %v1992 = vld [vmem:[#allocation6 + $0x334] sm:$0xf]
        %v1993 = vld [vmem:[#allocation6 + $0x338] sm:$0xf]
        %v1994 = vld [vmem:[#allocation6 + $0x33c] sm:$0xf]
        %v1995 = vld [vmem:[#allocation6 + $0x340] sm:$0xf]
        %v1996 = vld [vmem:[#allocation6 + $0x344] sm:$0xf]
        %v1997 = vld [vmem:[#allocation6 + $0x348] sm:$0xf]
        %v1998 = vld [vmem:[#allocation6 + $0x34c] sm:$0xf]
        %v1999 = vld [vmem:[#allocation6 + $0x350] sm:$0xf]
        %v2000 = vld [vmem:[#allocation6 + $0x354] sm:$0xf]
        %v2001 = vld [vmem:[#allocation6 + $0x358] sm:$0xf]
        %v2002 = vld [vmem:[#allocation6 + $0x35c] sm:$0xf]
        %v2003 = vld [vmem:[#allocation6 + $0x360] sm:$0xf]
        %v2004 = vld [vmem:[#allocation6 + $0x364] sm:$0xf]
        %v2005 = vld [vmem:[#allocation6 + $0x368] sm:$0xf]
        %v2006 = vld [vmem:[#allocation6 + $0x36c] sm:$0xf]
        %v2007 = vld [vmem:[#allocation6 + $0x370] sm:$0xf]
        %v2008 = vld [vmem:[#allocation6 + $0x374] sm:$0xf]
        %v2009 = vld [vmem:[#allocation6 + $0x378] sm:$0xf]
        %v2010 = vld [vmem:[#allocation6 + $0x37c] sm:$0xf]
        %v2011 = vld [vmem:[#allocation6 + $0x380] sm:$0xf]
        %v2012 = vld [vmem:[#allocation6 + $0x384] sm:$0xf]
        %v2013 = vld [vmem:[#allocation6 + $0x388] sm:$0xf]
        %v2014 = vld [vmem:[#allocation6 + $0x38c] sm:$0xf]
        %v2015 = vld [vmem:[#allocation6 + $0x390] sm:$0xf]
        %v2016 = vld [vmem:[#allocation6 + $0x394] sm:$0xf]
        %v2017 = vld [vmem:[#allocation6 + $0x398] sm:$0xf]
        %v2018 = vld [vmem:[#allocation6 + $0x39c] sm:$0xf]
        %v2019 = vld [vmem:[#allocation6 + $0x3a0] sm:$0xf]
        %v2020 = vld [vmem:[#allocation6 + $0x3a4] sm:$0xf]
        %v2021 = vld [vmem:[#allocation6 + $0x3a8] sm:$0xf]
        %v2022 = vld [vmem:[#allocation6 + $0x3ac] sm:$0xf]
        %v2023 = vld [vmem:[#allocation6 + $0x3b0] sm:$0xf]
        %v2024 = vld [vmem:[#allocation6 + $0x3b4] sm:$0xf]
        %v2025 = vld [vmem:[#allocation6 + $0x3b8] sm:$0xf]
        %v2026 = vld [vmem:[#allocation6 + $0x3bc] sm:$0xf]
        %v2027 = vld [vmem:[#allocation6 + $0x3c0] sm:$0xf]
        %v2028 = vld [vmem:[#allocation6 + $0x3c4] sm:$0xf]
        %v2029 = vld [vmem:[#allocation6 + $0x3c8] sm:$0xf]
        %v2030 = vld [vmem:[#allocation6 + $0x3cc] sm:$0xf]
        %v2031 = vld [vmem:[#allocation6 + $0x3d0] sm:$0xf]
        %v2032 = vld [vmem:[#allocation6 + $0x3d4] sm:$0xf]
        %v2033 = vld [vmem:[#allocation6 + $0x3d8] sm:$0xf]
        %v2034 = vld [vmem:[#allocation6 + $0x3dc] sm:$0xf]
        %v2035 = vld [vmem:[#allocation6 + $0x3e0] sm:$0xf]
        %v2036 = vld [vmem:[#allocation6 + $0x3e4] sm:$0xf]
        %v2037 = vld [vmem:[#allocation6 + $0x3e8] sm:$0xf]
        %v2038 = vld [vmem:[#allocation6 + $0x3ec] sm:$0xf]
        %v2039 = vld [vmem:[#allocation6 + $0x3f0] sm:$0xf]
        %v2040 = vld [vmem:[#allocation6 + $0x3f4] sm:$0xf]
        %v2041 = vld [vmem:[#allocation6 + $0x3f8] sm:$0xf]
        %v2042 = vld [vmem:[#allocation6 + $0x3fc] sm:$0xf]
        %v2043 = vld [vmem:[#allocation6 + $0x400] sm:$0xf]
        %v2044 = vld [vmem:[#allocation6 + $0x404] sm:$0xf]
        %v2045 = vld [vmem:[#allocation6 + $0x408] sm:$0xf]
        %v2046 = vld [vmem:[#allocation6 + $0x40c] sm:$0xf]
        %v2047 = vld [vmem:[#allocation6 + $0x410] sm:$0xf]
        %v2048 = vld [vmem:[#allocation6 + $0x414] sm:$0xf]
        %v2049 = vld [vmem:[#allocation6 + $0x418] sm:$0xf]
        %v2050 = vld [vmem:[#allocation6 + $0x41c] sm:$0xf]
        %v2051 = vld [vmem:[#allocation6 + $0x420] sm:$0xf]
        %v2052 = vld [vmem:[#allocation6 + $0x424] sm:$0xf]
        %v2053 = vld [vmem:[#allocation6 + $0x428] sm:$0xf]
        %v2054 = vld [vmem:[#allocation6 + $0x42c] sm:$0xf]
        %v2055 = vld [vmem:[#allocation6 + $0x430] sm:$0xf]
        %v2056 = vld [vmem:[#allocation6 + $0x434] sm:$0xf]
        %v2057 = vld [vmem:[#allocation6 + $0x438] sm:$0xf]
        %v2058 = vld [vmem:[#allocation6 + $0x43c] sm:$0xf]
        %v2059 = vld [vmem:[#allocation6 + $0x440] sm:$0xf]
        %v2060 = vld [vmem:[#allocation6 + $0x444] sm:$0xf]
        %v2061 = vld [vmem:[#allocation6 + $0x448] sm:$0xf]
        %v2062 = vld [vmem:[#allocation6 + $0x44c] sm:$0xf]
        %v2063 = vld [vmem:[#allocation6 + $0x450] sm:$0xf]
        %v2064 = vld [vmem:[#allocation6 + $0x454] sm:$0xf]
        %v2065 = vld [vmem:[#allocation6 + $0x458] sm:$0xf]
        %v2066 = vld [vmem:[#allocation6 + $0x45c] sm:$0xf]
        %v2067 = vld [vmem:[#allocation6 + $0x460] sm:$0xf]
        %v2068 = vld [vmem:[#allocation6 + $0x464] sm:$0xf]
        %v2069 = vld [vmem:[#allocation6 + $0x468] sm:$0xf]
        %v2070 = vld [vmem:[#allocation6 + $0x46c] sm:$0xf]
        %v2071 = vld [vmem:[#allocation6 + $0x470] sm:$0xf]
        %v2072 = vld [vmem:[#allocation6 + $0x474] sm:$0xf]
        %v2073 = vld [vmem:[#allocation6 + $0x478] sm:$0xf]
        %v2074 = vld [vmem:[#allocation6 + $0x47c] sm:$0xf]
        %v2075 = vld [vmem:[#allocation8 + $0x1] sm:$0x1]
        %v2076 = vlaneseq
        %v2077 = vshrl.u32 %v2076, 7
        %v2078 = vsub.s32 0, %v2077
        %v2079 = vrot.slane %v2075, %v2078
        %v2081 = vshrl.u32 %v1797, 16
        %v2083 = vrot.slane %v2081, 3
        %v2084 = vshll.u32 %v1797, 16
        %v2086 = vrot.slane %v2084, 4
        %v2087 = vor.u32 %v2083, %v2086
        %v2088 = vrot.slane %v1825, 3
        %v2089 = vrot.slane %v1821, 4
        %v2090 = vor.u32 %v2088, %v2089
        %v2091 = vsel %vm735, %v2087, %v2090
        %v2093 = vshrl.u32 %v1824, 16
        %v2095 = vrot.slane %v2093, 3
        %v2096 = vshll.u32 %v1824, 16
        %v2098 = vrot.slane %v2096, 4
        %v2099 = vor.u32 %v2095, %v2098
        %v2101 = vshrl.u32 %v1832, 16
        %v2103 = vrot.slane %v2101, 3
        %v2104 = vshll.u32 %v1832, 16
        %v2106 = vrot.slane %v2104, 4
        %v2107 = vor.u32 %v2103, %v2106
        %v2108 = vsel %vm735, %v2099, %v2107
        %v2110 = vshrl.u32 %v1850, 16
        %v2112 = vrot.slane %v2110, 3
        %v2113 = vshll.u32 %v1850, 16
        %v2115 = vrot.slane %v2113, 4
        %v2116 = vor.u32 %v2112, %v2115
        %v2118 = vshrl.u32 %v1852, 16
        %v2120 = vrot.slane %v2118, 3
        %v2121 = vshll.u32 %v1852, 16
        %v2123 = vrot.slane %v2121, 4
        %v2124 = vor.u32 %v2120, %v2123
        %v2125 = vsel %vm735, %v2116, %v2124
        %v2127 = vshrl.u32 %v1859, 16
        %v2129 = vrot.slane %v2127, 3
        %v2130 = vshll.u32 %v1859, 16
        %v2132 = vrot.slane %v2130, 4
        %v2133 = vor.u32 %v2129, %v2132
        %v2135 = vshrl.u32 %v1861, 16
        %v2137 = vrot.slane %v2135, 3
        %v2138 = vshll.u32 %v1861, 16
        %v2140 = vrot.slane %v2138, 4
        %v2141 = vor.u32 %v2137, %v2140
        %v2142 = vsel %vm735, %v2133, %v2141
        %v2144 = vshrl.u32 %v1866, 16
        %v2146 = vrot.slane %v2144, 3
        %v2147 = vshll.u32 %v1866, 16
        %v2149 = vrot.slane %v2147, 4
        %v2150 = vor.u32 %v2146, %v2149
        %v2152 = vshrl.u32 %v1870, 16
        %v2154 = vrot.slane %v2152, 3
        %v2155 = vshll.u32 %v1870, 16
        %v2157 = vrot.slane %v2155, 4
        %v2158 = vor.u32 %v2154, %v2157
        %v2159 = vsel %vm735, %v2150, %v2158
        %v2161 = vshrl.u32 %v1884, 16
        %v2163 = vrot.slane %v2161, 3
        %v2164 = vshll.u32 %v1884, 16
        %v2166 = vrot.slane %v2164, 4
        %v2167 = vor.u32 %v2163, %v2166
        %v2169 = vshrl.u32 %v1886, 16
        %v2171 = vrot.slane %v2169, 3
        %v2172 = vshll.u32 %v1886, 16
        %v2174 = vrot.slane %v2172, 4
        %v2175 = vor.u32 %v2171, %v2174
        %v2176 = vsel %vm735, %v2167, %v2175
        %v2178 = vshrl.u32 %v1809, 16
        %v2180 = vrot.slane %v2178, 3
        %v2181 = vshll.u32 %v1809, 16
        %v2183 = vrot.slane %v2181, 4
        %v2184 = vor.u32 %v2180, %v2183
        %v2185 = vrot.slane %v1903, 3
        %v2186 = vrot.slane %v1899, 4
        %v2187 = vor.u32 %v2185, %v2186
        %v2188 = vsel %vm735, %v2184, %v2187
        %v2190 = vshrl.u32 %v1902, 16
        %v2192 = vrot.slane %v2190, 3
        %v2193 = vshll.u32 %v1902, 16
        %v2195 = vrot.slane %v2193, 4
        %v2196 = vor.u32 %v2192, %v2195
        %v2198 = vshrl.u32 %v1910, 16
        %v2200 = vrot.slane %v2198, 3
        %v2201 = vshll.u32 %v1910, 16
        %v2203 = vrot.slane %v2201, 4
        %v2204 = vor.u32 %v2200, %v2203
        %v2205 = vsel %vm735, %v2196, %v2204
        %v2207 = vshrl.u32 %v1926, 16
        %v2209 = vrot.slane %v2207, 3
        %v2210 = vshll.u32 %v1926, 16
        %v2212 = vrot.slane %v2210, 4
        %v2213 = vor.u32 %v2209, %v2212
        %v2215 = vshrl.u32 %v1928, 16
        %v2217 = vrot.slane %v2215, 3
        %v2218 = vshll.u32 %v1928, 16
        %v2220 = vrot.slane %v2218, 4
        %v2221 = vor.u32 %v2217, %v2220
        %v2222 = vsel %vm735, %v2213, %v2221
        %v2223 = vrot.slane %v1833, 3
        %v2224 = vrot.slane %v1829, 4
        %v2225 = vor.u32 %v2223, %v2224
        %v2226 = vsel %vm735, %v2090, %v2225
        %v2228 = vshrl.u32 %v1840, 16
        %v2230 = vrot.slane %v2228, 3
        %v2231 = vshll.u32 %v1840, 16
        %v2233 = vrot.slane %v2231, 4
        %v2234 = vor.u32 %v2230, %v2233
        %v2235 = vsel %vm735, %v2107, %v2234
        %v2237 = vshrl.u32 %v1854, 16
        %v2239 = vrot.slane %v2237, 3
        %v2240 = vshll.u32 %v1854, 16
        %v2242 = vrot.slane %v2240, 4
        %v2243 = vor.u32 %v2239, %v2242
        %v2244 = vsel %vm735, %v2124, %v2243
        %v2246 = vshrl.u32 %v1863, 16
        %v2248 = vrot.slane %v2246, 3
        %v2249 = vshll.u32 %v1863, 16
        %v2251 = vrot.slane %v2249, 4
        %v2252 = vor.u32 %v2248, %v2251
        %v2253 = vsel %vm735, %v2141, %v2252
        %v2255 = vshrl.u32 %v1879, 16
        %v2257 = vrot.slane %v2255, 3
        %v2258 = vshll.u32 %v1879, 16
        %v2260 = vrot.slane %v2258, 4
        %v2261 = vor.u32 %v2257, %v2260
        %v2262 = vsel %vm735, %v2158, %v2261
        %v2264 = vshrl.u32 %v1888, 16
        %v2266 = vrot.slane %v2264, 3
        %v2267 = vshll.u32 %v1888, 16
        %v2269 = vrot.slane %v2267, 4
        %v2270 = vor.u32 %v2266, %v2269
        %v2271 = vsel %vm735, %v2175, %v2270
        %v2272 = vrot.slane %v1911, 3
        %v2273 = vrot.slane %v1907, 4
        %v2274 = vor.u32 %v2272, %v2273
        %v2275 = vsel %vm735, %v2187, %v2274
        %v2277 = vshrl.u32 %v1918, 16
        %v2279 = vrot.slane %v2277, 3
        %v2280 = vshll.u32 %v1918, 16
        %v2282 = vrot.slane %v2280, 4
        %v2283 = vor.u32 %v2279, %v2282
        %v2284 = vsel %vm735, %v2204, %v2283
        %v2286 = vshrl.u32 %v1930, 16
        %v2288 = vrot.slane %v2286, 3
        %v2289 = vshll.u32 %v1930, 16
        %v2291 = vrot.slane %v2289, 4
        %v2292 = vor.u32 %v2288, %v2291
        %v2293 = vsel %vm735, %v2221, %v2292
        %v2294 = vrot.slane %v1841, 3
        %v2295 = vrot.slane %v1837, 4
        %v2296 = vor.u32 %v2294, %v2295
        %v2297 = vsel %vm735, %v2225, %v2296
        %v2299 = vshrl.u32 %v1843, 16
        %v2301 = vrot.slane %v2299, 3
        %v2302 = vshll.u32 %v1843, 16
        %v2304 = vrot.slane %v2302, 4
        %v2305 = vor.u32 %v2301, %v2304
        %v2306 = vsel %vm735, %v2234, %v2305
        %v2308 = vshrl.u32 %v1853, 16
        %v2310 = vrot.slane %v2308, 3
        %v2311 = vshll.u32 %v1853, 16
        %v2313 = vrot.slane %v2311, 4
        %v2314 = vor.u32 %v2310, %v2313
        %v2315 = vsel %vm735, %v2243, %v2314
        %v2317 = vshrl.u32 %v1862, 16
        %v2319 = vrot.slane %v2317, 3
        %v2320 = vshll.u32 %v1862, 16
        %v2322 = vrot.slane %v2320, 4
        %v2323 = vor.u32 %v2319, %v2322
        %v2324 = vsel %vm735, %v2252, %v2323
        %v2326 = vshrl.u32 %v1878, 16
        %v2328 = vrot.slane %v2326, 3
        %v2329 = vshll.u32 %v1878, 16
        %v2331 = vrot.slane %v2329, 4
        %v2332 = vor.u32 %v2328, %v2331
        %v2333 = vsel %vm735, %v2261, %v2332
        %v2335 = vshrl.u32 %v1890, 16
        %v2337 = vrot.slane %v2335, 3
        %v2338 = vshll.u32 %v1890, 16
        %v2340 = vrot.slane %v2338, 4
        %v2341 = vor.u32 %v2337, %v2340
        %v2342 = vsel %vm735, %v2270, %v2341
        %v2343 = vrot.slane %v1919, 3
        %v2344 = vrot.slane %v1915, 4
        %v2345 = vor.u32 %v2343, %v2344
        %v2346 = vsel %vm735, %v2274, %v2345
        %v2348 = vshrl.u32 %v1921, 16
        %v2350 = vrot.slane %v2348, 3
        %v2351 = vshll.u32 %v1921, 16
        %v2353 = vrot.slane %v2351, 4
        %v2354 = vor.u32 %v2350, %v2353
        %v2355 = vsel %vm735, %v2283, %v2354
        %v2357 = vshrl.u32 %v1929, 16
        %v2359 = vrot.slane %v2357, 3
        %v2360 = vshll.u32 %v1929, 16
        %v2362 = vrot.slane %v2360, 4
        %v2363 = vor.u32 %v2359, %v2362
        %v2364 = vsel %vm735, %v2292, %v2363
        %v2536 = vunpack.c.l.b16 %v1931
        %v2537 = vunpack.c.l.b16 %v1932
        %v2538 = vunpack.c.l.b16 %v1933
        %v2539 = vunpack.c.l.b16 %v1934
        %v2540 = vunpack.c.l.b16 %v1935
        %v2541 = vunpack.c.l.b16 %v1936
        %v2542 = vunpack.c.l.b16 %v1937
        %v2543 = vunpack.c.l.b16 %v1938
        %v2544 = vunpack.c.l.b16 %v1939
        %v2545 = vunpack.c.l.b16 %v1940
        %v2546 = vunpack.c.l.b16 %v1941
        %v2547 = vunpack.c.l.b16 %v1942
        %v2548 = vunpack.c.l.b16 %v1943
        %v2549 = vunpack.c.l.b16 %v1944
        %v2550 = vunpack.c.l.b16 %v1945
        %v2551 = vunpack.c.l.b16 %v1946
        %v2552 = vunpack.c.l.b16 %v1947
        %v2553 = vunpack.c.l.b16 %v1948
        %v2554 = vunpack.c.l.b16 %v1949
        %v2555 = vunpack.c.l.b16 %v1950
        %v2556 = vunpack.c.l.b16 %v1951
        %v2557 = vunpack.c.l.b16 %v1952
        %v2558 = vunpack.c.l.b16 %v1953
        %v2559 = vunpack.c.l.b16 %v1954
        %v2560 = vunpack.c.l.b16 %v1955
        %v2561 = vunpack.c.l.b16 %v1956
        %v2562 = vunpack.c.l.b16 %v1957
        %v2563 = vunpack.c.l.b16 %v1958
        %v2564 = vunpack.c.l.b16 %v1959
        %v2565 = vunpack.c.l.b16 %v1960
        %v2566 = vunpack.c.l.b16 %v1961
        %v2567 = vunpack.c.l.b16 %v1962
        %v2568 = vunpack.c.l.b16 %v1963
        %v2569 = vunpack.c.l.b16 %v1964
        %v2570 = vunpack.c.l.b16 %v1965
        %v2571 = vunpack.c.l.b16 %v1966
        %v2572 = vunpack.c.l.b16 %v1967
        %v2573 = vunpack.c.l.b16 %v1968
        %v2574 = vunpack.c.l.b16 %v1969
        %v2575 = vunpack.c.l.b16 %v1970
        %v2576 = vunpack.c.l.b16 %v1971
        %v2577 = vunpack.c.l.b16 %v1972
        %v2578 = vunpack.c.l.b16 %v1973
        %v2579 = vunpack.c.l.b16 %v1974
        %v2580 = vunpack.c.l.b16 %v1975
        %v2581 = vunpack.c.l.b16 %v1976
        %v2582 = vunpack.c.l.b16 %v1977
        %v2583 = vunpack.c.l.b16 %v1978
        %v2584 = vunpack.c.l.b16 %v1979
        %v2585 = vunpack.c.l.b16 %v1980
        %v2586 = vunpack.c.l.b16 %v1981
        %v2587 = vunpack.c.l.b16 %v1982
        %v2588 = vunpack.c.l.b16 %v1983
        %v2589 = vunpack.c.l.b16 %v1984
        %v2590 = vunpack.c.l.b16 %v1985
        %v2591 = vunpack.c.l.b16 %v1986
        %v2592 = vunpack.c.l.b16 %v1987
        %v2593 = vunpack.c.l.b16 %v1988
        %v2594 = vunpack.c.l.b16 %v1989
        %v2595 = vunpack.c.l.b16 %v1990
        %v2596 = vunpack.c.l.b16 %v1991
        %v2597 = vunpack.c.l.b16 %v1992
        %v2598 = vunpack.c.l.b16 %v1993
        %v2599 = vunpack.c.l.b16 %v1994
        %v2600 = vunpack.c.l.b16 %v1995
        %v2601 = vunpack.c.l.b16 %v1996
        %v2602 = vunpack.c.l.b16 %v1997
        %v2603 = vunpack.c.l.b16 %v1998
        %v2604 = vunpack.c.l.b16 %v1999
        %v2605 = vunpack.c.l.b16 %v2000
        %v2606 = vunpack.c.l.b16 %v2001
        %v2607 = vunpack.c.l.b16 %v2002
        %v2608 = vunpack.c.l.b16 %v2003
        %v2609 = vunpack.c.l.b16 %v2004
        %v2610 = vunpack.c.l.b16 %v2005
        %v2611 = vunpack.c.l.b16 %v2006
        %v2612 = vunpack.c.l.b16 %v2007
        %v2613 = vunpack.c.l.b16 %v2008
        %v2614 = vunpack.c.l.b16 %v2009
        %v2615 = vunpack.c.l.b16 %v2010
        %v2616 = vunpack.c.l.b16 %v2011
        %v2617 = vunpack.c.l.b16 %v2012
        %v2618 = vunpack.c.l.b16 %v2013
        %v2619 = vunpack.c.l.b16 %v2014
        %v2620 = vunpack.c.l.b16 %v2015
        %v2621 = vunpack.c.l.b16 %v2016
        %v2622 = vunpack.c.l.b16 %v2017
        %v2623 = vunpack.c.l.b16 %v2018
        %v2624 = vunpack.c.l.b16 %v2019
        %v2625 = vunpack.c.l.b16 %v2020
        %v2626 = vunpack.c.l.b16 %v2021
        %v2627 = vunpack.c.l.b16 %v2022
        %v2628 = vunpack.c.l.b16 %v2023
        %v2629 = vunpack.c.l.b16 %v2024
        %v2630 = vunpack.c.l.b16 %v2025
        %v2631 = vunpack.c.l.b16 %v2026
        %v2632 = vunpack.c.l.b16 %v2027
        %v2633 = vunpack.c.l.b16 %v2028
        %v2634 = vunpack.c.l.b16 %v2029
        %v2635 = vunpack.c.l.b16 %v2030
        %v2636 = vunpack.c.l.b16 %v2031
        %v2637 = vunpack.c.l.b16 %v2032
        %v2638 = vunpack.c.l.b16 %v2033
        %v2639 = vunpack.c.l.b16 %v2034
        %v2640 = vunpack.c.l.b16 %v2035
        %v2641 = vunpack.c.l.b16 %v2036
        %v2642 = vunpack.c.l.b16 %v2037
        %v2643 = vunpack.c.l.b16 %v2038
        %v2644 = vunpack.c.l.b16 %v2039
        %v2645 = vunpack.c.l.b16 %v2040
        %v2646 = vunpack.c.l.b16 %v2041
        %v2647 = vunpack.c.l.b16 %v2042
        %v2648 = vunpack.c.l.b16 %v2043
        %v2649 = vunpack.c.l.b16 %v2044
        %v2650 = vunpack.c.l.b16 %v2045
        %v2651 = vunpack.c.l.b16 %v2046
        %v2652 = vunpack.c.l.b16 %v2047
        %v2653 = vunpack.c.l.b16 %v2048
        %v2654 = vunpack.c.l.b16 %v2049
        %v2655 = vunpack.c.l.b16 %v2050
        %v2656 = vunpack.c.l.b16 %v2051
        %v2657 = vunpack.c.l.b16 %v2052
        %v2658 = vunpack.c.l.b16 %v2053
        %v2659 = vunpack.c.l.b16 %v2054
        %v2660 = vunpack.c.l.b16 %v2055
        %v2661 = vunpack.c.l.b16 %v2056
        %v2662 = vunpack.c.l.b16 %v2057
        %v2663 = vunpack.c.l.b16 %v2058
        %v2664 = vunpack.c.l.b16 %v2059
        %v2665 = vunpack.c.l.b16 %v2060
        %v2666 = vunpack.c.l.b16 %v2061
        %v2667 = vunpack.c.l.b16 %v2062
        %v2668 = vunpack.c.l.b16 %v2063
        %v2669 = vunpack.c.l.b16 %v2064
        %v2670 = vunpack.c.l.b16 %v2065
        %v2671 = vunpack.c.l.b16 %v2066
        %v2672 = vunpack.c.l.b16 %v2067
        %v2673 = vunpack.c.l.b16 %v2068
        %v2674 = vunpack.c.l.b16 %v2069
        %v2675 = vunpack.c.l.b16 %v2070
        %v2676 = vunpack.c.l.b16 %v2071
        %v2677 = vunpack.c.l.b16 %v2072
        %v2678 = vunpack.c.l.b16 %v2073
        %v2679 = vunpack.c.l.b16 %v2074
        %v2680 = vpack.c.b16 %v2537, %v2536
        %v2681 = vpack.c.b16 %v2539, %v2538
        %v2682 = vpack.c.b16 %v2541, %v2540
        %v2683 = vpack.c.b16 %v2543, %v2542
        %v2684 = vpack.c.b16 %v2545, %v2544
        %v2685 = vpack.c.b16 %v2547, %v2546
        %v2686 = vpack.c.b16 %v2549, %v2548
        %v2687 = vpack.c.b16 %v2551, %v2550
        %v2688 = vpack.c.b16 %v2553, %v2552
        %v2689 = vpack.c.b16 %v2555, %v2554
        %v2690 = vpack.c.b16 %v2557, %v2556
        %v2691 = vpack.c.b16 %v2559, %v2558
        %v2692 = vpack.c.b16 %v2561, %v2560
        %v2693 = vpack.c.b16 %v2563, %v2562
        %v2694 = vpack.c.b16 %v2565, %v2564
        %v2695 = vpack.c.b16 %v2567, %v2566
        %v2696 = vpack.c.b16 %v2569, %v2568
        %v2697 = vpack.c.b16 %v2571, %v2570
        %v2698 = vpack.c.b16 %v2573, %v2572
        %v2699 = vpack.c.b16 %v2575, %v2574
        %v2700 = vpack.c.b16 %v2577, %v2576
        %v2701 = vpack.c.b16 %v2579, %v2578
        %v2702 = vpack.c.b16 %v2581, %v2580
        %v2703 = vpack.c.b16 %v2583, %v2582
        %v2704 = vpack.c.b16 %v2585, %v2584
        %v2705 = vpack.c.b16 %v2587, %v2586
        %v2706 = vpack.c.b16 %v2589, %v2588
        %v2707 = vpack.c.b16 %v2591, %v2590
        %v2708 = vpack.c.b16 %v2593, %v2592
        %v2709 = vpack.c.b16 %v2595, %v2594
        %v2710 = vpack.c.b16 %v2597, %v2596
        %v2711 = vpack.c.b16 %v2599, %v2598
        %v2712 = vpack.c.b16 %v2601, %v2600
        %v2713 = vpack.c.b16 %v2603, %v2602
        %v2714 = vpack.c.b16 %v2605, %v2604
        %v2715 = vpack.c.b16 %v2607, %v2606
        %v2716 = vpack.c.b16 %v2609, %v2608
        %v2717 = vpack.c.b16 %v2611, %v2610
        %v2718 = vpack.c.b16 %v2613, %v2612
        %v2719 = vpack.c.b16 %v2615, %v2614
        %v2720 = vpack.c.b16 %v2617, %v2616
        %v2721 = vpack.c.b16 %v2619, %v2618
        %v2722 = vpack.c.b16 %v2621, %v2620
        %v2723 = vpack.c.b16 %v2623, %v2622
        %v2724 = vpack.c.b16 %v2625, %v2624
        %v2725 = vpack.c.b16 %v2627, %v2626
        %v2726 = vpack.c.b16 %v2629, %v2628
        %v2727 = vpack.c.b16 %v2631, %v2630
        %v2728 = vpack.c.b16 %v2633, %v2632
        %v2729 = vpack.c.b16 %v2635, %v2634
        %v2730 = vpack.c.b16 %v2637, %v2636
        %v2731 = vpack.c.b16 %v2639, %v2638
        %v2732 = vpack.c.b16 %v2641, %v2640
        %v2733 = vpack.c.b16 %v2643, %v2642
        %v2734 = vpack.c.b16 %v2645, %v2644
        %v2735 = vpack.c.b16 %v2647, %v2646
        %v2736 = vpack.c.b16 %v2649, %v2648
        %v2737 = vpack.c.b16 %v2651, %v2650
        %v2738 = vpack.c.b16 %v2653, %v2652
        %v2739 = vpack.c.b16 %v2655, %v2654
        %v2740 = vpack.c.b16 %v2657, %v2656
        %v2741 = vpack.c.b16 %v2659, %v2658
        %v2742 = vpack.c.b16 %v2661, %v2660
        %v2743 = vpack.c.b16 %v2663, %v2662
        %v2744 = vpack.c.b16 %v2665, %v2664
        %v2745 = vpack.c.b16 %v2667, %v2666
        %v2746 = vpack.c.b16 %v2669, %v2668
        %v2747 = vpack.c.b16 %v2671, %v2670
        %v2748 = vpack.c.b16 %v2673, %v2672
        %v2749 = vpack.c.b16 %v2675, %v2674
        %v2750 = vpack.c.b16 %v2677, %v2676
        %v2751 = vpack.c.b16 %v2679, %v2678
        %2824 = vmatprep.subr.bf16.mxu0 0
        %2825 = vmatpush1.bf16.msra.mxu0 %v2680
        %2826 = vmatprep.subr.bf16.mxu0 0
        %2827 = vmatpush1.bf16.msra.mxu0 %v2681
        %2828 = vmatprep.subr.bf16.mxu0 0
        %2829 = vmatpush1.bf16.msra.mxu0 %v2682
        %2830 = vmatprep.subr.bf16.mxu0 0
        %2831 = vmatpush1.bf16.msra.mxu0 %v2683
        %2832 = vmatprep.subr.bf16.mxu0 0
        %2833 = vmatpush1.bf16.msra.mxu0 %v2684
        %2834 = vmatprep.subr.bf16.mxu0 0
        %2835 = vmatpush1.bf16.msra.mxu0 %v2685
        %2836 = vmatprep.subr.bf16.mxu0 0
        %2837 = vmatpush1.bf16.msra.mxu0 %v2686
        %2838 = vmatprep.subr.bf16.mxu0 0
        %2839 = vmatpush1.bf16.msra.mxu0 %v2687
        %2840 = vmatprep.subr.bf16.mxu0 0
        %2841 = vmatpush1.bf16.msra.mxu0 %v2688
        %2842 = vmatprep.subr.bf16.mxu0 0
        %2843 = vmatpush1.bf16.msra.mxu0 %v2689
        %2844 = vmatprep.subr.bf16.mxu0 0
        %2845 = vmatpush1.bf16.msra.mxu0 %v2690
        %2846 = vmatprep.subr.bf16.mxu0 0
        %2847 = vmatpush1.bf16.msra.mxu0 %v2691
        %2848 = vmatprep.subr.bf16.mxu0 0
        %2849 = vmatpush1.bf16.msra.mxu0 %v2692
        %2850 = vmatprep.subr.bf16.mxu0 0
        %2851 = vmatpush1.bf16.msra.mxu0 %v2693
        %2852 = vmatprep.subr.bf16.mxu0 0
        %2853 = vmatpush1.bf16.msra.mxu0 %v2694
        %2854 = vmatprep.subr.bf16.mxu0 0
        %2855 = vmatpush1.bf16.msra.mxu0 %v2695
        %2856 = vmatprep.mubr.bf16.mxu0 %v2108
        %2857 = vmatmul.mubr.bf16.gmra.mrb[0].mxu0 %v2091
        %v2858 = vpop.f32.mrb[0].mxu0
        %v2859 = vadd.f32 %v2079, %v2858
        %v2860 = vpop.f32.mrb[0].mxu0
        %v2861 = vpop.f32.mrb[0].mxu0
        %v2862 = vadd.f32 %v2079, %v2861
        %v2863 = vpop.f32.mrb[0].mxu0
        %2864 = vmatprep.mubr.bf16.mxu0 %v2235
        %2865 = vmatmul.mubr.bf16.gmra.mrb[0].mxu0 %v2226
        %v2866 = vpop.f32.mrb[0].mxu0
        %v2867 = vadd.f32 %v2079, %v2866
        %v2868 = vpop.f32.mrb[0].mxu0
        %v2869 = vpop.f32.mrb[0].mxu0
        %v2870 = vadd.f32 %v2079, %v2869
        %v2871 = vpop.f32.mrb[0].mxu0
        %2872 = vmatprep.mubr.bf16.mxu0 %v2306
        %2873 = vmatmul.mubr.bf16.gmra.mrb[0].mxu0 %v2297
        %v2874 = vpop.f32.mrb[0].mxu0
        %v2875 = vadd.f32 %v2079, %v2874
        %v2876 = vpop.f32.mrb[0].mxu0
        %v2877 = vpop.f32.mrb[0].mxu0
        %v2878 = vadd.f32 %v2079, %v2877
        %v2879 = vpop.f32.mrb[0].mxu0
        %2880 = vdwg.mxu0
        %2881 = vmatprep.subr.bf16.mxu0 0
        %2882 = vmatpush1.bf16.msra.mxu0 %v2696
        %2883 = vmatprep.subr.bf16.mxu0 0
        %2884 = vmatpush1.bf16.msra.mxu0 %v2697
        %2885 = vmatprep.subr.bf16.mxu0 0
        %2886 = vmatpush1.bf16.msra.mxu0 %v2698
        %2887 = vmatprep.subr.bf16.mxu0 0
        %2888 = vmatpush1.bf16.msra.mxu0 %v2699
        %2889 = vmatprep.subr.bf16.mxu0 0
        %2890 = vmatpush1.bf16.msra.mxu0 %v2700
        %2891 = vmatprep.subr.bf16.mxu0 0
        %2892 = vmatpush1.bf16.msra.mxu0 %v2701
        %2893 = vmatprep.subr.bf16.mxu0 0
        %2894 = vmatpush1.bf16.msra.mxu0 %v2702
        %2895 = vmatprep.subr.bf16.mxu0 0
        %2896 = vmatpush1.bf16.msra.mxu0 %v2703
        %2897 = vmatprep.subr.bf16.mxu0 0
        %2898 = vmatpush1.bf16.msra.mxu0 %v2704
        %2899 = vmatprep.subr.bf16.mxu0 0
        %2900 = vmatpush1.bf16.msra.mxu0 %v2705
        %2901 = vmatprep.subr.bf16.mxu0 0
        %2902 = vmatpush1.bf16.msra.mxu0 %v2706
        %2903 = vmatprep.subr.bf16.mxu0 0
        %2904 = vmatpush1.bf16.msra.mxu0 %v2707
        %2905 = vmatprep.subr.bf16.mxu0 0
        %2906 = vmatpush1.bf16.msra.mxu0 %v2708
        %2907 = vmatprep.subr.bf16.mxu0 0
        %2908 = vmatpush1.bf16.msra.mxu0 %v2709
        %2909 = vmatprep.subr.bf16.mxu0 0
        %2910 = vmatpush1.bf16.msra.mxu0 %v2710
        %2911 = vmatprep.subr.bf16.mxu0 0
        %2912 = vmatpush1.bf16.msra.mxu0 %v2711
        %2913 = vmatprep.mubr.bf16.mxu0 %v2142
        %2914 = vmatmul.mubr.bf16.gmra.mrb[0].mxu0 %v2125
        %v2915 = vpop.f32.mrb[0].mxu0
        %v2916 = vadd.f32 %v2859, %v2915
        %v2917 = vpop.f32.mrb[0].mxu0
        %v2918 = vpop.f32.mrb[0].mxu0
        %v2919 = vadd.f32 %v2862, %v2918
        %v2920 = vpop.f32.mrb[0].mxu0
        %2921 = vmatprep.mubr.bf16.mxu0 %v2253
        %2922 = vmatmul.mubr.bf16.gmra.mrb[0].mxu0 %v2244
        %v2923 = vpop.f32.mrb[0].mxu0
        %v2924 = vadd.f32 %v2867, %v2923
        %v2925 = vpop.f32.mrb[0].mxu0
        %v2926 = vpop.f32.mrb[0].mxu0
        %v2927 = vadd.f32 %v2870, %v2926
        %v2928 = vpop.f32.mrb[0].mxu0
        %2929 = vmatprep.mubr.bf16.mxu0 %v2324
        %2930 = vmatmul.mubr.bf16.gmra.mrb[0].mxu0 %v2315
        %v2931 = vpop.f32.mrb[0].mxu0
        %v2932 = vadd.f32 %v2875, %v2931
        %v2933 = vpop.f32.mrb[0].mxu0
        %v2934 = vpop.f32.mrb[0].mxu0
        %v2935 = vadd.f32 %v2878, %v2934
        %v2936 = vpop.f32.mrb[0].mxu0
        %2937 = vdwg.mxu0
        %2938 = vmatprep.subr.bf16.mxu0 0
        %2939 = vmatpush1.bf16.msra.mxu0 %v2712
        %2940 = vmatprep.subr.bf16.mxu0 0
        %2941 = vmatpush1.bf16.msra.mxu0 %v2713
        %2942 = vmatprep.subr.bf16.mxu0 0
        %2943 = vmatpush1.bf16.msra.mxu0 %v2714
        %2944 = vmatprep.subr.bf16.mxu0 0
        %2945 = vmatpush1.bf16.msra.mxu0 %v2715
        %2946 = vmatprep.subr.bf16.mxu0 0
        %2947 = vmatpush1.bf16.msra.mxu0 %v2716
        %2948 = vmatprep.subr.bf16.mxu0 0
        %2949 = vmatpush1.bf16.msra.mxu0 %v2717
        %2950 = vmatprep.subr.bf16.mxu0 0
        %2951 = vmatpush1.bf16.msra.mxu0 %v2718
        %2952 = vmatprep.subr.bf16.mxu0 0
        %2953 = vmatpush1.bf16.msra.mxu0 %v2719
        %2954 = vmatprep.subr.bf16.mxu0 0
        %2955 = vmatpush1.bf16.msra.mxu0 %v2720
        %2956 = vmatprep.subr.bf16.mxu0 0
        %2957 = vmatpush1.bf16.msra.mxu0 %v2721
        %2958 = vmatprep.subr.bf16.mxu0 0
        %2959 = vmatpush1.bf16.msra.mxu0 %v2722
        %2960 = vmatprep.subr.bf16.mxu0 0
        %2961 = vmatpush1.bf16.msra.mxu0 %v2723
        %2962 = vmatprep.subr.bf16.mxu0 0
        %2963 = vmatpush1.bf16.msra.mxu0 %v2724
        %2964 = vmatprep.subr.bf16.mxu0 0
        %2965 = vmatpush1.bf16.msra.mxu0 %v2725
        %2966 = vmatprep.subr.bf16.mxu0 0
        %2967 = vmatpush1.bf16.msra.mxu0 %v2726
        %2968 = vmatprep.subr.bf16.mxu0 0
        %2969 = vmatpush1.bf16.msra.mxu0 %v2727
        %2970 = vmatprep.mubr.bf16.mxu0 %v2176
        %2971 = vmatmul.mubr.bf16.gmra.mrb[0].mxu0 %v2159
        %v2972 = vpop.f32.mrb[0].mxu0
        %v2973 = vadd.f32 %v2916, %v2972
        %v2974 = vpop.f32.mrb[0].mxu0
        %v2975 = vpop.f32.mrb[0].mxu0
        %v2976 = vadd.f32 %v2919, %v2975
        %v2977 = vpop.f32.mrb[0].mxu0
        %2978 = vmatprep.mubr.bf16.mxu0 %v2271
        %2979 = vmatmul.mubr.bf16.gmra.mrb[0].mxu0 %v2262
        %v2980 = vpop.f32.mrb[0].mxu0
        %v2981 = vadd.f32 %v2924, %v2980
        %v2982 = vpop.f32.mrb[0].mxu0
        %v2983 = vpop.f32.mrb[0].mxu0
        %v2984 = vadd.f32 %v2927, %v2983
        %v2985 = vpop.f32.mrb[0].mxu0
        %2986 = vmatprep.mubr.bf16.mxu0 %v2342
        %2987 = vmatmul.mubr.bf16.gmra.mrb[0].mxu0 %v2333
        %v2988 = vpop.f32.mrb[0].mxu0
        %v2989 = vadd.f32 %v2932, %v2988
        %v2990 = vpop.f32.mrb[0].mxu0
        %v2991 = vpop.f32.mrb[0].mxu0
        %v2992 = vadd.f32 %v2935, %v2991
        %v2993 = vpop.f32.mrb[0].mxu0
        %2994 = vdwg.mxu0
        %2995 = vmatprep.subr.bf16.mxu0 0
        %2996 = vmatpush1.bf16.msra.mxu0 %v2728
        %2997 = vmatprep.subr.bf16.mxu0 0
        %2998 = vmatpush1.bf16.msra.mxu0 %v2729
        %2999 = vmatprep.subr.bf16.mxu0 0
        %3000 = vmatpush1.bf16.msra.mxu0 %v2730
        %3001 = vmatprep.subr.bf16.mxu0 0
        %3002 = vmatpush1.bf16.msra.mxu0 %v2731
        %3003 = vmatprep.subr.bf16.mxu0 0
        %3004 = vmatpush1.bf16.msra.mxu0 %v2732
        %3005 = vmatprep.subr.bf16.mxu0 0
        %3006 = vmatpush1.bf16.msra.mxu0 %v2733
        %3007 = vmatprep.subr.bf16.mxu0 0
        %3008 = vmatpush1.bf16.msra.mxu0 %v2734
        %3009 = vmatprep.subr.bf16.mxu0 0
        %3010 = vmatpush1.bf16.msra.mxu0 %v2735
        %3011 = vmatprep.subr.bf16.mxu0 0
        %3012 = vmatpush1.bf16.msra.mxu0 %v2736
        %3013 = vmatprep.subr.bf16.mxu0 0
        %3014 = vmatpush1.bf16.msra.mxu0 %v2737
        %3015 = vmatprep.subr.bf16.mxu0 0
        %3016 = vmatpush1.bf16.msra.mxu0 %v2738
        %3017 = vmatprep.subr.bf16.mxu0 0
        %3018 = vmatpush1.bf16.msra.mxu0 %v2739
        %3019 = vmatprep.subr.bf16.mxu0 0
        %3020 = vmatpush1.bf16.msra.mxu0 %v2740
        %3021 = vmatprep.subr.bf16.mxu0 0
        %3022 = vmatpush1.bf16.msra.mxu0 %v2741
        %3023 = vmatprep.subr.bf16.mxu0 0
        %3024 = vmatpush1.bf16.msra.mxu0 %v2742
        %3025 = vmatprep.subr.bf16.mxu0 0
        %3026 = vmatpush1.bf16.msra.mxu0 %v2743
        %3027 = vmatprep.mubr.bf16.mxu0 %v2205
        %3028 = vmatmul.mubr.bf16.gmra.mrb[0].mxu0 %v2188
        %v3029 = vpop.f32.mrb[0].mxu0
        %v3030 = vadd.f32 %v2973, %v3029
        %v3031 = vpop.f32.mrb[0].mxu0
        %v3032 = vpop.f32.mrb[0].mxu0
        %v3033 = vadd.f32 %v2976, %v3032
        %v3034 = vpop.f32.mrb[0].mxu0
        %3035 = vmatprep.mubr.bf16.mxu0 %v2284
        %3036 = vmatmul.mubr.bf16.gmra.mrb[0].mxu0 %v2275
        %v3037 = vpop.f32.mrb[0].mxu0
        %v3038 = vadd.f32 %v2981, %v3037
        %v3039 = vpop.f32.mrb[0].mxu0
        %v3040 = vpop.f32.mrb[0].mxu0
        %v3041 = vadd.f32 %v2984, %v3040
        %v3042 = vpop.f32.mrb[0].mxu0
        %3043 = vmatprep.mubr.bf16.mxu0 %v2355
        %3044 = vmatmul.mubr.bf16.gmra.mrb[0].mxu0 %v2346
        %v3045 = vpop.f32.mrb[0].mxu0
        %v3046 = vadd.f32 %v2989, %v3045
        %v3047 = vpop.f32.mrb[0].mxu0
        %v3048 = vpop.f32.mrb[0].mxu0
        %v3049 = vadd.f32 %v2992, %v3048
        %v3050 = vpop.f32.mrb[0].mxu0
        %3051 = vdwg.mxu0
        %3052 = vmatprep.subr.bf16.mxu0 0
        %3053 = vmatpush1.bf16.msra.mxu0 %v2744
        %3054 = vmatprep.subr.bf16.mxu0 0
        %3055 = vmatpush1.bf16.msra.mxu0 %v2745
        %3056 = vmatprep.subr.bf16.mxu0 0
        %3057 = vmatpush1.bf16.msra.mxu0 %v2746
        %3058 = vmatprep.subr.bf16.mxu0 0
        %3059 = vmatpush1.bf16.msra.mxu0 %v2747
        %3060 = vmatprep.subr.bf16.mxu0 0
        %3061 = vmatpush1.bf16.msra.mxu0 %v2748
        %3062 = vmatprep.subr.bf16.mxu0 0
        %3063 = vmatpush1.bf16.msra.mxu0 %v2749
        %3064 = vmatprep.subr.bf16.mxu0 0
        %3065 = vmatpush1.bf16.msra.mxu0 %v2750
        %3066 = vmatprep.subr.bf16.mxu0 0
        %3067 = vmatpush1.bf16.msra.mxu0 %v2751
        %3068 = vmatprep.subr.bf16.mxu0 0
        %3069 = vmatpush1.bf16.msra.mxu0 0
        %3070 = vmatprep.subr.bf16.mxu0 0
        %3071 = vmatpush1.bf16.msra.mxu0 0
        %3072 = vmatprep.subr.bf16.mxu0 0
        %3073 = vmatpush1.bf16.msra.mxu0 0
        %3074 = vmatprep.subr.bf16.mxu0 0
        %3075 = vmatpush1.bf16.msra.mxu0 0
        %3076 = vmatprep.subr.bf16.mxu0 0
        %3077 = vmatpush1.bf16.msra.mxu0 0
        %3078 = vmatprep.subr.bf16.mxu0 0
        %3079 = vmatpush1.bf16.msra.mxu0 0
        %3080 = vmatprep.subr.bf16.mxu0 0
        %3081 = vmatpush1.bf16.msra.mxu0 0
        %3082 = vmatprep.subr.bf16.mxu0 0
        %3083 = vmatpush1.bf16.msra.mxu0 0
        %3084 = vmatprep.mubr.bf16.mxu0 0
        %3085 = vmatmul.mubr.bf16.gmra.mrb[0].mxu0 %v2222
        %v3086 = vpop.f32.mrb[0].mxu0
        %v3087 = vadd.f32 %v3030, %v3086
        %v3088 = vpop.f32.mrb[0].mxu0
        %v3089 = vpop.f32.mrb[0].mxu0
        %v3090 = vadd.f32 %v3033, %v3089
        %v3091 = vpop.f32.mrb[0].mxu0
        %3092 = vmatprep.mubr.bf16.mxu0 0
        %3093 = vmatmul.mubr.bf16.gmra.mrb[0].mxu0 %v2293
        %v3094 = vpop.f32.mrb[0].mxu0
        %v3095 = vadd.f32 %v3038, %v3094
        %v3096 = vpop.f32.mrb[0].mxu0
        %v3097 = vpop.f32.mrb[0].mxu0
        %v3098 = vadd.f32 %v3041, %v3097
        %v3099 = vpop.f32.mrb[0].mxu0
        %3100 = vmatprep.mubr.bf16.mxu0 0
        %3101 = vmatmul.mubr.bf16.gmra.mrb[0].mxu0 %v2364
        %v3102 = vpop.f32.mrb[0].mxu0
        %v3103 = vadd.f32 %v3046, %v3102
        %v3104 = vpop.f32.mrb[0].mxu0
        %v3105 = vpop.f32.mrb[0].mxu0
        %v3106 = vadd.f32 %v3049, %v3105
        %v3107 = vpop.f32.mrb[0].mxu0
        %3108 = vdwg.mxu0
        %vm3109 = vcmp.ge.f32.partialorder %v3087, 0.0
        %vm3110 = vcmp.ge.f32.partialorder %v3090, 0.0
        %vm3111 = vcmp.ge.f32.partialorder %v3095, 0.0
        %vm3112 = vcmp.ge.f32.partialorder %v3098, 0.0
        %vm3113 = vcmp.ge.f32.partialorder %v3103, 0.0
        %vm3114 = vcmp.ge.f32.partialorder %v3106, 0.0
        %v3115 = vld [vmem:[#allocation9 + $0x1] sm:$0x1]
        %v3116 = vlaneseq
        %v3117 = vshrl.u32 %v3116, 7
        %v3118 = vsub.s32 0, %v3117
        %v3119 = vrot.slane %v3115, %v3118
        %v3120 = vmul.f32 %v3087, %v3119
        %v3121 = vmul.f32 %v3090, %v3119
        %v3122 = vmul.f32 %v3095, %v3119
        %v3123 = vmul.f32 %v3098, %v3119
        %v3124 = vmul.f32 %v3103, %v3119
        %v3125 = vmul.f32 %v3106, %v3119
        %v3126 = vsel %vm3109, %v3087, %v3120
        %v3127 = vsel %vm3110, %v3090, %v3121
        %v3128 = vsel %vm3111, %v3095, %v3122
        %v3129 = vsel %vm3112, %v3098, %v3123
        %v3130 = vsel %vm3113, %v3103, %v3124
        %v3131 = vsel %vm3114, %v3106, %v3125
        %v3132 = vpack.c.bf16 %v3127, %v3126
        %v3133 = vpack.c.bf16 %v3129, %v3128
        %v3134 = vpack.c.bf16 %v3131, %v3130
        %v3135 = vmul.bf16 %v3132, %v444
        %v3136 = vmul.bf16 %v3133, %v445
        %v3137 = vmul.bf16 %v3134, %v446
        %3138 = vst [vmem:[#allocation2 + $0x8] sm:$0xff] %v3135
        %3139 = vst [vmem:[#allocation2 + $0x10] sm:$0xff] %v3136
        %3140 = vst [vmem:[#allocation2 + $0x18] sm:$0xff] %v3137
        %v3141 = vld [vmem:[#allocation2] sm:$0xf8]
        %v3142 = vld [vmem:[#allocation2 + $0x8] sm:$0xff]
        %v3143 = vld [vmem:[#allocation2 + $0x10] sm:$0xff]
        %v3144 = vld [vmem:[#allocation2 + $0x18] sm:$0xf]
        %v3145 = vld [vmem:[#allocation2] sm:$0xf0]
        %v3146 = vld [vmem:[#allocation2 + $0x18] sm:$0x1f]
        %v3147 = vld [vmem:[#allocation2] sm:$0x80]
        %v3148 = vld [vmem:[#allocation2 + $0x18] sm:$0xff]
        %v3149 = vld [vmem:[#allocation2 + $0x8] sm:$0xff]
        %v3150 = vld [vmem:[#allocation2 + $0x10] sm:$0xff]
        %v3151 = vld [vmem:[#allocation2 + $0x18] sm:$0xff]
        %v3152 = vld [vmem:[#allocation2 + $0x20] sm:$0x1]
        %v3153 = vld [vmem:[#allocation2 + $0x8] sm:$0xf8]
        %v3154 = vld [vmem:[#allocation2 + $0x20] sm:$0xf]
        %v3155 = vld [vmem:[#allocation2 + $0x8] sm:$0xf0]
        %v3156 = vld [vmem:[#allocation2 + $0x20] sm:$0x1f]
        %v3158 = vshrl.u32 %v3145, 16
        %v3160 = vshll.u32 %v3145, 16
        %v3162 = vrot.slane %v3160, 1
        %v3163 = vor.u32 %v3158, %v3162
        %v3165 = vshll.u32 %v3142, 16
        %v3167 = vrot.slane %v3165, 1
        %v3168 = vsel %vm463, %v3163, %v3167
        %v3169 = vshrl.u32 %v3142, 16
        %v3171 = vor.u32 %v3169, %v3167
        %v3173 = vshll.u32 %v3143, 16
        %v3175 = vrot.slane %v3173, 1
        %v3176 = vsel %vm463, %v3171, %v3175
        %v3177 = vshrl.u32 %v3143, 16
        %v3179 = vor.u32 %v3177, %v3175
        %v3181 = vshll.u32 %v3144, 16
        %v3183 = vrot.slane %v3181, 1
        %v3184 = vsel %vm463, %v3179, %v3183
        %v3185 = vshrl.u32 %v3144, 16
        %v3187 = vor.u32 %v3185, %v3183
        %v3192 = vrot.slane %v3145, 1
        %v3193 = vrot.slane %v3142, 1
        %v3194 = vsel %vm499, %v3192, %v3193
        %v3195 = vrot.slane %v3143, 1
        %v3196 = vsel %vm499, %v3193, %v3195
        %v3197 = vrot.slane %v3146, 1
        %v3198 = vsel %vm499, %v3195, %v3197
        %v3201 = vrot.slane %v3147, 4
        %v3202 = vrot.slane %v3142, 4
        %v3203 = vsel %vm509, %v3201, %v3202
        %v3204 = vrot.slane %v3143, 4
        %v3205 = vsel %vm509, %v3202, %v3204
        %v3206 = vrot.slane %v3148, 4
        %v3207 = vsel %vm509, %v3204, %v3206
        %v3208 = vrot.slane %v3169, 4
        %v3209 = vrot.slane %v3165, 5
        %v3210 = vor.u32 %v3208, %v3209
        %v3211 = vrot.slane %v3177, 4
        %v3212 = vrot.slane %v3173, 5
        %v3213 = vor.u32 %v3211, %v3212
        %v3214 = vsel %vm517, %v3210, %v3213
        %v3216 = vshrl.u32 %v3148, 16
        %v3218 = vrot.slane %v3216, 4
        %v3219 = vshll.u32 %v3148, 16
        %v3221 = vrot.slane %v3219, 5
        %v3222 = vor.u32 %v3218, %v3221
        %v3223 = vsel %vm517, %v3213, %v3222
        %v3228 = vrot.slane %v3149, 5
        %v3229 = vrot.slane %v3150, 5
        %v3230 = vsel %vm538, %v3228, %v3229
        %v3231 = vrot.slane %v3151, 5
        %v3232 = vsel %vm538, %v3229, %v3231
        %v3233 = vrot.slane %v3152, 5
        %v3234 = vsel %vm538, %v3231, %v3233
        %v3236 = vshrl.u32 %v3155, 16
        %v3238 = vshll.u32 %v3155, 16
        %v3240 = vrot.slane %v3238, 1
        %v3241 = vor.u32 %v3236, %v3240
        %v3243 = vshll.u32 %v3150, 16
        %v3245 = vrot.slane %v3243, 1
        %v3246 = vsel %vm463, %v3241, %v3245
        %v3247 = vshrl.u32 %v3150, 16
        %v3249 = vor.u32 %v3247, %v3245
        %v3251 = vshll.u32 %v3151, 16
        %v3253 = vrot.slane %v3251, 1
        %v3254 = vsel %vm463, %v3249, %v3253
        %v3255 = vshrl.u32 %v3151, 16
        %v3257 = vor.u32 %v3255, %v3253
        %v3259 = vshll.u32 %v3154, 16
        %v3261 = vrot.slane %v3259, 1
        %v3262 = vsel %vm463, %v3257, %v3261
        %v3263 = vshrl.u32 %v3154, 16
        %v3265 = vor.u32 %v3263, %v3261
        %v3268 = vrot.slane %v3155, 1
        %v3269 = vrot.slane %v3150, 1
        %v3270 = vsel %vm499, %v3268, %v3269
        %v3271 = vrot.slane %v3151, 1
        %v3272 = vsel %vm499, %v3269, %v3271
        %v3273 = vrot.slane %v3156, 1
        %v3274 = vsel %vm499, %v3271, %v3273
        %v3275 = vld [vmem:[#allocation6 + $0x480] sm:$0xf]
        %v3276 = vld [vmem:[#allocation6 + $0x484] sm:$0xf]
        %v3277 = vld [vmem:[#allocation6 + $0x488] sm:$0xf]
        %v3278 = vld [vmem:[#allocation6 + $0x48c] sm:$0xf]
        %v3279 = vld [vmem:[#allocation6 + $0x490] sm:$0xf]
        %v3280 = vld [vmem:[#allocation6 + $0x494] sm:$0xf]
        %v3281 = vld [vmem:[#allocation6 + $0x498] sm:$0xf]
        %v3282 = vld [vmem:[#allocation6 + $0x49c] sm:$0xf]
        %v3283 = vld [vmem:[#allocation6 + $0x4a0] sm:$0xf]
        %v3284 = vld [vmem:[#allocation6 + $0x4a4] sm:$0xf]
        %v3285 = vld [vmem:[#allocation6 + $0x4a8] sm:$0xf]
        %v3286 = vld [vmem:[#allocation6 + $0x4ac] sm:$0xf]
        %v3287 = vld [vmem:[#allocation6 + $0x4b0] sm:$0xf]
        %v3288 = vld [vmem:[#allocation6 + $0x4b4] sm:$0xf]
        %v3289 = vld [vmem:[#allocation6 + $0x4b8] sm:$0xf]
        %v3290 = vld [vmem:[#allocation6 + $0x4bc] sm:$0xf]
        %v3291 = vld [vmem:[#allocation6 + $0x4c0] sm:$0xf]
        %v3292 = vld [vmem:[#allocation6 + $0x4c4] sm:$0xf]
        %v3293 = vld [vmem:[#allocation6 + $0x4c8] sm:$0xf]
        %v3294 = vld [vmem:[#allocation6 + $0x4cc] sm:$0xf]
        %v3295 = vld [vmem:[#allocation6 + $0x4d0] sm:$0xf]
        %v3296 = vld [vmem:[#allocation6 + $0x4d4] sm:$0xf]
        %v3297 = vld [vmem:[#allocation6 + $0x4d8] sm:$0xf]
        %v3298 = vld [vmem:[#allocation6 + $0x4dc] sm:$0xf]
        %v3299 = vld [vmem:[#allocation6 + $0x4e0] sm:$0xf]
        %v3300 = vld [vmem:[#allocation6 + $0x4e4] sm:$0xf]
        %v3301 = vld [vmem:[#allocation6 + $0x4e8] sm:$0xf]
        %v3302 = vld [vmem:[#allocation6 + $0x4ec] sm:$0xf]
        %v3303 = vld [vmem:[#allocation6 + $0x4f0] sm:$0xf]
        %v3304 = vld [vmem:[#allocation6 + $0x4f4] sm:$0xf]
        %v3305 = vld [vmem:[#allocation6 + $0x4f8] sm:$0xf]
        %v3306 = vld [vmem:[#allocation6 + $0x4fc] sm:$0xf]
        %v3307 = vld [vmem:[#allocation6 + $0x500] sm:$0xf]
        %v3308 = vld [vmem:[#allocation6 + $0x504] sm:$0xf]
        %v3309 = vld [vmem:[#allocation6 + $0x508] sm:$0xf]
        %v3310 = vld [vmem:[#allocation6 + $0x50c] sm:$0xf]
        %v3311 = vld [vmem:[#allocation6 + $0x510] sm:$0xf]
        %v3312 = vld [vmem:[#allocation6 + $0x514] sm:$0xf]
        %v3313 = vld [vmem:[#allocation6 + $0x518] sm:$0xf]
        %v3314 = vld [vmem:[#allocation6 + $0x51c] sm:$0xf]
        %v3315 = vld [vmem:[#allocation6 + $0x520] sm:$0xf]
        %v3316 = vld [vmem:[#allocation6 + $0x524] sm:$0xf]
        %v3317 = vld [vmem:[#allocation6 + $0x528] sm:$0xf]
        %v3318 = vld [vmem:[#allocation6 + $0x52c] sm:$0xf]
        %v3319 = vld [vmem:[#allocation6 + $0x530] sm:$0xf]
        %v3320 = vld [vmem:[#allocation6 + $0x534] sm:$0xf]
        %v3321 = vld [vmem:[#allocation6 + $0x538] sm:$0xf]
        %v3322 = vld [vmem:[#allocation6 + $0x53c] sm:$0xf]
        %v3323 = vld [vmem:[#allocation6 + $0x540] sm:$0xf]
        %v3324 = vld [vmem:[#allocation6 + $0x544] sm:$0xf]
        %v3325 = vld [vmem:[#allocation6 + $0x548] sm:$0xf]
        %v3326 = vld [vmem:[#allocation6 + $0x54c] sm:$0xf]
        %v3327 = vld [vmem:[#allocation6 + $0x550] sm:$0xf]
        %v3328 = vld [vmem:[#allocation6 + $0x554] sm:$0xf]
        %v3329 = vld [vmem:[#allocation6 + $0x558] sm:$0xf]
        %v3330 = vld [vmem:[#allocation6 + $0x55c] sm:$0xf]
        %v3331 = vld [vmem:[#allocation6 + $0x560] sm:$0xf]
        %v3332 = vld [vmem:[#allocation6 + $0x564] sm:$0xf]
        %v3333 = vld [vmem:[#allocation6 + $0x568] sm:$0xf]
        %v3334 = vld [vmem:[#allocation6 + $0x56c] sm:$0xf]
        %v3335 = vld [vmem:[#allocation6 + $0x570] sm:$0xf]
        %v3336 = vld [vmem:[#allocation6 + $0x574] sm:$0xf]
        %v3337 = vld [vmem:[#allocation6 + $0x578] sm:$0xf]
        %v3338 = vld [vmem:[#allocation6 + $0x57c] sm:$0xf]
        %v3339 = vld [vmem:[#allocation6 + $0x580] sm:$0xf]
        %v3340 = vld [vmem:[#allocation6 + $0x584] sm:$0xf]
        %v3341 = vld [vmem:[#allocation6 + $0x588] sm:$0xf]
        %v3342 = vld [vmem:[#allocation6 + $0x58c] sm:$0xf]
        %v3343 = vld [vmem:[#allocation6 + $0x590] sm:$0xf]
        %v3344 = vld [vmem:[#allocation6 + $0x594] sm:$0xf]
        %v3345 = vld [vmem:[#allocation6 + $0x598] sm:$0xf]
        %v3346 = vld [vmem:[#allocation6 + $0x59c] sm:$0xf]
        %v3347 = vld [vmem:[#allocation6 + $0x5a0] sm:$0xf]
        %v3348 = vld [vmem:[#allocation6 + $0x5a4] sm:$0xf]
        %v3349 = vld [vmem:[#allocation6 + $0x5a8] sm:$0xf]
        %v3350 = vld [vmem:[#allocation6 + $0x5ac] sm:$0xf]
        %v3351 = vld [vmem:[#allocation6 + $0x5b0] sm:$0xf]
        %v3352 = vld [vmem:[#allocation6 + $0x5b4] sm:$0xf]
        %v3353 = vld [vmem:[#allocation6 + $0x5b8] sm:$0xf]
        %v3354 = vld [vmem:[#allocation6 + $0x5bc] sm:$0xf]
        %v3355 = vld [vmem:[#allocation6 + $0x5c0] sm:$0xf]
        %v3356 = vld [vmem:[#allocation6 + $0x5c4] sm:$0xf]
        %v3357 = vld [vmem:[#allocation6 + $0x5c8] sm:$0xf]
        %v3358 = vld [vmem:[#allocation6 + $0x5cc] sm:$0xf]
        %v3359 = vld [vmem:[#allocation6 + $0x5d0] sm:$0xf]
        %v3360 = vld [vmem:[#allocation6 + $0x5d4] sm:$0xf]
        %v3361 = vld [vmem:[#allocation6 + $0x5d8] sm:$0xf]
        %v3362 = vld [vmem:[#allocation6 + $0x5dc] sm:$0xf]
        %v3363 = vld [vmem:[#allocation6 + $0x5e0] sm:$0xf]
        %v3364 = vld [vmem:[#allocation6 + $0x5e4] sm:$0xf]
        %v3365 = vld [vmem:[#allocation6 + $0x5e8] sm:$0xf]
        %v3366 = vld [vmem:[#allocation6 + $0x5ec] sm:$0xf]
        %v3367 = vld [vmem:[#allocation6 + $0x5f0] sm:$0xf]
        %v3368 = vld [vmem:[#allocation6 + $0x5f4] sm:$0xf]
        %v3369 = vld [vmem:[#allocation6 + $0x5f8] sm:$0xf]
        %v3370 = vld [vmem:[#allocation6 + $0x5fc] sm:$0xf]
        %v3371 = vld [vmem:[#allocation6 + $0x600] sm:$0xf]
        %v3372 = vld [vmem:[#allocation6 + $0x604] sm:$0xf]
        %v3373 = vld [vmem:[#allocation6 + $0x608] sm:$0xf]
        %v3374 = vld [vmem:[#allocation6 + $0x60c] sm:$0xf]
        %v3375 = vld [vmem:[#allocation6 + $0x610] sm:$0xf]
        %v3376 = vld [vmem:[#allocation6 + $0x614] sm:$0xf]
        %v3377 = vld [vmem:[#allocation6 + $0x618] sm:$0xf]
        %v3378 = vld [vmem:[#allocation6 + $0x61c] sm:$0xf]
        %v3379 = vld [vmem:[#allocation6 + $0x620] sm:$0xf]
        %v3380 = vld [vmem:[#allocation6 + $0x624] sm:$0xf]
        %v3381 = vld [vmem:[#allocation6 + $0x628] sm:$0xf]
        %v3382 = vld [vmem:[#allocation6 + $0x62c] sm:$0xf]
        %v3383 = vld [vmem:[#allocation6 + $0x630] sm:$0xf]
        %v3384 = vld [vmem:[#allocation6 + $0x634] sm:$0xf]
        %v3385 = vld [vmem:[#allocation6 + $0x638] sm:$0xf]
        %v3386 = vld [vmem:[#allocation6 + $0x63c] sm:$0xf]
        %v3387 = vld [vmem:[#allocation6 + $0x640] sm:$0xf]
        %v3388 = vld [vmem:[#allocation6 + $0x644] sm:$0xf]
        %v3389 = vld [vmem:[#allocation6 + $0x648] sm:$0xf]
        %v3390 = vld [vmem:[#allocation6 + $0x64c] sm:$0xf]
        %v3391 = vld [vmem:[#allocation6 + $0x650] sm:$0xf]
        %v3392 = vld [vmem:[#allocation6 + $0x654] sm:$0xf]
        %v3393 = vld [vmem:[#allocation6 + $0x658] sm:$0xf]
        %v3394 = vld [vmem:[#allocation6 + $0x65c] sm:$0xf]
        %v3395 = vld [vmem:[#allocation6 + $0x660] sm:$0xf]
        %v3396 = vld [vmem:[#allocation6 + $0x664] sm:$0xf]
        %v3397 = vld [vmem:[#allocation6 + $0x668] sm:$0xf]
        %v3398 = vld [vmem:[#allocation6 + $0x66c] sm:$0xf]
        %v3399 = vld [vmem:[#allocation6 + $0x670] sm:$0xf]
        %v3400 = vld [vmem:[#allocation6 + $0x674] sm:$0xf]
        %v3401 = vld [vmem:[#allocation6 + $0x678] sm:$0xf]
        %v3402 = vld [vmem:[#allocation6 + $0x67c] sm:$0xf]
        %v3403 = vld [vmem:[#allocation6 + $0x680] sm:$0xf]
        %v3404 = vld [vmem:[#allocation6 + $0x684] sm:$0xf]
        %v3405 = vld [vmem:[#allocation6 + $0x688] sm:$0xf]
        %v3406 = vld [vmem:[#allocation6 + $0x68c] sm:$0xf]
        %v3407 = vld [vmem:[#allocation6 + $0x690] sm:$0xf]
        %v3408 = vld [vmem:[#allocation6 + $0x694] sm:$0xf]
        %v3409 = vld [vmem:[#allocation6 + $0x698] sm:$0xf]
        %v3410 = vld [vmem:[#allocation6 + $0x69c] sm:$0xf]
        %v3411 = vld [vmem:[#allocation6 + $0x6a0] sm:$0xf]
        %v3412 = vld [vmem:[#allocation6 + $0x6a4] sm:$0xf]
        %v3413 = vld [vmem:[#allocation6 + $0x6a8] sm:$0xf]
        %v3414 = vld [vmem:[#allocation6 + $0x6ac] sm:$0xf]
        %v3415 = vld [vmem:[#allocation6 + $0x6b0] sm:$0xf]
        %v3416 = vld [vmem:[#allocation6 + $0x6b4] sm:$0xf]
        %v3417 = vld [vmem:[#allocation6 + $0x6b8] sm:$0xf]
        %v3418 = vld [vmem:[#allocation6 + $0x6bc] sm:$0xf]
        %v3419 = vld [vmem:[#allocation8 + $0x2] sm:$0x1]
        %v3420 = vlaneseq
        %v3421 = vshrl.u32 %v3420, 7
        %v3422 = vsub.s32 0, %v3421
        %v3423 = vrot.slane %v3419, %v3422
        %v3425 = vshrl.u32 %v3141, 16
        %v3427 = vrot.slane %v3425, 3
        %v3428 = vshll.u32 %v3141, 16
        %v3430 = vrot.slane %v3428, 4
        %v3431 = vor.u32 %v3427, %v3430
        %v3432 = vrot.slane %v3169, 3
        %v3433 = vrot.slane %v3165, 4
        %v3434 = vor.u32 %v3432, %v3433
        %v3435 = vsel %vm735, %v3431, %v3434
        %v3437 = vshrl.u32 %v3168, 16
        %v3439 = vrot.slane %v3437, 3
        %v3440 = vshll.u32 %v3168, 16
        %v3442 = vrot.slane %v3440, 4
        %v3443 = vor.u32 %v3439, %v3442
        %v3445 = vshrl.u32 %v3176, 16
        %v3447 = vrot.slane %v3445, 3
        %v3448 = vshll.u32 %v3176, 16
        %v3450 = vrot.slane %v3448, 4
        %v3451 = vor.u32 %v3447, %v3450
        %v3452 = vsel %vm735, %v3443, %v3451
        %v3454 = vshrl.u32 %v3194, 16
        %v3456 = vrot.slane %v3454, 3
        %v3457 = vshll.u32 %v3194, 16
        %v3459 = vrot.slane %v3457, 4
        %v3460 = vor.u32 %v3456, %v3459
        %v3462 = vshrl.u32 %v3196, 16
        %v3464 = vrot.slane %v3462, 3
        %v3465 = vshll.u32 %v3196, 16
        %v3467 = vrot.slane %v3465, 4
        %v3468 = vor.u32 %v3464, %v3467
        %v3469 = vsel %vm735, %v3460, %v3468
        %v3471 = vshrl.u32 %v3203, 16
        %v3473 = vrot.slane %v3471, 3
        %v3474 = vshll.u32 %v3203, 16
        %v3476 = vrot.slane %v3474, 4
        %v3477 = vor.u32 %v3473, %v3476
        %v3479 = vshrl.u32 %v3205, 16
        %v3481 = vrot.slane %v3479, 3
        %v3482 = vshll.u32 %v3205, 16
        %v3484 = vrot.slane %v3482, 4
        %v3485 = vor.u32 %v3481, %v3484
        %v3486 = vsel %vm735, %v3477, %v3485
        %v3488 = vshrl.u32 %v3210, 16
        %v3490 = vrot.slane %v3488, 3
        %v3491 = vshll.u32 %v3210, 16
        %v3493 = vrot.slane %v3491, 4
        %v3494 = vor.u32 %v3490, %v3493
        %v3496 = vshrl.u32 %v3214, 16
        %v3498 = vrot.slane %v3496, 3
        %v3499 = vshll.u32 %v3214, 16
        %v3501 = vrot.slane %v3499, 4
        %v3502 = vor.u32 %v3498, %v3501
        %v3503 = vsel %vm735, %v3494, %v3502
        %v3505 = vshrl.u32 %v3228, 16
        %v3507 = vrot.slane %v3505, 3
        %v3508 = vshll.u32 %v3228, 16
        %v3510 = vrot.slane %v3508, 4
        %v3511 = vor.u32 %v3507, %v3510
        %v3513 = vshrl.u32 %v3230, 16
        %v3515 = vrot.slane %v3513, 3
        %v3516 = vshll.u32 %v3230, 16
        %v3518 = vrot.slane %v3516, 4
        %v3519 = vor.u32 %v3515, %v3518
        %v3520 = vsel %vm735, %v3511, %v3519
        %v3522 = vshrl.u32 %v3153, 16
        %v3524 = vrot.slane %v3522, 3
        %v3525 = vshll.u32 %v3153, 16
        %v3527 = vrot.slane %v3525, 4
        %v3528 = vor.u32 %v3524, %v3527
        %v3529 = vrot.slane %v3247, 3
        %v3530 = vrot.slane %v3243, 4
        %v3531 = vor.u32 %v3529, %v3530
        %v3532 = vsel %vm735, %v3528, %v3531
        %v3534 = vshrl.u32 %v3246, 16
        %v3536 = vrot.slane %v3534, 3
        %v3537 = vshll.u32 %v3246, 16
        %v3539 = vrot.slane %v3537, 4
        %v3540 = vor.u32 %v3536, %v3539
        %v3542 = vshrl.u32 %v3254, 16
        %v3544 = vrot.slane %v3542, 3
        %v3545 = vshll.u32 %v3254, 16
        %v3547 = vrot.slane %v3545, 4
        %v3548 = vor.u32 %v3544, %v3547
        %v3549 = vsel %vm735, %v3540, %v3548
        %v3551 = vshrl.u32 %v3270, 16
        %v3553 = vrot.slane %v3551, 3
        %v3554 = vshll.u32 %v3270, 16
        %v3556 = vrot.slane %v3554, 4
        %v3557 = vor.u32 %v3553, %v3556
        %v3559 = vshrl.u32 %v3272, 16
        %v3561 = vrot.slane %v3559, 3
        %v3562 = vshll.u32 %v3272, 16
        %v3564 = vrot.slane %v3562, 4
        %v3565 = vor.u32 %v3561, %v3564
        %v3566 = vsel %vm735, %v3557, %v3565
        %v3567 = vrot.slane %v3177, 3
        %v3568 = vrot.slane %v3173, 4
        %v3569 = vor.u32 %v3567, %v3568
        %v3570 = vsel %vm735, %v3434, %v3569
        %v3572 = vshrl.u32 %v3184, 16
        %v3574 = vrot.slane %v3572, 3
        %v3575 = vshll.u32 %v3184, 16
        %v3577 = vrot.slane %v3575, 4
        %v3578 = vor.u32 %v3574, %v3577
        %v3579 = vsel %vm735, %v3451, %v3578
        %v3581 = vshrl.u32 %v3198, 16
        %v3583 = vrot.slane %v3581, 3
        %v3584 = vshll.u32 %v3198, 16
        %v3586 = vrot.slane %v3584, 4
        %v3587 = vor.u32 %v3583, %v3586
        %v3588 = vsel %vm735, %v3468, %v3587
        %v3590 = vshrl.u32 %v3207, 16
        %v3592 = vrot.slane %v3590, 3
        %v3593 = vshll.u32 %v3207, 16
        %v3595 = vrot.slane %v3593, 4
        %v3596 = vor.u32 %v3592, %v3595
        %v3597 = vsel %vm735, %v3485, %v3596
        %v3599 = vshrl.u32 %v3223, 16
        %v3601 = vrot.slane %v3599, 3
        %v3602 = vshll.u32 %v3223, 16
        %v3604 = vrot.slane %v3602, 4
        %v3605 = vor.u32 %v3601, %v3604
        %v3606 = vsel %vm735, %v3502, %v3605
        %v3608 = vshrl.u32 %v3232, 16
        %v3610 = vrot.slane %v3608, 3
        %v3611 = vshll.u32 %v3232, 16
        %v3613 = vrot.slane %v3611, 4
        %v3614 = vor.u32 %v3610, %v3613
        %v3615 = vsel %vm735, %v3519, %v3614
        %v3616 = vrot.slane %v3255, 3
        %v3617 = vrot.slane %v3251, 4
        %v3618 = vor.u32 %v3616, %v3617
        %v3619 = vsel %vm735, %v3531, %v3618
        %v3621 = vshrl.u32 %v3262, 16
        %v3623 = vrot.slane %v3621, 3
        %v3624 = vshll.u32 %v3262, 16
        %v3626 = vrot.slane %v3624, 4
        %v3627 = vor.u32 %v3623, %v3626
        %v3628 = vsel %vm735, %v3548, %v3627
        %v3630 = vshrl.u32 %v3274, 16
        %v3632 = vrot.slane %v3630, 3
        %v3633 = vshll.u32 %v3274, 16
        %v3635 = vrot.slane %v3633, 4
        %v3636 = vor.u32 %v3632, %v3635
        %v3637 = vsel %vm735, %v3565, %v3636
        %v3638 = vrot.slane %v3185, 3
        %v3639 = vrot.slane %v3181, 4
        %v3640 = vor.u32 %v3638, %v3639
        %v3641 = vsel %vm735, %v3569, %v3640
        %v3643 = vshrl.u32 %v3187, 16
        %v3645 = vrot.slane %v3643, 3
        %v3646 = vshll.u32 %v3187, 16
        %v3648 = vrot.slane %v3646, 4
        %v3649 = vor.u32 %v3645, %v3648
        %v3650 = vsel %vm735, %v3578, %v3649
        %v3652 = vshrl.u32 %v3197, 16
        %v3654 = vrot.slane %v3652, 3
        %v3655 = vshll.u32 %v3197, 16
        %v3657 = vrot.slane %v3655, 4
        %v3658 = vor.u32 %v3654, %v3657
        %v3659 = vsel %vm735, %v3587, %v3658
        %v3661 = vshrl.u32 %v3206, 16
        %v3663 = vrot.slane %v3661, 3
        %v3664 = vshll.u32 %v3206, 16
        %v3666 = vrot.slane %v3664, 4
        %v3667 = vor.u32 %v3663, %v3666
        %v3668 = vsel %vm735, %v3596, %v3667
        %v3670 = vshrl.u32 %v3222, 16
        %v3672 = vrot.slane %v3670, 3
        %v3673 = vshll.u32 %v3222, 16
        %v3675 = vrot.slane %v3673, 4
        %v3676 = vor.u32 %v3672, %v3675
        %v3677 = vsel %vm735, %v3605, %v3676
        %v3679 = vshrl.u32 %v3234, 16
        %v3681 = vrot.slane %v3679, 3
        %v3682 = vshll.u32 %v3234, 16
        %v3684 = vrot.slane %v3682, 4
        %v3685 = vor.u32 %v3681, %v3684
        %v3686 = vsel %vm735, %v3614, %v3685
        %v3687 = vrot.slane %v3263, 3
        %v3688 = vrot.slane %v3259, 4
        %v3689 = vor.u32 %v3687, %v3688
        %v3690 = vsel %vm735, %v3618, %v3689
        %v3692 = vshrl.u32 %v3265, 16
        %v3694 = vrot.slane %v3692, 3
        %v3695 = vshll.u32 %v3265, 16
        %v3697 = vrot.slane %v3695, 4
        %v3698 = vor.u32 %v3694, %v3697
        %v3699 = vsel %vm735, %v3627, %v3698
        %v3701 = vshrl.u32 %v3273, 16
        %v3703 = vrot.slane %v3701, 3
        %v3704 = vshll.u32 %v3273, 16
        %v3706 = vrot.slane %v3704, 4
        %v3707 = vor.u32 %v3703, %v3706
        %v3708 = vsel %vm735, %v3636, %v3707
        %v3880 = vunpack.c.l.b16 %v3275
        %v3881 = vunpack.c.l.b16 %v3276
        %v3882 = vunpack.c.l.b16 %v3277
        %v3883 = vunpack.c.l.b16 %v3278
        %v3884 = vunpack.c.l.b16 %v3279
        %v3885 = vunpack.c.l.b16 %v3280
        %v3886 = vunpack.c.l.b16 %v3281
        %v3887 = vunpack.c.l.b16 %v3282
        %v3888 = vunpack.c.l.b16 %v3283
        %v3889 = vunpack.c.l.b16 %v3284
        %v3890 = vunpack.c.l.b16 %v3285
        %v3891 = vunpack.c.l.b16 %v3286
        %v3892 = vunpack.c.l.b16 %v3287
        %v3893 = vunpack.c.l.b16 %v3288
        %v3894 = vunpack.c.l.b16 %v3289
        %v3895 = vunpack.c.l.b16 %v3290
        %v3896 = vunpack.c.l.b16 %v3291
        %v3897 = vunpack.c.l.b16 %v3292
        %v3898 = vunpack.c.l.b16 %v3293
        %v3899 = vunpack.c.l.b16 %v3294
        %v3900 = vunpack.c.l.b16 %v3295
        %v3901 = vunpack.c.l.b16 %v3296
        %v3902 = vunpack.c.l.b16 %v3297
        %v3903 = vunpack.c.l.b16 %v3298
        %v3904 = vunpack.c.l.b16 %v3299
        %v3905 = vunpack.c.l.b16 %v3300
        %v3906 = vunpack.c.l.b16 %v3301
        %v3907 = vunpack.c.l.b16 %v3302
        %v3908 = vunpack.c.l.b16 %v3303
        %v3909 = vunpack.c.l.b16 %v3304
        %v3910 = vunpack.c.l.b16 %v3305
        %v3911 = vunpack.c.l.b16 %v3306
        %v3912 = vunpack.c.l.b16 %v3307
        %v3913 = vunpack.c.l.b16 %v3308
        %v3914 = vunpack.c.l.b16 %v3309
        %v3915 = vunpack.c.l.b16 %v3310
        %v3916 = vunpack.c.l.b16 %v3311
        %v3917 = vunpack.c.l.b16 %v3312
        %v3918 = vunpack.c.l.b16 %v3313
        %v3919 = vunpack.c.l.b16 %v3314
        %v3920 = vunpack.c.l.b16 %v3315
        %v3921 = vunpack.c.l.b16 %v3316
        %v3922 = vunpack.c.l.b16 %v3317
        %v3923 = vunpack.c.l.b16 %v3318
        %v3924 = vunpack.c.l.b16 %v3319
        %v3925 = vunpack.c.l.b16 %v3320
        %v3926 = vunpack.c.l.b16 %v3321
        %v3927 = vunpack.c.l.b16 %v3322
        %v3928 = vunpack.c.l.b16 %v3323
        %v3929 = vunpack.c.l.b16 %v3324
        %v3930 = vunpack.c.l.b16 %v3325
        %v3931 = vunpack.c.l.b16 %v3326
        %v3932 = vunpack.c.l.b16 %v3327
        %v3933 = vunpack.c.l.b16 %v3328
        %v3934 = vunpack.c.l.b16 %v3329
        %v3935 = vunpack.c.l.b16 %v3330
        %v3936 = vunpack.c.l.b16 %v3331
        %v3937 = vunpack.c.l.b16 %v3332
        %v3938 = vunpack.c.l.b16 %v3333
        %v3939 = vunpack.c.l.b16 %v3334
        %v3940 = vunpack.c.l.b16 %v3335
        %v3941 = vunpack.c.l.b16 %v3336
        %v3942 = vunpack.c.l.b16 %v3337
        %v3943 = vunpack.c.l.b16 %v3338
        %v3944 = vunpack.c.l.b16 %v3339
        %v3945 = vunpack.c.l.b16 %v3340
        %v3946 = vunpack.c.l.b16 %v3341
        %v3947 = vunpack.c.l.b16 %v3342
        %v3948 = vunpack.c.l.b16 %v3343
        %v3949 = vunpack.c.l.b16 %v3344
        %v3950 = vunpack.c.l.b16 %v3345
        %v3951 = vunpack.c.l.b16 %v3346
        %v3952 = vunpack.c.l.b16 %v3347
        %v3953 = vunpack.c.l.b16 %v3348
        %v3954 = vunpack.c.l.b16 %v3349
        %v3955 = vunpack.c.l.b16 %v3350
        %v3956 = vunpack.c.l.b16 %v3351
        %v3957 = vunpack.c.l.b16 %v3352
        %v3958 = vunpack.c.l.b16 %v3353
        %v3959 = vunpack.c.l.b16 %v3354
        %v3960 = vunpack.c.l.b16 %v3355
        %v3961 = vunpack.c.l.b16 %v3356
        %v3962 = vunpack.c.l.b16 %v3357
        %v3963 = vunpack.c.l.b16 %v3358
        %v3964 = vunpack.c.l.b16 %v3359
        %v3965 = vunpack.c.l.b16 %v3360
        %v3966 = vunpack.c.l.b16 %v3361
        %v3967 = vunpack.c.l.b16 %v3362
        %v3968 = vunpack.c.l.b16 %v3363
        %v3969 = vunpack.c.l.b16 %v3364
        %v3970 = vunpack.c.l.b16 %v3365
        %v3971 = vunpack.c.l.b16 %v3366
        %v3972 = vunpack.c.l.b16 %v3367
        %v3973 = vunpack.c.l.b16 %v3368
        %v3974 = vunpack.c.l.b16 %v3369
        %v3975 = vunpack.c.l.b16 %v3370
        %v3976 = vunpack.c.l.b16 %v3371
        %v3977 = vunpack.c.l.b16 %v3372
        %v3978 = vunpack.c.l.b16 %v3373
        %v3979 = vunpack.c.l.b16 %v3374
        %v3980 = vunpack.c.l.b16 %v3375
        %v3981 = vunpack.c.l.b16 %v3376
        %v3982 = vunpack.c.l.b16 %v3377
        %v3983 = vunpack.c.l.b16 %v3378
        %v3984 = vunpack.c.l.b16 %v3379
        %v3985 = vunpack.c.l.b16 %v3380
        %v3986 = vunpack.c.l.b16 %v3381
        %v3987 = vunpack.c.l.b16 %v3382
        %v3988 = vunpack.c.l.b16 %v3383
        %v3989 = vunpack.c.l.b16 %v3384
        %v3990 = vunpack.c.l.b16 %v3385
        %v3991 = vunpack.c.l.b16 %v3386
        %v3992 = vunpack.c.l.b16 %v3387
        %v3993 = vunpack.c.l.b16 %v3388
        %v3994 = vunpack.c.l.b16 %v3389
        %v3995 = vunpack.c.l.b16 %v3390
        %v3996 = vunpack.c.l.b16 %v3391
        %v3997 = vunpack.c.l.b16 %v3392
        %v3998 = vunpack.c.l.b16 %v3393
        %v3999 = vunpack.c.l.b16 %v3394
        %v4000 = vunpack.c.l.b16 %v3395
        %v4001 = vunpack.c.l.b16 %v3396
        %v4002 = vunpack.c.l.b16 %v3397
        %v4003 = vunpack.c.l.b16 %v3398
        %v4004 = vunpack.c.l.b16 %v3399
        %v4005 = vunpack.c.l.b16 %v3400
        %v4006 = vunpack.c.l.b16 %v3401
        %v4007 = vunpack.c.l.b16 %v3402
        %v4008 = vunpack.c.l.b16 %v3403
        %v4009 = vunpack.c.l.b16 %v3404
        %v4010 = vunpack.c.l.b16 %v3405
        %v4011 = vunpack.c.l.b16 %v3406
        %v4012 = vunpack.c.l.b16 %v3407
        %v4013 = vunpack.c.l.b16 %v3408
        %v4014 = vunpack.c.l.b16 %v3409
        %v4015 = vunpack.c.l.b16 %v3410
        %v4016 = vunpack.c.l.b16 %v3411
        %v4017 = vunpack.c.l.b16 %v3412
        %v4018 = vunpack.c.l.b16 %v3413
        %v4019 = vunpack.c.l.b16 %v3414
        %v4020 = vunpack.c.l.b16 %v3415
        %v4021 = vunpack.c.l.b16 %v3416
        %v4022 = vunpack.c.l.b16 %v3417
        %v4023 = vunpack.c.l.b16 %v3418
        %v4024 = vpack.c.b16 %v3881, %v3880
        %v4025 = vpack.c.b16 %v3883, %v3882
        %v4026 = vpack.c.b16 %v3885, %v3884
        %v4027 = vpack.c.b16 %v3887, %v3886
        %v4028 = vpack.c.b16 %v3889, %v3888
        %v4029 = vpack.c.b16 %v3891, %v3890
        %v4030 = vpack.c.b16 %v3893, %v3892
        %v4031 = vpack.c.b16 %v3895, %v3894
        %v4032 = vpack.c.b16 %v3897, %v3896
        %v4033 = vpack.c.b16 %v3899, %v3898
        %v4034 = vpack.c.b16 %v3901, %v3900
        %v4035 = vpack.c.b16 %v3903, %v3902
        %v4036 = vpack.c.b16 %v3905, %v3904
        %v4037 = vpack.c.b16 %v3907, %v3906
        %v4038 = vpack.c.b16 %v3909, %v3908
        %v4039 = vpack.c.b16 %v3911, %v3910
        %v4040 = vpack.c.b16 %v3913, %v3912
        %v4041 = vpack.c.b16 %v3915, %v3914
        %v4042 = vpack.c.b16 %v3917, %v3916
        %v4043 = vpack.c.b16 %v3919, %v3918
        %v4044 = vpack.c.b16 %v3921, %v3920
        %v4045 = vpack.c.b16 %v3923, %v3922
        %v4046 = vpack.c.b16 %v3925, %v3924
        %v4047 = vpack.c.b16 %v3927, %v3926
        %v4048 = vpack.c.b16 %v3929, %v3928
        %v4049 = vpack.c.b16 %v3931, %v3930
        %v4050 = vpack.c.b16 %v3933, %v3932
        %v4051 = vpack.c.b16 %v3935, %v3934
        %v4052 = vpack.c.b16 %v3937, %v3936
        %v4053 = vpack.c.b16 %v3939, %v3938
        %v4054 = vpack.c.b16 %v3941, %v3940
        %v4055 = vpack.c.b16 %v3943, %v3942
        %v4056 = vpack.c.b16 %v3945, %v3944
        %v4057 = vpack.c.b16 %v3947, %v3946
        %v4058 = vpack.c.b16 %v3949, %v3948
        %v4059 = vpack.c.b16 %v3951, %v3950
        %v4060 = vpack.c.b16 %v3953, %v3952
        %v4061 = vpack.c.b16 %v3955, %v3954
        %v4062 = vpack.c.b16 %v3957, %v3956
        %v4063 = vpack.c.b16 %v3959, %v3958
        %v4064 = vpack.c.b16 %v3961, %v3960
        %v4065 = vpack.c.b16 %v3963, %v3962
        %v4066 = vpack.c.b16 %v3965, %v3964
        %v4067 = vpack.c.b16 %v3967, %v3966
        %v4068 = vpack.c.b16 %v3969, %v3968
        %v4069 = vpack.c.b16 %v3971, %v3970
        %v4070 = vpack.c.b16 %v3973, %v3972
        %v4071 = vpack.c.b16 %v3975, %v3974
        %v4072 = vpack.c.b16 %v3977, %v3976
        %v4073 = vpack.c.b16 %v3979, %v3978
        %v4074 = vpack.c.b16 %v3981, %v3980
        %v4075 = vpack.c.b16 %v3983, %v3982
        %v4076 = vpack.c.b16 %v3985, %v3984
        %v4077 = vpack.c.b16 %v3987, %v3986
        %v4078 = vpack.c.b16 %v3989, %v3988
        %v4079 = vpack.c.b16 %v3991, %v3990
        %v4080 = vpack.c.b16 %v3993, %v3992
        %v4081 = vpack.c.b16 %v3995, %v3994
        %v4082 = vpack.c.b16 %v3997, %v3996
        %v4083 = vpack.c.b16 %v3999, %v3998
        %v4084 = vpack.c.b16 %v4001, %v4000
        %v4085 = vpack.c.b16 %v4003, %v4002
        %v4086 = vpack.c.b16 %v4005, %v4004
        %v4087 = vpack.c.b16 %v4007, %v4006
        %v4088 = vpack.c.b16 %v4009, %v4008
        %v4089 = vpack.c.b16 %v4011, %v4010
        %v4090 = vpack.c.b16 %v4013, %v4012
        %v4091 = vpack.c.b16 %v4015, %v4014
        %v4092 = vpack.c.b16 %v4017, %v4016
        %v4093 = vpack.c.b16 %v4019, %v4018
        %v4094 = vpack.c.b16 %v4021, %v4020
        %v4095 = vpack.c.b16 %v4023, %v4022
        %4168 = vmatprep.subr.bf16.mxu0 0
        %4169 = vmatpush1.bf16.msra.mxu0 %v4024
        %4170 = vmatprep.subr.bf16.mxu0 0
        %4171 = vmatpush1.bf16.msra.mxu0 %v4025
        %4172 = vmatprep.subr.bf16.mxu0 0
        %4173 = vmatpush1.bf16.msra.mxu0 %v4026
        %4174 = vmatprep.subr.bf16.mxu0 0
        %4175 = vmatpush1.bf16.msra.mxu0 %v4027
        %4176 = vmatprep.subr.bf16.mxu0 0
        %4177 = vmatpush1.bf16.msra.mxu0 %v4028
        %4178 = vmatprep.subr.bf16.mxu0 0
        %4179 = vmatpush1.bf16.msra.mxu0 %v4029
        %4180 = vmatprep.subr.bf16.mxu0 0
        %4181 = vmatpush1.bf16.msra.mxu0 %v4030
        %4182 = vmatprep.subr.bf16.mxu0 0
        %4183 = vmatpush1.bf16.msra.mxu0 %v4031
        %4184 = vmatprep.subr.bf16.mxu0 0
        %4185 = vmatpush1.bf16.msra.mxu0 %v4032
        %4186 = vmatprep.subr.bf16.mxu0 0
        %4187 = vmatpush1.bf16.msra.mxu0 %v4033
        %4188 = vmatprep.subr.bf16.mxu0 0
        %4189 = vmatpush1.bf16.msra.mxu0 %v4034
        %4190 = vmatprep.subr.bf16.mxu0 0
        %4191 = vmatpush1.bf16.msra.mxu0 %v4035
        %4192 = vmatprep.subr.bf16.mxu0 0
        %4193 = vmatpush1.bf16.msra.mxu0 %v4036
        %4194 = vmatprep.subr.bf16.mxu0 0
        %4195 = vmatpush1.bf16.msra.mxu0 %v4037
        %4196 = vmatprep.subr.bf16.mxu0 0
        %4197 = vmatpush1.bf16.msra.mxu0 %v4038
        %4198 = vmatprep.subr.bf16.mxu0 0
        %4199 = vmatpush1.bf16.msra.mxu0 %v4039
        %4200 = vmatprep.mubr.bf16.mxu0 %v3452
        %4201 = vmatmul.mubr.bf16.gmra.mrb[0].mxu0 %v3435
        %v4202 = vpop.f32.mrb[0].mxu0
        %v4203 = vadd.f32 %v3423, %v4202
        %v4204 = vpop.f32.mrb[0].mxu0
        %v4205 = vpop.f32.mrb[0].mxu0
        %v4206 = vadd.f32 %v3423, %v4205
        %v4207 = vpop.f32.mrb[0].mxu0
        %4208 = vmatprep.mubr.bf16.mxu0 %v3579
        %4209 = vmatmul.mubr.bf16.gmra.mrb[0].mxu0 %v3570
        %v4210 = vpop.f32.mrb[0].mxu0
        %v4211 = vadd.f32 %v3423, %v4210
        %v4212 = vpop.f32.mrb[0].mxu0
        %v4213 = vpop.f32.mrb[0].mxu0
        %v4214 = vadd.f32 %v3423, %v4213
        %v4215 = vpop.f32.mrb[0].mxu0
        %4216 = vmatprep.mubr.bf16.mxu0 %v3650
        %4217 = vmatmul.mubr.bf16.gmra.mrb[0].mxu0 %v3641
        %v4218 = vpop.f32.mrb[0].mxu0
        %v4219 = vadd.f32 %v3423, %v4218
        %v4220 = vpop.f32.mrb[0].mxu0
        %v4221 = vpop.f32.mrb[0].mxu0
        %v4222 = vadd.f32 %v3423, %v4221
        %v4223 = vpop.f32.mrb[0].mxu0
        %4224 = vdwg.mxu0
        %4225 = vmatprep.subr.bf16.mxu0 0
        %4226 = vmatpush1.bf16.msra.mxu0 %v4040
        %4227 = vmatprep.subr.bf16.mxu0 0
        %4228 = vmatpush1.bf16.msra.mxu0 %v4041
        %4229 = vmatprep.subr.bf16.mxu0 0
        %4230 = vmatpush1.bf16.msra.mxu0 %v4042
        %4231 = vmatprep.subr.bf16.mxu0 0
        %4232 = vmatpush1.bf16.msra.mxu0 %v4043
        %4233 = vmatprep.subr.bf16.mxu0 0
        %4234 = vmatpush1.bf16.msra.mxu0 %v4044
        %4235 = vmatprep.subr.bf16.mxu0 0
        %4236 = vmatpush1.bf16.msra.mxu0 %v4045
        %4237 = vmatprep.subr.bf16.mxu0 0
        %4238 = vmatpush1.bf16.msra.mxu0 %v4046
        %4239 = vmatprep.subr.bf16.mxu0 0
        %4240 = vmatpush1.bf16.msra.mxu0 %v4047
        %4241 = vmatprep.subr.bf16.mxu0 0
        %4242 = vmatpush1.bf16.msra.mxu0 %v4048
        %4243 = vmatprep.subr.bf16.mxu0 0
        %4244 = vmatpush1.bf16.msra.mxu0 %v4049
        %4245 = vmatprep.subr.bf16.mxu0 0
        %4246 = vmatpush1.bf16.msra.mxu0 %v4050
        %4247 = vmatprep.subr.bf16.mxu0 0
        %4248 = vmatpush1.bf16.msra.mxu0 %v4051
        %4249 = vmatprep.subr.bf16.mxu0 0
        %4250 = vmatpush1.bf16.msra.mxu0 %v4052
        %4251 = vmatprep.subr.bf16.mxu0 0
        %4252 = vmatpush1.bf16.msra.mxu0 %v4053
        %4253 = vmatprep.subr.bf16.mxu0 0
        %4254 = vmatpush1.bf16.msra.mxu0 %v4054
        %4255 = vmatprep.subr.bf16.mxu0 0
        %4256 = vmatpush1.bf16.msra.mxu0 %v4055
        %4257 = vmatprep.mubr.bf16.mxu0 %v3486
        %4258 = vmatmul.mubr.bf16.gmra.mrb[0].mxu0 %v3469
        %v4259 = vpop.f32.mrb[0].mxu0
        %v4260 = vadd.f32 %v4203, %v4259
        %v4261 = vpop.f32.mrb[0].mxu0
        %v4262 = vpop.f32.mrb[0].mxu0
        %v4263 = vadd.f32 %v4206, %v4262
        %v4264 = vpop.f32.mrb[0].mxu0
        %4265 = vmatprep.mubr.bf16.mxu0 %v3597
        %4266 = vmatmul.mubr.bf16.gmra.mrb[0].mxu0 %v3588
        %v4267 = vpop.f32.mrb[0].mxu0
        %v4268 = vadd.f32 %v4211, %v4267
        %v4269 = vpop.f32.mrb[0].mxu0
        %v4270 = vpop.f32.mrb[0].mxu0
        %v4271 = vadd.f32 %v4214, %v4270
        %v4272 = vpop.f32.mrb[0].mxu0
        %4273 = vmatprep.mubr.bf16.mxu0 %v3668
        %4274 = vmatmul.mubr.bf16.gmra.mrb[0].mxu0 %v3659
        %v4275 = vpop.f32.mrb[0].mxu0
        %v4276 = vadd.f32 %v4219, %v4275
        %v4277 = vpop.f32.mrb[0].mxu0
        %v4278 = vpop.f32.mrb[0].mxu0
        %v4279 = vadd.f32 %v4222, %v4278
        %v4280 = vpop.f32.mrb[0].mxu0
        %4281 = vdwg.mxu0
        %4282 = vmatprep.subr.bf16.mxu0 0
        %4283 = vmatpush1.bf16.msra.mxu0 %v4056
        %4284 = vmatprep.subr.bf16.mxu0 0
        %4285 = vmatpush1.bf16.msra.mxu0 %v4057
        %4286 = vmatprep.subr.bf16.mxu0 0
        %4287 = vmatpush1.bf16.msra.mxu0 %v4058
        %4288 = vmatprep.subr.bf16.mxu0 0
        %4289 = vmatpush1.bf16.msra.mxu0 %v4059
        %4290 = vmatprep.subr.bf16.mxu0 0
        %4291 = vmatpush1.bf16.msra.mxu0 %v4060
        %4292 = vmatprep.subr.bf16.mxu0 0
        %4293 = vmatpush1.bf16.msra.mxu0 %v4061
        %4294 = vmatprep.subr.bf16.mxu0 0
        %4295 = vmatpush1.bf16.msra.mxu0 %v4062
        %4296 = vmatprep.subr.bf16.mxu0 0
        %4297 = vmatpush1.bf16.msra.mxu0 %v4063
        %4298 = vmatprep.subr.bf16.mxu0 0
        %4299 = vmatpush1.bf16.msra.mxu0 %v4064
        %4300 = vmatprep.subr.bf16.mxu0 0
        %4301 = vmatpush1.bf16.msra.mxu0 %v4065
        %4302 = vmatprep.subr.bf16.mxu0 0
        %4303 = vmatpush1.bf16.msra.mxu0 %v4066
        %4304 = vmatprep.subr.bf16.mxu0 0
        %4305 = vmatpush1.bf16.msra.mxu0 %v4067
        %4306 = vmatprep.subr.bf16.mxu0 0
        %4307 = vmatpush1.bf16.msra.mxu0 %v4068
        %4308 = vmatprep.subr.bf16.mxu0 0
        %4309 = vmatpush1.bf16.msra.mxu0 %v4069
        %4310 = vmatprep.subr.bf16.mxu0 0
        %4311 = vmatpush1.bf16.msra.mxu0 %v4070
        %4312 = vmatprep.subr.bf16.mxu0 0
        %4313 = vmatpush1.bf16.msra.mxu0 %v4071
        %4314 = vmatprep.mubr.bf16.mxu0 %v3520
        %4315 = vmatmul.mubr.bf16.gmra.mrb[0].mxu0 %v3503
        %v4316 = vpop.f32.mrb[0].mxu0
        %v4317 = vadd.f32 %v4260, %v4316
        %v4318 = vpop.f32.mrb[0].mxu0
        %v4319 = vpop.f32.mrb[0].mxu0
        %v4320 = vadd.f32 %v4263, %v4319
        %v4321 = vpop.f32.mrb[0].mxu0
        %4322 = vmatprep.mubr.bf16.mxu0 %v3615
        %4323 = vmatmul.mubr.bf16.gmra.mrb[0].mxu0 %v3606
        %v4324 = vpop.f32.mrb[0].mxu0
        %v4325 = vadd.f32 %v4268, %v4324
        %v4326 = vpop.f32.mrb[0].mxu0
        %v4327 = vpop.f32.mrb[0].mxu0
        %v4328 = vadd.f32 %v4271, %v4327
        %v4329 = vpop.f32.mrb[0].mxu0
        %4330 = vmatprep.mubr.bf16.mxu0 %v3686
        %4331 = vmatmul.mubr.bf16.gmra.mrb[0].mxu0 %v3677
        %v4332 = vpop.f32.mrb[0].mxu0
        %v4333 = vadd.f32 %v4276, %v4332
        %v4334 = vpop.f32.mrb[0].mxu0
        %v4335 = vpop.f32.mrb[0].mxu0
        %v4336 = vadd.f32 %v4279, %v4335
        %v4337 = vpop.f32.mrb[0].mxu0
        %4338 = vdwg.mxu0
        %4339 = vmatprep.subr.bf16.mxu0 0
        %4340 = vmatpush1.bf16.msra.mxu0 %v4072
        %4341 = vmatprep.subr.bf16.mxu0 0
        %4342 = vmatpush1.bf16.msra.mxu0 %v4073
        %4343 = vmatprep.subr.bf16.mxu0 0
        %4344 = vmatpush1.bf16.msra.mxu0 %v4074
        %4345 = vmatprep.subr.bf16.mxu0 0
        %4346 = vmatpush1.bf16.msra.mxu0 %v4075
        %4347 = vmatprep.subr.bf16.mxu0 0
        %4348 = vmatpush1.bf16.msra.mxu0 %v4076
        %4349 = vmatprep.subr.bf16.mxu0 0
        %4350 = vmatpush1.bf16.msra.mxu0 %v4077
        %4351 = vmatprep.subr.bf16.mxu0 0
        %4352 = vmatpush1.bf16.msra.mxu0 %v4078
        %4353 = vmatprep.subr.bf16.mxu0 0
        %4354 = vmatpush1.bf16.msra.mxu0 %v4079
        %4355 = vmatprep.subr.bf16.mxu0 0
        %4356 = vmatpush1.bf16.msra.mxu0 %v4080
        %4357 = vmatprep.subr.bf16.mxu0 0
        %4358 = vmatpush1.bf16.msra.mxu0 %v4081
        %4359 = vmatprep.subr.bf16.mxu0 0
        %4360 = vmatpush1.bf16.msra.mxu0 %v4082
        %4361 = vmatprep.subr.bf16.mxu0 0
        %4362 = vmatpush1.bf16.msra.mxu0 %v4083
        %4363 = vmatprep.subr.bf16.mxu0 0
        %4364 = vmatpush1.bf16.msra.mxu0 %v4084
        %4365 = vmatprep.subr.bf16.mxu0 0
        %4366 = vmatpush1.bf16.msra.mxu0 %v4085
        %4367 = vmatprep.subr.bf16.mxu0 0
        %4368 = vmatpush1.bf16.msra.mxu0 %v4086
        %4369 = vmatprep.subr.bf16.mxu0 0
        %4370 = vmatpush1.bf16.msra.mxu0 %v4087
        %4371 = vmatprep.mubr.bf16.mxu0 %v3549
        %4372 = vmatmul.mubr.bf16.gmra.mrb[0].mxu0 %v3532
        %v4373 = vpop.f32.mrb[0].mxu0
        %v4374 = vadd.f32 %v4317, %v4373
        %v4375 = vpop.f32.mrb[0].mxu0
        %v4376 = vpop.f32.mrb[0].mxu0
        %v4377 = vadd.f32 %v4320, %v4376
        %v4378 = vpop.f32.mrb[0].mxu0
        %4379 = vmatprep.mubr.bf16.mxu0 %v3628
        %4380 = vmatmul.mubr.bf16.gmra.mrb[0].mxu0 %v3619
        %v4381 = vpop.f32.mrb[0].mxu0
        %v4382 = vadd.f32 %v4325, %v4381
        %v4383 = vpop.f32.mrb[0].mxu0
        %v4384 = vpop.f32.mrb[0].mxu0
        %v4385 = vadd.f32 %v4328, %v4384
        %v4386 = vpop.f32.mrb[0].mxu0
        %4387 = vmatprep.mubr.bf16.mxu0 %v3699
        %4388 = vmatmul.mubr.bf16.gmra.mrb[0].mxu0 %v3690
        %v4389 = vpop.f32.mrb[0].mxu0
        %v4390 = vadd.f32 %v4333, %v4389
        %v4391 = vpop.f32.mrb[0].mxu0
        %v4392 = vpop.f32.mrb[0].mxu0
        %v4393 = vadd.f32 %v4336, %v4392
        %v4394 = vpop.f32.mrb[0].mxu0
        %4395 = vdwg.mxu0
        %4396 = vmatprep.subr.bf16.mxu0 0
        %4397 = vmatpush1.bf16.msra.mxu0 %v4088
        %4398 = vmatprep.subr.bf16.mxu0 0
        %4399 = vmatpush1.bf16.msra.mxu0 %v4089
        %4400 = vmatprep.subr.bf16.mxu0 0
        %4401 = vmatpush1.bf16.msra.mxu0 %v4090
        %4402 = vmatprep.subr.bf16.mxu0 0
        %4403 = vmatpush1.bf16.msra.mxu0 %v4091
        %4404 = vmatprep.subr.bf16.mxu0 0
        %4405 = vmatpush1.bf16.msra.mxu0 %v4092
        %4406 = vmatprep.subr.bf16.mxu0 0
        %4407 = vmatpush1.bf16.msra.mxu0 %v4093
        %4408 = vmatprep.subr.bf16.mxu0 0
        %4409 = vmatpush1.bf16.msra.mxu0 %v4094
        %4410 = vmatprep.subr.bf16.mxu0 0
        %4411 = vmatpush1.bf16.msra.mxu0 %v4095
        %4412 = vmatprep.subr.bf16.mxu0 0
        %4413 = vmatpush1.bf16.msra.mxu0 0
        %4414 = vmatprep.subr.bf16.mxu0 0
        %4415 = vmatpush1.bf16.msra.mxu0 0
        %4416 = vmatprep.subr.bf16.mxu0 0
        %4417 = vmatpush1.bf16.msra.mxu0 0
        %4418 = vmatprep.subr.bf16.mxu0 0
        %4419 = vmatpush1.bf16.msra.mxu0 0
        %4420 = vmatprep.subr.bf16.mxu0 0
        %4421 = vmatpush1.bf16.msra.mxu0 0
        %4422 = vmatprep.subr.bf16.mxu0 0
        %4423 = vmatpush1.bf16.msra.mxu0 0
        %4424 = vmatprep.subr.bf16.mxu0 0
        %4425 = vmatpush1.bf16.msra.mxu0 0
        %4426 = vmatprep.subr.bf16.mxu0 0
        %4427 = vmatpush1.bf16.msra.mxu0 0
        %4428 = vmatprep.mubr.bf16.mxu0 0
        %4429 = vmatmul.mubr.bf16.gmra.mrb[0].mxu0 %v3566
        %v4430 = vpop.f32.mrb[0].mxu0
        %v4431 = vadd.f32 %v4374, %v4430
        %v4432 = vpop.f32.mrb[0].mxu0
        %v4433 = vpop.f32.mrb[0].mxu0
        %v4434 = vadd.f32 %v4377, %v4433
        %v4435 = vpop.f32.mrb[0].mxu0
        %4436 = vmatprep.mubr.bf16.mxu0 0
        %4437 = vmatmul.mubr.bf16.gmra.mrb[0].mxu0 %v3637
        %v4438 = vpop.f32.mrb[0].mxu0
        %v4439 = vadd.f32 %v4382, %v4438
        %v4440 = vpop.f32.mrb[0].mxu0
        %v4441 = vpop.f32.mrb[0].mxu0
        %v4442 = vadd.f32 %v4385, %v4441
        %v4443 = vpop.f32.mrb[0].mxu0
        %4444 = vmatprep.mubr.bf16.mxu0 0
        %4445 = vmatmul.mubr.bf16.gmra.mrb[0].mxu0 %v3708
        %v4446 = vpop.f32.mrb[0].mxu0
        %v4447 = vadd.f32 %v4390, %v4446
        %v4448 = vpop.f32.mrb[0].mxu0
        %v4449 = vpop.f32.mrb[0].mxu0
        %v4450 = vadd.f32 %v4393, %v4449
        %v4451 = vpop.f32.mrb[0].mxu0
        %4452 = vdwg.mxu0
        %vm4453 = vcmp.ge.f32.partialorder %v4431, 0.0
        %vm4454 = vcmp.ge.f32.partialorder %v4434, 0.0
        %vm4455 = vcmp.ge.f32.partialorder %v4439, 0.0
        %vm4456 = vcmp.ge.f32.partialorder %v4442, 0.0
        %vm4457 = vcmp.ge.f32.partialorder %v4447, 0.0
        %vm4458 = vcmp.ge.f32.partialorder %v4450, 0.0
        %v4459 = vld [vmem:[#allocation9 + $0x2] sm:$0x1]
        %v4460 = vlaneseq
        %v4461 = vshrl.u32 %v4460, 7
        %v4462 = vsub.s32 0, %v4461
        %v4463 = vrot.slane %v4459, %v4462
        %v4464 = vmul.f32 %v4431, %v4463
        %v4465 = vmul.f32 %v4434, %v4463
        %v4466 = vmul.f32 %v4439, %v4463
        %v4467 = vmul.f32 %v4442, %v4463
        %v4468 = vmul.f32 %v4447, %v4463
        %v4469 = vmul.f32 %v4450, %v4463
        %v4470 = vsel %vm4453, %v4431, %v4464
        %v4471 = vsel %vm4454, %v4434, %v4465
        %v4472 = vsel %vm4455, %v4439, %v4466
        %v4473 = vsel %vm4456, %v4442, %v4467
        %v4474 = vsel %vm4457, %v4447, %v4468
        %v4475 = vsel %vm4458, %v4450, %v4469
        %v4476 = vpack.c.bf16 %v4471, %v4470
        %v4477 = vpack.c.bf16 %v4473, %v4472
        %v4478 = vpack.c.bf16 %v4475, %v4474
        %v4479 = vmul.bf16 %v4476, %v444
        %v4480 = vmul.bf16 %v4477, %v445
        %v4481 = vmul.bf16 %v4478, %v446
        %4482 = vst [vmem:[#allocation2 + $0x8] sm:$0xff] %v4479
        %4483 = vst [vmem:[#allocation2 + $0x10] sm:$0xff] %v4480
        %4484 = vst [vmem:[#allocation2 + $0x18] sm:$0xff] %v4481
        %v4485 = vld [vmem:[#allocation2] sm:$0xf8]
        %v4486 = vld [vmem:[#allocation2 + $0x8] sm:$0xff]
        %v4487 = vld [vmem:[#allocation2 + $0x10] sm:$0xff]
        %v4488 = vld [vmem:[#allocation2 + $0x18] sm:$0xf]
        %v4489 = vld [vmem:[#allocation2] sm:$0xf0]
        %v4490 = vld [vmem:[#allocation2 + $0x18] sm:$0x1f]
        %v4491 = vld [vmem:[#allocation2] sm:$0x80]
        %v4492 = vld [vmem:[#allocation2 + $0x18] sm:$0xff]
        %v4493 = vld [vmem:[#allocation2 + $0x8] sm:$0xff]
        %v4494 = vld [vmem:[#allocation2 + $0x10] sm:$0xff]
        %v4495 = vld [vmem:[#allocation2 + $0x18] sm:$0xff]
        %v4496 = vld [vmem:[#allocation2 + $0x20] sm:$0x1]
        %v4497 = vld [vmem:[#allocation2 + $0x8] sm:$0xf8]
        %v4498 = vld [vmem:[#allocation2 + $0x20] sm:$0xf]
        %v4499 = vld [vmem:[#allocation2 + $0x8] sm:$0xf0]
        %v4500 = vld [vmem:[#allocation2 + $0x20] sm:$0x1f]
        %v4502 = vshrl.u32 %v4489, 16
        %v4504 = vshll.u32 %v4489, 16
        %v4506 = vrot.slane %v4504, 1
        %v4507 = vor.u32 %v4502, %v4506
        %v4509 = vshll.u32 %v4486, 16
        %v4511 = vrot.slane %v4509, 1
        %v4512 = vsel %vm463, %v4507, %v4511
        %v4513 = vshrl.u32 %v4486, 16
        %v4515 = vor.u32 %v4513, %v4511
        %v4517 = vshll.u32 %v4487, 16
        %v4519 = vrot.slane %v4517, 1
        %v4520 = vsel %vm463, %v4515, %v4519
        %v4521 = vshrl.u32 %v4487, 16
        %v4523 = vor.u32 %v4521, %v4519
        %v4525 = vshll.u32 %v4488, 16
        %v4527 = vrot.slane %v4525, 1
        %v4528 = vsel %vm463, %v4523, %v4527
        %v4529 = vshrl.u32 %v4488, 16
        %v4531 = vor.u32 %v4529, %v4527
        %v4536 = vrot.slane %v4489, 1
        %v4537 = vrot.slane %v4486, 1
        %v4538 = vsel %vm499, %v4536, %v4537
        %v4539 = vrot.slane %v4487, 1
        %v4540 = vsel %vm499, %v4537, %v4539
        %v4541 = vrot.slane %v4490, 1
        %v4542 = vsel %vm499, %v4539, %v4541
        %v4545 = vrot.slane %v4491, 4
        %v4546 = vrot.slane %v4486, 4
        %v4547 = vsel %vm509, %v4545, %v4546
        %v4548 = vrot.slane %v4487, 4
        %v4549 = vsel %vm509, %v4546, %v4548
        %v4550 = vrot.slane %v4492, 4
        %v4551 = vsel %vm509, %v4548, %v4550
        %v4552 = vrot.slane %v4513, 4
        %v4553 = vrot.slane %v4509, 5
        %v4554 = vor.u32 %v4552, %v4553
        %v4555 = vrot.slane %v4521, 4
        %v4556 = vrot.slane %v4517, 5
        %v4557 = vor.u32 %v4555, %v4556
        %v4558 = vsel %vm517, %v4554, %v4557
        %v4560 = vshrl.u32 %v4492, 16
        %v4562 = vrot.slane %v4560, 4
        %v4563 = vshll.u32 %v4492, 16
        %v4565 = vrot.slane %v4563, 5
        %v4566 = vor.u32 %v4562, %v4565
        %v4567 = vsel %vm517, %v4557, %v4566
        %v4572 = vrot.slane %v4493, 5
        %v4573 = vrot.slane %v4494, 5
        %v4574 = vsel %vm538, %v4572, %v4573
        %v4575 = vrot.slane %v4495, 5
        %v4576 = vsel %vm538, %v4573, %v4575
        %v4577 = vrot.slane %v4496, 5
        %v4578 = vsel %vm538, %v4575, %v4577
        %v4580 = vshrl.u32 %v4499, 16
        %v4582 = vshll.u32 %v4499, 16
        %v4584 = vrot.slane %v4582, 1
        %v4585 = vor.u32 %v4580, %v4584
        %v4587 = vshll.u32 %v4494, 16
        %v4589 = vrot.slane %v4587, 1
        %v4590 = vsel %vm463, %v4585, %v4589
        %v4591 = vshrl.u32 %v4494, 16
        %v4593 = vor.u32 %v4591, %v4589
        %v4595 = vshll.u32 %v4495, 16
        %v4597 = vrot.slane %v4595, 1
        %v4598 = vsel %vm463, %v4593, %v4597
        %v4599 = vshrl.u32 %v4495, 16
        %v4601 = vor.u32 %v4599, %v4597
        %v4603 = vshll.u32 %v4498, 16
        %v4605 = vrot.slane %v4603, 1
        %v4606 = vsel %vm463, %v4601, %v4605
        %v4607 = vshrl.u32 %v4498, 16
        %v4609 = vor.u32 %v4607, %v4605
        %v4612 = vrot.slane %v4499, 1
        %v4613 = vrot.slane %v4494, 1
        %v4614 = vsel %vm499, %v4612, %v4613
        %v4615 = vrot.slane %v4495, 1
        %v4616 = vsel %vm499, %v4613, %v4615
        %v4617 = vrot.slane %v4500, 1
        %v4618 = vsel %vm499, %v4615, %v4617
        %v4619 = vld [vmem:[#allocation6 + $0x6c0] sm:$0xf]
        %v4620 = vld [vmem:[#allocation6 + $0x6c4] sm:$0xf]
        %v4621 = vld [vmem:[#allocation6 + $0x6c8] sm:$0xf]
        %v4622 = vld [vmem:[#allocation6 + $0x6cc] sm:$0xf]
        %v4623 = vld [vmem:[#allocation6 + $0x6d0] sm:$0xf]
        %v4624 = vld [vmem:[#allocation6 + $0x6d4] sm:$0xf]
        %v4625 = vld [vmem:[#allocation6 + $0x6d8] sm:$0xf]
        %v4626 = vld [vmem:[#allocation6 + $0x6dc] sm:$0xf]
        %v4627 = vld [vmem:[#allocation6 + $0x6e0] sm:$0xf]
        %v4628 = vld [vmem:[#allocation6 + $0x6e4] sm:$0xf]
        %v4629 = vld [vmem:[#allocation6 + $0x6e8] sm:$0xf]
        %v4630 = vld [vmem:[#allocation6 + $0x6ec] sm:$0xf]
        %v4631 = vld [vmem:[#allocation6 + $0x6f0] sm:$0xf]
        %v4632 = vld [vmem:[#allocation6 + $0x6f4] sm:$0xf]
        %v4633 = vld [vmem:[#allocation6 + $0x6f8] sm:$0xf]
        %v4634 = vld [vmem:[#allocation6 + $0x6fc] sm:$0xf]
        %v4635 = vld [vmem:[#allocation6 + $0x700] sm:$0xf]
        %v4636 = vld [vmem:[#allocation6 + $0x704] sm:$0xf]
        %v4637 = vld [vmem:[#allocation6 + $0x708] sm:$0xf]
        %v4638 = vld [vmem:[#allocation6 + $0x70c] sm:$0xf]
        %v4639 = vld [vmem:[#allocation6 + $0x710] sm:$0xf]
        %v4640 = vld [vmem:[#allocation6 + $0x714] sm:$0xf]
        %v4641 = vld [vmem:[#allocation6 + $0x718] sm:$0xf]
        %v4642 = vld [vmem:[#allocation6 + $0x71c] sm:$0xf]
        %v4643 = vld [vmem:[#allocation6 + $0x720] sm:$0xf]
        %v4644 = vld [vmem:[#allocation6 + $0x724] sm:$0xf]
        %v4645 = vld [vmem:[#allocation6 + $0x728] sm:$0xf]
        %v4646 = vld [vmem:[#allocation6 + $0x72c] sm:$0xf]
        %v4647 = vld [vmem:[#allocation6 + $0x730] sm:$0xf]
        %v4648 = vld [vmem:[#allocation6 + $0x734] sm:$0xf]
        %v4649 = vld [vmem:[#allocation6 + $0x738] sm:$0xf]
        %v4650 = vld [vmem:[#allocation6 + $0x73c] sm:$0xf]
        %v4651 = vld [vmem:[#allocation6 + $0x740] sm:$0xf]
        %v4652 = vld [vmem:[#allocation6 + $0x744] sm:$0xf]
        %v4653 = vld [vmem:[#allocation6 + $0x748] sm:$0xf]
        %v4654 = vld [vmem:[#allocation6 + $0x74c] sm:$0xf]
        %v4655 = vld [vmem:[#allocation6 + $0x750] sm:$0xf]
        %v4656 = vld [vmem:[#allocation6 + $0x754] sm:$0xf]
        %v4657 = vld [vmem:[#allocation6 + $0x758] sm:$0xf]
        %v4658 = vld [vmem:[#allocation6 + $0x75c] sm:$0xf]
        %v4659 = vld [vmem:[#allocation6 + $0x760] sm:$0xf]
        %v4660 = vld [vmem:[#allocation6 + $0x764] sm:$0xf]
        %v4661 = vld [vmem:[#allocation6 + $0x768] sm:$0xf]
        %v4662 = vld [vmem:[#allocation6 + $0x76c] sm:$0xf]
        %v4663 = vld [vmem:[#allocation6 + $0x770] sm:$0xf]
        %v4664 = vld [vmem:[#allocation6 + $0x774] sm:$0xf]
        %v4665 = vld [vmem:[#allocation6 + $0x778] sm:$0xf]
        %v4666 = vld [vmem:[#allocation6 + $0x77c] sm:$0xf]
        %v4667 = vld [vmem:[#allocation6 + $0x780] sm:$0xf]
        %v4668 = vld [vmem:[#allocation6 + $0x784] sm:$0xf]
        %v4669 = vld [vmem:[#allocation6 + $0x788] sm:$0xf]
        %v4670 = vld [vmem:[#allocation6 + $0x78c] sm:$0xf]
        %v4671 = vld [vmem:[#allocation6 + $0x790] sm:$0xf]
        %v4672 = vld [vmem:[#allocation6 + $0x794] sm:$0xf]
        %v4673 = vld [vmem:[#allocation6 + $0x798] sm:$0xf]
        %v4674 = vld [vmem:[#allocation6 + $0x79c] sm:$0xf]
        %v4675 = vld [vmem:[#allocation6 + $0x7a0] sm:$0xf]
        %v4676 = vld [vmem:[#allocation6 + $0x7a4] sm:$0xf]
        %v4677 = vld [vmem:[#allocation6 + $0x7a8] sm:$0xf]
        %v4678 = vld [vmem:[#allocation6 + $0x7ac] sm:$0xf]
        %v4679 = vld [vmem:[#allocation6 + $0x7b0] sm:$0xf]
        %v4680 = vld [vmem:[#allocation6 + $0x7b4] sm:$0xf]
        %v4681 = vld [vmem:[#allocation6 + $0x7b8] sm:$0xf]
        %v4682 = vld [vmem:[#allocation6 + $0x7bc] sm:$0xf]
        %v4683 = vld [vmem:[#allocation6 + $0x7c0] sm:$0xf]
        %v4684 = vld [vmem:[#allocation6 + $0x7c4] sm:$0xf]
        %v4685 = vld [vmem:[#allocation6 + $0x7c8] sm:$0xf]
        %v4686 = vld [vmem:[#allocation6 + $0x7cc] sm:$0xf]
        %v4687 = vld [vmem:[#allocation6 + $0x7d0] sm:$0xf]
        %v4688 = vld [vmem:[#allocation6 + $0x7d4] sm:$0xf]
        %v4689 = vld [vmem:[#allocation6 + $0x7d8] sm:$0xf]
        %v4690 = vld [vmem:[#allocation6 + $0x7dc] sm:$0xf]
        %v4691 = vld [vmem:[#allocation6 + $0x7e0] sm:$0xf]
        %v4692 = vld [vmem:[#allocation6 + $0x7e4] sm:$0xf]
        %v4693 = vld [vmem:[#allocation6 + $0x7e8] sm:$0xf]
        %v4694 = vld [vmem:[#allocation6 + $0x7ec] sm:$0xf]
        %v4695 = vld [vmem:[#allocation6 + $0x7f0] sm:$0xf]
        %v4696 = vld [vmem:[#allocation6 + $0x7f4] sm:$0xf]
        %v4697 = vld [vmem:[#allocation6 + $0x7f8] sm:$0xf]
        %v4698 = vld [vmem:[#allocation6 + $0x7fc] sm:$0xf]
        %v4699 = vld [vmem:[#allocation6 + $0x800] sm:$0xf]
        %v4700 = vld [vmem:[#allocation6 + $0x804] sm:$0xf]
        %v4701 = vld [vmem:[#allocation6 + $0x808] sm:$0xf]
        %v4702 = vld [vmem:[#allocation6 + $0x80c] sm:$0xf]
        %v4703 = vld [vmem:[#allocation6 + $0x810] sm:$0xf]
        %v4704 = vld [vmem:[#allocation6 + $0x814] sm:$0xf]
        %v4705 = vld [vmem:[#allocation6 + $0x818] sm:$0xf]
        %v4706 = vld [vmem:[#allocation6 + $0x81c] sm:$0xf]
        %v4707 = vld [vmem:[#allocation6 + $0x820] sm:$0xf]
        %v4708 = vld [vmem:[#allocation6 + $0x824] sm:$0xf]
        %v4709 = vld [vmem:[#allocation6 + $0x828] sm:$0xf]
        %v4710 = vld [vmem:[#allocation6 + $0x82c] sm:$0xf]
        %v4711 = vld [vmem:[#allocation6 + $0x830] sm:$0xf]
        %v4712 = vld [vmem:[#allocation6 + $0x834] sm:$0xf]
        %v4713 = vld [vmem:[#allocation6 + $0x838] sm:$0xf]
        %v4714 = vld [vmem:[#allocation6 + $0x83c] sm:$0xf]
        %v4715 = vld [vmem:[#allocation6 + $0x840] sm:$0xf]
        %v4716 = vld [vmem:[#allocation6 + $0x844] sm:$0xf]
        %v4717 = vld [vmem:[#allocation6 + $0x848] sm:$0xf]
        %v4718 = vld [vmem:[#allocation6 + $0x84c] sm:$0xf]
        %v4719 = vld [vmem:[#allocation6 + $0x850] sm:$0xf]
        %v4720 = vld [vmem:[#allocation6 + $0x854] sm:$0xf]
        %v4721 = vld [vmem:[#allocation6 + $0x858] sm:$0xf]
        %v4722 = vld [vmem:[#allocation6 + $0x85c] sm:$0xf]
        %v4723 = vld [vmem:[#allocation6 + $0x860] sm:$0xf]
        %v4724 = vld [vmem:[#allocation6 + $0x864] sm:$0xf]
        %v4725 = vld [vmem:[#allocation6 + $0x868] sm:$0xf]
        %v4726 = vld [vmem:[#allocation6 + $0x86c] sm:$0xf]
        %v4727 = vld [vmem:[#allocation6 + $0x870] sm:$0xf]
        %v4728 = vld [vmem:[#allocation6 + $0x874] sm:$0xf]
        %v4729 = vld [vmem:[#allocation6 + $0x878] sm:$0xf]
        %v4730 = vld [vmem:[#allocation6 + $0x87c] sm:$0xf]
        %v4731 = vld [vmem:[#allocation6 + $0x880] sm:$0xf]
        %v4732 = vld [vmem:[#allocation6 + $0x884] sm:$0xf]
        %v4733 = vld [vmem:[#allocation6 + $0x888] sm:$0xf]
        %v4734 = vld [vmem:[#allocation6 + $0x88c] sm:$0xf]
        %v4735 = vld [vmem:[#allocation6 + $0x890] sm:$0xf]
        %v4736 = vld [vmem:[#allocation6 + $0x894] sm:$0xf]
        %v4737 = vld [vmem:[#allocation6 + $0x898] sm:$0xf]
        %v4738 = vld [vmem:[#allocation6 + $0x89c] sm:$0xf]
        %v4739 = vld [vmem:[#allocation6 + $0x8a0] sm:$0xf]
        %v4740 = vld [vmem:[#allocation6 + $0x8a4] sm:$0xf]
        %v4741 = vld [vmem:[#allocation6 + $0x8a8] sm:$0xf]
        %v4742 = vld [vmem:[#allocation6 + $0x8ac] sm:$0xf]
        %v4743 = vld [vmem:[#allocation6 + $0x8b0] sm:$0xf]
        %v4744 = vld [vmem:[#allocation6 + $0x8b4] sm:$0xf]
        %v4745 = vld [vmem:[#allocation6 + $0x8b8] sm:$0xf]
        %v4746 = vld [vmem:[#allocation6 + $0x8bc] sm:$0xf]
        %v4747 = vld [vmem:[#allocation6 + $0x8c0] sm:$0xf]
        %v4748 = vld [vmem:[#allocation6 + $0x8c4] sm:$0xf]
        %v4749 = vld [vmem:[#allocation6 + $0x8c8] sm:$0xf]
        %v4750 = vld [vmem:[#allocation6 + $0x8cc] sm:$0xf]
        %v4751 = vld [vmem:[#allocation6 + $0x8d0] sm:$0xf]
        %v4752 = vld [vmem:[#allocation6 + $0x8d4] sm:$0xf]
        %v4753 = vld [vmem:[#allocation6 + $0x8d8] sm:$0xf]
        %v4754 = vld [vmem:[#allocation6 + $0x8dc] sm:$0xf]
        %v4755 = vld [vmem:[#allocation6 + $0x8e0] sm:$0xf]
        %v4756 = vld [vmem:[#allocation6 + $0x8e4] sm:$0xf]
        %v4757 = vld [vmem:[#allocation6 + $0x8e8] sm:$0xf]
        %v4758 = vld [vmem:[#allocation6 + $0x8ec] sm:$0xf]
        %v4759 = vld [vmem:[#allocation6 + $0x8f0] sm:$0xf]
        %v4760 = vld [vmem:[#allocation6 + $0x8f4] sm:$0xf]
        %v4761 = vld [vmem:[#allocation6 + $0x8f8] sm:$0xf]
        %v4762 = vld [vmem:[#allocation6 + $0x8fc] sm:$0xf]
        %v4763 = vld [vmem:[#allocation8 + $0x3] sm:$0x1]
        %v4764 = vlaneseq
        %v4765 = vshrl.u32 %v4764, 7
        %v4766 = vsub.s32 0, %v4765
        %v4767 = vrot.slane %v4763, %v4766
        %v4769 = vshrl.u32 %v4485, 16
        %v4771 = vrot.slane %v4769, 3
        %v4772 = vshll.u32 %v4485, 16
        %v4774 = vrot.slane %v4772, 4
        %v4775 = vor.u32 %v4771, %v4774
        %v4776 = vrot.slane %v4513, 3
        %v4777 = vrot.slane %v4509, 4
        %v4778 = vor.u32 %v4776, %v4777
        %v4779 = vsel %vm735, %v4775, %v4778
        %v4781 = vshrl.u32 %v4512, 16
        %v4783 = vrot.slane %v4781, 3
        %v4784 = vshll.u32 %v4512, 16
        %v4786 = vrot.slane %v4784, 4
        %v4787 = vor.u32 %v4783, %v4786
        %v4789 = vshrl.u32 %v4520, 16
        %v4791 = vrot.slane %v4789, 3
        %v4792 = vshll.u32 %v4520, 16
        %v4794 = vrot.slane %v4792, 4
        %v4795 = vor.u32 %v4791, %v4794
        %v4796 = vsel %vm735, %v4787, %v4795
        %v4798 = vshrl.u32 %v4538, 16
        %v4800 = vrot.slane %v4798, 3
        %v4801 = vshll.u32 %v4538, 16
        %v4803 = vrot.slane %v4801, 4
        %v4804 = vor.u32 %v4800, %v4803
        %v4806 = vshrl.u32 %v4540, 16
        %v4808 = vrot.slane %v4806, 3
        %v4809 = vshll.u32 %v4540, 16
        %v4811 = vrot.slane %v4809, 4
        %v4812 = vor.u32 %v4808, %v4811
        %v4813 = vsel %vm735, %v4804, %v4812
        %v4815 = vshrl.u32 %v4547, 16
        %v4817 = vrot.slane %v4815, 3
        %v4818 = vshll.u32 %v4547, 16
        %v4820 = vrot.slane %v4818, 4
        %v4821 = vor.u32 %v4817, %v4820
        %v4823 = vshrl.u32 %v4549, 16
        %v4825 = vrot.slane %v4823, 3
        %v4826 = vshll.u32 %v4549, 16
        %v4828 = vrot.slane %v4826, 4
        %v4829 = vor.u32 %v4825, %v4828
        %v4830 = vsel %vm735, %v4821, %v4829
        %v4832 = vshrl.u32 %v4554, 16
        %v4834 = vrot.slane %v4832, 3
        %v4835 = vshll.u32 %v4554, 16
        %v4837 = vrot.slane %v4835, 4
        %v4838 = vor.u32 %v4834, %v4837
        %v4840 = vshrl.u32 %v4558, 16
        %v4842 = vrot.slane %v4840, 3
        %v4843 = vshll.u32 %v4558, 16
        %v4845 = vrot.slane %v4843, 4
        %v4846 = vor.u32 %v4842, %v4845
        %v4847 = vsel %vm735, %v4838, %v4846
        %v4849 = vshrl.u32 %v4572, 16
        %v4851 = vrot.slane %v4849, 3
        %v4852 = vshll.u32 %v4572, 16
        %v4854 = vrot.slane %v4852, 4
        %v4855 = vor.u32 %v4851, %v4854
        %v4857 = vshrl.u32 %v4574, 16
        %v4859 = vrot.slane %v4857, 3
        %v4860 = vshll.u32 %v4574, 16
        %v4862 = vrot.slane %v4860, 4
        %v4863 = vor.u32 %v4859, %v4862
        %v4864 = vsel %vm735, %v4855, %v4863
        %v4866 = vshrl.u32 %v4497, 16
        %v4868 = vrot.slane %v4866, 3
        %v4869 = vshll.u32 %v4497, 16
        %v4871 = vrot.slane %v4869, 4
        %v4872 = vor.u32 %v4868, %v4871
        %v4873 = vrot.slane %v4591, 3
        %v4874 = vrot.slane %v4587, 4
        %v4875 = vor.u32 %v4873, %v4874
        %v4876 = vsel %vm735, %v4872, %v4875
        %v4878 = vshrl.u32 %v4590, 16
        %v4880 = vrot.slane %v4878, 3
        %v4881 = vshll.u32 %v4590, 16
        %v4883 = vrot.slane %v4881, 4
        %v4884 = vor.u32 %v4880, %v4883
        %v4886 = vshrl.u32 %v4598, 16
        %v4888 = vrot.slane %v4886, 3
        %v4889 = vshll.u32 %v4598, 16
        %v4891 = vrot.slane %v4889, 4
        %v4892 = vor.u32 %v4888, %v4891
        %v4893 = vsel %vm735, %v4884, %v4892
        %v4895 = vshrl.u32 %v4614, 16
        %v4897 = vrot.slane %v4895, 3
        %v4898 = vshll.u32 %v4614, 16
        %v4900 = vrot.slane %v4898, 4
        %v4901 = vor.u32 %v4897, %v4900
        %v4903 = vshrl.u32 %v4616, 16
        %v4905 = vrot.slane %v4903, 3
        %v4906 = vshll.u32 %v4616, 16
        %v4908 = vrot.slane %v4906, 4
        %v4909 = vor.u32 %v4905, %v4908
        %v4910 = vsel %vm735, %v4901, %v4909
        %v4911 = vrot.slane %v4521, 3
        %v4912 = vrot.slane %v4517, 4
        %v4913 = vor.u32 %v4911, %v4912
        %v4914 = vsel %vm735, %v4778, %v4913
        %v4916 = vshrl.u32 %v4528, 16
        %v4918 = vrot.slane %v4916, 3
        %v4919 = vshll.u32 %v4528, 16
        %v4921 = vrot.slane %v4919, 4
        %v4922 = vor.u32 %v4918, %v4921
        %v4923 = vsel %vm735, %v4795, %v4922
        %v4925 = vshrl.u32 %v4542, 16
        %v4927 = vrot.slane %v4925, 3
        %v4928 = vshll.u32 %v4542, 16
        %v4930 = vrot.slane %v4928, 4
        %v4931 = vor.u32 %v4927, %v4930
        %v4932 = vsel %vm735, %v4812, %v4931
        %v4934 = vshrl.u32 %v4551, 16
        %v4936 = vrot.slane %v4934, 3
        %v4937 = vshll.u32 %v4551, 16
        %v4939 = vrot.slane %v4937, 4
        %v4940 = vor.u32 %v4936, %v4939
        %v4941 = vsel %vm735, %v4829, %v4940
        %v4943 = vshrl.u32 %v4567, 16
        %v4945 = vrot.slane %v4943, 3
        %v4946 = vshll.u32 %v4567, 16
        %v4948 = vrot.slane %v4946, 4
        %v4949 = vor.u32 %v4945, %v4948
        %v4950 = vsel %vm735, %v4846, %v4949
        %v4952 = vshrl.u32 %v4576, 16
        %v4954 = vrot.slane %v4952, 3
        %v4955 = vshll.u32 %v4576, 16
        %v4957 = vrot.slane %v4955, 4
        %v4958 = vor.u32 %v4954, %v4957
        %v4959 = vsel %vm735, %v4863, %v4958
        %v4960 = vrot.slane %v4599, 3
        %v4961 = vrot.slane %v4595, 4
        %v4962 = vor.u32 %v4960, %v4961
        %v4963 = vsel %vm735, %v4875, %v4962
        %v4965 = vshrl.u32 %v4606, 16
        %v4967 = vrot.slane %v4965, 3
        %v4968 = vshll.u32 %v4606, 16
        %v4970 = vrot.slane %v4968, 4
        %v4971 = vor.u32 %v4967, %v4970
        %v4972 = vsel %vm735, %v4892, %v4971
        %v4974 = vshrl.u32 %v4618, 16
        %v4976 = vrot.slane %v4974, 3
        %v4977 = vshll.u32 %v4618, 16
        %v4979 = vrot.slane %v4977, 4
        %v4980 = vor.u32 %v4976, %v4979
        %v4981 = vsel %vm735, %v4909, %v4980
        %v4982 = vrot.slane %v4529, 3
        %v4983 = vrot.slane %v4525, 4
        %v4984 = vor.u32 %v4982, %v4983
        %v4985 = vsel %vm735, %v4913, %v4984
        %v4987 = vshrl.u32 %v4531, 16
        %v4989 = vrot.slane %v4987, 3
        %v4990 = vshll.u32 %v4531, 16
        %v4992 = vrot.slane %v4990, 4
        %v4993 = vor.u32 %v4989, %v4992
        %v4994 = vsel %vm735, %v4922, %v4993
        %v4996 = vshrl.u32 %v4541, 16
        %v4998 = vrot.slane %v4996, 3
        %v4999 = vshll.u32 %v4541, 16
        %v5001 = vrot.slane %v4999, 4
        %v5002 = vor.u32 %v4998, %v5001
        %v5003 = vsel %vm735, %v4931, %v5002
        %v5005 = vshrl.u32 %v4550, 16
        %v5007 = vrot.slane %v5005, 3
        %v5008 = vshll.u32 %v4550, 16
        %v5010 = vrot.slane %v5008, 4
        %v5011 = vor.u32 %v5007, %v5010
        %v5012 = vsel %vm735, %v4940, %v5011
        %v5014 = vshrl.u32 %v4566, 16
        %v5016 = vrot.slane %v5014, 3
        %v5017 = vshll.u32 %v4566, 16
        %v5019 = vrot.slane %v5017, 4
        %v5020 = vor.u32 %v5016, %v5019
        %v5021 = vsel %vm735, %v4949, %v5020
        %v5023 = vshrl.u32 %v4578, 16
        %v5025 = vrot.slane %v5023, 3
        %v5026 = vshll.u32 %v4578, 16
        %v5028 = vrot.slane %v5026, 4
        %v5029 = vor.u32 %v5025, %v5028
        %v5030 = vsel %vm735, %v4958, %v5029
        %v5031 = vrot.slane %v4607, 3
        %v5032 = vrot.slane %v4603, 4
        %v5033 = vor.u32 %v5031, %v5032
        %v5034 = vsel %vm735, %v4962, %v5033
        %v5036 = vshrl.u32 %v4609, 16
        %v5038 = vrot.slane %v5036, 3
        %v5039 = vshll.u32 %v4609, 16
        %v5041 = vrot.slane %v5039, 4
        %v5042 = vor.u32 %v5038, %v5041
        %v5043 = vsel %vm735, %v4971, %v5042
        %v5045 = vshrl.u32 %v4617, 16
        %v5047 = vrot.slane %v5045, 3
        %v5048 = vshll.u32 %v4617, 16
        %v5050 = vrot.slane %v5048, 4
        %v5051 = vor.u32 %v5047, %v5050
        %v5052 = vsel %vm735, %v4980, %v5051
        %v5224 = vunpack.c.l.b16 %v4619
        %v5225 = vunpack.c.l.b16 %v4620
        %v5226 = vunpack.c.l.b16 %v4621
        %v5227 = vunpack.c.l.b16 %v4622
        %v5228 = vunpack.c.l.b16 %v4623
        %v5229 = vunpack.c.l.b16 %v4624
        %v5230 = vunpack.c.l.b16 %v4625
        %v5231 = vunpack.c.l.b16 %v4626
        %v5232 = vunpack.c.l.b16 %v4627
        %v5233 = vunpack.c.l.b16 %v4628
        %v5234 = vunpack.c.l.b16 %v4629
        %v5235 = vunpack.c.l.b16 %v4630
        %v5236 = vunpack.c.l.b16 %v4631
        %v5237 = vunpack.c.l.b16 %v4632
        %v5238 = vunpack.c.l.b16 %v4633
        %v5239 = vunpack.c.l.b16 %v4634
        %v5240 = vunpack.c.l.b16 %v4635
        %v5241 = vunpack.c.l.b16 %v4636
        %v5242 = vunpack.c.l.b16 %v4637
        %v5243 = vunpack.c.l.b16 %v4638
        %v5244 = vunpack.c.l.b16 %v4639
        %v5245 = vunpack.c.l.b16 %v4640
        %v5246 = vunpack.c.l.b16 %v4641
        %v5247 = vunpack.c.l.b16 %v4642
        %v5248 = vunpack.c.l.b16 %v4643
        %v5249 = vunpack.c.l.b16 %v4644
        %v5250 = vunpack.c.l.b16 %v4645
        %v5251 = vunpack.c.l.b16 %v4646
        %v5252 = vunpack.c.l.b16 %v4647
        %v5253 = vunpack.c.l.b16 %v4648
        %v5254 = vunpack.c.l.b16 %v4649
        %v5255 = vunpack.c.l.b16 %v4650
        %v5256 = vunpack.c.l.b16 %v4651
        %v5257 = vunpack.c.l.b16 %v4652
        %v5258 = vunpack.c.l.b16 %v4653
        %v5259 = vunpack.c.l.b16 %v4654
        %v5260 = vunpack.c.l.b16 %v4655
        %v5261 = vunpack.c.l.b16 %v4656
        %v5262 = vunpack.c.l.b16 %v4657
        %v5263 = vunpack.c.l.b16 %v4658
        %v5264 = vunpack.c.l.b16 %v4659
        %v5265 = vunpack.c.l.b16 %v4660
        %v5266 = vunpack.c.l.b16 %v4661
        %v5267 = vunpack.c.l.b16 %v4662
        %v5268 = vunpack.c.l.b16 %v4663
        %v5269 = vunpack.c.l.b16 %v4664
        %v5270 = vunpack.c.l.b16 %v4665
        %v5271 = vunpack.c.l.b16 %v4666
        %v5272 = vunpack.c.l.b16 %v4667
        %v5273 = vunpack.c.l.b16 %v4668
        %v5274 = vunpack.c.l.b16 %v4669
        %v5275 = vunpack.c.l.b16 %v4670
        %v5276 = vunpack.c.l.b16 %v4671
        %v5277 = vunpack.c.l.b16 %v4672
        %v5278 = vunpack.c.l.b16 %v4673
        %v5279 = vunpack.c.l.b16 %v4674
        %v5280 = vunpack.c.l.b16 %v4675
        %v5281 = vunpack.c.l.b16 %v4676
        %v5282 = vunpack.c.l.b16 %v4677
        %v5283 = vunpack.c.l.b16 %v4678
        %v5284 = vunpack.c.l.b16 %v4679
        %v5285 = vunpack.c.l.b16 %v4680
        %v5286 = vunpack.c.l.b16 %v4681
        %v5287 = vunpack.c.l.b16 %v4682
        %v5288 = vunpack.c.l.b16 %v4683
        %v5289 = vunpack.c.l.b16 %v4684
        %v5290 = vunpack.c.l.b16 %v4685
        %v5291 = vunpack.c.l.b16 %v4686
        %v5292 = vunpack.c.l.b16 %v4687
        %v5293 = vunpack.c.l.b16 %v4688
        %v5294 = vunpack.c.l.b16 %v4689
        %v5295 = vunpack.c.l.b16 %v4690
        %v5296 = vunpack.c.l.b16 %v4691
        %v5297 = vunpack.c.l.b16 %v4692
        %v5298 = vunpack.c.l.b16 %v4693
        %v5299 = vunpack.c.l.b16 %v4694
        %v5300 = vunpack.c.l.b16 %v4695
        %v5301 = vunpack.c.l.b16 %v4696
        %v5302 = vunpack.c.l.b16 %v4697
        %v5303 = vunpack.c.l.b16 %v4698
        %v5304 = vunpack.c.l.b16 %v4699
        %v5305 = vunpack.c.l.b16 %v4700
        %v5306 = vunpack.c.l.b16 %v4701
        %v5307 = vunpack.c.l.b16 %v4702
        %v5308 = vunpack.c.l.b16 %v4703
        %v5309 = vunpack.c.l.b16 %v4704
        %v5310 = vunpack.c.l.b16 %v4705
        %v5311 = vunpack.c.l.b16 %v4706
        %v5312 = vunpack.c.l.b16 %v4707
        %v5313 = vunpack.c.l.b16 %v4708
        %v5314 = vunpack.c.l.b16 %v4709
        %v5315 = vunpack.c.l.b16 %v4710
        %v5316 = vunpack.c.l.b16 %v4711
        %v5317 = vunpack.c.l.b16 %v4712
        %v5318 = vunpack.c.l.b16 %v4713
        %v5319 = vunpack.c.l.b16 %v4714
        %v5320 = vunpack.c.l.b16 %v4715
        %v5321 = vunpack.c.l.b16 %v4716
        %v5322 = vunpack.c.l.b16 %v4717
        %v5323 = vunpack.c.l.b16 %v4718
        %v5324 = vunpack.c.l.b16 %v4719
        %v5325 = vunpack.c.l.b16 %v4720
        %v5326 = vunpack.c.l.b16 %v4721
        %v5327 = vunpack.c.l.b16 %v4722
        %v5328 = vunpack.c.l.b16 %v4723
        %v5329 = vunpack.c.l.b16 %v4724
        %v5330 = vunpack.c.l.b16 %v4725
        %v5331 = vunpack.c.l.b16 %v4726
        %v5332 = vunpack.c.l.b16 %v4727
        %v5333 = vunpack.c.l.b16 %v4728
        %v5334 = vunpack.c.l.b16 %v4729
        %v5335 = vunpack.c.l.b16 %v4730
        %v5336 = vunpack.c.l.b16 %v4731
        %v5337 = vunpack.c.l.b16 %v4732
        %v5338 = vunpack.c.l.b16 %v4733
        %v5339 = vunpack.c.l.b16 %v4734
        %v5340 = vunpack.c.l.b16 %v4735
        %v5341 = vunpack.c.l.b16 %v4736
        %v5342 = vunpack.c.l.b16 %v4737
        %v5343 = vunpack.c.l.b16 %v4738
        %v5344 = vunpack.c.l.b16 %v4739
        %v5345 = vunpack.c.l.b16 %v4740
        %v5346 = vunpack.c.l.b16 %v4741
        %v5347 = vunpack.c.l.b16 %v4742
        %v5348 = vunpack.c.l.b16 %v4743
        %v5349 = vunpack.c.l.b16 %v4744
        %v5350 = vunpack.c.l.b16 %v4745
        %v5351 = vunpack.c.l.b16 %v4746
        %v5352 = vunpack.c.l.b16 %v4747
        %v5353 = vunpack.c.l.b16 %v4748
        %v5354 = vunpack.c.l.b16 %v4749
        %v5355 = vunpack.c.l.b16 %v4750
        %v5356 = vunpack.c.l.b16 %v4751
        %v5357 = vunpack.c.l.b16 %v4752
        %v5358 = vunpack.c.l.b16 %v4753
        %v5359 = vunpack.c.l.b16 %v4754
        %v5360 = vunpack.c.l.b16 %v4755
        %v5361 = vunpack.c.l.b16 %v4756
        %v5362 = vunpack.c.l.b16 %v4757
        %v5363 = vunpack.c.l.b16 %v4758
        %v5364 = vunpack.c.l.b16 %v4759
        %v5365 = vunpack.c.l.b16 %v4760
        %v5366 = vunpack.c.l.b16 %v4761
        %v5367 = vunpack.c.l.b16 %v4762
        %v5368 = vpack.c.b16 %v5225, %v5224
        %v5369 = vpack.c.b16 %v5227, %v5226
        %v5370 = vpack.c.b16 %v5229, %v5228
        %v5371 = vpack.c.b16 %v5231, %v5230
        %v5372 = vpack.c.b16 %v5233, %v5232
        %v5373 = vpack.c.b16 %v5235, %v5234
        %v5374 = vpack.c.b16 %v5237, %v5236
        %v5375 = vpack.c.b16 %v5239, %v5238
        %v5376 = vpack.c.b16 %v5241, %v5240
        %v5377 = vpack.c.b16 %v5243, %v5242
        %v5378 = vpack.c.b16 %v5245, %v5244
        %v5379 = vpack.c.b16 %v5247, %v5246
        %v5380 = vpack.c.b16 %v5249, %v5248
        %v5381 = vpack.c.b16 %v5251, %v5250
        %v5382 = vpack.c.b16 %v5253, %v5252
        %v5383 = vpack.c.b16 %v5255, %v5254
        %v5384 = vpack.c.b16 %v5257, %v5256
        %v5385 = vpack.c.b16 %v5259, %v5258
        %v5386 = vpack.c.b16 %v5261, %v5260
        %v5387 = vpack.c.b16 %v5263, %v5262
        %v5388 = vpack.c.b16 %v5265, %v5264
        %v5389 = vpack.c.b16 %v5267, %v5266
        %v5390 = vpack.c.b16 %v5269, %v5268
        %v5391 = vpack.c.b16 %v5271, %v5270
        %v5392 = vpack.c.b16 %v5273, %v5272
        %v5393 = vpack.c.b16 %v5275, %v5274
        %v5394 = vpack.c.b16 %v5277, %v5276
        %v5395 = vpack.c.b16 %v5279, %v5278
        %v5396 = vpack.c.b16 %v5281, %v5280
        %v5397 = vpack.c.b16 %v5283, %v5282
        %v5398 = vpack.c.b16 %v5285, %v5284
        %v5399 = vpack.c.b16 %v5287, %v5286
        %v5400 = vpack.c.b16 %v5289, %v5288
        %v5401 = vpack.c.b16 %v5291, %v5290
        %v5402 = vpack.c.b16 %v5293, %v5292
        %v5403 = vpack.c.b16 %v5295, %v5294
        %v5404 = vpack.c.b16 %v5297, %v5296
        %v5405 = vpack.c.b16 %v5299, %v5298
        %v5406 = vpack.c.b16 %v5301, %v5300
        %v5407 = vpack.c.b16 %v5303, %v5302
        %v5408 = vpack.c.b16 %v5305, %v5304
        %v5409 = vpack.c.b16 %v5307, %v5306
        %v5410 = vpack.c.b16 %v5309, %v5308
        %v5411 = vpack.c.b16 %v5311, %v5310
        %v5412 = vpack.c.b16 %v5313, %v5312
        %v5413 = vpack.c.b16 %v5315, %v5314
        %v5414 = vpack.c.b16 %v5317, %v5316
        %v5415 = vpack.c.b16 %v5319, %v5318
        %v5416 = vpack.c.b16 %v5321, %v5320
        %v5417 = vpack.c.b16 %v5323, %v5322
        %v5418 = vpack.c.b16 %v5325, %v5324
        %v5419 = vpack.c.b16 %v5327, %v5326
        %v5420 = vpack.c.b16 %v5329, %v5328
        %v5421 = vpack.c.b16 %v5331, %v5330
        %v5422 = vpack.c.b16 %v5333, %v5332
        %v5423 = vpack.c.b16 %v5335, %v5334
        %v5424 = vpack.c.b16 %v5337, %v5336
        %v5425 = vpack.c.b16 %v5339, %v5338
        %v5426 = vpack.c.b16 %v5341, %v5340
        %v5427 = vpack.c.b16 %v5343, %v5342
        %v5428 = vpack.c.b16 %v5345, %v5344
        %v5429 = vpack.c.b16 %v5347, %v5346
        %v5430 = vpack.c.b16 %v5349, %v5348
        %v5431 = vpack.c.b16 %v5351, %v5350
        %v5432 = vpack.c.b16 %v5353, %v5352
        %v5433 = vpack.c.b16 %v5355, %v5354
        %v5434 = vpack.c.b16 %v5357, %v5356
        %v5435 = vpack.c.b16 %v5359, %v5358
        %v5436 = vpack.c.b16 %v5361, %v5360
        %v5437 = vpack.c.b16 %v5363, %v5362
        %v5438 = vpack.c.b16 %v5365, %v5364
        %v5439 = vpack.c.b16 %v5367, %v5366
        %5512 = vmatprep.subr.bf16.mxu0 0
        %5513 = vmatpush1.bf16.msra.mxu0 %v5368
        %5514 = vmatprep.subr.bf16.mxu0 0
        %5515 = vmatpush1.bf16.msra.mxu0 %v5369
        %5516 = vmatprep.subr.bf16.mxu0 0
        %5517 = vmatpush1.bf16.msra.mxu0 %v5370
        %5518 = vmatprep.subr.bf16.mxu0 0
        %5519 = vmatpush1.bf16.msra.mxu0 %v5371
        %5520 = vmatprep.subr.bf16.mxu0 0
        %5521 = vmatpush1.bf16.msra.mxu0 %v5372
        %5522 = vmatprep.subr.bf16.mxu0 0
        %5523 = vmatpush1.bf16.msra.mxu0 %v5373
        %5524 = vmatprep.subr.bf16.mxu0 0
        %5525 = vmatpush1.bf16.msra.mxu0 %v5374
        %5526 = vmatprep.subr.bf16.mxu0 0
        %5527 = vmatpush1.bf16.msra.mxu0 %v5375
        %5528 = vmatprep.subr.bf16.mxu0 0
        %5529 = vmatpush1.bf16.msra.mxu0 %v5376
        %5530 = vmatprep.subr.bf16.mxu0 0
        %5531 = vmatpush1.bf16.msra.mxu0 %v5377
        %5532 = vmatprep.subr.bf16.mxu0 0
        %5533 = vmatpush1.bf16.msra.mxu0 %v5378
        %5534 = vmatprep.subr.bf16.mxu0 0
        %5535 = vmatpush1.bf16.msra.mxu0 %v5379
        %5536 = vmatprep.subr.bf16.mxu0 0
        %5537 = vmatpush1.bf16.msra.mxu0 %v5380
        %5538 = vmatprep.subr.bf16.mxu0 0
        %5539 = vmatpush1.bf16.msra.mxu0 %v5381
        %5540 = vmatprep.subr.bf16.mxu0 0
        %5541 = vmatpush1.bf16.msra.mxu0 %v5382
        %5542 = vmatprep.subr.bf16.mxu0 0
        %5543 = vmatpush1.bf16.msra.mxu0 %v5383
        %5544 = vmatprep.mubr.bf16.mxu0 %v4796
        %5545 = vmatmul.mubr.bf16.gmra.mrb[0].mxu0 %v4779
        %v5546 = vpop.f32.mrb[0].mxu0
        %v5547 = vadd.f32 %v4767, %v5546
        %v5548 = vpop.f32.mrb[0].mxu0
        %v5549 = vpop.f32.mrb[0].mxu0
        %v5550 = vadd.f32 %v4767, %v5549
        %v5551 = vpop.f32.mrb[0].mxu0
        %5552 = vmatprep.mubr.bf16.mxu0 %v4923
        %5553 = vmatmul.mubr.bf16.gmra.mrb[0].mxu0 %v4914
        %v5554 = vpop.f32.mrb[0].mxu0
        %v5555 = vadd.f32 %v4767, %v5554
        %v5556 = vpop.f32.mrb[0].mxu0
        %v5557 = vpop.f32.mrb[0].mxu0
        %v5558 = vadd.f32 %v4767, %v5557
        %v5559 = vpop.f32.mrb[0].mxu0
        %5560 = vmatprep.mubr.bf16.mxu0 %v4994
        %5561 = vmatmul.mubr.bf16.gmra.mrb[0].mxu0 %v4985
        %v5562 = vpop.f32.mrb[0].mxu0
        %v5563 = vadd.f32 %v4767, %v5562
        %v5564 = vpop.f32.mrb[0].mxu0
        %v5565 = vpop.f32.mrb[0].mxu0
        %v5566 = vadd.f32 %v4767, %v5565
        %v5567 = vpop.f32.mrb[0].mxu0
        %5568 = vdwg.mxu0
        %5569 = vmatprep.subr.bf16.mxu0 0
        %5570 = vmatpush1.bf16.msra.mxu0 %v5384
        %5571 = vmatprep.subr.bf16.mxu0 0
        %5572 = vmatpush1.bf16.msra.mxu0 %v5385
        %5573 = vmatprep.subr.bf16.mxu0 0
        %5574 = vmatpush1.bf16.msra.mxu0 %v5386
        %5575 = vmatprep.subr.bf16.mxu0 0
        %5576 = vmatpush1.bf16.msra.mxu0 %v5387
        %5577 = vmatprep.subr.bf16.mxu0 0
        %5578 = vmatpush1.bf16.msra.mxu0 %v5388
        %5579 = vmatprep.subr.bf16.mxu0 0
        %5580 = vmatpush1.bf16.msra.mxu0 %v5389
        %5581 = vmatprep.subr.bf16.mxu0 0
        %5582 = vmatpush1.bf16.msra.mxu0 %v5390
        %5583 = vmatprep.subr.bf16.mxu0 0
        %5584 = vmatpush1.bf16.msra.mxu0 %v5391
        %5585 = vmatprep.subr.bf16.mxu0 0
        %5586 = vmatpush1.bf16.msra.mxu0 %v5392
        %5587 = vmatprep.subr.bf16.mxu0 0
        %5588 = vmatpush1.bf16.msra.mxu0 %v5393
        %5589 = vmatprep.subr.bf16.mxu0 0
        %5590 = vmatpush1.bf16.msra.mxu0 %v5394
        %5591 = vmatprep.subr.bf16.mxu0 0
        %5592 = vmatpush1.bf16.msra.mxu0 %v5395
        %5593 = vmatprep.subr.bf16.mxu0 0
        %5594 = vmatpush1.bf16.msra.mxu0 %v5396
        %5595 = vmatprep.subr.bf16.mxu0 0
        %5596 = vmatpush1.bf16.msra.mxu0 %v5397
        %5597 = vmatprep.subr.bf16.mxu0 0
        %5598 = vmatpush1.bf16.msra.mxu0 %v5398
        %5599 = vmatprep.subr.bf16.mxu0 0
        %5600 = vmatpush1.bf16.msra.mxu0 %v5399
        %5601 = vmatprep.mubr.bf16.mxu0 %v4830
        %5602 = vmatmul.mubr.bf16.gmra.mrb[0].mxu0 %v4813
        %v5603 = vpop.f32.mrb[0].mxu0
        %v5604 = vadd.f32 %v5547, %v5603
        %v5605 = vpop.f32.mrb[0].mxu0
        %v5606 = vpop.f32.mrb[0].mxu0
        %v5607 = vadd.f32 %v5550, %v5606
        %v5608 = vpop.f32.mrb[0].mxu0
        %5609 = vmatprep.mubr.bf16.mxu0 %v4941
        %5610 = vmatmul.mubr.bf16.gmra.mrb[0].mxu0 %v4932
        %v5611 = vpop.f32.mrb[0].mxu0
        %v5612 = vadd.f32 %v5555, %v5611
        %v5613 = vpop.f32.mrb[0].mxu0
        %v5614 = vpop.f32.mrb[0].mxu0
        %v5615 = vadd.f32 %v5558, %v5614
        %v5616 = vpop.f32.mrb[0].mxu0
        %5617 = vmatprep.mubr.bf16.mxu0 %v5012
        %5618 = vmatmul.mubr.bf16.gmra.mrb[0].mxu0 %v5003
        %v5619 = vpop.f32.mrb[0].mxu0
        %v5620 = vadd.f32 %v5563, %v5619
        %v5621 = vpop.f32.mrb[0].mxu0
        %v5622 = vpop.f32.mrb[0].mxu0
        %v5623 = vadd.f32 %v5566, %v5622
        %v5624 = vpop.f32.mrb[0].mxu0
        %5625 = vdwg.mxu0
        %5626 = vmatprep.subr.bf16.mxu0 0
        %5627 = vmatpush1.bf16.msra.mxu0 %v5400
        %5628 = vmatprep.subr.bf16.mxu0 0
        %5629 = vmatpush1.bf16.msra.mxu0 %v5401
        %5630 = vmatprep.subr.bf16.mxu0 0
        %5631 = vmatpush1.bf16.msra.mxu0 %v5402
        %5632 = vmatprep.subr.bf16.mxu0 0
        %5633 = vmatpush1.bf16.msra.mxu0 %v5403
        %5634 = vmatprep.subr.bf16.mxu0 0
        %5635 = vmatpush1.bf16.msra.mxu0 %v5404
        %5636 = vmatprep.subr.bf16.mxu0 0
        %5637 = vmatpush1.bf16.msra.mxu0 %v5405
        %5638 = vmatprep.subr.bf16.mxu0 0
        %5639 = vmatpush1.bf16.msra.mxu0 %v5406
        %5640 = vmatprep.subr.bf16.mxu0 0
        %5641 = vmatpush1.bf16.msra.mxu0 %v5407
        %5642 = vmatprep.subr.bf16.mxu0 0
        %5643 = vmatpush1.bf16.msra.mxu0 %v5408
        %5644 = vmatprep.subr.bf16.mxu0 0
        %5645 = vmatpush1.bf16.msra.mxu0 %v5409
        %5646 = vmatprep.subr.bf16.mxu0 0
        %5647 = vmatpush1.bf16.msra.mxu0 %v5410
        %5648 = vmatprep.subr.bf16.mxu0 0
        %5649 = vmatpush1.bf16.msra.mxu0 %v5411
        %5650 = vmatprep.subr.bf16.mxu0 0
        %5651 = vmatpush1.bf16.msra.mxu0 %v5412
        %5652 = vmatprep.subr.bf16.mxu0 0
        %5653 = vmatpush1.bf16.msra.mxu0 %v5413
        %5654 = vmatprep.subr.bf16.mxu0 0
        %5655 = vmatpush1.bf16.msra.mxu0 %v5414
        %5656 = vmatprep.subr.bf16.mxu0 0
        %5657 = vmatpush1.bf16.msra.mxu0 %v5415
        %5658 = vmatprep.mubr.bf16.mxu0 %v4864
        %5659 = vmatmul.mubr.bf16.gmra.mrb[0].mxu0 %v4847
        %v5660 = vpop.f32.mrb[0].mxu0
        %v5661 = vadd.f32 %v5604, %v5660
        %v5662 = vpop.f32.mrb[0].mxu0
        %v5663 = vpop.f32.mrb[0].mxu0
        %v5664 = vadd.f32 %v5607, %v5663
        %v5665 = vpop.f32.mrb[0].mxu0
        %5666 = vmatprep.mubr.bf16.mxu0 %v4959
        %5667 = vmatmul.mubr.bf16.gmra.mrb[0].mxu0 %v4950
        %v5668 = vpop.f32.mrb[0].mxu0
        %v5669 = vadd.f32 %v5612, %v5668
        %v5670 = vpop.f32.mrb[0].mxu0
        %v5671 = vpop.f32.mrb[0].mxu0
        %v5672 = vadd.f32 %v5615, %v5671
        %v5673 = vpop.f32.mrb[0].mxu0
        %5674 = vmatprep.mubr.bf16.mxu0 %v5030
        %5675 = vmatmul.mubr.bf16.gmra.mrb[0].mxu0 %v5021
        %v5676 = vpop.f32.mrb[0].mxu0
        %v5677 = vadd.f32 %v5620, %v5676
        %v5678 = vpop.f32.mrb[0].mxu0
        %v5679 = vpop.f32.mrb[0].mxu0
        %v5680 = vadd.f32 %v5623, %v5679
        %v5681 = vpop.f32.mrb[0].mxu0
        %5682 = vdwg.mxu0
        %5683 = vmatprep.subr.bf16.mxu0 0
        %5684 = vmatpush1.bf16.msra.mxu0 %v5416
        %5685 = vmatprep.subr.bf16.mxu0 0
        %5686 = vmatpush1.bf16.msra.mxu0 %v5417
        %5687 = vmatprep.subr.bf16.mxu0 0
        %5688 = vmatpush1.bf16.msra.mxu0 %v5418
        %5689 = vmatprep.subr.bf16.mxu0 0
        %5690 = vmatpush1.bf16.msra.mxu0 %v5419
        %5691 = vmatprep.subr.bf16.mxu0 0
        %5692 = vmatpush1.bf16.msra.mxu0 %v5420
        %5693 = vmatprep.subr.bf16.mxu0 0
        %5694 = vmatpush1.bf16.msra.mxu0 %v5421
        %5695 = vmatprep.subr.bf16.mxu0 0
        %5696 = vmatpush1.bf16.msra.mxu0 %v5422
        %5697 = vmatprep.subr.bf16.mxu0 0
        %5698 = vmatpush1.bf16.msra.mxu0 %v5423
        %5699 = vmatprep.subr.bf16.mxu0 0
        %5700 = vmatpush1.bf16.msra.mxu0 %v5424
        %5701 = vmatprep.subr.bf16.mxu0 0
        %5702 = vmatpush1.bf16.msra.mxu0 %v5425
        %5703 = vmatprep.subr.bf16.mxu0 0
        %5704 = vmatpush1.bf16.msra.mxu0 %v5426
        %5705 = vmatprep.subr.bf16.mxu0 0
        %5706 = vmatpush1.bf16.msra.mxu0 %v5427
        %5707 = vmatprep.subr.bf16.mxu0 0
        %5708 = vmatpush1.bf16.msra.mxu0 %v5428
        %5709 = vmatprep.subr.bf16.mxu0 0
        %5710 = vmatpush1.bf16.msra.mxu0 %v5429
        %5711 = vmatprep.subr.bf16.mxu0 0
        %5712 = vmatpush1.bf16.msra.mxu0 %v5430
        %5713 = vmatprep.subr.bf16.mxu0 0
        %5714 = vmatpush1.bf16.msra.mxu0 %v5431
        %5715 = vmatprep.mubr.bf16.mxu0 %v4893
        %5716 = vmatmul.mubr.bf16.gmra.mrb[0].mxu0 %v4876
        %v5717 = vpop.f32.mrb[0].mxu0
        %v5718 = vadd.f32 %v5661, %v5717
        %v5719 = vpop.f32.mrb[0].mxu0
        %v5720 = vpop.f32.mrb[0].mxu0
        %v5721 = vadd.f32 %v5664, %v5720
        %v5722 = vpop.f32.mrb[0].mxu0
        %5723 = vmatprep.mubr.bf16.mxu0 %v4972
        %5724 = vmatmul.mubr.bf16.gmra.mrb[0].mxu0 %v4963
        %v5725 = vpop.f32.mrb[0].mxu0
        %v5726 = vadd.f32 %v5669, %v5725
        %v5727 = vpop.f32.mrb[0].mxu0
        %v5728 = vpop.f32.mrb[0].mxu0
        %v5729 = vadd.f32 %v5672, %v5728
        %v5730 = vpop.f32.mrb[0].mxu0
        %5731 = vmatprep.mubr.bf16.mxu0 %v5043
        %5732 = vmatmul.mubr.bf16.gmra.mrb[0].mxu0 %v5034
        %v5733 = vpop.f32.mrb[0].mxu0
        %v5734 = vadd.f32 %v5677, %v5733
        %v5735 = vpop.f32.mrb[0].mxu0
        %v5736 = vpop.f32.mrb[0].mxu0
        %v5737 = vadd.f32 %v5680, %v5736
        %v5738 = vpop.f32.mrb[0].mxu0
        %5739 = vdwg.mxu0
        %5740 = vmatprep.subr.bf16.mxu0 0
        %5741 = vmatpush1.bf16.msra.mxu0 %v5432
        %5742 = vmatprep.subr.bf16.mxu0 0
        %5743 = vmatpush1.bf16.msra.mxu0 %v5433
        %5744 = vmatprep.subr.bf16.mxu0 0
        %5745 = vmatpush1.bf16.msra.mxu0 %v5434
        %5746 = vmatprep.subr.bf16.mxu0 0
        %5747 = vmatpush1.bf16.msra.mxu0 %v5435
        %5748 = vmatprep.subr.bf16.mxu0 0
        %5749 = vmatpush1.bf16.msra.mxu0 %v5436
        %5750 = vmatprep.subr.bf16.mxu0 0
        %5751 = vmatpush1.bf16.msra.mxu0 %v5437
        %5752 = vmatprep.subr.bf16.mxu0 0
        %5753 = vmatpush1.bf16.msra.mxu0 %v5438
        %5754 = vmatprep.subr.bf16.mxu0 0
        %5755 = vmatpush1.bf16.msra.mxu0 %v5439
        %5756 = vmatprep.subr.bf16.mxu0 0
        %5757 = vmatpush1.bf16.msra.mxu0 0
        %5758 = vmatprep.subr.bf16.mxu0 0
        %5759 = vmatpush1.bf16.msra.mxu0 0
        %5760 = vmatprep.subr.bf16.mxu0 0
        %5761 = vmatpush1.bf16.msra.mxu0 0
        %5762 = vmatprep.subr.bf16.mxu0 0
        %5763 = vmatpush1.bf16.msra.mxu0 0
        %5764 = vmatprep.subr.bf16.mxu0 0
        %5765 = vmatpush1.bf16.msra.mxu0 0
        %5766 = vmatprep.subr.bf16.mxu0 0
        %5767 = vmatpush1.bf16.msra.mxu0 0
        %5768 = vmatprep.subr.bf16.mxu0 0
        %5769 = vmatpush1.bf16.msra.mxu0 0
        %5770 = vmatprep.subr.bf16.mxu0 0
        %5771 = vmatpush1.bf16.msra.mxu0 0
        %5772 = vmatprep.mubr.bf16.mxu0 0
        %5773 = vmatmul.mubr.bf16.gmra.mrb[0].mxu0 %v4910
        %v5774 = vpop.f32.mrb[0].mxu0
        %v5775 = vadd.f32 %v5718, %v5774
        %v5776 = vpop.f32.mrb[0].mxu0
        %v5777 = vpop.f32.mrb[0].mxu0
        %v5778 = vadd.f32 %v5721, %v5777
        %v5779 = vpop.f32.mrb[0].mxu0
        %5780 = vmatprep.mubr.bf16.mxu0 0
        %5781 = vmatmul.mubr.bf16.gmra.mrb[0].mxu0 %v4981
        %v5782 = vpop.f32.mrb[0].mxu0
        %v5783 = vadd.f32 %v5726, %v5782
        %v5784 = vpop.f32.mrb[0].mxu0
        %v5785 = vpop.f32.mrb[0].mxu0
        %v5786 = vadd.f32 %v5729, %v5785
        %v5787 = vpop.f32.mrb[0].mxu0
        %5788 = vmatprep.mubr.bf16.mxu0 0
        %5789 = vmatmul.mubr.bf16.gmra.mrb[0].mxu0 %v5052
        %v5790 = vpop.f32.mrb[0].mxu0
        %v5791 = vadd.f32 %v5734, %v5790
        %v5792 = vpop.f32.mrb[0].mxu0
        %v5793 = vpop.f32.mrb[0].mxu0
        %v5794 = vadd.f32 %v5737, %v5793
        %v5795 = vpop.f32.mrb[0].mxu0
        %5796 = vdwg.mxu0
        %vm5797 = vcmp.ge.f32.partialorder %v5775, 0.0
        %vm5798 = vcmp.ge.f32.partialorder %v5778, 0.0
        %vm5799 = vcmp.ge.f32.partialorder %v5783, 0.0
        %vm5800 = vcmp.ge.f32.partialorder %v5786, 0.0
        %vm5801 = vcmp.ge.f32.partialorder %v5791, 0.0
        %vm5802 = vcmp.ge.f32.partialorder %v5794, 0.0
        %v5803 = vld [vmem:[#allocation9 + $0x3] sm:$0x1]
        %v5804 = vlaneseq
        %v5805 = vshrl.u32 %v5804, 7
        %v5806 = vsub.s32 0, %v5805
        %v5807 = vrot.slane %v5803, %v5806
        %v5808 = vmul.f32 %v5775, %v5807
        %v5809 = vmul.f32 %v5778, %v5807
        %v5810 = vmul.f32 %v5783, %v5807
        %v5811 = vmul.f32 %v5786, %v5807
        %v5812 = vmul.f32 %v5791, %v5807
        %v5813 = vmul.f32 %v5794, %v5807
        %v5814 = vsel %vm5797, %v5775, %v5808
        %v5815 = vsel %vm5798, %v5778, %v5809
        %v5816 = vsel %vm5799, %v5783, %v5810
        %v5817 = vsel %vm5800, %v5786, %v5811
        %v5818 = vsel %vm5801, %v5791, %v5812
        %v5819 = vsel %vm5802, %v5794, %v5813
        %v5820 = vpack.c.bf16 %v5815, %v5814
        %v5821 = vpack.c.bf16 %v5817, %v5816
        %v5822 = vpack.c.bf16 %v5819, %v5818
        %v5823 = vmul.bf16 %v5820, %v444
        %v5824 = vmul.bf16 %v5821, %v445
        %v5825 = vmul.bf16 %v5822, %v446
        %5826 = vst [vmem:[#allocation2 + $0x8] sm:$0xff] %v5823
        %5827 = vst [vmem:[#allocation2 + $0x10] sm:$0xff] %v5824
        %5828 = vst [vmem:[#allocation2 + $0x18] sm:$0xff] %v5825
        %v5829 = vld [vmem:[#allocation2] sm:$0xf8]
        %v5830 = vld [vmem:[#allocation2 + $0x8] sm:$0xff]
        %v5831 = vld [vmem:[#allocation2 + $0x10] sm:$0xff]
        %v5832 = vld [vmem:[#allocation2 + $0x18] sm:$0xf]
        %v5833 = vld [vmem:[#allocation2] sm:$0xf0]
        %v5834 = vld [vmem:[#allocation2 + $0x18] sm:$0x1f]
        %v5835 = vld [vmem:[#allocation2] sm:$0x80]
        %v5836 = vld [vmem:[#allocation2 + $0x18] sm:$0xff]
        %v5837 = vld [vmem:[#allocation2 + $0x8] sm:$0xff]
        %v5838 = vld [vmem:[#allocation2 + $0x10] sm:$0xff]
        %v5839 = vld [vmem:[#allocation2 + $0x18] sm:$0xff]
        %v5840 = vld [vmem:[#allocation2 + $0x20] sm:$0x1]
        %v5841 = vld [vmem:[#allocation2 + $0x8] sm:$0xf8]
        %v5842 = vld [vmem:[#allocation2 + $0x20] sm:$0xf]
        %v5843 = vld [vmem:[#allocation2 + $0x8] sm:$0xf0]
        %v5844 = vld [vmem:[#allocation2 + $0x20] sm:$0x1f]
        %v5846 = vshrl.u32 %v5833, 16
        %v5848 = vshll.u32 %v5833, 16
        %v5850 = vrot.slane %v5848, 1
        %v5851 = vor.u32 %v5846, %v5850
        %v5853 = vshll.u32 %v5830, 16
        %v5855 = vrot.slane %v5853, 1
        %v5856 = vsel %vm463, %v5851, %v5855
        %v5857 = vshrl.u32 %v5830, 16
        %v5859 = vor.u32 %v5857, %v5855
        %v5861 = vshll.u32 %v5831, 16
        %v5863 = vrot.slane %v5861, 1
        %v5864 = vsel %vm463, %v5859, %v5863
        %v5865 = vshrl.u32 %v5831, 16
        %v5867 = vor.u32 %v5865, %v5863
        %v5869 = vshll.u32 %v5832, 16
        %v5871 = vrot.slane %v5869, 1
        %v5872 = vsel %vm463, %v5867, %v5871
        %v5873 = vshrl.u32 %v5832, 16
        %v5875 = vor.u32 %v5873, %v5871
        %v5880 = vrot.slane %v5833, 1
        %v5881 = vrot.slane %v5830, 1
        %v5882 = vsel %vm499, %v5880, %v5881
        %v5883 = vrot.slane %v5831, 1
        %v5884 = vsel %vm499, %v5881, %v5883
        %v5885 = vrot.slane %v5834, 1
        %v5886 = vsel %vm499, %v5883, %v5885
        %v5889 = vrot.slane %v5835, 4
        %v5890 = vrot.slane %v5830, 4
        %v5891 = vsel %vm509, %v5889, %v5890
        %v5892 = vrot.slane %v5831, 4
        %v5893 = vsel %vm509, %v5890, %v5892
        %v5894 = vrot.slane %v5836, 4
        %v5895 = vsel %vm509, %v5892, %v5894
        %v5896 = vrot.slane %v5857, 4
        %v5897 = vrot.slane %v5853, 5
        %v5898 = vor.u32 %v5896, %v5897
        %v5899 = vrot.slane %v5865, 4
        %v5900 = vrot.slane %v5861, 5
        %v5901 = vor.u32 %v5899, %v5900
        %v5902 = vsel %vm517, %v5898, %v5901
        %v5904 = vshrl.u32 %v5836, 16
        %v5906 = vrot.slane %v5904, 4
        %v5907 = vshll.u32 %v5836, 16
        %v5909 = vrot.slane %v5907, 5
        %v5910 = vor.u32 %v5906, %v5909
        %v5911 = vsel %vm517, %v5901, %v5910
        %v5916 = vrot.slane %v5837, 5
        %v5917 = vrot.slane %v5838, 5
        %v5918 = vsel %vm538, %v5916, %v5917
        %v5919 = vrot.slane %v5839, 5
        %v5920 = vsel %vm538, %v5917, %v5919
        %v5921 = vrot.slane %v5840, 5
        %v5922 = vsel %vm538, %v5919, %v5921
        %v5924 = vshrl.u32 %v5843, 16
        %v5926 = vshll.u32 %v5843, 16
        %v5928 = vrot.slane %v5926, 1
        %v5929 = vor.u32 %v5924, %v5928
        %v5931 = vshll.u32 %v5838, 16
        %v5933 = vrot.slane %v5931, 1
        %v5934 = vsel %vm463, %v5929, %v5933
        %v5935 = vshrl.u32 %v5838, 16
        %v5937 = vor.u32 %v5935, %v5933
        %v5939 = vshll.u32 %v5839, 16
        %v5941 = vrot.slane %v5939, 1
        %v5942 = vsel %vm463, %v5937, %v5941
        %v5943 = vshrl.u32 %v5839, 16
        %v5945 = vor.u32 %v5943, %v5941
        %v5947 = vshll.u32 %v5842, 16
        %v5949 = vrot.slane %v5947, 1
        %v5950 = vsel %vm463, %v5945, %v5949
        %v5951 = vshrl.u32 %v5842, 16
        %v5953 = vor.u32 %v5951, %v5949
        %v5956 = vrot.slane %v5843, 1
        %v5957 = vrot.slane %v5838, 1
        %v5958 = vsel %vm499, %v5956, %v5957
        %v5959 = vrot.slane %v5839, 1
        %v5960 = vsel %vm499, %v5957, %v5959
        %v5961 = vrot.slane %v5844, 1
        %v5962 = vsel %vm499, %v5959, %v5961
        %v5963 = vld [vmem:[#allocation6 + $0x900] sm:$0xf]
        %v5964 = vld [vmem:[#allocation6 + $0x904] sm:$0xf]
        %v5965 = vld [vmem:[#allocation6 + $0x908] sm:$0xf]
        %v5966 = vld [vmem:[#allocation6 + $0x90c] sm:$0xf]
        %v5967 = vld [vmem:[#allocation6 + $0x910] sm:$0xf]
        %v5968 = vld [vmem:[#allocation6 + $0x914] sm:$0xf]
        %v5969 = vld [vmem:[#allocation6 + $0x918] sm:$0xf]
        %v5970 = vld [vmem:[#allocation6 + $0x91c] sm:$0xf]
        %v5971 = vld [vmem:[#allocation6 + $0x920] sm:$0xf]
        %v5972 = vld [vmem:[#allocation6 + $0x924] sm:$0xf]
        %v5973 = vld [vmem:[#allocation6 + $0x928] sm:$0xf]
        %v5974 = vld [vmem:[#allocation6 + $0x92c] sm:$0xf]
        %v5975 = vld [vmem:[#allocation6 + $0x930] sm:$0xf]
        %v5976 = vld [vmem:[#allocation6 + $0x934] sm:$0xf]
        %v5977 = vld [vmem:[#allocation6 + $0x938] sm:$0xf]
        %v5978 = vld [vmem:[#allocation6 + $0x93c] sm:$0xf]
        %v5979 = vld [vmem:[#allocation6 + $0x940] sm:$0xf]
        %v5980 = vld [vmem:[#allocation6 + $0x944] sm:$0xf]
        %v5981 = vld [vmem:[#allocation6 + $0x948] sm:$0xf]
        %v5982 = vld [vmem:[#allocation6 + $0x94c] sm:$0xf]
        %v5983 = vld [vmem:[#allocation6 + $0x950] sm:$0xf]
        %v5984 = vld [vmem:[#allocation6 + $0x954] sm:$0xf]
        %v5985 = vld [vmem:[#allocation6 + $0x958] sm:$0xf]
        %v5986 = vld [vmem:[#allocation6 + $0x95c] sm:$0xf]
        %v5987 = vld [vmem:[#allocation6 + $0x960] sm:$0xf]
        %v5988 = vld [vmem:[#allocation6 + $0x964] sm:$0xf]
        %v5989 = vld [vmem:[#allocation6 + $0x968] sm:$0xf]
        %v5990 = vld [vmem:[#allocation6 + $0x96c] sm:$0xf]
        %v5991 = vld [vmem:[#allocation6 + $0x970] sm:$0xf]
        %v5992 = vld [vmem:[#allocation6 + $0x974] sm:$0xf]
        %v5993 = vld [vmem:[#allocation6 + $0x978] sm:$0xf]
        %v5994 = vld [vmem:[#allocation6 + $0x97c] sm:$0xf]
        %v5995 = vld [vmem:[#allocation6 + $0x980] sm:$0xf]
        %v5996 = vld [vmem:[#allocation6 + $0x984] sm:$0xf]
        %v5997 = vld [vmem:[#allocation6 + $0x988] sm:$0xf]
        %v5998 = vld [vmem:[#allocation6 + $0x98c] sm:$0xf]
        %v5999 = vld [vmem:[#allocation6 + $0x990] sm:$0xf]
        %v6000 = vld [vmem:[#allocation6 + $0x994] sm:$0xf]
        %v6001 = vld [vmem:[#allocation6 + $0x998] sm:$0xf]
        %v6002 = vld [vmem:[#allocation6 + $0x99c] sm:$0xf]
        %v6003 = vld [vmem:[#allocation6 + $0x9a0] sm:$0xf]
        %v6004 = vld [vmem:[#allocation6 + $0x9a4] sm:$0xf]
        %v6005 = vld [vmem:[#allocation6 + $0x9a8] sm:$0xf]
        %v6006 = vld [vmem:[#allocation6 + $0x9ac] sm:$0xf]
        %v6007 = vld [vmem:[#allocation6 + $0x9b0] sm:$0xf]
        %v6008 = vld [vmem:[#allocation6 + $0x9b4] sm:$0xf]
        %v6009 = vld [vmem:[#allocation6 + $0x9b8] sm:$0xf]
        %v6010 = vld [vmem:[#allocation6 + $0x9bc] sm:$0xf]
        %v6011 = vld [vmem:[#allocation6 + $0x9c0] sm:$0xf]
        %v6012 = vld [vmem:[#allocation6 + $0x9c4] sm:$0xf]
        %v6013 = vld [vmem:[#allocation6 + $0x9c8] sm:$0xf]
        %v6014 = vld [vmem:[#allocation6 + $0x9cc] sm:$0xf]
        %v6015 = vld [vmem:[#allocation6 + $0x9d0] sm:$0xf]
        %v6016 = vld [vmem:[#allocation6 + $0x9d4] sm:$0xf]
        %v6017 = vld [vmem:[#allocation6 + $0x9d8] sm:$0xf]
        %v6018 = vld [vmem:[#allocation6 + $0x9dc] sm:$0xf]
        %v6019 = vld [vmem:[#allocation6 + $0x9e0] sm:$0xf]
        %v6020 = vld [vmem:[#allocation6 + $0x9e4] sm:$0xf]
        %v6021 = vld [vmem:[#allocation6 + $0x9e8] sm:$0xf]
        %v6022 = vld [vmem:[#allocation6 + $0x9ec] sm:$0xf]
        %v6023 = vld [vmem:[#allocation6 + $0x9f0] sm:$0xf]
        %v6024 = vld [vmem:[#allocation6 + $0x9f4] sm:$0xf]
        %v6025 = vld [vmem:[#allocation6 + $0x9f8] sm:$0xf]
        %v6026 = vld [vmem:[#allocation6 + $0x9fc] sm:$0xf]
        %v6027 = vld [vmem:[#allocation6 + $0xa00] sm:$0xf]
        %v6028 = vld [vmem:[#allocation6 + $0xa04] sm:$0xf]
        %v6029 = vld [vmem:[#allocation6 + $0xa08] sm:$0xf]
        %v6030 = vld [vmem:[#allocation6 + $0xa0c] sm:$0xf]
        %v6031 = vld [vmem:[#allocation6 + $0xa10] sm:$0xf]
        %v6032 = vld [vmem:[#allocation6 + $0xa14] sm:$0xf]
        %v6033 = vld [vmem:[#allocation6 + $0xa18] sm:$0xf]
        %v6034 = vld [vmem:[#allocation6 + $0xa1c] sm:$0xf]
        %v6035 = vld [vmem:[#allocation6 + $0xa20] sm:$0xf]
        %v6036 = vld [vmem:[#allocation6 + $0xa24] sm:$0xf]
        %v6037 = vld [vmem:[#allocation6 + $0xa28] sm:$0xf]
        %v6038 = vld [vmem:[#allocation6 + $0xa2c] sm:$0xf]
        %v6039 = vld [vmem:[#allocation6 + $0xa30] sm:$0xf]
        %v6040 = vld [vmem:[#allocation6 + $0xa34] sm:$0xf]
        %v6041 = vld [vmem:[#allocation6 + $0xa38] sm:$0xf]
        %v6042 = vld [vmem:[#allocation6 + $0xa3c] sm:$0xf]
        %v6043 = vld [vmem:[#allocation6 + $0xa40] sm:$0xf]
        %v6044 = vld [vmem:[#allocation6 + $0xa44] sm:$0xf]
        %v6045 = vld [vmem:[#allocation6 + $0xa48] sm:$0xf]
        %v6046 = vld [vmem:[#allocation6 + $0xa4c] sm:$0xf]
        %v6047 = vld [vmem:[#allocation6 + $0xa50] sm:$0xf]
        %v6048 = vld [vmem:[#allocation6 + $0xa54] sm:$0xf]
        %v6049 = vld [vmem:[#allocation6 + $0xa58] sm:$0xf]
        %v6050 = vld [vmem:[#allocation6 + $0xa5c] sm:$0xf]
        %v6051 = vld [vmem:[#allocation6 + $0xa60] sm:$0xf]
        %v6052 = vld [vmem:[#allocation6 + $0xa64] sm:$0xf]
        %v6053 = vld [vmem:[#allocation6 + $0xa68] sm:$0xf]
        %v6054 = vld [vmem:[#allocation6 + $0xa6c] sm:$0xf]
        %v6055 = vld [vmem:[#allocation6 + $0xa70] sm:$0xf]
        %v6056 = vld [vmem:[#allocation6 + $0xa74] sm:$0xf]
        %v6057 = vld [vmem:[#allocation6 + $0xa78] sm:$0xf]
        %v6058 = vld [vmem:[#allocation6 + $0xa7c] sm:$0xf]
        %v6059 = vld [vmem:[#allocation6 + $0xa80] sm:$0xf]
        %v6060 = vld [vmem:[#allocation6 + $0xa84] sm:$0xf]
        %v6061 = vld [vmem:[#allocation6 + $0xa88] sm:$0xf]
        %v6062 = vld [vmem:[#allocation6 + $0xa8c] sm:$0xf]
        %v6063 = vld [vmem:[#allocation6 + $0xa90] sm:$0xf]
        %v6064 = vld [vmem:[#allocation6 + $0xa94] sm:$0xf]
        %v6065 = vld [vmem:[#allocation6 + $0xa98] sm:$0xf]
        %v6066 = vld [vmem:[#allocation6 + $0xa9c] sm:$0xf]
        %v6067 = vld [vmem:[#allocation6 + $0xaa0] sm:$0xf]
        %v6068 = vld [vmem:[#allocation6 + $0xaa4] sm:$0xf]
        %v6069 = vld [vmem:[#allocation6 + $0xaa8] sm:$0xf]
        %v6070 = vld [vmem:[#allocation6 + $0xaac] sm:$0xf]
        %v6071 = vld [vmem:[#allocation6 + $0xab0] sm:$0xf]
        %v6072 = vld [vmem:[#allocation6 + $0xab4] sm:$0xf]
        %v6073 = vld [vmem:[#allocation6 + $0xab8] sm:$0xf]
        %v6074 = vld [vmem:[#allocation6 + $0xabc] sm:$0xf]
        %v6075 = vld [vmem:[#allocation6 + $0xac0] sm:$0xf]
        %v6076 = vld [vmem:[#allocation6 + $0xac4] sm:$0xf]
        %v6077 = vld [vmem:[#allocation6 + $0xac8] sm:$0xf]
        %v6078 = vld [vmem:[#allocation6 + $0xacc] sm:$0xf]
        %v6079 = vld [vmem:[#allocation6 + $0xad0] sm:$0xf]
        %v6080 = vld [vmem:[#allocation6 + $0xad4] sm:$0xf]
        %v6081 = vld [vmem:[#allocation6 + $0xad8] sm:$0xf]
        %v6082 = vld [vmem:[#allocation6 + $0xadc] sm:$0xf]
        %v6083 = vld [vmem:[#allocation6 + $0xae0] sm:$0xf]
        %v6084 = vld [vmem:[#allocation6 + $0xae4] sm:$0xf]
        %v6085 = vld [vmem:[#allocation6 + $0xae8] sm:$0xf]
        %v6086 = vld [vmem:[#allocation6 + $0xaec] sm:$0xf]
        %v6087 = vld [vmem:[#allocation6 + $0xaf0] sm:$0xf]
        %v6088 = vld [vmem:[#allocation6 + $0xaf4] sm:$0xf]
        %v6089 = vld [vmem:[#allocation6 + $0xaf8] sm:$0xf]
        %v6090 = vld [vmem:[#allocation6 + $0xafc] sm:$0xf]
        %v6091 = vld [vmem:[#allocation6 + $0xb00] sm:$0xf]
        %v6092 = vld [vmem:[#allocation6 + $0xb04] sm:$0xf]
        %v6093 = vld [vmem:[#allocation6 + $0xb08] sm:$0xf]
        %v6094 = vld [vmem:[#allocation6 + $0xb0c] sm:$0xf]
        %v6095 = vld [vmem:[#allocation6 + $0xb10] sm:$0xf]
        %v6096 = vld [vmem:[#allocation6 + $0xb14] sm:$0xf]
        %v6097 = vld [vmem:[#allocation6 + $0xb18] sm:$0xf]
        %v6098 = vld [vmem:[#allocation6 + $0xb1c] sm:$0xf]
        %v6099 = vld [vmem:[#allocation6 + $0xb20] sm:$0xf]
        %v6100 = vld [vmem:[#allocation6 + $0xb24] sm:$0xf]
        %v6101 = vld [vmem:[#allocation6 + $0xb28] sm:$0xf]
        %v6102 = vld [vmem:[#allocation6 + $0xb2c] sm:$0xf]
        %v6103 = vld [vmem:[#allocation6 + $0xb30] sm:$0xf]
        %v6104 = vld [vmem:[#allocation6 + $0xb34] sm:$0xf]
        %v6105 = vld [vmem:[#allocation6 + $0xb38] sm:$0xf]
        %v6106 = vld [vmem:[#allocation6 + $0xb3c] sm:$0xf]
        %v6107 = vld [vmem:[#allocation8 + $0x4] sm:$0x1]
        %v6108 = vlaneseq
        %v6109 = vshrl.u32 %v6108, 7
        %v6110 = vsub.s32 0, %v6109
        %v6111 = vrot.slane %v6107, %v6110
        %v6113 = vshrl.u32 %v5829, 16
        %v6115 = vrot.slane %v6113, 3
        %v6116 = vshll.u32 %v5829, 16
        %v6118 = vrot.slane %v6116, 4
        %v6119 = vor.u32 %v6115, %v6118
        %v6120 = vrot.slane %v5857, 3
        %v6121 = vrot.slane %v5853, 4
        %v6122 = vor.u32 %v6120, %v6121
        %v6123 = vsel %vm735, %v6119, %v6122
        %v6125 = vshrl.u32 %v5856, 16
        %v6127 = vrot.slane %v6125, 3
        %v6128 = vshll.u32 %v5856, 16
        %v6130 = vrot.slane %v6128, 4
        %v6131 = vor.u32 %v6127, %v6130
        %v6133 = vshrl.u32 %v5864, 16
        %v6135 = vrot.slane %v6133, 3
        %v6136 = vshll.u32 %v5864, 16
        %v6138 = vrot.slane %v6136, 4
        %v6139 = vor.u32 %v6135, %v6138
        %v6140 = vsel %vm735, %v6131, %v6139
        %v6142 = vshrl.u32 %v5882, 16
        %v6144 = vrot.slane %v6142, 3
        %v6145 = vshll.u32 %v5882, 16
        %v6147 = vrot.slane %v6145, 4
        %v6148 = vor.u32 %v6144, %v6147
        %v6150 = vshrl.u32 %v5884, 16
        %v6152 = vrot.slane %v6150, 3
        %v6153 = vshll.u32 %v5884, 16
        %v6155 = vrot.slane %v6153, 4
        %v6156 = vor.u32 %v6152, %v6155
        %v6157 = vsel %vm735, %v6148, %v6156
        %v6159 = vshrl.u32 %v5891, 16
        %v6161 = vrot.slane %v6159, 3
        %v6162 = vshll.u32 %v5891, 16
        %v6164 = vrot.slane %v6162, 4
        %v6165 = vor.u32 %v6161, %v6164
        %v6167 = vshrl.u32 %v5893, 16
        %v6169 = vrot.slane %v6167, 3
        %v6170 = vshll.u32 %v5893, 16
        %v6172 = vrot.slane %v6170, 4
        %v6173 = vor.u32 %v6169, %v6172
        %v6174 = vsel %vm735, %v6165, %v6173
        %v6176 = vshrl.u32 %v5898, 16
        %v6178 = vrot.slane %v6176, 3
        %v6179 = vshll.u32 %v5898, 16
        %v6181 = vrot.slane %v6179, 4
        %v6182 = vor.u32 %v6178, %v6181
        %v6184 = vshrl.u32 %v5902, 16
        %v6186 = vrot.slane %v6184, 3
        %v6187 = vshll.u32 %v5902, 16
        %v6189 = vrot.slane %v6187, 4
        %v6190 = vor.u32 %v6186, %v6189
        %v6191 = vsel %vm735, %v6182, %v6190
        %v6193 = vshrl.u32 %v5916, 16
        %v6195 = vrot.slane %v6193, 3
        %v6196 = vshll.u32 %v5916, 16
        %v6198 = vrot.slane %v6196, 4
        %v6199 = vor.u32 %v6195, %v6198
        %v6201 = vshrl.u32 %v5918, 16
        %v6203 = vrot.slane %v6201, 3
        %v6204 = vshll.u32 %v5918, 16
        %v6206 = vrot.slane %v6204, 4
        %v6207 = vor.u32 %v6203, %v6206
        %v6208 = vsel %vm735, %v6199, %v6207
        %v6210 = vshrl.u32 %v5841, 16
        %v6212 = vrot.slane %v6210, 3
        %v6213 = vshll.u32 %v5841, 16
        %v6215 = vrot.slane %v6213, 4
        %v6216 = vor.u32 %v6212, %v6215
        %v6217 = vrot.slane %v5935, 3
        %v6218 = vrot.slane %v5931, 4
        %v6219 = vor.u32 %v6217, %v6218
        %v6220 = vsel %vm735, %v6216, %v6219
        %v6222 = vshrl.u32 %v5934, 16
        %v6224 = vrot.slane %v6222, 3
        %v6225 = vshll.u32 %v5934, 16
        %v6227 = vrot.slane %v6225, 4
        %v6228 = vor.u32 %v6224, %v6227
        %v6230 = vshrl.u32 %v5942, 16
        %v6232 = vrot.slane %v6230, 3
        %v6233 = vshll.u32 %v5942, 16
        %v6235 = vrot.slane %v6233, 4
        %v6236 = vor.u32 %v6232, %v6235
        %v6237 = vsel %vm735, %v6228, %v6236
        %v6239 = vshrl.u32 %v5958, 16
        %v6241 = vrot.slane %v6239, 3
        %v6242 = vshll.u32 %v5958, 16
        %v6244 = vrot.slane %v6242, 4
        %v6245 = vor.u32 %v6241, %v6244
        %v6247 = vshrl.u32 %v5960, 16
        %v6249 = vrot.slane %v6247, 3
        %v6250 = vshll.u32 %v5960, 16
        %v6252 = vrot.slane %v6250, 4
        %v6253 = vor.u32 %v6249, %v6252
        %v6254 = vsel %vm735, %v6245, %v6253
        %v6255 = vrot.slane %v5865, 3
        %v6256 = vrot.slane %v5861, 4
        %v6257 = vor.u32 %v6255, %v6256
        %v6258 = vsel %vm735, %v6122, %v6257
        %v6260 = vshrl.u32 %v5872, 16
        %v6262 = vrot.slane %v6260, 3
        %v6263 = vshll.u32 %v5872, 16
        %v6265 = vrot.slane %v6263, 4
        %v6266 = vor.u32 %v6262, %v6265
        %v6267 = vsel %vm735, %v6139, %v6266
        %v6269 = vshrl.u32 %v5886, 16
        %v6271 = vrot.slane %v6269, 3
        %v6272 = vshll.u32 %v5886, 16
        %v6274 = vrot.slane %v6272, 4
        %v6275 = vor.u32 %v6271, %v6274
        %v6276 = vsel %vm735, %v6156, %v6275
        %v6278 = vshrl.u32 %v5895, 16
        %v6280 = vrot.slane %v6278, 3
        %v6281 = vshll.u32 %v5895, 16
        %v6283 = vrot.slane %v6281, 4
        %v6284 = vor.u32 %v6280, %v6283
        %v6285 = vsel %vm735, %v6173, %v6284
        %v6287 = vshrl.u32 %v5911, 16
        %v6289 = vrot.slane %v6287, 3
        %v6290 = vshll.u32 %v5911, 16
        %v6292 = vrot.slane %v6290, 4
        %v6293 = vor.u32 %v6289, %v6292
        %v6294 = vsel %vm735, %v6190, %v6293
        %v6296 = vshrl.u32 %v5920, 16
        %v6298 = vrot.slane %v6296, 3
        %v6299 = vshll.u32 %v5920, 16
        %v6301 = vrot.slane %v6299, 4
        %v6302 = vor.u32 %v6298, %v6301
        %v6303 = vsel %vm735, %v6207, %v6302
        %v6304 = vrot.slane %v5943, 3
        %v6305 = vrot.slane %v5939, 4
        %v6306 = vor.u32 %v6304, %v6305
        %v6307 = vsel %vm735, %v6219, %v6306
        %v6309 = vshrl.u32 %v5950, 16
        %v6311 = vrot.slane %v6309, 3
        %v6312 = vshll.u32 %v5950, 16
        %v6314 = vrot.slane %v6312, 4
        %v6315 = vor.u32 %v6311, %v6314
        %v6316 = vsel %vm735, %v6236, %v6315
        %v6318 = vshrl.u32 %v5962, 16
        %v6320 = vrot.slane %v6318, 3
        %v6321 = vshll.u32 %v5962, 16
        %v6323 = vrot.slane %v6321, 4
        %v6324 = vor.u32 %v6320, %v6323
        %v6325 = vsel %vm735, %v6253, %v6324
        %v6326 = vrot.slane %v5873, 3
        %v6327 = vrot.slane %v5869, 4
        %v6328 = vor.u32 %v6326, %v6327
        %v6329 = vsel %vm735, %v6257, %v6328
        %v6331 = vshrl.u32 %v5875, 16
        %v6333 = vrot.slane %v6331, 3
        %v6334 = vshll.u32 %v5875, 16
        %v6336 = vrot.slane %v6334, 4
        %v6337 = vor.u32 %v6333, %v6336
        %v6338 = vsel %vm735, %v6266, %v6337
        %v6340 = vshrl.u32 %v5885, 16
        %v6342 = vrot.slane %v6340, 3
        %v6343 = vshll.u32 %v5885, 16
        %v6345 = vrot.slane %v6343, 4
        %v6346 = vor.u32 %v6342, %v6345
        %v6347 = vsel %vm735, %v6275, %v6346
        %v6349 = vshrl.u32 %v5894, 16
        %v6351 = vrot.slane %v6349, 3
        %v6352 = vshll.u32 %v5894, 16
        %v6354 = vrot.slane %v6352, 4
        %v6355 = vor.u32 %v6351, %v6354
        %v6356 = vsel %vm735, %v6284, %v6355
        %v6358 = vshrl.u32 %v5910, 16
        %v6360 = vrot.slane %v6358, 3
        %v6361 = vshll.u32 %v5910, 16
        %v6363 = vrot.slane %v6361, 4
        %v6364 = vor.u32 %v6360, %v6363
        %v6365 = vsel %vm735, %v6293, %v6364
        %v6367 = vshrl.u32 %v5922, 16
        %v6369 = vrot.slane %v6367, 3
        %v6370 = vshll.u32 %v5922, 16
        %v6372 = vrot.slane %v6370, 4
        %v6373 = vor.u32 %v6369, %v6372
        %v6374 = vsel %vm735, %v6302, %v6373
        %v6375 = vrot.slane %v5951, 3
        %v6376 = vrot.slane %v5947, 4
        %v6377 = vor.u32 %v6375, %v6376
        %v6378 = vsel %vm735, %v6306, %v6377
        %v6380 = vshrl.u32 %v5953, 16
        %v6382 = vrot.slane %v6380, 3
        %v6383 = vshll.u32 %v5953, 16
        %v6385 = vrot.slane %v6383, 4
        %v6386 = vor.u32 %v6382, %v6385
        %v6387 = vsel %vm735, %v6315, %v6386
        %v6389 = vshrl.u32 %v5961, 16
        %v6391 = vrot.slane %v6389, 3
        %v6392 = vshll.u32 %v5961, 16
        %v6394 = vrot.slane %v6392, 4
        %v6395 = vor.u32 %v6391, %v6394
        %v6396 = vsel %vm735, %v6324, %v6395
        %v6568 = vunpack.c.l.b16 %v5963
        %v6569 = vunpack.c.l.b16 %v5964
        %v6570 = vunpack.c.l.b16 %v5965
        %v6571 = vunpack.c.l.b16 %v5966
        %v6572 = vunpack.c.l.b16 %v5967
        %v6573 = vunpack.c.l.b16 %v5968
        %v6574 = vunpack.c.l.b16 %v5969
        %v6575 = vunpack.c.l.b16 %v5970
        %v6576 = vunpack.c.l.b16 %v5971
        %v6577 = vunpack.c.l.b16 %v5972
        %v6578 = vunpack.c.l.b16 %v5973
        %v6579 = vunpack.c.l.b16 %v5974
        %v6580 = vunpack.c.l.b16 %v5975
        %v6581 = vunpack.c.l.b16 %v5976
        %v6582 = vunpack.c.l.b16 %v5977
        %v6583 = vunpack.c.l.b16 %v5978
        %v6584 = vunpack.c.l.b16 %v5979
        %v6585 = vunpack.c.l.b16 %v5980
        %v6586 = vunpack.c.l.b16 %v5981
        %v6587 = vunpack.c.l.b16 %v5982
        %v6588 = vunpack.c.l.b16 %v5983
        %v6589 = vunpack.c.l.b16 %v5984
        %v6590 = vunpack.c.l.b16 %v5985
        %v6591 = vunpack.c.l.b16 %v5986
        %v6592 = vunpack.c.l.b16 %v5987
        %v6593 = vunpack.c.l.b16 %v5988
        %v6594 = vunpack.c.l.b16 %v5989
        %v6595 = vunpack.c.l.b16 %v5990
        %v6596 = vunpack.c.l.b16 %v5991
        %v6597 = vunpack.c.l.b16 %v5992
        %v6598 = vunpack.c.l.b16 %v5993
        %v6599 = vunpack.c.l.b16 %v5994
        %v6600 = vunpack.c.l.b16 %v5995
        %v6601 = vunpack.c.l.b16 %v5996
        %v6602 = vunpack.c.l.b16 %v5997
        %v6603 = vunpack.c.l.b16 %v5998
        %v6604 = vunpack.c.l.b16 %v5999
        %v6605 = vunpack.c.l.b16 %v6000
        %v6606 = vunpack.c.l.b16 %v6001
        %v6607 = vunpack.c.l.b16 %v6002
        %v6608 = vunpack.c.l.b16 %v6003
        %v6609 = vunpack.c.l.b16 %v6004
        %v6610 = vunpack.c.l.b16 %v6005
        %v6611 = vunpack.c.l.b16 %v6006
        %v6612 = vunpack.c.l.b16 %v6007
        %v6613 = vunpack.c.l.b16 %v6008
        %v6614 = vunpack.c.l.b16 %v6009
        %v6615 = vunpack.c.l.b16 %v6010
        %v6616 = vunpack.c.l.b16 %v6011
        %v6617 = vunpack.c.l.b16 %v6012
        %v6618 = vunpack.c.l.b16 %v6013
        %v6619 = vunpack.c.l.b16 %v6014
        %v6620 = vunpack.c.l.b16 %v6015
        %v6621 = vunpack.c.l.b16 %v6016
        %v6622 = vunpack.c.l.b16 %v6017
        %v6623 = vunpack.c.l.b16 %v6018
        %v6624 = vunpack.c.l.b16 %v6019
        %v6625 = vunpack.c.l.b16 %v6020
        %v6626 = vunpack.c.l.b16 %v6021
        %v6627 = vunpack.c.l.b16 %v6022
        %v6628 = vunpack.c.l.b16 %v6023
        %v6629 = vunpack.c.l.b16 %v6024
        %v6630 = vunpack.c.l.b16 %v6025
        %v6631 = vunpack.c.l.b16 %v6026
        %v6632 = vunpack.c.l.b16 %v6027
        %v6633 = vunpack.c.l.b16 %v6028
        %v6634 = vunpack.c.l.b16 %v6029
        %v6635 = vunpack.c.l.b16 %v6030
        %v6636 = vunpack.c.l.b16 %v6031
        %v6637 = vunpack.c.l.b16 %v6032
        %v6638 = vunpack.c.l.b16 %v6033
        %v6639 = vunpack.c.l.b16 %v6034
        %v6640 = vunpack.c.l.b16 %v6035
        %v6641 = vunpack.c.l.b16 %v6036
        %v6642 = vunpack.c.l.b16 %v6037
        %v6643 = vunpack.c.l.b16 %v6038
        %v6644 = vunpack.c.l.b16 %v6039
        %v6645 = vunpack.c.l.b16 %v6040
        %v6646 = vunpack.c.l.b16 %v6041
        %v6647 = vunpack.c.l.b16 %v6042
        %v6648 = vunpack.c.l.b16 %v6043
        %v6649 = vunpack.c.l.b16 %v6044
        %v6650 = vunpack.c.l.b16 %v6045
        %v6651 = vunpack.c.l.b16 %v6046
        %v6652 = vunpack.c.l.b16 %v6047
        %v6653 = vunpack.c.l.b16 %v6048
        %v6654 = vunpack.c.l.b16 %v6049
        %v6655 = vunpack.c.l.b16 %v6050
        %v6656 = vunpack.c.l.b16 %v6051
        %v6657 = vunpack.c.l.b16 %v6052
        %v6658 = vunpack.c.l.b16 %v6053
        %v6659 = vunpack.c.l.b16 %v6054
        %v6660 = vunpack.c.l.b16 %v6055
        %v6661 = vunpack.c.l.b16 %v6056
        %v6662 = vunpack.c.l.b16 %v6057
        %v6663 = vunpack.c.l.b16 %v6058
        %v6664 = vunpack.c.l.b16 %v6059
        %v6665 = vunpack.c.l.b16 %v6060
        %v6666 = vunpack.c.l.b16 %v6061
        %v6667 = vunpack.c.l.b16 %v6062
        %v6668 = vunpack.c.l.b16 %v6063
        %v6669 = vunpack.c.l.b16 %v6064
        %v6670 = vunpack.c.l.b16 %v6065
        %v6671 = vunpack.c.l.b16 %v6066
        %v6672 = vunpack.c.l.b16 %v6067
        %v6673 = vunpack.c.l.b16 %v6068
        %v6674 = vunpack.c.l.b16 %v6069
        %v6675 = vunpack.c.l.b16 %v6070
        %v6676 = vunpack.c.l.b16 %v6071
        %v6677 = vunpack.c.l.b16 %v6072
        %v6678 = vunpack.c.l.b16 %v6073
        %v6679 = vunpack.c.l.b16 %v6074
        %v6680 = vunpack.c.l.b16 %v6075
        %v6681 = vunpack.c.l.b16 %v6076
        %v6682 = vunpack.c.l.b16 %v6077
        %v6683 = vunpack.c.l.b16 %v6078
        %v6684 = vunpack.c.l.b16 %v6079
        %v6685 = vunpack.c.l.b16 %v6080
        %v6686 = vunpack.c.l.b16 %v6081
        %v6687 = vunpack.c.l.b16 %v6082
        %v6688 = vunpack.c.l.b16 %v6083
        %v6689 = vunpack.c.l.b16 %v6084
        %v6690 = vunpack.c.l.b16 %v6085
        %v6691 = vunpack.c.l.b16 %v6086
        %v6692 = vunpack.c.l.b16 %v6087
        %v6693 = vunpack.c.l.b16 %v6088
        %v6694 = vunpack.c.l.b16 %v6089
        %v6695 = vunpack.c.l.b16 %v6090
        %v6696 = vunpack.c.l.b16 %v6091
        %v6697 = vunpack.c.l.b16 %v6092
        %v6698 = vunpack.c.l.b16 %v6093
        %v6699 = vunpack.c.l.b16 %v6094
        %v6700 = vunpack.c.l.b16 %v6095
        %v6701 = vunpack.c.l.b16 %v6096
        %v6702 = vunpack.c.l.b16 %v6097
        %v6703 = vunpack.c.l.b16 %v6098
        %v6704 = vunpack.c.l.b16 %v6099
        %v6705 = vunpack.c.l.b16 %v6100
        %v6706 = vunpack.c.l.b16 %v6101
        %v6707 = vunpack.c.l.b16 %v6102
        %v6708 = vunpack.c.l.b16 %v6103
        %v6709 = vunpack.c.l.b16 %v6104
        %v6710 = vunpack.c.l.b16 %v6105
        %v6711 = vunpack.c.l.b16 %v6106
        %v6712 = vpack.c.b16 %v6569, %v6568
        %v6713 = vpack.c.b16 %v6571, %v6570
        %v6714 = vpack.c.b16 %v6573, %v6572
        %v6715 = vpack.c.b16 %v6575, %v6574
        %v6716 = vpack.c.b16 %v6577, %v6576
        %v6717 = vpack.c.b16 %v6579, %v6578
        %v6718 = vpack.c.b16 %v6581, %v6580
        %v6719 = vpack.c.b16 %v6583, %v6582
        %v6720 = vpack.c.b16 %v6585, %v6584
        %v6721 = vpack.c.b16 %v6587, %v6586
        %v6722 = vpack.c.b16 %v6589, %v6588
        %v6723 = vpack.c.b16 %v6591, %v6590
        %v6724 = vpack.c.b16 %v6593, %v6592
        %v6725 = vpack.c.b16 %v6595, %v6594
        %v6726 = vpack.c.b16 %v6597, %v6596
        %v6727 = vpack.c.b16 %v6599, %v6598
        %v6728 = vpack.c.b16 %v6601, %v6600
        %v6729 = vpack.c.b16 %v6603, %v6602
        %v6730 = vpack.c.b16 %v6605, %v6604
        %v6731 = vpack.c.b16 %v6607, %v6606
        %v6732 = vpack.c.b16 %v6609, %v6608
        %v6733 = vpack.c.b16 %v6611, %v6610
        %v6734 = vpack.c.b16 %v6613, %v6612
        %v6735 = vpack.c.b16 %v6615, %v6614
        %v6736 = vpack.c.b16 %v6617, %v6616
        %v6737 = vpack.c.b16 %v6619, %v6618
        %v6738 = vpack.c.b16 %v6621, %v6620
        %v6739 = vpack.c.b16 %v6623, %v6622
        %v6740 = vpack.c.b16 %v6625, %v6624
        %v6741 = vpack.c.b16 %v6627, %v6626
        %v6742 = vpack.c.b16 %v6629, %v6628
        %v6743 = vpack.c.b16 %v6631, %v6630
        %v6744 = vpack.c.b16 %v6633, %v6632
        %v6745 = vpack.c.b16 %v6635, %v6634
        %v6746 = vpack.c.b16 %v6637, %v6636
        %v6747 = vpack.c.b16 %v6639, %v6638
        %v6748 = vpack.c.b16 %v6641, %v6640
        %v6749 = vpack.c.b16 %v6643, %v6642
        %v6750 = vpack.c.b16 %v6645, %v6644
        %v6751 = vpack.c.b16 %v6647, %v6646
        %v6752 = vpack.c.b16 %v6649, %v6648
        %v6753 = vpack.c.b16 %v6651, %v6650
        %v6754 = vpack.c.b16 %v6653, %v6652
        %v6755 = vpack.c.b16 %v6655, %v6654
        %v6756 = vpack.c.b16 %v6657, %v6656
        %v6757 = vpack.c.b16 %v6659, %v6658
        %v6758 = vpack.c.b16 %v6661, %v6660
        %v6759 = vpack.c.b16 %v6663, %v6662
        %v6760 = vpack.c.b16 %v6665, %v6664
        %v6761 = vpack.c.b16 %v6667, %v6666
        %v6762 = vpack.c.b16 %v6669, %v6668
        %v6763 = vpack.c.b16 %v6671, %v6670
        %v6764 = vpack.c.b16 %v6673, %v6672
        %v6765 = vpack.c.b16 %v6675, %v6674
        %v6766 = vpack.c.b16 %v6677, %v6676
        %v6767 = vpack.c.b16 %v6679, %v6678
        %v6768 = vpack.c.b16 %v6681, %v6680
        %v6769 = vpack.c.b16 %v6683, %v6682
        %v6770 = vpack.c.b16 %v6685, %v6684
        %v6771 = vpack.c.b16 %v6687, %v6686
        %v6772 = vpack.c.b16 %v6689, %v6688
        %v6773 = vpack.c.b16 %v6691, %v6690
        %v6774 = vpack.c.b16 %v6693, %v6692
        %v6775 = vpack.c.b16 %v6695, %v6694
        %v6776 = vpack.c.b16 %v6697, %v6696
        %v6777 = vpack.c.b16 %v6699, %v6698
        %v6778 = vpack.c.b16 %v6701, %v6700
        %v6779 = vpack.c.b16 %v6703, %v6702
        %v6780 = vpack.c.b16 %v6705, %v6704
        %v6781 = vpack.c.b16 %v6707, %v6706
        %v6782 = vpack.c.b16 %v6709, %v6708
        %v6783 = vpack.c.b16 %v6711, %v6710
        %6856 = vmatprep.subr.bf16.mxu0 0
        %6857 = vmatpush1.bf16.msra.mxu0 %v6712
        %6858 = vmatprep.subr.bf16.mxu0 0
        %6859 = vmatpush1.bf16.msra.mxu0 %v6713
        %6860 = vmatprep.subr.bf16.mxu0 0
        %6861 = vmatpush1.bf16.msra.mxu0 %v6714
        %6862 = vmatprep.subr.bf16.mxu0 0
        %6863 = vmatpush1.bf16.msra.mxu0 %v6715
        %6864 = vmatprep.subr.bf16.mxu0 0
        %6865 = vmatpush1.bf16.msra.mxu0 %v6716
        %6866 = vmatprep.subr.bf16.mxu0 0
        %6867 = vmatpush1.bf16.msra.mxu0 %v6717
        %6868 = vmatprep.subr.bf16.mxu0 0
        %6869 = vmatpush1.bf16.msra.mxu0 %v6718
        %6870 = vmatprep.subr.bf16.mxu0 0
        %6871 = vmatpush1.bf16.msra.mxu0 %v6719
        %6872 = vmatprep.subr.bf16.mxu0 0
        %6873 = vmatpush1.bf16.msra.mxu0 %v6720
        %6874 = vmatprep.subr.bf16.mxu0 0
        %6875 = vmatpush1.bf16.msra.mxu0 %v6721
        %6876 = vmatprep.subr.bf16.mxu0 0
        %6877 = vmatpush1.bf16.msra.mxu0 %v6722
        %6878 = vmatprep.subr.bf16.mxu0 0
        %6879 = vmatpush1.bf16.msra.mxu0 %v6723
        %6880 = vmatprep.subr.bf16.mxu0 0
        %6881 = vmatpush1.bf16.msra.mxu0 %v6724
        %6882 = vmatprep.subr.bf16.mxu0 0
        %6883 = vmatpush1.bf16.msra.mxu0 %v6725
        %6884 = vmatprep.subr.bf16.mxu0 0
        %6885 = vmatpush1.bf16.msra.mxu0 %v6726
        %6886 = vmatprep.subr.bf16.mxu0 0
        %6887 = vmatpush1.bf16.msra.mxu0 %v6727
        %6888 = vmatprep.mubr.bf16.mxu0 %v6140
        %6889 = vmatmul.mubr.bf16.gmra.mrb[0].mxu0 %v6123
        %v6890 = vpop.f32.mrb[0].mxu0
        %v6891 = vadd.f32 %v6111, %v6890
        %v6892 = vpop.f32.mrb[0].mxu0
        %v6893 = vpop.f32.mrb[0].mxu0
        %v6894 = vadd.f32 %v6111, %v6893
        %v6895 = vpop.f32.mrb[0].mxu0
        %6896 = vmatprep.mubr.bf16.mxu0 %v6267
        %6897 = vmatmul.mubr.bf16.gmra.mrb[0].mxu0 %v6258
        %v6898 = vpop.f32.mrb[0].mxu0
        %v6899 = vadd.f32 %v6111, %v6898
        %v6900 = vpop.f32.mrb[0].mxu0
        %v6901 = vpop.f32.mrb[0].mxu0
        %v6902 = vadd.f32 %v6111, %v6901
        %v6903 = vpop.f32.mrb[0].mxu0
        %6904 = vmatprep.mubr.bf16.mxu0 %v6338
        %6905 = vmatmul.mubr.bf16.gmra.mrb[0].mxu0 %v6329
        %v6906 = vpop.f32.mrb[0].mxu0
        %v6907 = vadd.f32 %v6111, %v6906
        %v6908 = vpop.f32.mrb[0].mxu0
        %v6909 = vpop.f32.mrb[0].mxu0
        %v6910 = vadd.f32 %v6111, %v6909
        %v6911 = vpop.f32.mrb[0].mxu0
        %6912 = vdwg.mxu0
        %6913 = vmatprep.subr.bf16.mxu0 0
        %6914 = vmatpush1.bf16.msra.mxu0 %v6728
        %6915 = vmatprep.subr.bf16.mxu0 0
        %6916 = vmatpush1.bf16.msra.mxu0 %v6729
        %6917 = vmatprep.subr.bf16.mxu0 0
        %6918 = vmatpush1.bf16.msra.mxu0 %v6730
        %6919 = vmatprep.subr.bf16.mxu0 0
        %6920 = vmatpush1.bf16.msra.mxu0 %v6731
        %6921 = vmatprep.subr.bf16.mxu0 0
        %6922 = vmatpush1.bf16.msra.mxu0 %v6732
        %6923 = vmatprep.subr.bf16.mxu0 0
        %6924 = vmatpush1.bf16.msra.mxu0 %v6733
        %6925 = vmatprep.subr.bf16.mxu0 0
        %6926 = vmatpush1.bf16.msra.mxu0 %v6734
        %6927 = vmatprep.subr.bf16.mxu0 0
        %6928 = vmatpush1.bf16.msra.mxu0 %v6735
        %6929 = vmatprep.subr.bf16.mxu0 0
        %6930 = vmatpush1.bf16.msra.mxu0 %v6736
        %6931 = vmatprep.subr.bf16.mxu0 0
        %6932 = vmatpush1.bf16.msra.mxu0 %v6737
        %6933 = vmatprep.subr.bf16.mxu0 0
        %6934 = vmatpush1.bf16.msra.mxu0 %v6738
        %6935 = vmatprep.subr.bf16.mxu0 0
        %6936 = vmatpush1.bf16.msra.mxu0 %v6739
        %6937 = vmatprep.subr.bf16.mxu0 0
        %6938 = vmatpush1.bf16.msra.mxu0 %v6740
        %6939 = vmatprep.subr.bf16.mxu0 0
        %6940 = vmatpush1.bf16.msra.mxu0 %v6741
        %6941 = vmatprep.subr.bf16.mxu0 0
        %6942 = vmatpush1.bf16.msra.mxu0 %v6742
        %6943 = vmatprep.subr.bf16.mxu0 0
        %6944 = vmatpush1.bf16.msra.mxu0 %v6743
        %6945 = vmatprep.mubr.bf16.mxu0 %v6174
        %6946 = vmatmul.mubr.bf16.gmra.mrb[0].mxu0 %v6157
        %v6947 = vpop.f32.mrb[0].mxu0
        %v6948 = vadd.f32 %v6891, %v6947
        %v6949 = vpop.f32.mrb[0].mxu0
        %v6950 = vpop.f32.mrb[0].mxu0
        %v6951 = vadd.f32 %v6894, %v6950
        %v6952 = vpop.f32.mrb[0].mxu0
        %6953 = vmatprep.mubr.bf16.mxu0 %v6285
        %6954 = vmatmul.mubr.bf16.gmra.mrb[0].mxu0 %v6276
        %v6955 = vpop.f32.mrb[0].mxu0
        %v6956 = vadd.f32 %v6899, %v6955
        %v6957 = vpop.f32.mrb[0].mxu0
        %v6958 = vpop.f32.mrb[0].mxu0
        %v6959 = vadd.f32 %v6902, %v6958
        %v6960 = vpop.f32.mrb[0].mxu0
        %6961 = vmatprep.mubr.bf16.mxu0 %v6356
        %6962 = vmatmul.mubr.bf16.gmra.mrb[0].mxu0 %v6347
        %v6963 = vpop.f32.mrb[0].mxu0
        %v6964 = vadd.f32 %v6907, %v6963
        %v6965 = vpop.f32.mrb[0].mxu0
        %v6966 = vpop.f32.mrb[0].mxu0
        %v6967 = vadd.f32 %v6910, %v6966
        %v6968 = vpop.f32.mrb[0].mxu0
        %6969 = vdwg.mxu0
        %6970 = vmatprep.subr.bf16.mxu0 0
        %6971 = vmatpush1.bf16.msra.mxu0 %v6744
        %6972 = vmatprep.subr.bf16.mxu0 0
        %6973 = vmatpush1.bf16.msra.mxu0 %v6745
        %6974 = vmatprep.subr.bf16.mxu0 0
        %6975 = vmatpush1.bf16.msra.mxu0 %v6746
        %6976 = vmatprep.subr.bf16.mxu0 0
        %6977 = vmatpush1.bf16.msra.mxu0 %v6747
        %6978 = vmatprep.subr.bf16.mxu0 0
        %6979 = vmatpush1.bf16.msra.mxu0 %v6748
        %6980 = vmatprep.subr.bf16.mxu0 0
        %6981 = vmatpush1.bf16.msra.mxu0 %v6749
        %6982 = vmatprep.subr.bf16.mxu0 0
        %6983 = vmatpush1.bf16.msra.mxu0 %v6750
        %6984 = vmatprep.subr.bf16.mxu0 0
        %6985 = vmatpush1.bf16.msra.mxu0 %v6751
        %6986 = vmatprep.subr.bf16.mxu0 0
        %6987 = vmatpush1.bf16.msra.mxu0 %v6752
        %6988 = vmatprep.subr.bf16.mxu0 0
        %6989 = vmatpush1.bf16.msra.mxu0 %v6753
        %6990 = vmatprep.subr.bf16.mxu0 0
        %6991 = vmatpush1.bf16.msra.mxu0 %v6754
        %6992 = vmatprep.subr.bf16.mxu0 0
        %6993 = vmatpush1.bf16.msra.mxu0 %v6755
        %6994 = vmatprep.subr.bf16.mxu0 0
        %6995 = vmatpush1.bf16.msra.mxu0 %v6756
        %6996 = vmatprep.subr.bf16.mxu0 0
        %6997 = vmatpush1.bf16.msra.mxu0 %v6757
        %6998 = vmatprep.subr.bf16.mxu0 0
        %6999 = vmatpush1.bf16.msra.mxu0 %v6758
        %7000 = vmatprep.subr.bf16.mxu0 0
        %7001 = vmatpush1.bf16.msra.mxu0 %v6759
        %7002 = vmatprep.mubr.bf16.mxu0 %v6208
        %7003 = vmatmul.mubr.bf16.gmra.mrb[0].mxu0 %v6191
        %v7004 = vpop.f32.mrb[0].mxu0
        %v7005 = vadd.f32 %v6948, %v7004
        %v7006 = vpop.f32.mrb[0].mxu0
        %v7007 = vpop.f32.mrb[0].mxu0
        %v7008 = vadd.f32 %v6951, %v7007
        %v7009 = vpop.f32.mrb[0].mxu0
        %7010 = vmatprep.mubr.bf16.mxu0 %v6303
        %7011 = vmatmul.mubr.bf16.gmra.mrb[0].mxu0 %v6294
        %v7012 = vpop.f32.mrb[0].mxu0
        %v7013 = vadd.f32 %v6956, %v7012
        %v7014 = vpop.f32.mrb[0].mxu0
        %v7015 = vpop.f32.mrb[0].mxu0
        %v7016 = vadd.f32 %v6959, %v7015
        %v7017 = vpop.f32.mrb[0].mxu0
        %7018 = vmatprep.mubr.bf16.mxu0 %v6374
        %7019 = vmatmul.mubr.bf16.gmra.mrb[0].mxu0 %v6365
        %v7020 = vpop.f32.mrb[0].mxu0
        %v7021 = vadd.f32 %v6964, %v7020
        %v7022 = vpop.f32.mrb[0].mxu0
        %v7023 = vpop.f32.mrb[0].mxu0
        %v7024 = vadd.f32 %v6967, %v7023
        %v7025 = vpop.f32.mrb[0].mxu0
        %7026 = vdwg.mxu0
        %7027 = vmatprep.subr.bf16.mxu0 0
        %7028 = vmatpush1.bf16.msra.mxu0 %v6760
        %7029 = vmatprep.subr.bf16.mxu0 0
        %7030 = vmatpush1.bf16.msra.mxu0 %v6761
        %7031 = vmatprep.subr.bf16.mxu0 0
        %7032 = vmatpush1.bf16.msra.mxu0 %v6762
        %7033 = vmatprep.subr.bf16.mxu0 0
        %7034 = vmatpush1.bf16.msra.mxu0 %v6763
        %7035 = vmatprep.subr.bf16.mxu0 0
        %7036 = vmatpush1.bf16.msra.mxu0 %v6764
        %7037 = vmatprep.subr.bf16.mxu0 0
        %7038 = vmatpush1.bf16.msra.mxu0 %v6765
        %7039 = vmatprep.subr.bf16.mxu0 0
        %7040 = vmatpush1.bf16.msra.mxu0 %v6766
        %7041 = vmatprep.subr.bf16.mxu0 0
        %7042 = vmatpush1.bf16.msra.mxu0 %v6767
        %7043 = vmatprep.subr.bf16.mxu0 0
        %7044 = vmatpush1.bf16.msra.mxu0 %v6768
        %7045 = vmatprep.subr.bf16.mxu0 0
        %7046 = vmatpush1.bf16.msra.mxu0 %v6769
        %7047 = vmatprep.subr.bf16.mxu0 0
        %7048 = vmatpush1.bf16.msra.mxu0 %v6770
        %7049 = vmatprep.subr.bf16.mxu0 0
        %7050 = vmatpush1.bf16.msra.mxu0 %v6771
        %7051 = vmatprep.subr.bf16.mxu0 0
        %7052 = vmatpush1.bf16.msra.mxu0 %v6772
        %7053 = vmatprep.subr.bf16.mxu0 0
        %7054 = vmatpush1.bf16.msra.mxu0 %v6773
        %7055 = vmatprep.subr.bf16.mxu0 0
        %7056 = vmatpush1.bf16.msra.mxu0 %v6774
        %7057 = vmatprep.subr.bf16.mxu0 0
        %7058 = vmatpush1.bf16.msra.mxu0 %v6775
        %7059 = vmatprep.mubr.bf16.mxu0 %v6237
        %7060 = vmatmul.mubr.bf16.gmra.mrb[0].mxu0 %v6220
        %v7061 = vpop.f32.mrb[0].mxu0
        %v7062 = vadd.f32 %v7005, %v7061
        %v7063 = vpop.f32.mrb[0].mxu0
        %v7064 = vpop.f32.mrb[0].mxu0
        %v7065 = vadd.f32 %v7008, %v7064
        %v7066 = vpop.f32.mrb[0].mxu0
        %7067 = vmatprep.mubr.bf16.mxu0 %v6316
        %7068 = vmatmul.mubr.bf16.gmra.mrb[0].mxu0 %v6307
        %v7069 = vpop.f32.mrb[0].mxu0
        %v7070 = vadd.f32 %v7013, %v7069
        %v7071 = vpop.f32.mrb[0].mxu0
        %v7072 = vpop.f32.mrb[0].mxu0
        %v7073 = vadd.f32 %v7016, %v7072
        %v7074 = vpop.f32.mrb[0].mxu0
        %7075 = vmatprep.mubr.bf16.mxu0 %v6387
        %7076 = vmatmul.mubr.bf16.gmra.mrb[0].mxu0 %v6378
        %v7077 = vpop.f32.mrb[0].mxu0
        %v7078 = vadd.f32 %v7021, %v7077
        %v7079 = vpop.f32.mrb[0].mxu0
        %v7080 = vpop.f32.mrb[0].mxu0
        %v7081 = vadd.f32 %v7024, %v7080
        %v7082 = vpop.f32.mrb[0].mxu0
        %7083 = vdwg.mxu0
        %7084 = vmatprep.subr.bf16.mxu0 0
        %7085 = vmatpush1.bf16.msra.mxu0 %v6776
        %7086 = vmatprep.subr.bf16.mxu0 0
        %7087 = vmatpush1.bf16.msra.mxu0 %v6777
        %7088 = vmatprep.subr.bf16.mxu0 0
        %7089 = vmatpush1.bf16.msra.mxu0 %v6778
        %7090 = vmatprep.subr.bf16.mxu0 0
        %7091 = vmatpush1.bf16.msra.mxu0 %v6779
        %7092 = vmatprep.subr.bf16.mxu0 0
        %7093 = vmatpush1.bf16.msra.mxu0 %v6780
        %7094 = vmatprep.subr.bf16.mxu0 0
        %7095 = vmatpush1.bf16.msra.mxu0 %v6781
        %7096 = vmatprep.subr.bf16.mxu0 0
        %7097 = vmatpush1.bf16.msra.mxu0 %v6782
        %7098 = vmatprep.subr.bf16.mxu0 0
        %7099 = vmatpush1.bf16.msra.mxu0 %v6783
        %7100 = vmatprep.subr.bf16.mxu0 0
        %7101 = vmatpush1.bf16.msra.mxu0 0
        %7102 = vmatprep.subr.bf16.mxu0 0
        %7103 = vmatpush1.bf16.msra.mxu0 0
        %7104 = vmatprep.subr.bf16.mxu0 0
        %7105 = vmatpush1.bf16.msra.mxu0 0
        %7106 = vmatprep.subr.bf16.mxu0 0
        %7107 = vmatpush1.bf16.msra.mxu0 0
        %7108 = vmatprep.subr.bf16.mxu0 0
        %7109 = vmatpush1.bf16.msra.mxu0 0
        %7110 = vmatprep.subr.bf16.mxu0 0
        %7111 = vmatpush1.bf16.msra.mxu0 0
        %7112 = vmatprep.subr.bf16.mxu0 0
        %7113 = vmatpush1.bf16.msra.mxu0 0
        %7114 = vmatprep.subr.bf16.mxu0 0
        %7115 = vmatpush1.bf16.msra.mxu0 0
        %7116 = vmatprep.mubr.bf16.mxu0 0
        %7117 = vmatmul.mubr.bf16.gmra.mrb[0].mxu0 %v6254
        %v7118 = vpop.f32.mrb[0].mxu0
        %v7119 = vadd.f32 %v7062, %v7118
        %v7120 = vpop.f32.mrb[0].mxu0
        %v7121 = vpop.f32.mrb[0].mxu0
        %v7122 = vadd.f32 %v7065, %v7121
        %v7123 = vpop.f32.mrb[0].mxu0
        %7124 = vmatprep.mubr.bf16.mxu0 0
        %7125 = vmatmul.mubr.bf16.gmra.mrb[0].mxu0 %v6325
        %v7126 = vpop.f32.mrb[0].mxu0
        %v7127 = vadd.f32 %v7070, %v7126
        %v7128 = vpop.f32.mrb[0].mxu0
        %v7129 = vpop.f32.mrb[0].mxu0
        %v7130 = vadd.f32 %v7073, %v7129
        %v7131 = vpop.f32.mrb[0].mxu0
        %7132 = vmatprep.mubr.bf16.mxu0 0
        %7133 = vmatmul.mubr.bf16.gmra.mrb[0].mxu0 %v6396
        %v7134 = vpop.f32.mrb[0].mxu0
        %v7135 = vadd.f32 %v7078, %v7134
        %v7136 = vpop.f32.mrb[0].mxu0
        %v7137 = vpop.f32.mrb[0].mxu0
        %v7138 = vadd.f32 %v7081, %v7137
        %v7139 = vpop.f32.mrb[0].mxu0
        %7140 = vdwg.mxu0
        %vm7141 = vcmp.ge.f32.partialorder %v7119, 0.0
        %vm7142 = vcmp.ge.f32.partialorder %v7122, 0.0
        %vm7143 = vcmp.ge.f32.partialorder %v7127, 0.0
        %vm7144 = vcmp.ge.f32.partialorder %v7130, 0.0
        %vm7145 = vcmp.ge.f32.partialorder %v7135, 0.0
        %vm7146 = vcmp.ge.f32.partialorder %v7138, 0.0
        %v7147 = vld [vmem:[#allocation9 + $0x4] sm:$0x1]
        %v7148 = vlaneseq
        %v7149 = vshrl.u32 %v7148, 7
        %v7150 = vsub.s32 0, %v7149
        %v7151 = vrot.slane %v7147, %v7150
        %v7152 = vmul.f32 %v7119, %v7151
        %v7153 = vmul.f32 %v7122, %v7151
        %v7154 = vmul.f32 %v7127, %v7151
        %v7155 = vmul.f32 %v7130, %v7151
        %v7156 = vmul.f32 %v7135, %v7151
        %v7157 = vmul.f32 %v7138, %v7151
        %v7158 = vsel %vm7141, %v7119, %v7152
        %v7159 = vsel %vm7142, %v7122, %v7153
        %v7160 = vsel %vm7143, %v7127, %v7154
        %v7161 = vsel %vm7144, %v7130, %v7155
        %v7162 = vsel %vm7145, %v7135, %v7156
        %v7163 = vsel %vm7146, %v7138, %v7157
        %v7164 = vpack.c.bf16 %v7159, %v7158
        %v7165 = vpack.c.bf16 %v7161, %v7160
        %v7166 = vpack.c.bf16 %v7163, %v7162
        %v7167 = vmul.bf16 %v7164, %v444
        %v7168 = vmul.bf16 %v7165, %v445
        %v7169 = vmul.bf16 %v7166, %v446
        %7170 = vst [vmem:[#allocation2 + $0x8] sm:$0xff] %v7167
        %7171 = vst [vmem:[#allocation2 + $0x10] sm:$0xff] %v7168
        %7172 = vst [vmem:[#allocation2 + $0x18] sm:$0xff] %v7169
        %v7173 = vld [vmem:[#allocation2] sm:$0xf8]
        %v7174 = vld [vmem:[#allocation2 + $0x8] sm:$0xff]
        %v7175 = vld [vmem:[#allocation2 + $0x10] sm:$0xff]
        %v7176 = vld [vmem:[#allocation2 + $0x18] sm:$0xf]
        %v7177 = vld [vmem:[#allocation2] sm:$0xf0]
        %v7178 = vld [vmem:[#allocation2 + $0x18] sm:$0x1f]
        %v7179 = vld [vmem:[#allocation2] sm:$0x80]
        %v7180 = vld [vmem:[#allocation2 + $0x18] sm:$0xff]
        %v7181 = vld [vmem:[#allocation2 + $0x8] sm:$0xff]
        %v7182 = vld [vmem:[#allocation2 + $0x10] sm:$0xff]
        %v7183 = vld [vmem:[#allocation2 + $0x18] sm:$0xff]
        %v7184 = vld [vmem:[#allocation2 + $0x20] sm:$0x1]
        %v7185 = vld [vmem:[#allocation2 + $0x8] sm:$0xf8]
        %v7186 = vld [vmem:[#allocation2 + $0x20] sm:$0xf]
        %v7187 = vld [vmem:[#allocation2 + $0x8] sm:$0xf0]
        %v7188 = vld [vmem:[#allocation2 + $0x20] sm:$0x1f]
        %v7190 = vshrl.u32 %v7177, 16
        %v7192 = vshll.u32 %v7177, 16
        %v7194 = vrot.slane %v7192, 1
        %v7195 = vor.u32 %v7190, %v7194
        %v7197 = vshll.u32 %v7174, 16
        %v7199 = vrot.slane %v7197, 1
        %v7200 = vsel %vm463, %v7195, %v7199
        %v7201 = vshrl.u32 %v7174, 16
        %v7203 = vor.u32 %v7201, %v7199
        %v7205 = vshll.u32 %v7175, 16
        %v7207 = vrot.slane %v7205, 1
        %v7208 = vsel %vm463, %v7203, %v7207
        %v7209 = vshrl.u32 %v7175, 16
        %v7211 = vor.u32 %v7209, %v7207
        %v7213 = vshll.u32 %v7176, 16
        %v7215 = vrot.slane %v7213, 1
        %v7216 = vsel %vm463, %v7211, %v7215
        %v7217 = vshrl.u32 %v7176, 16
        %v7219 = vor.u32 %v7217, %v7215
        %v7224 = vrot.slane %v7177, 1
        %v7225 = vrot.slane %v7174, 1
        %v7226 = vsel %vm499, %v7224, %v7225
        %v7227 = vrot.slane %v7175, 1
        %v7228 = vsel %vm499, %v7225, %v7227
        %v7229 = vrot.slane %v7178, 1
        %v7230 = vsel %vm499, %v7227, %v7229
        %v7233 = vrot.slane %v7179, 4
        %v7234 = vrot.slane %v7174, 4
        %v7235 = vsel %vm509, %v7233, %v7234
        %v7236 = vrot.slane %v7175, 4
        %v7237 = vsel %vm509, %v7234, %v7236
        %v7238 = vrot.slane %v7180, 4
        %v7239 = vsel %vm509, %v7236, %v7238
        %v7240 = vrot.slane %v7201, 4
        %v7241 = vrot.slane %v7197, 5
        %v7242 = vor.u32 %v7240, %v7241
        %v7243 = vrot.slane %v7209, 4
        %v7244 = vrot.slane %v7205, 5
        %v7245 = vor.u32 %v7243, %v7244
        %v7246 = vsel %vm517, %v7242, %v7245
        %v7248 = vshrl.u32 %v7180, 16
        %v7250 = vrot.slane %v7248, 4
        %v7251 = vshll.u32 %v7180, 16
        %v7253 = vrot.slane %v7251, 5
        %v7254 = vor.u32 %v7250, %v7253
        %v7255 = vsel %vm517, %v7245, %v7254
        %v7260 = vrot.slane %v7181, 5
        %v7261 = vrot.slane %v7182, 5
        %v7262 = vsel %vm538, %v7260, %v7261
        %v7263 = vrot.slane %v7183, 5
        %v7264 = vsel %vm538, %v7261, %v7263
        %v7265 = vrot.slane %v7184, 5
        %v7266 = vsel %vm538, %v7263, %v7265
        %v7268 = vshrl.u32 %v7187, 16
        %v7270 = vshll.u32 %v7187, 16
        %v7272 = vrot.slane %v7270, 1
        %v7273 = vor.u32 %v7268, %v7272
        %v7275 = vshll.u32 %v7182, 16
        %v7277 = vrot.slane %v7275, 1
        %v7278 = vsel %vm463, %v7273, %v7277
        %v7279 = vshrl.u32 %v7182, 16
        %v7281 = vor.u32 %v7279, %v7277
        %v7283 = vshll.u32 %v7183, 16
        %v7285 = vrot.slane %v7283, 1
        %v7286 = vsel %vm463, %v7281, %v7285
        %v7287 = vshrl.u32 %v7183, 16
        %v7289 = vor.u32 %v7287, %v7285
        %v7291 = vshll.u32 %v7186, 16
        %v7293 = vrot.slane %v7291, 1
        %v7294 = vsel %vm463, %v7289, %v7293
        %v7295 = vshrl.u32 %v7186, 16
        %v7297 = vor.u32 %v7295, %v7293
        %v7300 = vrot.slane %v7187, 1
        %v7301 = vrot.slane %v7182, 1
        %v7302 = vsel %vm499, %v7300, %v7301
        %v7303 = vrot.slane %v7183, 1
        %v7304 = vsel %vm499, %v7301, %v7303
        %v7305 = vrot.slane %v7188, 1
        %v7306 = vsel %vm499, %v7303, %v7305
        %v7307 = vld [vmem:[#allocation6 + $0xb40] sm:$0xf]
        %v7308 = vld [vmem:[#allocation6 + $0xb44] sm:$0xf]
        %v7309 = vld [vmem:[#allocation6 + $0xb48] sm:$0xf]
        %v7310 = vld [vmem:[#allocation6 + $0xb4c] sm:$0xf]
        %v7311 = vld [vmem:[#allocation6 + $0xb50] sm:$0xf]
        %v7312 = vld [vmem:[#allocation6 + $0xb54] sm:$0xf]
        %v7313 = vld [vmem:[#allocation6 + $0xb58] sm:$0xf]
        %v7314 = vld [vmem:[#allocation6 + $0xb5c] sm:$0xf]
        %v7315 = vld [vmem:[#allocation6 + $0xb60] sm:$0xf]
        %v7316 = vld [vmem:[#allocation6 + $0xb64] sm:$0xf]
        %v7317 = vld [vmem:[#allocation6 + $0xb68] sm:$0xf]
        %v7318 = vld [vmem:[#allocation6 + $0xb6c] sm:$0xf]
        %v7319 = vld [vmem:[#allocation6 + $0xb70] sm:$0xf]
        %v7320 = vld [vmem:[#allocation6 + $0xb74] sm:$0xf]
        %v7321 = vld [vmem:[#allocation6 + $0xb78] sm:$0xf]
        %v7322 = vld [vmem:[#allocation6 + $0xb7c] sm:$0xf]
        %v7323 = vld [vmem:[#allocation6 + $0xb80] sm:$0xf]
        %v7324 = vld [vmem:[#allocation6 + $0xb84] sm:$0xf]
        %v7325 = vld [vmem:[#allocation6 + $0xb88] sm:$0xf]
        %v7326 = vld [vmem:[#allocation6 + $0xb8c] sm:$0xf]
        %v7327 = vld [vmem:[#allocation6 + $0xb90] sm:$0xf]
        %v7328 = vld [vmem:[#allocation6 + $0xb94] sm:$0xf]
        %v7329 = vld [vmem:[#allocation6 + $0xb98] sm:$0xf]
        %v7330 = vld [vmem:[#allocation6 + $0xb9c] sm:$0xf]
        %v7331 = vld [vmem:[#allocation6 + $0xba0] sm:$0xf]
        %v7332 = vld [vmem:[#allocation6 + $0xba4] sm:$0xf]
        %v7333 = vld [vmem:[#allocation6 + $0xba8] sm:$0xf]
        %v7334 = vld [vmem:[#allocation6 + $0xbac] sm:$0xf]
        %v7335 = vld [vmem:[#allocation6 + $0xbb0] sm:$0xf]
        %v7336 = vld [vmem:[#allocation6 + $0xbb4] sm:$0xf]
        %v7337 = vld [vmem:[#allocation6 + $0xbb8] sm:$0xf]
        %v7338 = vld [vmem:[#allocation6 + $0xbbc] sm:$0xf]
        %v7339 = vld [vmem:[#allocation6 + $0xbc0] sm:$0xf]
        %v7340 = vld [vmem:[#allocation6 + $0xbc4] sm:$0xf]
        %v7341 = vld [vmem:[#allocation6 + $0xbc8] sm:$0xf]
        %v7342 = vld [vmem:[#allocation6 + $0xbcc] sm:$0xf]
        %v7343 = vld [vmem:[#allocation6 + $0xbd0] sm:$0xf]
        %v7344 = vld [vmem:[#allocation6 + $0xbd4] sm:$0xf]
        %v7345 = vld [vmem:[#allocation6 + $0xbd8] sm:$0xf]
        %v7346 = vld [vmem:[#allocation6 + $0xbdc] sm:$0xf]
        %v7347 = vld [vmem:[#allocation6 + $0xbe0] sm:$0xf]
        %v7348 = vld [vmem:[#allocation6 + $0xbe4] sm:$0xf]
        %v7349 = vld [vmem:[#allocation6 + $0xbe8] sm:$0xf]
        %v7350 = vld [vmem:[#allocation6 + $0xbec] sm:$0xf]
        %v7351 = vld [vmem:[#allocation6 + $0xbf0] sm:$0xf]
        %v7352 = vld [vmem:[#allocation6 + $0xbf4] sm:$0xf]
        %v7353 = vld [vmem:[#allocation6 + $0xbf8] sm:$0xf]
        %v7354 = vld [vmem:[#allocation6 + $0xbfc] sm:$0xf]
        %v7355 = vld [vmem:[#allocation6 + $0xc00] sm:$0xf]
        %v7356 = vld [vmem:[#allocation6 + $0xc04] sm:$0xf]
        %v7357 = vld [vmem:[#allocation6 + $0xc08] sm:$0xf]
        %v7358 = vld [vmem:[#allocation6 + $0xc0c] sm:$0xf]
        %v7359 = vld [vmem:[#allocation6 + $0xc10] sm:$0xf]
        %v7360 = vld [vmem:[#allocation6 + $0xc14] sm:$0xf]
        %v7361 = vld [vmem:[#allocation6 + $0xc18] sm:$0xf]
        %v7362 = vld [vmem:[#allocation6 + $0xc1c] sm:$0xf]
        %v7363 = vld [vmem:[#allocation6 + $0xc20] sm:$0xf]
        %v7364 = vld [vmem:[#allocation6 + $0xc24] sm:$0xf]
        %v7365 = vld [vmem:[#allocation6 + $0xc28] sm:$0xf]
        %v7366 = vld [vmem:[#allocation6 + $0xc2c] sm:$0xf]
        %v7367 = vld [vmem:[#allocation6 + $0xc30] sm:$0xf]
        %v7368 = vld [vmem:[#allocation6 + $0xc34] sm:$0xf]
        %v7369 = vld [vmem:[#allocation6 + $0xc38] sm:$0xf]
        %v7370 = vld [vmem:[#allocation6 + $0xc3c] sm:$0xf]
        %v7371 = vld [vmem:[#allocation6 + $0xc40] sm:$0xf]
        %v7372 = vld [vmem:[#allocation6 + $0xc44] sm:$0xf]
        %v7373 = vld [vmem:[#allocation6 + $0xc48] sm:$0xf]
        %v7374 = vld [vmem:[#allocation6 + $0xc4c] sm:$0xf]
        %v7375 = vld [vmem:[#allocation6 + $0xc50] sm:$0xf]
        %v7376 = vld [vmem:[#allocation6 + $0xc54] sm:$0xf]
        %v7377 = vld [vmem:[#allocation6 + $0xc58] sm:$0xf]
        %v7378 = vld [vmem:[#allocation6 + $0xc5c] sm:$0xf]
        %v7379 = vld [vmem:[#allocation6 + $0xc60] sm:$0xf]
        %v7380 = vld [vmem:[#allocation6 + $0xc64] sm:$0xf]
        %v7381 = vld [vmem:[#allocation6 + $0xc68] sm:$0xf]
        %v7382 = vld [vmem:[#allocation6 + $0xc6c] sm:$0xf]
        %v7383 = vld [vmem:[#allocation6 + $0xc70] sm:$0xf]
        %v7384 = vld [vmem:[#allocation6 + $0xc74] sm:$0xf]
        %v7385 = vld [vmem:[#allocation6 + $0xc78] sm:$0xf]
        %v7386 = vld [vmem:[#allocation6 + $0xc7c] sm:$0xf]
        %v7387 = vld [vmem:[#allocation6 + $0xc80] sm:$0xf]
        %v7388 = vld [vmem:[#allocation6 + $0xc84] sm:$0xf]
        %v7389 = vld [vmem:[#allocation6 + $0xc88] sm:$0xf]
        %v7390 = vld [vmem:[#allocation6 + $0xc8c] sm:$0xf]
        %v7391 = vld [vmem:[#allocation6 + $0xc90] sm:$0xf]
        %v7392 = vld [vmem:[#allocation6 + $0xc94] sm:$0xf]
        %v7393 = vld [vmem:[#allocation6 + $0xc98] sm:$0xf]
        %v7394 = vld [vmem:[#allocation6 + $0xc9c] sm:$0xf]
        %v7395 = vld [vmem:[#allocation6 + $0xca0] sm:$0xf]
        %v7396 = vld [vmem:[#allocation6 + $0xca4] sm:$0xf]
        %v7397 = vld [vmem:[#allocation6 + $0xca8] sm:$0xf]
        %v7398 = vld [vmem:[#allocation6 + $0xcac] sm:$0xf]
        %v7399 = vld [vmem:[#allocation6 + $0xcb0] sm:$0xf]
        %v7400 = vld [vmem:[#allocation6 + $0xcb4] sm:$0xf]
        %v7401 = vld [vmem:[#allocation6 + $0xcb8] sm:$0xf]
        %v7402 = vld [vmem:[#allocation6 + $0xcbc] sm:$0xf]
        %v7403 = vld [vmem:[#allocation6 + $0xcc0] sm:$0xf]
        %v7404 = vld [vmem:[#allocation6 + $0xcc4] sm:$0xf]
        %v7405 = vld [vmem:[#allocation6 + $0xcc8] sm:$0xf]
        %v7406 = vld [vmem:[#allocation6 + $0xccc] sm:$0xf]
        %v7407 = vld [vmem:[#allocation6 + $0xcd0] sm:$0xf]
        %v7408 = vld [vmem:[#allocation6 + $0xcd4] sm:$0xf]
        %v7409 = vld [vmem:[#allocation6 + $0xcd8] sm:$0xf]
        %v7410 = vld [vmem:[#allocation6 + $0xcdc] sm:$0xf]
        %v7411 = vld [vmem:[#allocation6 + $0xce0] sm:$0xf]
        %v7412 = vld [vmem:[#allocation6 + $0xce4] sm:$0xf]
        %v7413 = vld [vmem:[#allocation6 + $0xce8] sm:$0xf]
        %v7414 = vld [vmem:[#allocation6 + $0xcec] sm:$0xf]
        %v7415 = vld [vmem:[#allocation6 + $0xcf0] sm:$0xf]
        %v7416 = vld [vmem:[#allocation6 + $0xcf4] sm:$0xf]
        %v7417 = vld [vmem:[#allocation6 + $0xcf8] sm:$0xf]
        %v7418 = vld [vmem:[#allocation6 + $0xcfc] sm:$0xf]
        %v7419 = vld [vmem:[#allocation6 + $0xd00] sm:$0xf]
        %v7420 = vld [vmem:[#allocation6 + $0xd04] sm:$0xf]
        %v7421 = vld [vmem:[#allocation6 + $0xd08] sm:$0xf]
        %v7422 = vld [vmem:[#allocation6 + $0xd0c] sm:$0xf]
        %v7423 = vld [vmem:[#allocation6 + $0xd10] sm:$0xf]
        %v7424 = vld [vmem:[#allocation6 + $0xd14] sm:$0xf]
        %v7425 = vld [vmem:[#allocation6 + $0xd18] sm:$0xf]
        %v7426 = vld [vmem:[#allocation6 + $0xd1c] sm:$0xf]
        %v7427 = vld [vmem:[#allocation6 + $0xd20] sm:$0xf]
        %v7428 = vld [vmem:[#allocation6 + $0xd24] sm:$0xf]
        %v7429 = vld [vmem:[#allocation6 + $0xd28] sm:$0xf]
        %v7430 = vld [vmem:[#allocation6 + $0xd2c] sm:$0xf]
        %v7431 = vld [vmem:[#allocation6 + $0xd30] sm:$0xf]
        %v7432 = vld [vmem:[#allocation6 + $0xd34] sm:$0xf]
        %v7433 = vld [vmem:[#allocation6 + $0xd38] sm:$0xf]
        %v7434 = vld [vmem:[#allocation6 + $0xd3c] sm:$0xf]
        %v7435 = vld [vmem:[#allocation6 + $0xd40] sm:$0xf]
        %v7436 = vld [vmem:[#allocation6 + $0xd44] sm:$0xf]
        %v7437 = vld [vmem:[#allocation6 + $0xd48] sm:$0xf]
        %v7438 = vld [vmem:[#allocation6 + $0xd4c] sm:$0xf]
        %v7439 = vld [vmem:[#allocation6 + $0xd50] sm:$0xf]
        %v7440 = vld [vmem:[#allocation6 + $0xd54] sm:$0xf]
        %v7441 = vld [vmem:[#allocation6 + $0xd58] sm:$0xf]
        %v7442 = vld [vmem:[#allocation6 + $0xd5c] sm:$0xf]
        %v7443 = vld [vmem:[#allocation6 + $0xd60] sm:$0xf]
        %v7444 = vld [vmem:[#allocation6 + $0xd64] sm:$0xf]
        %v7445 = vld [vmem:[#allocation6 + $0xd68] sm:$0xf]
        %v7446 = vld [vmem:[#allocation6 + $0xd6c] sm:$0xf]
        %v7447 = vld [vmem:[#allocation6 + $0xd70] sm:$0xf]
        %v7448 = vld [vmem:[#allocation6 + $0xd74] sm:$0xf]
        %v7449 = vld [vmem:[#allocation6 + $0xd78] sm:$0xf]
        %v7450 = vld [vmem:[#allocation6 + $0xd7c] sm:$0xf]
        %v7451 = vld [vmem:[#allocation8 + $0x5] sm:$0x1]
        %v7452 = vlaneseq
        %v7453 = vshrl.u32 %v7452, 7
        %v7454 = vsub.s32 0, %v7453
        %v7455 = vrot.slane %v7451, %v7454
        %v7457 = vshrl.u32 %v7173, 16
        %v7459 = vrot.slane %v7457, 3
        %v7460 = vshll.u32 %v7173, 16
        %v7462 = vrot.slane %v7460, 4
        %v7463 = vor.u32 %v7459, %v7462
        %v7464 = vrot.slane %v7201, 3
        %v7465 = vrot.slane %v7197, 4
        %v7466 = vor.u32 %v7464, %v7465
        %v7467 = vsel %vm735, %v7463, %v7466
        %v7469 = vshrl.u32 %v7200, 16
        %v7471 = vrot.slane %v7469, 3
        %v7472 = vshll.u32 %v7200, 16
        %v7474 = vrot.slane %v7472, 4
        %v7475 = vor.u32 %v7471, %v7474
        %v7477 = vshrl.u32 %v7208, 16
        %v7479 = vrot.slane %v7477, 3
        %v7480 = vshll.u32 %v7208, 16
        %v7482 = vrot.slane %v7480, 4
        %v7483 = vor.u32 %v7479, %v7482
        %v7484 = vsel %vm735, %v7475, %v7483
        %v7486 = vshrl.u32 %v7226, 16
        %v7488 = vrot.slane %v7486, 3
        %v7489 = vshll.u32 %v7226, 16
        %v7491 = vrot.slane %v7489, 4
        %v7492 = vor.u32 %v7488, %v7491
        %v7494 = vshrl.u32 %v7228, 16
        %v7496 = vrot.slane %v7494, 3
        %v7497 = vshll.u32 %v7228, 16
        %v7499 = vrot.slane %v7497, 4
        %v7500 = vor.u32 %v7496, %v7499
        %v7501 = vsel %vm735, %v7492, %v7500
        %v7503 = vshrl.u32 %v7235, 16
        %v7505 = vrot.slane %v7503, 3
        %v7506 = vshll.u32 %v7235, 16
        %v7508 = vrot.slane %v7506, 4
        %v7509 = vor.u32 %v7505, %v7508
        %v7511 = vshrl.u32 %v7237, 16
        %v7513 = vrot.slane %v7511, 3
        %v7514 = vshll.u32 %v7237, 16
        %v7516 = vrot.slane %v7514, 4
        %v7517 = vor.u32 %v7513, %v7516
        %v7518 = vsel %vm735, %v7509, %v7517
        %v7520 = vshrl.u32 %v7242, 16
        %v7522 = vrot.slane %v7520, 3
        %v7523 = vshll.u32 %v7242, 16
        %v7525 = vrot.slane %v7523, 4
        %v7526 = vor.u32 %v7522, %v7525
        %v7528 = vshrl.u32 %v7246, 16
        %v7530 = vrot.slane %v7528, 3
        %v7531 = vshll.u32 %v7246, 16
        %v7533 = vrot.slane %v7531, 4
        %v7534 = vor.u32 %v7530, %v7533
        %v7535 = vsel %vm735, %v7526, %v7534
        %v7537 = vshrl.u32 %v7260, 16
        %v7539 = vrot.slane %v7537, 3
        %v7540 = vshll.u32 %v7260, 16
        %v7542 = vrot.slane %v7540, 4
        %v7543 = vor.u32 %v7539, %v7542
        %v7545 = vshrl.u32 %v7262, 16
        %v7547 = vrot.slane %v7545, 3
        %v7548 = vshll.u32 %v7262, 16
        %v7550 = vrot.slane %v7548, 4
        %v7551 = vor.u32 %v7547, %v7550
        %v7552 = vsel %vm735, %v7543, %v7551
        %v7554 = vshrl.u32 %v7185, 16
        %v7556 = vrot.slane %v7554, 3
        %v7557 = vshll.u32 %v7185, 16
        %v7559 = vrot.slane %v7557, 4
        %v7560 = vor.u32 %v7556, %v7559
        %v7561 = vrot.slane %v7279, 3
        %v7562 = vrot.slane %v7275, 4
        %v7563 = vor.u32 %v7561, %v7562
        %v7564 = vsel %vm735, %v7560, %v7563
        %v7566 = vshrl.u32 %v7278, 16
        %v7568 = vrot.slane %v7566, 3
        %v7569 = vshll.u32 %v7278, 16
        %v7571 = vrot.slane %v7569, 4
        %v7572 = vor.u32 %v7568, %v7571
        %v7574 = vshrl.u32 %v7286, 16
        %v7576 = vrot.slane %v7574, 3
        %v7577 = vshll.u32 %v7286, 16
        %v7579 = vrot.slane %v7577, 4
        %v7580 = vor.u32 %v7576, %v7579
        %v7581 = vsel %vm735, %v7572, %v7580
        %v7583 = vshrl.u32 %v7302, 16
        %v7585 = vrot.slane %v7583, 3
        %v7586 = vshll.u32 %v7302, 16
        %v7588 = vrot.slane %v7586, 4
        %v7589 = vor.u32 %v7585, %v7588
        %v7591 = vshrl.u32 %v7304, 16
        %v7593 = vrot.slane %v7591, 3
        %v7594 = vshll.u32 %v7304, 16
        %v7596 = vrot.slane %v7594, 4
        %v7597 = vor.u32 %v7593, %v7596
        %v7598 = vsel %vm735, %v7589, %v7597
        %v7599 = vrot.slane %v7209, 3
        %v7600 = vrot.slane %v7205, 4
        %v7601 = vor.u32 %v7599, %v7600
        %v7602 = vsel %vm735, %v7466, %v7601
        %v7604 = vshrl.u32 %v7216, 16
        %v7606 = vrot.slane %v7604, 3
        %v7607 = vshll.u32 %v7216, 16
        %v7609 = vrot.slane %v7607, 4
        %v7610 = vor.u32 %v7606, %v7609
        %v7611 = vsel %vm735, %v7483, %v7610
        %v7613 = vshrl.u32 %v7230, 16
        %v7615 = vrot.slane %v7613, 3
        %v7616 = vshll.u32 %v7230, 16
        %v7618 = vrot.slane %v7616, 4
        %v7619 = vor.u32 %v7615, %v7618
        %v7620 = vsel %vm735, %v7500, %v7619
        %v7622 = vshrl.u32 %v7239, 16
        %v7624 = vrot.slane %v7622, 3
        %v7625 = vshll.u32 %v7239, 16
        %v7627 = vrot.slane %v7625, 4
        %v7628 = vor.u32 %v7624, %v7627
        %v7629 = vsel %vm735, %v7517, %v7628
        %v7631 = vshrl.u32 %v7255, 16
        %v7633 = vrot.slane %v7631, 3
        %v7634 = vshll.u32 %v7255, 16
        %v7636 = vrot.slane %v7634, 4
        %v7637 = vor.u32 %v7633, %v7636
        %v7638 = vsel %vm735, %v7534, %v7637
        %v7640 = vshrl.u32 %v7264, 16
        %v7642 = vrot.slane %v7640, 3
        %v7643 = vshll.u32 %v7264, 16
        %v7645 = vrot.slane %v7643, 4
        %v7646 = vor.u32 %v7642, %v7645
        %v7647 = vsel %vm735, %v7551, %v7646
        %v7648 = vrot.slane %v7287, 3
        %v7649 = vrot.slane %v7283, 4
        %v7650 = vor.u32 %v7648, %v7649
        %v7651 = vsel %vm735, %v7563, %v7650
        %v7653 = vshrl.u32 %v7294, 16
        %v7655 = vrot.slane %v7653, 3
        %v7656 = vshll.u32 %v7294, 16
        %v7658 = vrot.slane %v7656, 4
        %v7659 = vor.u32 %v7655, %v7658
        %v7660 = vsel %vm735, %v7580, %v7659
        %v7662 = vshrl.u32 %v7306, 16
        %v7664 = vrot.slane %v7662, 3
        %v7665 = vshll.u32 %v7306, 16
        %v7667 = vrot.slane %v7665, 4
        %v7668 = vor.u32 %v7664, %v7667
        %v7669 = vsel %vm735, %v7597, %v7668
        %v7670 = vrot.slane %v7217, 3
        %v7671 = vrot.slane %v7213, 4
        %v7672 = vor.u32 %v7670, %v7671
        %v7673 = vsel %vm735, %v7601, %v7672
        %v7675 = vshrl.u32 %v7219, 16
        %v7677 = vrot.slane %v7675, 3
        %v7678 = vshll.u32 %v7219, 16
        %v7680 = vrot.slane %v7678, 4
        %v7681 = vor.u32 %v7677, %v7680
        %v7682 = vsel %vm735, %v7610, %v7681
        %v7684 = vshrl.u32 %v7229, 16
        %v7686 = vrot.slane %v7684, 3
        %v7687 = vshll.u32 %v7229, 16
        %v7689 = vrot.slane %v7687, 4
        %v7690 = vor.u32 %v7686, %v7689
        %v7691 = vsel %vm735, %v7619, %v7690
        %v7693 = vshrl.u32 %v7238, 16
        %v7695 = vrot.slane %v7693, 3
        %v7696 = vshll.u32 %v7238, 16
        %v7698 = vrot.slane %v7696, 4
        %v7699 = vor.u32 %v7695, %v7698
        %v7700 = vsel %vm735, %v7628, %v7699
        %v7702 = vshrl.u32 %v7254, 16
        %v7704 = vrot.slane %v7702, 3
        %v7705 = vshll.u32 %v7254, 16
        %v7707 = vrot.slane %v7705, 4
        %v7708 = vor.u32 %v7704, %v7707
        %v7709 = vsel %vm735, %v7637, %v7708
        %v7711 = vshrl.u32 %v7266, 16
        %v7713 = vrot.slane %v7711, 3
        %v7714 = vshll.u32 %v7266, 16
        %v7716 = vrot.slane %v7714, 4
        %v7717 = vor.u32 %v7713, %v7716
        %v7718 = vsel %vm735, %v7646, %v7717
        %v7719 = vrot.slane %v7295, 3
        %v7720 = vrot.slane %v7291, 4
        %v7721 = vor.u32 %v7719, %v7720
        %v7722 = vsel %vm735, %v7650, %v7721
        %v7724 = vshrl.u32 %v7297, 16
        %v7726 = vrot.slane %v7724, 3
        %v7727 = vshll.u32 %v7297, 16
        %v7729 = vrot.slane %v7727, 4
        %v7730 = vor.u32 %v7726, %v7729
        %v7731 = vsel %vm735, %v7659, %v7730
        %v7733 = vshrl.u32 %v7305, 16
        %v7735 = vrot.slane %v7733, 3
        %v7736 = vshll.u32 %v7305, 16
        %v7738 = vrot.slane %v7736, 4
        %v7739 = vor.u32 %v7735, %v7738
        %v7740 = vsel %vm735, %v7668, %v7739
        %v7912 = vunpack.c.l.b16 %v7307
        %v7913 = vunpack.c.l.b16 %v7308
        %v7914 = vunpack.c.l.b16 %v7309
        %v7915 = vunpack.c.l.b16 %v7310
        %v7916 = vunpack.c.l.b16 %v7311
        %v7917 = vunpack.c.l.b16 %v7312
        %v7918 = vunpack.c.l.b16 %v7313
        %v7919 = vunpack.c.l.b16 %v7314
        %v7920 = vunpack.c.l.b16 %v7315
        %v7921 = vunpack.c.l.b16 %v7316
        %v7922 = vunpack.c.l.b16 %v7317
        %v7923 = vunpack.c.l.b16 %v7318
        %v7924 = vunpack.c.l.b16 %v7319
        %v7925 = vunpack.c.l.b16 %v7320
        %v7926 = vunpack.c.l.b16 %v7321
        %v7927 = vunpack.c.l.b16 %v7322
        %v7928 = vunpack.c.l.b16 %v7323
        %v7929 = vunpack.c.l.b16 %v7324
        %v7930 = vunpack.c.l.b16 %v7325
        %v7931 = vunpack.c.l.b16 %v7326
        %v7932 = vunpack.c.l.b16 %v7327
        %v7933 = vunpack.c.l.b16 %v7328
        %v7934 = vunpack.c.l.b16 %v7329
        %v7935 = vunpack.c.l.b16 %v7330
        %v7936 = vunpack.c.l.b16 %v7331
        %v7937 = vunpack.c.l.b16 %v7332
        %v7938 = vunpack.c.l.b16 %v7333
        %v7939 = vunpack.c.l.b16 %v7334
        %v7940 = vunpack.c.l.b16 %v7335
        %v7941 = vunpack.c.l.b16 %v7336
        %v7942 = vunpack.c.l.b16 %v7337
        %v7943 = vunpack.c.l.b16 %v7338
        %v7944 = vunpack.c.l.b16 %v7339
        %v7945 = vunpack.c.l.b16 %v7340
        %v7946 = vunpack.c.l.b16 %v7341
        %v7947 = vunpack.c.l.b16 %v7342
        %v7948 = vunpack.c.l.b16 %v7343
        %v7949 = vunpack.c.l.b16 %v7344
        %v7950 = vunpack.c.l.b16 %v7345
        %v7951 = vunpack.c.l.b16 %v7346
        %v7952 = vunpack.c.l.b16 %v7347
        %v7953 = vunpack.c.l.b16 %v7348
        %v7954 = vunpack.c.l.b16 %v7349
        %v7955 = vunpack.c.l.b16 %v7350
        %v7956 = vunpack.c.l.b16 %v7351
        %v7957 = vunpack.c.l.b16 %v7352
        %v7958 = vunpack.c.l.b16 %v7353
        %v7959 = vunpack.c.l.b16 %v7354
        %v7960 = vunpack.c.l.b16 %v7355
        %v7961 = vunpack.c.l.b16 %v7356
        %v7962 = vunpack.c.l.b16 %v7357
        %v7963 = vunpack.c.l.b16 %v7358
        %v7964 = vunpack.c.l.b16 %v7359
        %v7965 = vunpack.c.l.b16 %v7360
        %v7966 = vunpack.c.l.b16 %v7361
        %v7967 = vunpack.c.l.b16 %v7362
        %v7968 = vunpack.c.l.b16 %v7363
        %v7969 = vunpack.c.l.b16 %v7364
        %v7970 = vunpack.c.l.b16 %v7365
        %v7971 = vunpack.c.l.b16 %v7366
        %v7972 = vunpack.c.l.b16 %v7367
        %v7973 = vunpack.c.l.b16 %v7368
        %v7974 = vunpack.c.l.b16 %v7369
        %v7975 = vunpack.c.l.b16 %v7370
        %v7976 = vunpack.c.l.b16 %v7371
        %v7977 = vunpack.c.l.b16 %v7372
        %v7978 = vunpack.c.l.b16 %v7373
        %v7979 = vunpack.c.l.b16 %v7374
        %v7980 = vunpack.c.l.b16 %v7375
        %v7981 = vunpack.c.l.b16 %v7376
        %v7982 = vunpack.c.l.b16 %v7377
        %v7983 = vunpack.c.l.b16 %v7378
        %v7984 = vunpack.c.l.b16 %v7379
        %v7985 = vunpack.c.l.b16 %v7380
        %v7986 = vunpack.c.l.b16 %v7381
        %v7987 = vunpack.c.l.b16 %v7382
        %v7988 = vunpack.c.l.b16 %v7383
        %v7989 = vunpack.c.l.b16 %v7384
        %v7990 = vunpack.c.l.b16 %v7385
        %v7991 = vunpack.c.l.b16 %v7386
        %v7992 = vunpack.c.l.b16 %v7387
        %v7993 = vunpack.c.l.b16 %v7388
        %v7994 = vunpack.c.l.b16 %v7389
        %v7995 = vunpack.c.l.b16 %v7390
        %v7996 = vunpack.c.l.b16 %v7391
        %v7997 = vunpack.c.l.b16 %v7392
        %v7998 = vunpack.c.l.b16 %v7393
        %v7999 = vunpack.c.l.b16 %v7394
        %v8000 = vunpack.c.l.b16 %v7395
        %v8001 = vunpack.c.l.b16 %v7396
        %v8002 = vunpack.c.l.b16 %v7397
        %v8003 = vunpack.c.l.b16 %v7398
        %v8004 = vunpack.c.l.b16 %v7399
        %v8005 = vunpack.c.l.b16 %v7400
        %v8006 = vunpack.c.l.b16 %v7401
        %v8007 = vunpack.c.l.b16 %v7402
        %v8008 = vunpack.c.l.b16 %v7403
        %v8009 = vunpack.c.l.b16 %v7404
        %v8010 = vunpack.c.l.b16 %v7405
        %v8011 = vunpack.c.l.b16 %v7406
        %v8012 = vunpack.c.l.b16 %v7407
        %v8013 = vunpack.c.l.b16 %v7408
        %v8014 = vunpack.c.l.b16 %v7409
        %v8015 = vunpack.c.l.b16 %v7410
        %v8016 = vunpack.c.l.b16 %v7411
        %v8017 = vunpack.c.l.b16 %v7412
        %v8018 = vunpack.c.l.b16 %v7413
        %v8019 = vunpack.c.l.b16 %v7414
        %v8020 = vunpack.c.l.b16 %v7415
        %v8021 = vunpack.c.l.b16 %v7416
        %v8022 = vunpack.c.l.b16 %v7417
        %v8023 = vunpack.c.l.b16 %v7418
        %v8024 = vunpack.c.l.b16 %v7419
        %v8025 = vunpack.c.l.b16 %v7420
        %v8026 = vunpack.c.l.b16 %v7421
        %v8027 = vunpack.c.l.b16 %v7422
        %v8028 = vunpack.c.l.b16 %v7423
        %v8029 = vunpack.c.l.b16 %v7424
        %v8030 = vunpack.c.l.b16 %v7425
        %v8031 = vunpack.c.l.b16 %v7426
        %v8032 = vunpack.c.l.b16 %v7427
        %v8033 = vunpack.c.l.b16 %v7428
        %v8034 = vunpack.c.l.b16 %v7429
        %v8035 = vunpack.c.l.b16 %v7430
        %v8036 = vunpack.c.l.b16 %v7431
        %v8037 = vunpack.c.l.b16 %v7432
        %v8038 = vunpack.c.l.b16 %v7433
        %v8039 = vunpack.c.l.b16 %v7434
        %v8040 = vunpack.c.l.b16 %v7435
        %v8041 = vunpack.c.l.b16 %v7436
        %v8042 = vunpack.c.l.b16 %v7437
        %v8043 = vunpack.c.l.b16 %v7438
        %v8044 = vunpack.c.l.b16 %v7439
        %v8045 = vunpack.c.l.b16 %v7440
        %v8046 = vunpack.c.l.b16 %v7441
        %v8047 = vunpack.c.l.b16 %v7442
        %v8048 = vunpack.c.l.b16 %v7443
        %v8049 = vunpack.c.l.b16 %v7444
        %v8050 = vunpack.c.l.b16 %v7445
        %v8051 = vunpack.c.l.b16 %v7446
        %v8052 = vunpack.c.l.b16 %v7447
        %v8053 = vunpack.c.l.b16 %v7448
        %v8054 = vunpack.c.l.b16 %v7449
        %v8055 = vunpack.c.l.b16 %v7450
        %v8056 = vpack.c.b16 %v7913, %v7912
        %v8057 = vpack.c.b16 %v7915, %v7914
        %v8058 = vpack.c.b16 %v7917, %v7916
        %v8059 = vpack.c.b16 %v7919, %v7918
        %v8060 = vpack.c.b16 %v7921, %v7920
        %v8061 = vpack.c.b16 %v7923, %v7922
        %v8062 = vpack.c.b16 %v7925, %v7924
        %v8063 = vpack.c.b16 %v7927, %v7926
        %v8064 = vpack.c.b16 %v7929, %v7928
        %v8065 = vpack.c.b16 %v7931, %v7930
        %v8066 = vpack.c.b16 %v7933, %v7932
        %v8067 = vpack.c.b16 %v7935, %v7934
        %v8068 = vpack.c.b16 %v7937, %v7936
        %v8069 = vpack.c.b16 %v7939, %v7938
        %v8070 = vpack.c.b16 %v7941, %v7940
        %v8071 = vpack.c.b16 %v7943, %v7942
        %v8072 = vpack.c.b16 %v7945, %v7944
        %v8073 = vpack.c.b16 %v7947, %v7946
        %v8074 = vpack.c.b16 %v7949, %v7948
        %v8075 = vpack.c.b16 %v7951, %v7950
        %v8076 = vpack.c.b16 %v7953, %v7952
        %v8077 = vpack.c.b16 %v7955, %v7954
        %v8078 = vpack.c.b16 %v7957, %v7956
        %v8079 = vpack.c.b16 %v7959, %v7958
        %v8080 = vpack.c.b16 %v7961, %v7960
        %v8081 = vpack.c.b16 %v7963, %v7962
        %v8082 = vpack.c.b16 %v7965, %v7964
        %v8083 = vpack.c.b16 %v7967, %v7966
        %v8084 = vpack.c.b16 %v7969, %v7968
        %v8085 = vpack.c.b16 %v7971, %v7970
        %v8086 = vpack.c.b16 %v7973, %v7972
        %v8087 = vpack.c.b16 %v7975, %v7974
        %v8088 = vpack.c.b16 %v7977, %v7976
        %v8089 = vpack.c.b16 %v7979, %v7978
        %v8090 = vpack.c.b16 %v7981, %v7980
        %v8091 = vpack.c.b16 %v7983, %v7982
        %v8092 = vpack.c.b16 %v7985, %v7984
        %v8093 = vpack.c.b16 %v7987, %v7986
        %v8094 = vpack.c.b16 %v7989, %v7988
        %v8095 = vpack.c.b16 %v7991, %v7990
        %v8096 = vpack.c.b16 %v7993, %v7992
        %v8097 = vpack.c.b16 %v7995, %v7994
        %v8098 = vpack.c.b16 %v7997, %v7996
        %v8099 = vpack.c.b16 %v7999, %v7998
        %v8100 = vpack.c.b16 %v8001, %v8000
        %v8101 = vpack.c.b16 %v8003, %v8002
        %v8102 = vpack.c.b16 %v8005, %v8004
        %v8103 = vpack.c.b16 %v8007, %v8006
        %v8104 = vpack.c.b16 %v8009, %v8008
        %v8105 = vpack.c.b16 %v8011, %v8010
        %v8106 = vpack.c.b16 %v8013, %v8012
        %v8107 = vpack.c.b16 %v8015, %v8014
        %v8108 = vpack.c.b16 %v8017, %v8016
        %v8109 = vpack.c.b16 %v8019, %v8018
        %v8110 = vpack.c.b16 %v8021, %v8020
        %v8111 = vpack.c.b16 %v8023, %v8022
        %v8112 = vpack.c.b16 %v8025, %v8024
        %v8113 = vpack.c.b16 %v8027, %v8026
        %v8114 = vpack.c.b16 %v8029, %v8028
        %v8115 = vpack.c.b16 %v8031, %v8030
        %v8116 = vpack.c.b16 %v8033, %v8032
        %v8117 = vpack.c.b16 %v8035, %v8034
        %v8118 = vpack.c.b16 %v8037, %v8036
        %v8119 = vpack.c.b16 %v8039, %v8038
        %v8120 = vpack.c.b16 %v8041, %v8040
        %v8121 = vpack.c.b16 %v8043, %v8042
        %v8122 = vpack.c.b16 %v8045, %v8044
        %v8123 = vpack.c.b16 %v8047, %v8046
        %v8124 = vpack.c.b16 %v8049, %v8048
        %v8125 = vpack.c.b16 %v8051, %v8050
        %v8126 = vpack.c.b16 %v8053, %v8052
        %v8127 = vpack.c.b16 %v8055, %v8054
        %8200 = vmatprep.subr.bf16.mxu0 0
        %8201 = vmatpush1.bf16.msra.mxu0 %v8056
        %8202 = vmatprep.subr.bf16.mxu0 0
        %8203 = vmatpush1.bf16.msra.mxu0 %v8057
        %8204 = vmatprep.subr.bf16.mxu0 0
        %8205 = vmatpush1.bf16.msra.mxu0 %v8058
        %8206 = vmatprep.subr.bf16.mxu0 0
        %8207 = vmatpush1.bf16.msra.mxu0 %v8059
        %8208 = vmatprep.subr.bf16.mxu0 0
        %8209 = vmatpush1.bf16.msra.mxu0 %v8060
        %8210 = vmatprep.subr.bf16.mxu0 0
        %8211 = vmatpush1.bf16.msra.mxu0 %v8061
        %8212 = vmatprep.subr.bf16.mxu0 0
        %8213 = vmatpush1.bf16.msra.mxu0 %v8062
        %8214 = vmatprep.subr.bf16.mxu0 0
        %8215 = vmatpush1.bf16.msra.mxu0 %v8063
        %8216 = vmatprep.subr.bf16.mxu0 0
        %8217 = vmatpush1.bf16.msra.mxu0 %v8064
        %8218 = vmatprep.subr.bf16.mxu0 0
        %8219 = vmatpush1.bf16.msra.mxu0 %v8065
        %8220 = vmatprep.subr.bf16.mxu0 0
        %8221 = vmatpush1.bf16.msra.mxu0 %v8066
        %8222 = vmatprep.subr.bf16.mxu0 0
        %8223 = vmatpush1.bf16.msra.mxu0 %v8067
        %8224 = vmatprep.subr.bf16.mxu0 0
        %8225 = vmatpush1.bf16.msra.mxu0 %v8068
        %8226 = vmatprep.subr.bf16.mxu0 0
        %8227 = vmatpush1.bf16.msra.mxu0 %v8069
        %8228 = vmatprep.subr.bf16.mxu0 0
        %8229 = vmatpush1.bf16.msra.mxu0 %v8070
        %8230 = vmatprep.subr.bf16.mxu0 0
        %8231 = vmatpush1.bf16.msra.mxu0 %v8071
        %8232 = vmatprep.mubr.bf16.mxu0 %v7484
        %8233 = vmatmul.mubr.bf16.gmra.mrb[0].mxu0 %v7467
        %v8234 = vpop.f32.mrb[0].mxu0
        %v8235 = vadd.f32 %v7455, %v8234
        %v8236 = vpop.f32.mrb[0].mxu0
        %v8237 = vpop.f32.mrb[0].mxu0
        %v8238 = vadd.f32 %v7455, %v8237
        %v8239 = vpop.f32.mrb[0].mxu0
        %8240 = vmatprep.mubr.bf16.mxu0 %v7611
        %8241 = vmatmul.mubr.bf16.gmra.mrb[0].mxu0 %v7602
        %v8242 = vpop.f32.mrb[0].mxu0
        %v8243 = vadd.f32 %v7455, %v8242
        %v8244 = vpop.f32.mrb[0].mxu0
        %v8245 = vpop.f32.mrb[0].mxu0
        %v8246 = vadd.f32 %v7455, %v8245
        %v8247 = vpop.f32.mrb[0].mxu0
        %8248 = vmatprep.mubr.bf16.mxu0 %v7682
        %8249 = vmatmul.mubr.bf16.gmra.mrb[0].mxu0 %v7673
        %v8250 = vpop.f32.mrb[0].mxu0
        %v8251 = vadd.f32 %v7455, %v8250
        %v8252 = vpop.f32.mrb[0].mxu0
        %v8253 = vpop.f32.mrb[0].mxu0
        %v8254 = vadd.f32 %v7455, %v8253
        %v8255 = vpop.f32.mrb[0].mxu0
        %8256 = vdwg.mxu0
        %8257 = vmatprep.subr.bf16.mxu0 0
        %8258 = vmatpush1.bf16.msra.mxu0 %v8072
        %8259 = vmatprep.subr.bf16.mxu0 0
        %8260 = vmatpush1.bf16.msra.mxu0 %v8073
        %8261 = vmatprep.subr.bf16.mxu0 0
        %8262 = vmatpush1.bf16.msra.mxu0 %v8074
        %8263 = vmatprep.subr.bf16.mxu0 0
        %8264 = vmatpush1.bf16.msra.mxu0 %v8075
        %8265 = vmatprep.subr.bf16.mxu0 0
        %8266 = vmatpush1.bf16.msra.mxu0 %v8076
        %8267 = vmatprep.subr.bf16.mxu0 0
        %8268 = vmatpush1.bf16.msra.mxu0 %v8077
        %8269 = vmatprep.subr.bf16.mxu0 0
        %8270 = vmatpush1.bf16.msra.mxu0 %v8078
        %8271 = vmatprep.subr.bf16.mxu0 0
        %8272 = vmatpush1.bf16.msra.mxu0 %v8079
        %8273 = vmatprep.subr.bf16.mxu0 0
        %8274 = vmatpush1.bf16.msra.mxu0 %v8080
        %8275 = vmatprep.subr.bf16.mxu0 0
        %8276 = vmatpush1.bf16.msra.mxu0 %v8081
        %8277 = vmatprep.subr.bf16.mxu0 0
        %8278 = vmatpush1.bf16.msra.mxu0 %v8082
        %8279 = vmatprep.subr.bf16.mxu0 0
        %8280 = vmatpush1.bf16.msra.mxu0 %v8083
        %8281 = vmatprep.subr.bf16.mxu0 0
        %8282 = vmatpush1.bf16.msra.mxu0 %v8084
        %8283 = vmatprep.subr.bf16.mxu0 0
        %8284 = vmatpush1.bf16.msra.mxu0 %v8085
        %8285 = vmatprep.subr.bf16.mxu0 0
        %8286 = vmatpush1.bf16.msra.mxu0 %v8086
        %8287 = vmatprep.subr.bf16.mxu0 0
        %8288 = vmatpush1.bf16.msra.mxu0 %v8087
        %8289 = vmatprep.mubr.bf16.mxu0 %v7518
        %8290 = vmatmul.mubr.bf16.gmra.mrb[0].mxu0 %v7501
        %v8291 = vpop.f32.mrb[0].mxu0
        %v8292 = vadd.f32 %v8235, %v8291
        %v8293 = vpop.f32.mrb[0].mxu0
        %v8294 = vpop.f32.mrb[0].mxu0
        %v8295 = vadd.f32 %v8238, %v8294
        %v8296 = vpop.f32.mrb[0].mxu0
        %8297 = vmatprep.mubr.bf16.mxu0 %v7629
        %8298 = vmatmul.mubr.bf16.gmra.mrb[0].mxu0 %v7620
        %v8299 = vpop.f32.mrb[0].mxu0
        %v8300 = vadd.f32 %v8243, %v8299
        %v8301 = vpop.f32.mrb[0].mxu0
        %v8302 = vpop.f32.mrb[0].mxu0
        %v8303 = vadd.f32 %v8246, %v8302
        %v8304 = vpop.f32.mrb[0].mxu0
        %8305 = vmatprep.mubr.bf16.mxu0 %v7700
        %8306 = vmatmul.mubr.bf16.gmra.mrb[0].mxu0 %v7691
        %v8307 = vpop.f32.mrb[0].mxu0
        %v8308 = vadd.f32 %v8251, %v8307
        %v8309 = vpop.f32.mrb[0].mxu0
        %v8310 = vpop.f32.mrb[0].mxu0
        %v8311 = vadd.f32 %v8254, %v8310
        %v8312 = vpop.f32.mrb[0].mxu0
        %8313 = vdwg.mxu0
        %8314 = vmatprep.subr.bf16.mxu0 0
        %8315 = vmatpush1.bf16.msra.mxu0 %v8088
        %8316 = vmatprep.subr.bf16.mxu0 0
        %8317 = vmatpush1.bf16.msra.mxu0 %v8089
        %8318 = vmatprep.subr.bf16.mxu0 0
        %8319 = vmatpush1.bf16.msra.mxu0 %v8090
        %8320 = vmatprep.subr.bf16.mxu0 0
        %8321 = vmatpush1.bf16.msra.mxu0 %v8091
        %8322 = vmatprep.subr.bf16.mxu0 0
        %8323 = vmatpush1.bf16.msra.mxu0 %v8092
        %8324 = vmatprep.subr.bf16.mxu0 0
        %8325 = vmatpush1.bf16.msra.mxu0 %v8093
        %8326 = vmatprep.subr.bf16.mxu0 0
        %8327 = vmatpush1.bf16.msra.mxu0 %v8094
        %8328 = vmatprep.subr.bf16.mxu0 0
        %8329 = vmatpush1.bf16.msra.mxu0 %v8095
        %8330 = vmatprep.subr.bf16.mxu0 0
        %8331 = vmatpush1.bf16.msra.mxu0 %v8096
        %8332 = vmatprep.subr.bf16.mxu0 0
        %8333 = vmatpush1.bf16.msra.mxu0 %v8097
        %8334 = vmatprep.subr.bf16.mxu0 0
        %8335 = vmatpush1.bf16.msra.mxu0 %v8098
        %8336 = vmatprep.subr.bf16.mxu0 0
        %8337 = vmatpush1.bf16.msra.mxu0 %v8099
        %8338 = vmatprep.subr.bf16.mxu0 0
        %8339 = vmatpush1.bf16.msra.mxu0 %v8100
        %8340 = vmatprep.subr.bf16.mxu0 0
        %8341 = vmatpush1.bf16.msra.mxu0 %v8101
        %8342 = vmatprep.subr.bf16.mxu0 0
        %8343 = vmatpush1.bf16.msra.mxu0 %v8102
        %8344 = vmatprep.subr.bf16.mxu0 0
        %8345 = vmatpush1.bf16.msra.mxu0 %v8103
        %8346 = vmatprep.mubr.bf16.mxu0 %v7552
        %8347 = vmatmul.mubr.bf16.gmra.mrb[0].mxu0 %v7535
        %v8348 = vpop.f32.mrb[0].mxu0
        %v8349 = vadd.f32 %v8292, %v8348
        %v8350 = vpop.f32.mrb[0].mxu0
        %v8351 = vpop.f32.mrb[0].mxu0
        %v8352 = vadd.f32 %v8295, %v8351
        %v8353 = vpop.f32.mrb[0].mxu0
        %8354 = vmatprep.mubr.bf16.mxu0 %v7647
        %8355 = vmatmul.mubr.bf16.gmra.mrb[0].mxu0 %v7638
        %v8356 = vpop.f32.mrb[0].mxu0
        %v8357 = vadd.f32 %v8300, %v8356
        %v8358 = vpop.f32.mrb[0].mxu0
        %v8359 = vpop.f32.mrb[0].mxu0
        %v8360 = vadd.f32 %v8303, %v8359
        %v8361 = vpop.f32.mrb[0].mxu0
        %8362 = vmatprep.mubr.bf16.mxu0 %v7718
        %8363 = vmatmul.mubr.bf16.gmra.mrb[0].mxu0 %v7709
        %v8364 = vpop.f32.mrb[0].mxu0
        %v8365 = vadd.f32 %v8308, %v8364
        %v8366 = vpop.f32.mrb[0].mxu0
        %v8367 = vpop.f32.mrb[0].mxu0
        %v8368 = vadd.f32 %v8311, %v8367
        %v8369 = vpop.f32.mrb[0].mxu0
        %8370 = vdwg.mxu0
        %8371 = vmatprep.subr.bf16.mxu0 0
        %8372 = vmatpush1.bf16.msra.mxu0 %v8104
        %8373 = vmatprep.subr.bf16.mxu0 0
        %8374 = vmatpush1.bf16.msra.mxu0 %v8105
        %8375 = vmatprep.subr.bf16.mxu0 0
        %8376 = vmatpush1.bf16.msra.mxu0 %v8106
        %8377 = vmatprep.subr.bf16.mxu0 0
        %8378 = vmatpush1.bf16.msra.mxu0 %v8107
        %8379 = vmatprep.subr.bf16.mxu0 0
        %8380 = vmatpush1.bf16.msra.mxu0 %v8108
        %8381 = vmatprep.subr.bf16.mxu0 0
        %8382 = vmatpush1.bf16.msra.mxu0 %v8109
        %8383 = vmatprep.subr.bf16.mxu0 0
        %8384 = vmatpush1.bf16.msra.mxu0 %v8110
        %8385 = vmatprep.subr.bf16.mxu0 0
        %8386 = vmatpush1.bf16.msra.mxu0 %v8111
        %8387 = vmatprep.subr.bf16.mxu0 0
        %8388 = vmatpush1.bf16.msra.mxu0 %v8112
        %8389 = vmatprep.subr.bf16.mxu0 0
        %8390 = vmatpush1.bf16.msra.mxu0 %v8113
        %8391 = vmatprep.subr.bf16.mxu0 0
        %8392 = vmatpush1.bf16.msra.mxu0 %v8114
        %8393 = vmatprep.subr.bf16.mxu0 0
        %8394 = vmatpush1.bf16.msra.mxu0 %v8115
        %8395 = vmatprep.subr.bf16.mxu0 0
        %8396 = vmatpush1.bf16.msra.mxu0 %v8116
        %8397 = vmatprep.subr.bf16.mxu0 0
        %8398 = vmatpush1.bf16.msra.mxu0 %v8117
        %8399 = vmatprep.subr.bf16.mxu0 0
        %8400 = vmatpush1.bf16.msra.mxu0 %v8118
        %8401 = vmatprep.subr.bf16.mxu0 0
        %8402 = vmatpush1.bf16.msra.mxu0 %v8119
        %8403 = vmatprep.mubr.bf16.mxu0 %v7581
        %8404 = vmatmul.mubr.bf16.gmra.mrb[0].mxu0 %v7564
        %v8405 = vpop.f32.mrb[0].mxu0
        %v8406 = vadd.f32 %v8349, %v8405
        %v8407 = vpop.f32.mrb[0].mxu0
        %v8408 = vpop.f32.mrb[0].mxu0
        %v8409 = vadd.f32 %v8352, %v8408
        %v8410 = vpop.f32.mrb[0].mxu0
        %8411 = vmatprep.mubr.bf16.mxu0 %v7660
        %8412 = vmatmul.mubr.bf16.gmra.mrb[0].mxu0 %v7651
        %v8413 = vpop.f32.mrb[0].mxu0
        %v8414 = vadd.f32 %v8357, %v8413
        %v8415 = vpop.f32.mrb[0].mxu0
        %v8416 = vpop.f32.mrb[0].mxu0
        %v8417 = vadd.f32 %v8360, %v8416
        %v8418 = vpop.f32.mrb[0].mxu0
        %8419 = vmatprep.mubr.bf16.mxu0 %v7731
        %8420 = vmatmul.mubr.bf16.gmra.mrb[0].mxu0 %v7722
        %v8421 = vpop.f32.mrb[0].mxu0
        %v8422 = vadd.f32 %v8365, %v8421
        %v8423 = vpop.f32.mrb[0].mxu0
        %v8424 = vpop.f32.mrb[0].mxu0
        %v8425 = vadd.f32 %v8368, %v8424
        %v8426 = vpop.f32.mrb[0].mxu0
        %8427 = vdwg.mxu0
        %8428 = vmatprep.subr.bf16.mxu0 0
        %8429 = vmatpush1.bf16.msra.mxu0 %v8120
        %8430 = vmatprep.subr.bf16.mxu0 0
        %8431 = vmatpush1.bf16.msra.mxu0 %v8121
        %8432 = vmatprep.subr.bf16.mxu0 0
        %8433 = vmatpush1.bf16.msra.mxu0 %v8122
        %8434 = vmatprep.subr.bf16.mxu0 0
        %8435 = vmatpush1.bf16.msra.mxu0 %v8123
        %8436 = vmatprep.subr.bf16.mxu0 0
        %8437 = vmatpush1.bf16.msra.mxu0 %v8124
        %8438 = vmatprep.subr.bf16.mxu0 0
        %8439 = vmatpush1.bf16.msra.mxu0 %v8125
        %8440 = vmatprep.subr.bf16.mxu0 0
        %8441 = vmatpush1.bf16.msra.mxu0 %v8126
        %8442 = vmatprep.subr.bf16.mxu0 0
        %8443 = vmatpush1.bf16.msra.mxu0 %v8127
        %8444 = vmatprep.subr.bf16.mxu0 0
        %8445 = vmatpush1.bf16.msra.mxu0 0
        %8446 = vmatprep.subr.bf16.mxu0 0
        %8447 = vmatpush1.bf16.msra.mxu0 0
        %8448 = vmatprep.subr.bf16.mxu0 0
        %8449 = vmatpush1.bf16.msra.mxu0 0
        %8450 = vmatprep.subr.bf16.mxu0 0
        %8451 = vmatpush1.bf16.msra.mxu0 0
        %8452 = vmatprep.subr.bf16.mxu0 0
        %8453 = vmatpush1.bf16.msra.mxu0 0
        %8454 = vmatprep.subr.bf16.mxu0 0
        %8455 = vmatpush1.bf16.msra.mxu0 0
        %8456 = vmatprep.subr.bf16.mxu0 0
        %8457 = vmatpush1.bf16.msra.mxu0 0
        %8458 = vmatprep.subr.bf16.mxu0 0
        %8459 = vmatpush1.bf16.msra.mxu0 0
        %8460 = vmatprep.mubr.bf16.mxu0 0
        %8461 = vmatmul.mubr.bf16.gmra.mrb[0].mxu0 %v7598
        %v8462 = vpop.f32.mrb[0].mxu0
        %v8463 = vadd.f32 %v8406, %v8462
        %v8464 = vpop.f32.mrb[0].mxu0
        %v8465 = vpop.f32.mrb[0].mxu0
        %v8466 = vadd.f32 %v8409, %v8465
        %v8467 = vpop.f32.mrb[0].mxu0
        %8468 = vmatprep.mubr.bf16.mxu0 0
        %8469 = vmatmul.mubr.bf16.gmra.mrb[0].mxu0 %v7669
        %v8470 = vpop.f32.mrb[0].mxu0
        %v8471 = vadd.f32 %v8414, %v8470
        %v8472 = vpop.f32.mrb[0].mxu0
        %v8473 = vpop.f32.mrb[0].mxu0
        %v8474 = vadd.f32 %v8417, %v8473
        %v8475 = vpop.f32.mrb[0].mxu0
        %8476 = vmatprep.mubr.bf16.mxu0 0
        %8477 = vmatmul.mubr.bf16.gmra.mrb[0].mxu0 %v7740
        %v8478 = vpop.f32.mrb[0].mxu0
        %v8479 = vadd.f32 %v8422, %v8478
        %v8480 = vpop.f32.mrb[0].mxu0
        %v8481 = vpop.f32.mrb[0].mxu0
        %v8482 = vadd.f32 %v8425, %v8481
        %v8483 = vpop.f32.mrb[0].mxu0
        %8484 = vdwg.mxu0
        %vm8485 = vcmp.ge.f32.partialorder %v8463, 0.0
        %vm8486 = vcmp.ge.f32.partialorder %v8466, 0.0
        %vm8487 = vcmp.ge.f32.partialorder %v8471, 0.0
        %vm8488 = vcmp.ge.f32.partialorder %v8474, 0.0
        %vm8489 = vcmp.ge.f32.partialorder %v8479, 0.0
        %vm8490 = vcmp.ge.f32.partialorder %v8482, 0.0
        %v8491 = vld [vmem:[#allocation9 + $0x5] sm:$0x1]
        %v8492 = vlaneseq
        %v8493 = vshrl.u32 %v8492, 7
        %v8494 = vsub.s32 0, %v8493
        %v8495 = vrot.slane %v8491, %v8494
        %v8496 = vmul.f32 %v8463, %v8495
        %v8497 = vmul.f32 %v8466, %v8495
        %v8498 = vmul.f32 %v8471, %v8495
        %v8499 = vmul.f32 %v8474, %v8495
        %v8500 = vmul.f32 %v8479, %v8495
        %v8501 = vmul.f32 %v8482, %v8495
        %v8502 = vsel %vm8485, %v8463, %v8496
        %v8503 = vsel %vm8486, %v8466, %v8497
        %v8504 = vsel %vm8487, %v8471, %v8498
        %v8505 = vsel %vm8488, %v8474, %v8499
        %v8506 = vsel %vm8489, %v8479, %v8500
        %v8507 = vsel %vm8490, %v8482, %v8501
        %v8508 = vpack.c.bf16 %v8503, %v8502
        %v8509 = vpack.c.bf16 %v8505, %v8504
        %v8510 = vpack.c.bf16 %v8507, %v8506
        %v8511 = vmul.bf16 %v8508, %v444
        %v8512 = vmul.bf16 %v8509, %v445
        %v8513 = vmul.bf16 %v8510, %v446
        %8514 = vst [vmem:[#allocation2 + $0x8] sm:$0xff] %v8511
        %8515 = vst [vmem:[#allocation2 + $0x10] sm:$0xff] %v8512
        %8516 = vst [vmem:[#allocation2 + $0x18] sm:$0xff] %v8513
        %v8517 = vld [vmem:[#allocation2] sm:$0xf8]
        %v8518 = vld [vmem:[#allocation2 + $0x8] sm:$0xff]
        %v8519 = vld [vmem:[#allocation2 + $0x10] sm:$0xff]
        %v8520 = vld [vmem:[#allocation2 + $0x18] sm:$0xf]
        %v8521 = vld [vmem:[#allocation2] sm:$0xf0]
        %v8522 = vld [vmem:[#allocation2 + $0x18] sm:$0x1f]
        %v8523 = vld [vmem:[#allocation2] sm:$0x80]
        %v8524 = vld [vmem:[#allocation2 + $0x18] sm:$0xff]
        %v8525 = vld [vmem:[#allocation2 + $0x8] sm:$0xff]
        %v8526 = vld [vmem:[#allocation2 + $0x10] sm:$0xff]
        %v8527 = vld [vmem:[#allocation2 + $0x18] sm:$0xff]
        %v8528 = vld [vmem:[#allocation2 + $0x20] sm:$0x1]
        %v8529 = vld [vmem:[#allocation2 + $0x8] sm:$0xf8]
        %v8530 = vld [vmem:[#allocation2 + $0x20] sm:$0xf]
        %v8531 = vld [vmem:[#allocation2 + $0x8] sm:$0xf0]
        %v8532 = vld [vmem:[#allocation2 + $0x20] sm:$0x1f]
        %v8534 = vshrl.u32 %v8521, 16
        %v8536 = vshll.u32 %v8521, 16
        %v8538 = vrot.slane %v8536, 1
        %v8539 = vor.u32 %v8534, %v8538
        %v8541 = vshll.u32 %v8518, 16
        %v8543 = vrot.slane %v8541, 1
        %v8544 = vsel %vm463, %v8539, %v8543
        %v8545 = vshrl.u32 %v8518, 16
        %v8547 = vor.u32 %v8545, %v8543
        %v8549 = vshll.u32 %v8519, 16
        %v8551 = vrot.slane %v8549, 1
        %v8552 = vsel %vm463, %v8547, %v8551
        %v8553 = vshrl.u32 %v8519, 16
        %v8555 = vor.u32 %v8553, %v8551
        %v8557 = vshll.u32 %v8520, 16
        %v8559 = vrot.slane %v8557, 1
        %v8560 = vsel %vm463, %v8555, %v8559
        %v8561 = vshrl.u32 %v8520, 16
        %v8563 = vor.u32 %v8561, %v8559
        %v8568 = vrot.slane %v8521, 1
        %v8569 = vrot.slane %v8518, 1
        %v8570 = vsel %vm499, %v8568, %v8569
        %v8571 = vrot.slane %v8519, 1
        %v8572 = vsel %vm499, %v8569, %v8571
        %v8573 = vrot.slane %v8522, 1
        %v8574 = vsel %vm499, %v8571, %v8573
        %v8577 = vrot.slane %v8523, 4
        %v8578 = vrot.slane %v8518, 4
        %v8579 = vsel %vm509, %v8577, %v8578
        %v8580 = vrot.slane %v8519, 4
        %v8581 = vsel %vm509, %v8578, %v8580
        %v8582 = vrot.slane %v8524, 4
        %v8583 = vsel %vm509, %v8580, %v8582
        %v8584 = vrot.slane %v8545, 4
        %v8585 = vrot.slane %v8541, 5
        %v8586 = vor.u32 %v8584, %v8585
        %v8587 = vrot.slane %v8553, 4
        %v8588 = vrot.slane %v8549, 5
        %v8589 = vor.u32 %v8587, %v8588
        %v8590 = vsel %vm517, %v8586, %v8589
        %v8592 = vshrl.u32 %v8524, 16
        %v8594 = vrot.slane %v8592, 4
        %v8595 = vshll.u32 %v8524, 16
        %v8597 = vrot.slane %v8595, 5
        %v8598 = vor.u32 %v8594, %v8597
        %v8599 = vsel %vm517, %v8589, %v8598
        %v8604 = vrot.slane %v8525, 5
        %v8605 = vrot.slane %v8526, 5
        %v8606 = vsel %vm538, %v8604, %v8605
        %v8607 = vrot.slane %v8527, 5
        %v8608 = vsel %vm538, %v8605, %v8607
        %v8609 = vrot.slane %v8528, 5
        %v8610 = vsel %vm538, %v8607, %v8609
        %v8612 = vshrl.u32 %v8531, 16
        %v8614 = vshll.u32 %v8531, 16
        %v8616 = vrot.slane %v8614, 1
        %v8617 = vor.u32 %v8612, %v8616
        %v8619 = vshll.u32 %v8526, 16
        %v8621 = vrot.slane %v8619, 1
        %v8622 = vsel %vm463, %v8617, %v8621
        %v8623 = vshrl.u32 %v8526, 16
        %v8625 = vor.u32 %v8623, %v8621
        %v8627 = vshll.u32 %v8527, 16
        %v8629 = vrot.slane %v8627, 1
        %v8630 = vsel %vm463, %v8625, %v8629
        %v8631 = vshrl.u32 %v8527, 16
        %v8633 = vor.u32 %v8631, %v8629
        %v8635 = vshll.u32 %v8530, 16
        %v8637 = vrot.slane %v8635, 1
        %v8638 = vsel %vm463, %v8633, %v8637
        %v8639 = vshrl.u32 %v8530, 16
        %v8641 = vor.u32 %v8639, %v8637
        %v8644 = vrot.slane %v8531, 1
        %v8645 = vrot.slane %v8526, 1
        %v8646 = vsel %vm499, %v8644, %v8645
        %v8647 = vrot.slane %v8527, 1
        %v8648 = vsel %vm499, %v8645, %v8647
        %v8649 = vrot.slane %v8532, 1
        %v8650 = vsel %vm499, %v8647, %v8649
        %v8651 = vld [vmem:[#allocation12] sm:$0xf]
        %v8652 = vld [vmem:[#allocation12 + $0x4] sm:$0xf]
        %v8653 = vld [vmem:[#allocation12 + $0x8] sm:$0xf]
        %v8654 = vld [vmem:[#allocation12 + $0xc] sm:$0xf]
        %v8655 = vld [vmem:[#allocation12 + $0x10] sm:$0xf]
        %v8656 = vld [vmem:[#allocation12 + $0x14] sm:$0xf]
        %v8657 = vld [vmem:[#allocation12 + $0x18] sm:$0xf]
        %v8658 = vld [vmem:[#allocation12 + $0x1c] sm:$0xf]
        %v8659 = vld [vmem:[#allocation12 + $0x20] sm:$0xf]
        %v8660 = vld [vmem:[#allocation12 + $0x24] sm:$0xf]
        %v8661 = vld [vmem:[#allocation12 + $0x28] sm:$0xf]
        %v8662 = vld [vmem:[#allocation12 + $0x2c] sm:$0xf]
        %v8663 = vld [vmem:[#allocation12 + $0x30] sm:$0xf]
        %v8664 = vld [vmem:[#allocation12 + $0x34] sm:$0xf]
        %v8665 = vld [vmem:[#allocation12 + $0x38] sm:$0xf]
        %v8666 = vld [vmem:[#allocation12 + $0x3c] sm:$0xf]
        %v8667 = vld [vmem:[#allocation12 + $0x40] sm:$0xf]
        %v8668 = vld [vmem:[#allocation12 + $0x44] sm:$0xf]
        %v8669 = vld [vmem:[#allocation12 + $0x48] sm:$0xf]
        %v8670 = vld [vmem:[#allocation12 + $0x4c] sm:$0xf]
        %v8671 = vld [vmem:[#allocation12 + $0x50] sm:$0xf]
        %v8672 = vld [vmem:[#allocation12 + $0x54] sm:$0xf]
        %v8673 = vld [vmem:[#allocation12 + $0x58] sm:$0xf]
        %v8674 = vld [vmem:[#allocation12 + $0x5c] sm:$0xf]
        %v8675 = vld [vmem:[#allocation12 + $0x60] sm:$0xf]
        %v8676 = vld [vmem:[#allocation12 + $0x64] sm:$0xf]
        %v8677 = vld [vmem:[#allocation12 + $0x68] sm:$0xf]
        %v8678 = vld [vmem:[#allocation12 + $0x6c] sm:$0xf]
        %v8679 = vld [vmem:[#allocation12 + $0x70] sm:$0xf]
        %v8680 = vld [vmem:[#allocation12 + $0x74] sm:$0xf]
        %v8681 = vld [vmem:[#allocation12 + $0x78] sm:$0xf]
        %v8682 = vld [vmem:[#allocation12 + $0x7c] sm:$0xf]
        %v8683 = vld [vmem:[#allocation12 + $0x80] sm:$0xf]
        %v8684 = vld [vmem:[#allocation12 + $0x84] sm:$0xf]
        %v8685 = vld [vmem:[#allocation12 + $0x88] sm:$0xf]
        %v8686 = vld [vmem:[#allocation12 + $0x8c] sm:$0xf]
        %v8687 = vld [vmem:[#allocation12 + $0x90] sm:$0xf]
        %v8688 = vld [vmem:[#allocation12 + $0x94] sm:$0xf]
        %v8689 = vld [vmem:[#allocation12 + $0x98] sm:$0xf]
        %v8690 = vld [vmem:[#allocation12 + $0x9c] sm:$0xf]
        %v8691 = vld [vmem:[#allocation12 + $0xa0] sm:$0xf]
        %v8692 = vld [vmem:[#allocation12 + $0xa4] sm:$0xf]
        %v8693 = vld [vmem:[#allocation12 + $0xa8] sm:$0xf]
        %v8694 = vld [vmem:[#allocation12 + $0xac] sm:$0xf]
        %v8695 = vld [vmem:[#allocation12 + $0xb0] sm:$0xf]
        %v8696 = vld [vmem:[#allocation12 + $0xb4] sm:$0xf]
        %v8697 = vld [vmem:[#allocation12 + $0xb8] sm:$0xf]
        %v8698 = vld [vmem:[#allocation12 + $0xbc] sm:$0xf]
        %v8699 = vld [vmem:[#allocation12 + $0xc0] sm:$0xf]
        %v8700 = vld [vmem:[#allocation12 + $0xc4] sm:$0xf]
        %v8701 = vld [vmem:[#allocation12 + $0xc8] sm:$0xf]
        %v8702 = vld [vmem:[#allocation12 + $0xcc] sm:$0xf]
        %v8703 = vld [vmem:[#allocation12 + $0xd0] sm:$0xf]
        %v8704 = vld [vmem:[#allocation12 + $0xd4] sm:$0xf]
        %v8705 = vld [vmem:[#allocation12 + $0xd8] sm:$0xf]
        %v8706 = vld [vmem:[#allocation12 + $0xdc] sm:$0xf]
        %v8707 = vld [vmem:[#allocation12 + $0xe0] sm:$0xf]
        %v8708 = vld [vmem:[#allocation12 + $0xe4] sm:$0xf]
        %v8709 = vld [vmem:[#allocation12 + $0xe8] sm:$0xf]
        %v8710 = vld [vmem:[#allocation12 + $0xec] sm:$0xf]
        %v8711 = vld [vmem:[#allocation12 + $0xf0] sm:$0xf]
        %v8712 = vld [vmem:[#allocation12 + $0xf4] sm:$0xf]
        %v8713 = vld [vmem:[#allocation12 + $0xf8] sm:$0xf]
        %v8714 = vld [vmem:[#allocation12 + $0xfc] sm:$0xf]
        %v8715 = vld [vmem:[#allocation12 + $0x100] sm:$0xf]
        %v8716 = vld [vmem:[#allocation12 + $0x104] sm:$0xf]
        %v8717 = vld [vmem:[#allocation12 + $0x108] sm:$0xf]
        %v8718 = vld [vmem:[#allocation12 + $0x10c] sm:$0xf]
        %v8719 = vld [vmem:[#allocation12 + $0x110] sm:$0xf]
        %v8720 = vld [vmem:[#allocation12 + $0x114] sm:$0xf]
        %v8721 = vld [vmem:[#allocation12 + $0x118] sm:$0xf]
        %v8722 = vld [vmem:[#allocation12 + $0x11c] sm:$0xf]
        %v8723 = vld [vmem:[#allocation12 + $0x120] sm:$0xf]
        %v8724 = vld [vmem:[#allocation12 + $0x124] sm:$0xf]
        %v8725 = vld [vmem:[#allocation12 + $0x128] sm:$0xf]
        %v8726 = vld [vmem:[#allocation12 + $0x12c] sm:$0xf]
        %v8727 = vld [vmem:[#allocation12 + $0x130] sm:$0xf]
        %v8728 = vld [vmem:[#allocation12 + $0x134] sm:$0xf]
        %v8729 = vld [vmem:[#allocation12 + $0x138] sm:$0xf]
        %v8730 = vld [vmem:[#allocation12 + $0x13c] sm:$0xf]
        %v8731 = vld [vmem:[#allocation12 + $0x140] sm:$0xf]
        %v8732 = vld [vmem:[#allocation12 + $0x144] sm:$0xf]
        %v8733 = vld [vmem:[#allocation12 + $0x148] sm:$0xf]
        %v8734 = vld [vmem:[#allocation12 + $0x14c] sm:$0xf]
        %v8735 = vld [vmem:[#allocation12 + $0x150] sm:$0xf]
        %v8736 = vld [vmem:[#allocation12 + $0x154] sm:$0xf]
        %v8737 = vld [vmem:[#allocation12 + $0x158] sm:$0xf]
        %v8738 = vld [vmem:[#allocation12 + $0x15c] sm:$0xf]
        %v8739 = vld [vmem:[#allocation12 + $0x160] sm:$0xf]
        %v8740 = vld [vmem:[#allocation12 + $0x164] sm:$0xf]
        %v8741 = vld [vmem:[#allocation12 + $0x168] sm:$0xf]
        %v8742 = vld [vmem:[#allocation12 + $0x16c] sm:$0xf]
        %v8743 = vld [vmem:[#allocation12 + $0x170] sm:$0xf]
        %v8744 = vld [vmem:[#allocation12 + $0x174] sm:$0xf]
        %v8745 = vld [vmem:[#allocation12 + $0x178] sm:$0xf]
        %v8746 = vld [vmem:[#allocation12 + $0x17c] sm:$0xf]
        %v8747 = vld [vmem:[#allocation12 + $0x180] sm:$0xf]
        %v8748 = vld [vmem:[#allocation12 + $0x184] sm:$0xf]
        %v8749 = vld [vmem:[#allocation12 + $0x188] sm:$0xf]
        %v8750 = vld [vmem:[#allocation12 + $0x18c] sm:$0xf]
        %v8751 = vld [vmem:[#allocation12 + $0x190] sm:$0xf]
        %v8752 = vld [vmem:[#allocation12 + $0x194] sm:$0xf]
        %v8753 = vld [vmem:[#allocation12 + $0x198] sm:$0xf]
        %v8754 = vld [vmem:[#allocation12 + $0x19c] sm:$0xf]
        %v8755 = vld [vmem:[#allocation12 + $0x1a0] sm:$0xf]
        %v8756 = vld [vmem:[#allocation12 + $0x1a4] sm:$0xf]
        %v8757 = vld [vmem:[#allocation12 + $0x1a8] sm:$0xf]
        %v8758 = vld [vmem:[#allocation12 + $0x1ac] sm:$0xf]
        %v8759 = vld [vmem:[#allocation12 + $0x1b0] sm:$0xf]
        %v8760 = vld [vmem:[#allocation12 + $0x1b4] sm:$0xf]
        %v8761 = vld [vmem:[#allocation12 + $0x1b8] sm:$0xf]
        %v8762 = vld [vmem:[#allocation12 + $0x1bc] sm:$0xf]
        %v8763 = vld [vmem:[#allocation12 + $0x1c0] sm:$0xf]
        %v8764 = vld [vmem:[#allocation12 + $0x1c4] sm:$0xf]
        %v8765 = vld [vmem:[#allocation12 + $0x1c8] sm:$0xf]
        %v8766 = vld [vmem:[#allocation12 + $0x1cc] sm:$0xf]
        %v8767 = vld [vmem:[#allocation12 + $0x1d0] sm:$0xf]
        %v8768 = vld [vmem:[#allocation12 + $0x1d4] sm:$0xf]
        %v8769 = vld [vmem:[#allocation12 + $0x1d8] sm:$0xf]
        %v8770 = vld [vmem:[#allocation12 + $0x1dc] sm:$0xf]
        %v8771 = vld [vmem:[#allocation12 + $0x1e0] sm:$0xf]
        %v8772 = vld [vmem:[#allocation12 + $0x1e4] sm:$0xf]
        %v8773 = vld [vmem:[#allocation12 + $0x1e8] sm:$0xf]
        %v8774 = vld [vmem:[#allocation12 + $0x1ec] sm:$0xf]
        %v8775 = vld [vmem:[#allocation12 + $0x1f0] sm:$0xf]
        %v8776 = vld [vmem:[#allocation12 + $0x1f4] sm:$0xf]
        %v8777 = vld [vmem:[#allocation12 + $0x1f8] sm:$0xf]
        %v8778 = vld [vmem:[#allocation12 + $0x1fc] sm:$0xf]
        %v8779 = vld [vmem:[#allocation12 + $0x200] sm:$0xf]
        %v8780 = vld [vmem:[#allocation12 + $0x204] sm:$0xf]
        %v8781 = vld [vmem:[#allocation12 + $0x208] sm:$0xf]
        %v8782 = vld [vmem:[#allocation12 + $0x20c] sm:$0xf]
        %v8783 = vld [vmem:[#allocation12 + $0x210] sm:$0xf]
        %v8784 = vld [vmem:[#allocation12 + $0x214] sm:$0xf]
        %v8785 = vld [vmem:[#allocation12 + $0x218] sm:$0xf]
        %v8786 = vld [vmem:[#allocation12 + $0x21c] sm:$0xf]
        %v8787 = vld [vmem:[#allocation12 + $0x220] sm:$0xf]
        %v8788 = vld [vmem:[#allocation12 + $0x224] sm:$0xf]
        %v8789 = vld [vmem:[#allocation12 + $0x228] sm:$0xf]
        %v8790 = vld [vmem:[#allocation12 + $0x22c] sm:$0xf]
        %v8791 = vld [vmem:[#allocation12 + $0x230] sm:$0xf]
        %v8792 = vld [vmem:[#allocation12 + $0x234] sm:$0xf]
        %v8793 = vld [vmem:[#allocation12 + $0x238] sm:$0xf]
        %v8794 = vld [vmem:[#allocation12 + $0x23c] sm:$0xf]
        %v8795 = vld [vmem:[#allocation14] sm:$0x1]
        %v8797 = vlaneseq
        %v8798 = vshrl.u32 %v8797, 7
        %v8799 = vsub.s32 0, %v8798
        %v8800 = vrot.slane %v8795, %v8799
        %v8803 = vshrl.u32 %v8517, 16
        %v8805 = vrot.slane %v8803, 3
        %v8806 = vshll.u32 %v8517, 16
        %v8808 = vrot.slane %v8806, 4
        %v8809 = vor.u32 %v8805, %v8808
        %v8810 = vrot.slane %v8545, 3
        %v8811 = vrot.slane %v8541, 4
        %v8812 = vor.u32 %v8810, %v8811
        %v8813 = vsel %vm735, %v8809, %v8812
        %v8815 = vshrl.u32 %v8544, 16
        %v8817 = vrot.slane %v8815, 3
        %v8818 = vshll.u32 %v8544, 16
        %v8820 = vrot.slane %v8818, 4
        %v8821 = vor.u32 %v8817, %v8820
        %v8823 = vshrl.u32 %v8552, 16
        %v8825 = vrot.slane %v8823, 3
        %v8826 = vshll.u32 %v8552, 16
        %v8828 = vrot.slane %v8826, 4
        %v8829 = vor.u32 %v8825, %v8828
        %v8830 = vsel %vm735, %v8821, %v8829
        %v8832 = vshrl.u32 %v8570, 16
        %v8834 = vrot.slane %v8832, 3
        %v8835 = vshll.u32 %v8570, 16
        %v8837 = vrot.slane %v8835, 4
        %v8838 = vor.u32 %v8834, %v8837
        %v8840 = vshrl.u32 %v8572, 16
        %v8842 = vrot.slane %v8840, 3
        %v8843 = vshll.u32 %v8572, 16
        %v8845 = vrot.slane %v8843, 4
        %v8846 = vor.u32 %v8842, %v8845
        %v8847 = vsel %vm735, %v8838, %v8846
        %v8849 = vshrl.u32 %v8579, 16
        %v8851 = vrot.slane %v8849, 3
        %v8852 = vshll.u32 %v8579, 16
        %v8854 = vrot.slane %v8852, 4
        %v8855 = vor.u32 %v8851, %v8854
        %v8857 = vshrl.u32 %v8581, 16
        %v8859 = vrot.slane %v8857, 3
        %v8860 = vshll.u32 %v8581, 16
        %v8862 = vrot.slane %v8860, 4
        %v8863 = vor.u32 %v8859, %v8862
        %v8864 = vsel %vm735, %v8855, %v8863
        %v8866 = vshrl.u32 %v8586, 16
        %v8868 = vrot.slane %v8866, 3
        %v8869 = vshll.u32 %v8586, 16
        %v8871 = vrot.slane %v8869, 4
        %v8872 = vor.u32 %v8868, %v8871
        %v8874 = vshrl.u32 %v8590, 16
        %v8876 = vrot.slane %v8874, 3
        %v8877 = vshll.u32 %v8590, 16
        %v8879 = vrot.slane %v8877, 4
        %v8880 = vor.u32 %v8876, %v8879
        %v8881 = vsel %vm735, %v8872, %v8880
        %v8883 = vshrl.u32 %v8604, 16
        %v8885 = vrot.slane %v8883, 3
        %v8886 = vshll.u32 %v8604, 16
        %v8888 = vrot.slane %v8886, 4
        %v8889 = vor.u32 %v8885, %v8888
        %v8891 = vshrl.u32 %v8606, 16
        %v8893 = vrot.slane %v8891, 3
        %v8894 = vshll.u32 %v8606, 16
        %v8896 = vrot.slane %v8894, 4
        %v8897 = vor.u32 %v8893, %v8896
        %v8898 = vsel %vm735, %v8889, %v8897
        %v8900 = vshrl.u32 %v8529, 16
        %v8902 = vrot.slane %v8900, 3
        %v8903 = vshll.u32 %v8529, 16
        %v8905 = vrot.slane %v8903, 4
        %v8906 = vor.u32 %v8902, %v8905
        %v8907 = vrot.slane %v8623, 3
        %v8908 = vrot.slane %v8619, 4
        %v8909 = vor.u32 %v8907, %v8908
        %v8910 = vsel %vm735, %v8906, %v8909
        %v8912 = vshrl.u32 %v8622, 16
        %v8914 = vrot.slane %v8912, 3
        %v8915 = vshll.u32 %v8622, 16
        %v8917 = vrot.slane %v8915, 4
        %v8918 = vor.u32 %v8914, %v8917
        %v8920 = vshrl.u32 %v8630, 16
        %v8922 = vrot.slane %v8920, 3
        %v8923 = vshll.u32 %v8630, 16
        %v8925 = vrot.slane %v8923, 4
        %v8926 = vor.u32 %v8922, %v8925
        %v8927 = vsel %vm735, %v8918, %v8926
        %v8929 = vshrl.u32 %v8646, 16
        %v8931 = vrot.slane %v8929, 3
        %v8932 = vshll.u32 %v8646, 16
        %v8934 = vrot.slane %v8932, 4
        %v8935 = vor.u32 %v8931, %v8934
        %v8937 = vshrl.u32 %v8648, 16
        %v8939 = vrot.slane %v8937, 3
        %v8940 = vshll.u32 %v8648, 16
        %v8942 = vrot.slane %v8940, 4
        %v8943 = vor.u32 %v8939, %v8942
        %v8944 = vsel %vm735, %v8935, %v8943
        %v8945 = vrot.slane %v8553, 3
        %v8946 = vrot.slane %v8549, 4
        %v8947 = vor.u32 %v8945, %v8946
        %v8948 = vsel %vm735, %v8812, %v8947
        %v8950 = vshrl.u32 %v8560, 16
        %v8952 = vrot.slane %v8950, 3
        %v8953 = vshll.u32 %v8560, 16
        %v8955 = vrot.slane %v8953, 4
        %v8956 = vor.u32 %v8952, %v8955
        %v8957 = vsel %vm735, %v8829, %v8956
        %v8959 = vshrl.u32 %v8574, 16
        %v8961 = vrot.slane %v8959, 3
        %v8962 = vshll.u32 %v8574, 16
        %v8964 = vrot.slane %v8962, 4
        %v8965 = vor.u32 %v8961, %v8964
        %v8966 = vsel %vm735, %v8846, %v8965
        %v8968 = vshrl.u32 %v8583, 16
        %v8970 = vrot.slane %v8968, 3
        %v8971 = vshll.u32 %v8583, 16
        %v8973 = vrot.slane %v8971, 4
        %v8974 = vor.u32 %v8970, %v8973
        %v8975 = vsel %vm735, %v8863, %v8974
        %v8977 = vshrl.u32 %v8599, 16
        %v8979 = vrot.slane %v8977, 3
        %v8980 = vshll.u32 %v8599, 16
        %v8982 = vrot.slane %v8980, 4
        %v8983 = vor.u32 %v8979, %v8982
        %v8984 = vsel %vm735, %v8880, %v8983
        %v8986 = vshrl.u32 %v8608, 16
        %v8988 = vrot.slane %v8986, 3
        %v8989 = vshll.u32 %v8608, 16
        %v8991 = vrot.slane %v8989, 4
        %v8992 = vor.u32 %v8988, %v8991
        %v8993 = vsel %vm735, %v8897, %v8992
        %v8994 = vrot.slane %v8631, 3
        %v8995 = vrot.slane %v8627, 4
        %v8996 = vor.u32 %v8994, %v8995
        %v8997 = vsel %vm735, %v8909, %v8996
        %v8999 = vshrl.u32 %v8638, 16
        %v9001 = vrot.slane %v8999, 3
        %v9002 = vshll.u32 %v8638, 16
        %v9004 = vrot.slane %v9002, 4
        %v9005 = vor.u32 %v9001, %v9004
        %v9006 = vsel %vm735, %v8926, %v9005
        %v9008 = vshrl.u32 %v8650, 16
        %v9010 = vrot.slane %v9008, 3
        %v9011 = vshll.u32 %v8650, 16
        %v9013 = vrot.slane %v9011, 4
        %v9014 = vor.u32 %v9010, %v9013
        %v9015 = vsel %vm735, %v8943, %v9014
        %v9016 = vrot.slane %v8561, 3
        %v9017 = vrot.slane %v8557, 4
        %v9018 = vor.u32 %v9016, %v9017
        %v9019 = vsel %vm735, %v8947, %v9018
        %v9021 = vshrl.u32 %v8563, 16
        %v9023 = vrot.slane %v9021, 3
        %v9024 = vshll.u32 %v8563, 16
        %v9026 = vrot.slane %v9024, 4
        %v9027 = vor.u32 %v9023, %v9026
        %v9028 = vsel %vm735, %v8956, %v9027
        %v9030 = vshrl.u32 %v8573, 16
        %v9032 = vrot.slane %v9030, 3
        %v9033 = vshll.u32 %v8573, 16
        %v9035 = vrot.slane %v9033, 4
        %v9036 = vor.u32 %v9032, %v9035
        %v9037 = vsel %vm735, %v8965, %v9036
        %v9039 = vshrl.u32 %v8582, 16
        %v9041 = vrot.slane %v9039, 3
        %v9042 = vshll.u32 %v8582, 16
        %v9044 = vrot.slane %v9042, 4
        %v9045 = vor.u32 %v9041, %v9044
        %v9046 = vsel %vm735, %v8974, %v9045
        %v9048 = vshrl.u32 %v8598, 16
        %v9050 = vrot.slane %v9048, 3
        %v9051 = vshll.u32 %v8598, 16
        %v9053 = vrot.slane %v9051, 4
        %v9054 = vor.u32 %v9050, %v9053
        %v9055 = vsel %vm735, %v8983, %v9054
        %v9057 = vshrl.u32 %v8610, 16
        %v9059 = vrot.slane %v9057, 3
        %v9060 = vshll.u32 %v8610, 16
        %v9062 = vrot.slane %v9060, 4
        %v9063 = vor.u32 %v9059, %v9062
        %v9064 = vsel %vm735, %v8992, %v9063
        %v9065 = vrot.slane %v8639, 3
        %v9066 = vrot.slane %v8635, 4
        %v9067 = vor.u32 %v9065, %v9066
        %v9068 = vsel %vm735, %v8996, %v9067
        %v9070 = vshrl.u32 %v8641, 16
        %v9072 = vrot.slane %v9070, 3
        %v9073 = vshll.u32 %v8641, 16
        %v9075 = vrot.slane %v9073, 4
        %v9076 = vor.u32 %v9072, %v9075
        %v9077 = vsel %vm735, %v9005, %v9076
        %v9079 = vshrl.u32 %v8649, 16
        %v9081 = vrot.slane %v9079, 3
        %v9082 = vshll.u32 %v8649, 16
        %v9084 = vrot.slane %v9082, 4
        %v9085 = vor.u32 %v9081, %v9084
        %v9086 = vsel %vm735, %v9014, %v9085
        %v9258 = vunpack.c.l.b16 %v8651
        %v9259 = vunpack.c.l.b16 %v8652
        %v9260 = vunpack.c.l.b16 %v8653
        %v9261 = vunpack.c.l.b16 %v8654
        %v9262 = vunpack.c.l.b16 %v8655
        %v9263 = vunpack.c.l.b16 %v8656
        %v9264 = vunpack.c.l.b16 %v8657
        %v9265 = vunpack.c.l.b16 %v8658
        %v9266 = vunpack.c.l.b16 %v8659
        %v9267 = vunpack.c.l.b16 %v8660
        %v9268 = vunpack.c.l.b16 %v8661
        %v9269 = vunpack.c.l.b16 %v8662
        %v9270 = vunpack.c.l.b16 %v8663
        %v9271 = vunpack.c.l.b16 %v8664
        %v9272 = vunpack.c.l.b16 %v8665
        %v9273 = vunpack.c.l.b16 %v8666
        %v9274 = vunpack.c.l.b16 %v8667
        %v9275 = vunpack.c.l.b16 %v8668
        %v9276 = vunpack.c.l.b16 %v8669
        %v9277 = vunpack.c.l.b16 %v8670
        %v9278 = vunpack.c.l.b16 %v8671
        %v9279 = vunpack.c.l.b16 %v8672
        %v9280 = vunpack.c.l.b16 %v8673
        %v9281 = vunpack.c.l.b16 %v8674
        %v9282 = vunpack.c.l.b16 %v8675
        %v9283 = vunpack.c.l.b16 %v8676
        %v9284 = vunpack.c.l.b16 %v8677
        %v9285 = vunpack.c.l.b16 %v8678
        %v9286 = vunpack.c.l.b16 %v8679
        %v9287 = vunpack.c.l.b16 %v8680
        %v9288 = vunpack.c.l.b16 %v8681
        %v9289 = vunpack.c.l.b16 %v8682
        %v9290 = vunpack.c.l.b16 %v8683
        %v9291 = vunpack.c.l.b16 %v8684
        %v9292 = vunpack.c.l.b16 %v8685
        %v9293 = vunpack.c.l.b16 %v8686
        %v9294 = vunpack.c.l.b16 %v8687
        %v9295 = vunpack.c.l.b16 %v8688
        %v9296 = vunpack.c.l.b16 %v8689
        %v9297 = vunpack.c.l.b16 %v8690
        %v9298 = vunpack.c.l.b16 %v8691
        %v9299 = vunpack.c.l.b16 %v8692
        %v9300 = vunpack.c.l.b16 %v8693
        %v9301 = vunpack.c.l.b16 %v8694
        %v9302 = vunpack.c.l.b16 %v8695
        %v9303 = vunpack.c.l.b16 %v8696
        %v9304 = vunpack.c.l.b16 %v8697
        %v9305 = vunpack.c.l.b16 %v8698
        %v9306 = vunpack.c.l.b16 %v8699
        %v9307 = vunpack.c.l.b16 %v8700
        %v9308 = vunpack.c.l.b16 %v8701
        %v9309 = vunpack.c.l.b16 %v8702
        %v9310 = vunpack.c.l.b16 %v8703
        %v9311 = vunpack.c.l.b16 %v8704
        %v9312 = vunpack.c.l.b16 %v8705
        %v9313 = vunpack.c.l.b16 %v8706
        %v9314 = vunpack.c.l.b16 %v8707
        %v9315 = vunpack.c.l.b16 %v8708
        %v9316 = vunpack.c.l.b16 %v8709
        %v9317 = vunpack.c.l.b16 %v8710
        %v9318 = vunpack.c.l.b16 %v8711
        %v9319 = vunpack.c.l.b16 %v8712
        %v9320 = vunpack.c.l.b16 %v8713
        %v9321 = vunpack.c.l.b16 %v8714
        %v9322 = vunpack.c.l.b16 %v8715
        %v9323 = vunpack.c.l.b16 %v8716
        %v9324 = vunpack.c.l.b16 %v8717
        %v9325 = vunpack.c.l.b16 %v8718
        %v9326 = vunpack.c.l.b16 %v8719
        %v9327 = vunpack.c.l.b16 %v8720
        %v9328 = vunpack.c.l.b16 %v8721
        %v9329 = vunpack.c.l.b16 %v8722
        %v9330 = vunpack.c.l.b16 %v8723
        %v9331 = vunpack.c.l.b16 %v8724
        %v9332 = vunpack.c.l.b16 %v8725
        %v9333 = vunpack.c.l.b16 %v8726
        %v9334 = vunpack.c.l.b16 %v8727
        %v9335 = vunpack.c.l.b16 %v8728
        %v9336 = vunpack.c.l.b16 %v8729
        %v9337 = vunpack.c.l.b16 %v8730
        %v9338 = vunpack.c.l.b16 %v8731
        %v9339 = vunpack.c.l.b16 %v8732
        %v9340 = vunpack.c.l.b16 %v8733
        %v9341 = vunpack.c.l.b16 %v8734
        %v9342 = vunpack.c.l.b16 %v8735
        %v9343 = vunpack.c.l.b16 %v8736
        %v9344 = vunpack.c.l.b16 %v8737
        %v9345 = vunpack.c.l.b16 %v8738
        %v9346 = vunpack.c.l.b16 %v8739
        %v9347 = vunpack.c.l.b16 %v8740
        %v9348 = vunpack.c.l.b16 %v8741
        %v9349 = vunpack.c.l.b16 %v8742
        %v9350 = vunpack.c.l.b16 %v8743
        %v9351 = vunpack.c.l.b16 %v8744
        %v9352 = vunpack.c.l.b16 %v8745
        %v9353 = vunpack.c.l.b16 %v8746
        %v9354 = vunpack.c.l.b16 %v8747
        %v9355 = vunpack.c.l.b16 %v8748
        %v9356 = vunpack.c.l.b16 %v8749
        %v9357 = vunpack.c.l.b16 %v8750
        %v9358 = vunpack.c.l.b16 %v8751
        %v9359 = vunpack.c.l.b16 %v8752
        %v9360 = vunpack.c.l.b16 %v8753
        %v9361 = vunpack.c.l.b16 %v8754
        %v9362 = vunpack.c.l.b16 %v8755
        %v9363 = vunpack.c.l.b16 %v8756
        %v9364 = vunpack.c.l.b16 %v8757
        %v9365 = vunpack.c.l.b16 %v8758
        %v9366 = vunpack.c.l.b16 %v8759
        %v9367 = vunpack.c.l.b16 %v8760
        %v9368 = vunpack.c.l.b16 %v8761
        %v9369 = vunpack.c.l.b16 %v8762
        %v9370 = vunpack.c.l.b16 %v8763
        %v9371 = vunpack.c.l.b16 %v8764
        %v9372 = vunpack.c.l.b16 %v8765
        %v9373 = vunpack.c.l.b16 %v8766
        %v9374 = vunpack.c.l.b16 %v8767
        %v9375 = vunpack.c.l.b16 %v8768
        %v9376 = vunpack.c.l.b16 %v8769
        %v9377 = vunpack.c.l.b16 %v8770
        %v9378 = vunpack.c.l.b16 %v8771
        %v9379 = vunpack.c.l.b16 %v8772
        %v9380 = vunpack.c.l.b16 %v8773
        %v9381 = vunpack.c.l.b16 %v8774
        %v9382 = vunpack.c.l.b16 %v8775
        %v9383 = vunpack.c.l.b16 %v8776
        %v9384 = vunpack.c.l.b16 %v8777
        %v9385 = vunpack.c.l.b16 %v8778
        %v9386 = vunpack.c.l.b16 %v8779
        %v9387 = vunpack.c.l.b16 %v8780
        %v9388 = vunpack.c.l.b16 %v8781
        %v9389 = vunpack.c.l.b16 %v8782
        %v9390 = vunpack.c.l.b16 %v8783
        %v9391 = vunpack.c.l.b16 %v8784
        %v9392 = vunpack.c.l.b16 %v8785
        %v9393 = vunpack.c.l.b16 %v8786
        %v9394 = vunpack.c.l.b16 %v8787
        %v9395 = vunpack.c.l.b16 %v8788
        %v9396 = vunpack.c.l.b16 %v8789
        %v9397 = vunpack.c.l.b16 %v8790
        %v9398 = vunpack.c.l.b16 %v8791
        %v9399 = vunpack.c.l.b16 %v8792
        %v9400 = vunpack.c.l.b16 %v8793
        %v9401 = vunpack.c.l.b16 %v8794
        %v9402 = vpack.c.b16 %v9259, %v9258
        %v9403 = vpack.c.b16 %v9261, %v9260
        %v9404 = vpack.c.b16 %v9263, %v9262
        %v9405 = vpack.c.b16 %v9265, %v9264
        %v9406 = vpack.c.b16 %v9267, %v9266
        %v9407 = vpack.c.b16 %v9269, %v9268
        %v9408 = vpack.c.b16 %v9271, %v9270
        %v9409 = vpack.c.b16 %v9273, %v9272
        %v9410 = vpack.c.b16 %v9275, %v9274
        %v9411 = vpack.c.b16 %v9277, %v9276
        %v9412 = vpack.c.b16 %v9279, %v9278
        %v9413 = vpack.c.b16 %v9281, %v9280
        %v9414 = vpack.c.b16 %v9283, %v9282
        %v9415 = vpack.c.b16 %v9285, %v9284
        %v9416 = vpack.c.b16 %v9287, %v9286
        %v9417 = vpack.c.b16 %v9289, %v9288
        %v9418 = vpack.c.b16 %v9291, %v9290
        %v9419 = vpack.c.b16 %v9293, %v9292
        %v9420 = vpack.c.b16 %v9295, %v9294
        %v9421 = vpack.c.b16 %v9297, %v9296
        %v9422 = vpack.c.b16 %v9299, %v9298
        %v9423 = vpack.c.b16 %v9301, %v9300
        %v9424 = vpack.c.b16 %v9303, %v9302
        %v9425 = vpack.c.b16 %v9305, %v9304
        %v9426 = vpack.c.b16 %v9307, %v9306
        %v9427 = vpack.c.b16 %v9309, %v9308
        %v9428 = vpack.c.b16 %v9311, %v9310
        %v9429 = vpack.c.b16 %v9313, %v9312
        %v9430 = vpack.c.b16 %v9315, %v9314
        %v9431 = vpack.c.b16 %v9317, %v9316
        %v9432 = vpack.c.b16 %v9319, %v9318
        %v9433 = vpack.c.b16 %v9321, %v9320
        %v9434 = vpack.c.b16 %v9323, %v9322
        %v9435 = vpack.c.b16 %v9325, %v9324
        %v9436 = vpack.c.b16 %v9327, %v9326
        %v9437 = vpack.c.b16 %v9329, %v9328
        %v9438 = vpack.c.b16 %v9331, %v9330
        %v9439 = vpack.c.b16 %v9333, %v9332
        %v9440 = vpack.c.b16 %v9335, %v9334
        %v9441 = vpack.c.b16 %v9337, %v9336
        %v9442 = vpack.c.b16 %v9339, %v9338
        %v9443 = vpack.c.b16 %v9341, %v9340
        %v9444 = vpack.c.b16 %v9343, %v9342
        %v9445 = vpack.c.b16 %v9345, %v9344
        %v9446 = vpack.c.b16 %v9347, %v9346
        %v9447 = vpack.c.b16 %v9349, %v9348
        %v9448 = vpack.c.b16 %v9351, %v9350
        %v9449 = vpack.c.b16 %v9353, %v9352
        %v9450 = vpack.c.b16 %v9355, %v9354
        %v9451 = vpack.c.b16 %v9357, %v9356
        %v9452 = vpack.c.b16 %v9359, %v9358
        %v9453 = vpack.c.b16 %v9361, %v9360
        %v9454 = vpack.c.b16 %v9363, %v9362
        %v9455 = vpack.c.b16 %v9365, %v9364
        %v9456 = vpack.c.b16 %v9367, %v9366
        %v9457 = vpack.c.b16 %v9369, %v9368
        %v9458 = vpack.c.b16 %v9371, %v9370
        %v9459 = vpack.c.b16 %v9373, %v9372
        %v9460 = vpack.c.b16 %v9375, %v9374
        %v9461 = vpack.c.b16 %v9377, %v9376
        %v9462 = vpack.c.b16 %v9379, %v9378
        %v9463 = vpack.c.b16 %v9381, %v9380
        %v9464 = vpack.c.b16 %v9383, %v9382
        %v9465 = vpack.c.b16 %v9385, %v9384
        %v9466 = vpack.c.b16 %v9387, %v9386
        %v9467 = vpack.c.b16 %v9389, %v9388
        %v9468 = vpack.c.b16 %v9391, %v9390
        %v9469 = vpack.c.b16 %v9393, %v9392
        %v9470 = vpack.c.b16 %v9395, %v9394
        %v9471 = vpack.c.b16 %v9397, %v9396
        %v9472 = vpack.c.b16 %v9399, %v9398
        %v9473 = vpack.c.b16 %v9401, %v9400
        %9546 = vmatprep.subr.bf16.mxu0 0
        %9547 = vmatpush1.bf16.msra.mxu0 %v9402
        %9548 = vmatprep.subr.bf16.mxu0 0
        %9549 = vmatpush1.bf16.msra.mxu0 %v9403
        %9550 = vmatprep.subr.bf16.mxu0 0
        %9551 = vmatpush1.bf16.msra.mxu0 %v9404
        %9552 = vmatprep.subr.bf16.mxu0 0
        %9553 = vmatpush1.bf16.msra.mxu0 %v9405
        %9554 = vmatprep.subr.bf16.mxu0 0
        %9555 = vmatpush1.bf16.msra.mxu0 %v9406
        %9556 = vmatprep.subr.bf16.mxu0 0
        %9557 = vmatpush1.bf16.msra.mxu0 %v9407
        %9558 = vmatprep.subr.bf16.mxu0 0
        %9559 = vmatpush1.bf16.msra.mxu0 %v9408
        %9560 = vmatprep.subr.bf16.mxu0 0
        %9561 = vmatpush1.bf16.msra.mxu0 %v9409
        %9562 = vmatprep.subr.bf16.mxu0 0
        %9563 = vmatpush1.bf16.msra.mxu0 %v9410
        %9564 = vmatprep.subr.bf16.mxu0 0
        %9565 = vmatpush1.bf16.msra.mxu0 %v9411
        %9566 = vmatprep.subr.bf16.mxu0 0
        %9567 = vmatpush1.bf16.msra.mxu0 %v9412
        %9568 = vmatprep.subr.bf16.mxu0 0
        %9569 = vmatpush1.bf16.msra.mxu0 %v9413
        %9570 = vmatprep.subr.bf16.mxu0 0
        %9571 = vmatpush1.bf16.msra.mxu0 %v9414
        %9572 = vmatprep.subr.bf16.mxu0 0
        %9573 = vmatpush1.bf16.msra.mxu0 %v9415
        %9574 = vmatprep.subr.bf16.mxu0 0
        %9575 = vmatpush1.bf16.msra.mxu0 %v9416
        %9576 = vmatprep.subr.bf16.mxu0 0
        %9577 = vmatpush1.bf16.msra.mxu0 %v9417
        %9578 = vmatprep.mubr.bf16.mxu0 %v8830
        %9579 = vmatmul.mubr.bf16.gmra.mrb[0].mxu0 %v8813
        %v9580 = vpop.f32.mrb[0].mxu0
        %v9581 = vadd.f32 %v8800, %v9580
        %v9582 = vpop.f32.mrb[0].mxu0
        %v9583 = vpop.f32.mrb[0].mxu0
        %v9584 = vadd.f32 %v8800, %v9583
        %v9585 = vpop.f32.mrb[0].mxu0
        %9586 = vmatprep.mubr.bf16.mxu0 %v8957
        %9587 = vmatmul.mubr.bf16.gmra.mrb[0].mxu0 %v8948
        %v9588 = vpop.f32.mrb[0].mxu0
        %v9589 = vadd.f32 %v8800, %v9588
        %v9590 = vpop.f32.mrb[0].mxu0
        %v9591 = vpop.f32.mrb[0].mxu0
        %v9592 = vadd.f32 %v8800, %v9591
        %v9593 = vpop.f32.mrb[0].mxu0
        %9594 = vmatprep.mubr.bf16.mxu0 %v9028
        %9595 = vmatmul.mubr.bf16.gmra.mrb[0].mxu0 %v9019
        %v9596 = vpop.f32.mrb[0].mxu0
        %v9597 = vadd.f32 %v8800, %v9596
        %v9598 = vpop.f32.mrb[0].mxu0
        %v9599 = vpop.f32.mrb[0].mxu0
        %v9600 = vadd.f32 %v8800, %v9599
        %v9601 = vpop.f32.mrb[0].mxu0
        %9602 = vdwg.mxu0
        %9603 = vmatprep.subr.bf16.mxu0 0
        %9604 = vmatpush1.bf16.msra.mxu0 %v9418
        %9605 = vmatprep.subr.bf16.mxu0 0
        %9606 = vmatpush1.bf16.msra.mxu0 %v9419
        %9607 = vmatprep.subr.bf16.mxu0 0
        %9608 = vmatpush1.bf16.msra.mxu0 %v9420
        %9609 = vmatprep.subr.bf16.mxu0 0
        %9610 = vmatpush1.bf16.msra.mxu0 %v9421
        %9611 = vmatprep.subr.bf16.mxu0 0
        %9612 = vmatpush1.bf16.msra.mxu0 %v9422
        %9613 = vmatprep.subr.bf16.mxu0 0
        %9614 = vmatpush1.bf16.msra.mxu0 %v9423
        %9615 = vmatprep.subr.bf16.mxu0 0
        %9616 = vmatpush1.bf16.msra.mxu0 %v9424
        %9617 = vmatprep.subr.bf16.mxu0 0
        %9618 = vmatpush1.bf16.msra.mxu0 %v9425
        %9619 = vmatprep.subr.bf16.mxu0 0
        %9620 = vmatpush1.bf16.msra.mxu0 %v9426
        %9621 = vmatprep.subr.bf16.mxu0 0
        %9622 = vmatpush1.bf16.msra.mxu0 %v9427
        %9623 = vmatprep.subr.bf16.mxu0 0
        %9624 = vmatpush1.bf16.msra.mxu0 %v9428
        %9625 = vmatprep.subr.bf16.mxu0 0
        %9626 = vmatpush1.bf16.msra.mxu0 %v9429
        %9627 = vmatprep.subr.bf16.mxu0 0
        %9628 = vmatpush1.bf16.msra.mxu0 %v9430
        %9629 = vmatprep.subr.bf16.mxu0 0
        %9630 = vmatpush1.bf16.msra.mxu0 %v9431
        %9631 = vmatprep.subr.bf16.mxu0 0
        %9632 = vmatpush1.bf16.msra.mxu0 %v9432
        %9633 = vmatprep.subr.bf16.mxu0 0
        %9634 = vmatpush1.bf16.msra.mxu0 %v9433
        %9635 = vmatprep.mubr.bf16.mxu0 %v8864
        %9636 = vmatmul.mubr.bf16.gmra.mrb[0].mxu0 %v8847
        %v9637 = vpop.f32.mrb[0].mxu0
        %v9638 = vadd.f32 %v9581, %v9637
        %v9639 = vpop.f32.mrb[0].mxu0
        %v9640 = vpop.f32.mrb[0].mxu0
        %v9641 = vadd.f32 %v9584, %v9640
        %v9642 = vpop.f32.mrb[0].mxu0
        %9643 = vmatprep.mubr.bf16.mxu0 %v8975
        %9644 = vmatmul.mubr.bf16.gmra.mrb[0].mxu0 %v8966
        %v9645 = vpop.f32.mrb[0].mxu0
        %v9646 = vadd.f32 %v9589, %v9645
        %v9647 = vpop.f32.mrb[0].mxu0
        %v9648 = vpop.f32.mrb[0].mxu0
        %v9649 = vadd.f32 %v9592, %v9648
        %v9650 = vpop.f32.mrb[0].mxu0
        %9651 = vmatprep.mubr.bf16.mxu0 %v9046
        %9652 = vmatmul.mubr.bf16.gmra.mrb[0].mxu0 %v9037
        %v9653 = vpop.f32.mrb[0].mxu0
        %v9654 = vadd.f32 %v9597, %v9653
        %v9655 = vpop.f32.mrb[0].mxu0
        %v9656 = vpop.f32.mrb[0].mxu0
        %v9657 = vadd.f32 %v9600, %v9656
        %v9658 = vpop.f32.mrb[0].mxu0
        %9659 = vdwg.mxu0
        %9660 = vmatprep.subr.bf16.mxu0 0
        %9661 = vmatpush1.bf16.msra.mxu0 %v9434
        %9662 = vmatprep.subr.bf16.mxu0 0
        %9663 = vmatpush1.bf16.msra.mxu0 %v9435
        %9664 = vmatprep.subr.bf16.mxu0 0
        %9665 = vmatpush1.bf16.msra.mxu0 %v9436
        %9666 = vmatprep.subr.bf16.mxu0 0
        %9667 = vmatpush1.bf16.msra.mxu0 %v9437
        %9668 = vmatprep.subr.bf16.mxu0 0
        %9669 = vmatpush1.bf16.msra.mxu0 %v9438
        %9670 = vmatprep.subr.bf16.mxu0 0
        %9671 = vmatpush1.bf16.msra.mxu0 %v9439
        %9672 = vmatprep.subr.bf16.mxu0 0
        %9673 = vmatpush1.bf16.msra.mxu0 %v9440
        %9674 = vmatprep.subr.bf16.mxu0 0
        %9675 = vmatpush1.bf16.msra.mxu0 %v9441
        %9676 = vmatprep.subr.bf16.mxu0 0
        %9677 = vmatpush1.bf16.msra.mxu0 %v9442
        %9678 = vmatprep.subr.bf16.mxu0 0
        %9679 = vmatpush1.bf16.msra.mxu0 %v9443
        %9680 = vmatprep.subr.bf16.mxu0 0
        %9681 = vmatpush1.bf16.msra.mxu0 %v9444
        %9682 = vmatprep.subr.bf16.mxu0 0
        %9683 = vmatpush1.bf16.msra.mxu0 %v9445
        %9684 = vmatprep.subr.bf16.mxu0 0
        %9685 = vmatpush1.bf16.msra.mxu0 %v9446
        %9686 = vmatprep.subr.bf16.mxu0 0
        %9687 = vmatpush1.bf16.msra.mxu0 %v9447
        %9688 = vmatprep.subr.bf16.mxu0 0
        %9689 = vmatpush1.bf16.msra.mxu0 %v9448
        %9690 = vmatprep.subr.bf16.mxu0 0
        %9691 = vmatpush1.bf16.msra.mxu0 %v9449
        %9692 = vmatprep.mubr.bf16.mxu0 %v8898
        %9693 = vmatmul.mubr.bf16.gmra.mrb[0].mxu0 %v8881
        %v9694 = vpop.f32.mrb[0].mxu0
        %v9695 = vadd.f32 %v9638, %v9694
        %v9696 = vpop.f32.mrb[0].mxu0
        %v9697 = vpop.f32.mrb[0].mxu0
        %v9698 = vadd.f32 %v9641, %v9697
        %v9699 = vpop.f32.mrb[0].mxu0
        %9700 = vmatprep.mubr.bf16.mxu0 %v8993
        %9701 = vmatmul.mubr.bf16.gmra.mrb[0].mxu0 %v8984
        %v9702 = vpop.f32.mrb[0].mxu0
        %v9703 = vadd.f32 %v9646, %v9702
        %v9704 = vpop.f32.mrb[0].mxu0
        %v9705 = vpop.f32.mrb[0].mxu0
        %v9706 = vadd.f32 %v9649, %v9705
        %v9707 = vpop.f32.mrb[0].mxu0
        %9708 = vmatprep.mubr.bf16.mxu0 %v9064
        %9709 = vmatmul.mubr.bf16.gmra.mrb[0].mxu0 %v9055
        %v9710 = vpop.f32.mrb[0].mxu0
        %v9711 = vadd.f32 %v9654, %v9710
        %v9712 = vpop.f32.mrb[0].mxu0
        %v9713 = vpop.f32.mrb[0].mxu0
        %v9714 = vadd.f32 %v9657, %v9713
        %v9715 = vpop.f32.mrb[0].mxu0
        %9716 = vdwg.mxu0
        %9717 = vmatprep.subr.bf16.mxu0 0
        %9718 = vmatpush1.bf16.msra.mxu0 %v9450
        %9719 = vmatprep.subr.bf16.mxu0 0
        %9720 = vmatpush1.bf16.msra.mxu0 %v9451
        %9721 = vmatprep.subr.bf16.mxu0 0
        %9722 = vmatpush1.bf16.msra.mxu0 %v9452
        %9723 = vmatprep.subr.bf16.mxu0 0
        %9724 = vmatpush1.bf16.msra.mxu0 %v9453
        %9725 = vmatprep.subr.bf16.mxu0 0
        %9726 = vmatpush1.bf16.msra.mxu0 %v9454
        %9727 = vmatprep.subr.bf16.mxu0 0
        %9728 = vmatpush1.bf16.msra.mxu0 %v9455
        %9729 = vmatprep.subr.bf16.mxu0 0
        %9730 = vmatpush1.bf16.msra.mxu0 %v9456
        %9731 = vmatprep.subr.bf16.mxu0 0
        %9732 = vmatpush1.bf16.msra.mxu0 %v9457
        %9733 = vmatprep.subr.bf16.mxu0 0
        %9734 = vmatpush1.bf16.msra.mxu0 %v9458
        %9735 = vmatprep.subr.bf16.mxu0 0
        %9736 = vmatpush1.bf16.msra.mxu0 %v9459
        %9737 = vmatprep.subr.bf16.mxu0 0
        %9738 = vmatpush1.bf16.msra.mxu0 %v9460
        %9739 = vmatprep.subr.bf16.mxu0 0
        %9740 = vmatpush1.bf16.msra.mxu0 %v9461
        %9741 = vmatprep.subr.bf16.mxu0 0
        %9742 = vmatpush1.bf16.msra.mxu0 %v9462
        %9743 = vmatprep.subr.bf16.mxu0 0
        %9744 = vmatpush1.bf16.msra.mxu0 %v9463
        %9745 = vmatprep.subr.bf16.mxu0 0
        %9746 = vmatpush1.bf16.msra.mxu0 %v9464
        %9747 = vmatprep.subr.bf16.mxu0 0
        %9748 = vmatpush1.bf16.msra.mxu0 %v9465
        %9749 = vmatprep.mubr.bf16.mxu0 %v8927
        %9750 = vmatmul.mubr.bf16.gmra.mrb[0].mxu0 %v8910
        %v9751 = vpop.f32.mrb[0].mxu0
        %v9752 = vadd.f32 %v9695, %v9751
        %v9753 = vpop.f32.mrb[0].mxu0
        %v9754 = vpop.f32.mrb[0].mxu0
        %v9755 = vadd.f32 %v9698, %v9754
        %v9756 = vpop.f32.mrb[0].mxu0
        %9757 = vmatprep.mubr.bf16.mxu0 %v9006
        %9758 = vmatmul.mubr.bf16.gmra.mrb[0].mxu0 %v8997
        %v9759 = vpop.f32.mrb[0].mxu0
        %v9760 = vadd.f32 %v9703, %v9759
        %v9761 = vpop.f32.mrb[0].mxu0
        %v9762 = vpop.f32.mrb[0].mxu0
        %v9763 = vadd.f32 %v9706, %v9762
        %v9764 = vpop.f32.mrb[0].mxu0
        %9765 = vmatprep.mubr.bf16.mxu0 %v9077
        %9766 = vmatmul.mubr.bf16.gmra.mrb[0].mxu0 %v9068
        %v9767 = vpop.f32.mrb[0].mxu0
        %v9768 = vadd.f32 %v9711, %v9767
        %v9769 = vpop.f32.mrb[0].mxu0
        %v9770 = vpop.f32.mrb[0].mxu0
        %v9771 = vadd.f32 %v9714, %v9770
        %v9772 = vpop.f32.mrb[0].mxu0
        %9773 = vdwg.mxu0
        %9774 = vmatprep.subr.bf16.mxu0 0
        %9775 = vmatpush1.bf16.msra.mxu0 %v9466
        %9776 = vmatprep.subr.bf16.mxu0 0
        %9777 = vmatpush1.bf16.msra.mxu0 %v9467
        %9778 = vmatprep.subr.bf16.mxu0 0
        %9779 = vmatpush1.bf16.msra.mxu0 %v9468
        %9780 = vmatprep.subr.bf16.mxu0 0
        %9781 = vmatpush1.bf16.msra.mxu0 %v9469
        %9782 = vmatprep.subr.bf16.mxu0 0
        %9783 = vmatpush1.bf16.msra.mxu0 %v9470
        %9784 = vmatprep.subr.bf16.mxu0 0
        %9785 = vmatpush1.bf16.msra.mxu0 %v9471
        %9786 = vmatprep.subr.bf16.mxu0 0
        %9787 = vmatpush1.bf16.msra.mxu0 %v9472
        %9788 = vmatprep.subr.bf16.mxu0 0
        %9789 = vmatpush1.bf16.msra.mxu0 %v9473
        %9790 = vmatprep.subr.bf16.mxu0 0
        %9791 = vmatpush1.bf16.msra.mxu0 0
        %9792 = vmatprep.subr.bf16.mxu0 0
        %9793 = vmatpush1.bf16.msra.mxu0 0
        %9794 = vmatprep.subr.bf16.mxu0 0
        %9795 = vmatpush1.bf16.msra.mxu0 0
        %9796 = vmatprep.subr.bf16.mxu0 0
        %9797 = vmatpush1.bf16.msra.mxu0 0
        %9798 = vmatprep.subr.bf16.mxu0 0
        %9799 = vmatpush1.bf16.msra.mxu0 0
        %9800 = vmatprep.subr.bf16.mxu0 0
        %9801 = vmatpush1.bf16.msra.mxu0 0
        %9802 = vmatprep.subr.bf16.mxu0 0
        %9803 = vmatpush1.bf16.msra.mxu0 0
        %9804 = vmatprep.subr.bf16.mxu0 0
        %9805 = vmatpush1.bf16.msra.mxu0 0
        %9806 = vmatprep.mubr.bf16.mxu0 0
        %9807 = vmatmul.mubr.bf16.gmra.mrb[0].mxu0 %v8944
        %v9808 = vpop.f32.mrb[0].mxu0
        %v9809 = vadd.f32 %v9752, %v9808
        %v9810 = vpop.f32.mrb[0].mxu0
        %v9811 = vpop.f32.mrb[0].mxu0
        %v9812 = vadd.f32 %v9755, %v9811
        %v9813 = vpop.f32.mrb[0].mxu0
        %9814 = vmatprep.mubr.bf16.mxu0 0
        %9815 = vmatmul.mubr.bf16.gmra.mrb[0].mxu0 %v9015
        %v9816 = vpop.f32.mrb[0].mxu0
        %v9817 = vadd.f32 %v9760, %v9816
        %v9818 = vpop.f32.mrb[0].mxu0
        %v9819 = vpop.f32.mrb[0].mxu0
        %v9820 = vadd.f32 %v9763, %v9819
        %v9821 = vpop.f32.mrb[0].mxu0
        %9822 = vmatprep.mubr.bf16.mxu0 0
        %9823 = vmatmul.mubr.bf16.gmra.mrb[0].mxu0 %v9086
        %v9824 = vpop.f32.mrb[0].mxu0
        %v9825 = vadd.f32 %v9768, %v9824
        %v9826 = vpop.f32.mrb[0].mxu0
        %v9827 = vpop.f32.mrb[0].mxu0
        %v9828 = vadd.f32 %v9771, %v9827
        %v9829 = vpop.f32.mrb[0].mxu0
        %9830 = vdwg.mxu0
        %v9831 = vpack.c.bf16 %v9812, %v9809
        %v9832 = vpack.c.bf16 %v9820, %v9817
        %v9833 = vpack.c.bf16 %v9828, %v9825
        %v9837 = vunpack.c.l.b16 %v9831
        %v9838 = vunpack.c.h.b16 %v9831
        %v9839 = vunpack.c.l.b16 %v9832
        %v9840 = vunpack.c.h.b16 %v9832
        %v9841 = vunpack.c.l.b16 %v9833
        %v9842 = vunpack.c.h.b16 %v9833
        %v9843 = vpack.c.b16 %v9837, %v9837
        %v9844 = vpack.c.b16 %v9838, %v9838
        %v9845 = vpack.c.b16 %v9839, %v9839
        %v9846 = vpack.c.b16 %v9840, %v9840
        %v9847 = vpack.c.b16 %v9841, %v9841
        %v9848 = vpack.c.b16 %v9842, %v9842
        %vm9855 = vcmask 388096
        %9856 = vst.msk [vmem:[%s377] sm:$0xf] %vm9855, %v9843
        %9857 = vst.msk [vmem:[%s377 + $0x4] sm:$0xf] %vm9855, %v9844
        %9858 = vst.msk [vmem:[%s377 + $0x8] sm:$0xf] %vm9855, %v9845
        %9859 = vst.msk [vmem:[%s377 + $0xc] sm:$0xf] %vm9855, %v9846
        %9860 = vst.msk [vmem:[%s377 + $0x10] sm:$0xf] %vm9855, %v9847
        %9861 = vst.msk [vmem:[%s377 + $0x14] sm:$0xf] %vm9855, %v9848
        %s9862 = sand.u32 %s187, 1
        %s9863 = scalar_lea.sflag [#allocation5], %s9862
        %s9864 = sand.u32 %s187, 1
        %s9865 = smul.addr %s9864, 24
        %s9866 = scalar_lea.vmem [#allocation15], %s9865
        // Predicated region
        $region77: #{ifblock_forward.5} parent=47 // pred_check
          %p9867 = pneg %p197
        $region78: #{ifblock_forward.5} parent=47 // pred_check_branch
          %9869 = sbr.rel (%p9867) target = $region80
        $region79: #{ifblock_forward.5} parent=47 // pred_region
          %s9871 = ssub.s32 384, 384
          %9872 = vsyncadd %s9863, %s9871
          %s9873 = smul.addr %s27, 6
          %s9874 = smul.addr %s9873, 64
          %s9875 = scalar_lea.hbm %s7, %s9874
          %s9876 = sshll.u32 %s9866, 4
          %s9877 = int_to_ptr.vmem [resolvable:$true] %s9876
          %9882 = dma.vmem_to_hbm [thread:$0]  %s9877, 384, %s9875, %s9863, 64, 64, 4
        $region80: #{ifblock_forward.5} parent=47 // pred_fallthru
          _
      $region48: #{ifblock_forward.5} parent=5 // pred_fallthru
        _
      %p9883 = scmp.le.s32.totalorder 2, %s22
      // Predicated region
      $region81: #{ifblock_forward.5} parent=5 // pred_check
        %p9884 = pneg %p9883
      $region82: #{ifblock_forward.5} parent=5 // pred_check_branch
        %9886 = sbr.rel (%p9884) target = $region84
      $region83: #{ifblock_forward.5} parent=5 // pred_region
        %s9887 = ssub.s32 %s22, 2
        // Predicated region
        $region85: #{ifblock_forward.5} parent=83 // pred_check
          %p9888 = pneg %p203
        $region86: #{ifblock_forward.5} parent=83 // pred_check_branch
          %9890 = sbr.rel (%p9888) target = $region88
        $region87: #{ifblock_forward.5} parent=83 // pred_region
          %s9891 = sand.u32 %s188, 1
          %s9892 = scalar_lea.sflag [#allocation5], %s9891
          %s9893 = sand.u32 %s188, 1
          %s9894 = smul.addr %s9893, 24
          %s9895 = scalar_lea.vmem [#allocation15], %s9894
          %9896 = dma.done %s9892, 384
        $region88: #{ifblock_forward.5} parent=83 // pred_fallthru
          _
      $region84: #{ifblock_forward.5} parent=5 // pred_fallthru
        _
    $region6: #{ifblock_forward.5} parent=1 // loop_footer
      %s26 = sadd.s32 1, %s22
    $region7: #{ifblock_forward.5} parent=1 // loop_footer_branch
      %21 = sbr.rel target = $region3
    $region8: #{ifblock_forward.5} parent=1 // loop_exit
      _
    %9897 = vsyncpa [#allocation4], 1
    %s9898 = scalar_lea.sflag [#allocation4], 1
    %9899 = vsyncpa %s9898, 1
    %9900 = vsyncpa [#allocation7], 1
    %9901 = vsyncpa [#allocation10], 1
    %9902 = vsyncpa [#allocation13], 1
    %9903 = vsyncpa [#allocation5], 1
    %s9904 = scalar_lea.sflag [#allocation5], 1
    %9905 = vsyncpa %s9904, 1

</llo_original>
